<compile_context>
chip_gen: v7x
topology: tpu7x:2x2x1
jax: 0.10.0
libtpu: 0.0.40
codegen_flags: <defaults>
</compile_context>

<pallas_src>
import functools
import math

import jax
import jax.numpy as jnp
from jax.experimental import pallas as pl
from jax.experimental.pallas import tpu as pltpu


def _transformer_stack_kernel(
    x_ref,        # [B, T, D]      f32  (input activations; constant block)
    wqkv_ref,     # [1, D, 3*HK]   bf16 (q-slice pre-scaled by 1/sqrt(K))
    wl_ref,       # [1, HK, D]     bf16
    w1_ref,       # [1, D, F]      bf16
    w2_ref,       # [1, F, D]      bf16
    bias_ref,     # [1, 8, BW]     f32  rows: bq*inv, bk, bv, bl, b1, b2, 0, 0
    out_ref,      # [B, T, D]      f32  (resident across the layer axis)
    *, num_heads: int, key_size: int,
):
  H, K = num_heads, key_size
  HK = H * K
  B, T, D = x_ref.shape
  F = w1_ref.shape[2]

  # First layer: seed the resident activation (residual-stream) buffer.
  @pl.when(pl.program_id(0) == 0)
  def _():
    out_ref[...] = x_ref[...]

  biases = bias_ref[0]                       # [8, BW] f32
  bq = biases[0:1, :HK]                      # already scaled by 1/sqrt(K)
  bk = biases[1:2, :HK]
  bv = biases[2:3, :HK]
  bl = biases[3:4, :D]
  b1 = biases[4:5, :F]
  b2 = biases[5:6, :D]

  x_flat = out_ref[...].reshape(B * T, D)    # f32 residual stream
  xb = x_flat.astype(jnp.bfloat16)

  # ---------------- attention block ----------------
  # Fused QKV projection: one [B*T, D] x [D, 3*HK] matmul.
  qkv = jnp.dot(xb, wqkv_ref[0], preferred_element_type=jnp.float32)
  qkv3 = qkv.reshape(B, T, 3 * HK)

  q3 = (qkv3[:, :, 0 * HK:1 * HK] + bq).astype(jnp.bfloat16)   # [B, T, HK]
  k3 = (qkv3[:, :, 1 * HK:2 * HK] + bk).astype(jnp.bfloat16)
  v3 = (qkv3[:, :, 2 * HK:3 * HK] + bv).astype(jnp.bfloat16)

  wl = wl_ref[0]                              # [HK, D] bf16

  # Per-head attention (H is small & static).  The output projection is
  # decomposed per head, so no head-merge scratch / concatenate is needed.
  # TODO(synk): on v6e/v7x the exp could run in bf16 for ~2x EUP throughput;
  # kept in f32 here so the same kernel stays accurate/portable on v5e.
  attn_flat = None                            # accumulates [B*T, D] f32
  for h in range(H):
    sl = slice(h * K, (h + 1) * K)
    q_h = q3[:, :, sl]                        # [B, T, K]
    k_h = k3[:, :, sl]
    v_h = v3[:, :, sl]

    logits = jnp.einsum("btk,bsk->bts", q_h, k_h,
                        preferred_element_type=jnp.float32)     # [B, T, T]
    m = jnp.max(logits, axis=-1, keepdims=True)
    p = jnp.exp(logits - m)
    denom = jnp.sum(p, axis=-1, keepdims=True)
    w = (p * pl.reciprocal(denom, approx=True)).astype(jnp.bfloat16)

    pv = jnp.einsum("bts,bsk->btk", w, v_h,
                    preferred_element_type=jnp.float32)         # [B, T, K]
    contrib = jnp.dot(pv.reshape(B * T, K).astype(jnp.bfloat16), wl[sl, :],
                      preferred_element_type=jnp.float32)       # [B*T, D]
    attn_flat = contrib if attn_flat is None else attn_flat + contrib

  x2_flat = x_flat + attn_flat + bl           # residual 1 (f32)

  # ---------------- MLP block ----------------
  # TODO(synk): model_config.activation_function is unspecified; ReLU assumed.
  h1 = jnp.dot(x2_flat.astype(jnp.bfloat16), w1_ref[0],
               preferred_element_type=jnp.float32) + b1
  h1 = jnp.maximum(h1, 0.0)
  y = jnp.dot(h1.astype(jnp.bfloat16), w2_ref[0],
              preferred_element_type=jnp.float32) + b2
  out_ref[...] = (x2_flat + y).reshape(B, T, D)   # residual 2 (f32)


def transformer_module(x, layer_params, *, num_heads, key_size):
  """Full Transformer_Module forward.  x: [B, T, D] float32."""
  B, T, D = x.shape
  HK = num_heads * key_size
  F = layer_params[0]["w1"].shape[1]
  L = len(layer_params)
  inv_sqrt_k = 1.0 / math.sqrt(float(key_size))

  # Packed-bias lane width (lane-dense).
  BW = max(HK, D, F)
  BW = ((BW + 127) // 128) * 128

  wqkv_l, wl_l, w1_l, w2_l, bias_l = [], [], [], [], []
  for p in layer_params:
    wq = jnp.asarray(p["wq"], jnp.float32) * inv_sqrt_k   # fold logits scale
    wk = jnp.asarray(p["wk"], jnp.float32)
    wv = jnp.asarray(p["wv"], jnp.float32)
    wqkv_l.append(jnp.concatenate([wq, wk, wv], axis=1))   # [D, 3*HK]
    wl_l.append(jnp.asarray(p["wl"], jnp.float32))
    w1_l.append(jnp.asarray(p["w1"], jnp.float32))
    w2_l.append(jnp.asarray(p["w2"], jnp.float32))

    b = jnp.zeros((8, BW), jnp.float32)
    b = b.at[0, :HK].set(jnp.asarray(p["bq"], jnp.float32).reshape(-1) * inv_sqrt_k)
    b = b.at[1, :HK].set(jnp.asarray(p["bk"], jnp.float32).reshape(-1))
    b = b.at[2, :HK].set(jnp.asarray(p["bv"], jnp.float32).reshape(-1))
    b = b.at[3, :D].set(jnp.asarray(p["bl"], jnp.float32).reshape(-1))
    b = b.at[4, :F].set(jnp.asarray(p["b1"], jnp.float32).reshape(-1))
    b = b.at[5, :D].set(jnp.asarray(p["b2"], jnp.float32).reshape(-1))
    bias_l.append(b)

  # Weights in bf16 (MXU operands, half the DMA bytes); biases stay f32.
  wqkv = jnp.stack(wqkv_l).astype(jnp.bfloat16)   # [L, D, 3*HK]
  wl = jnp.stack(wl_l).astype(jnp.bfloat16)       # [L, HK, D]
  w1 = jnp.stack(w1_l).astype(jnp.bfloat16)       # [L, D, F]
  w2 = jnp.stack(w2_l).astype(jnp.bfloat16)       # [L, F, D]
  biases = jnp.stack(bias_l)                      # [L, 8, BW] f32

  kernel = functools.partial(_transformer_stack_kernel,
                             num_heads=num_heads, key_size=key_size)

  act_spec = pl.BlockSpec((B, T, D), lambda l: (0, 0, 0))

  return pl.pallas_call(
      kernel,
      out_shape=jax.ShapeDtypeStruct((B, T, D), jnp.float32),
      grid_spec=pltpu.PrefetchScalarGridSpec(
          num_scalar_prefetch=0,
          grid=(L,),
          in_specs=[
              act_spec,
              pl.BlockSpec((1, D, 3 * HK), lambda l: (l, 0, 0)),   # fused QKV
              pl.BlockSpec((1, HK, D), lambda l: (l, 0, 0)),       # attn linear
              pl.BlockSpec((1, D, F), lambda l: (l, 0, 0)),        # mlp linear_1
              pl.BlockSpec((1, F, D), lambda l: (l, 0, 0)),        # mlp linear_2
              pl.BlockSpec((1, 8, BW), lambda l: (l, 0, 0)),       # packed biases
          ],
          out_specs=act_spec,
      ),
      compiler_params=pltpu.CompilerParams(
          dimension_semantics=("arbitrary",),
          vmem_limit_bytes=32 * 1024 * 1024),
  )(x, wqkv, wl, w1, w2, biases)


# ------------- pure-JAX reference (mirrors the PyTorch forward) -------------
def _ref_layer(x, p, num_heads, key_size):
  B, T, D = x.shape
  q = (x @ p["wq"] + p["bq"][0]).reshape(B, T, num_heads, key_size)
  k = (x @ p["wk"] + p["bk"][0]).reshape(B, T, num_heads, key_size)
  v = (x @ p["wv"] + p["bv"][0]).reshape(B, T, num_heads, key_size)
  logits = jnp.einsum("bthd,bThd->bhtT", q, k) / jnp.sqrt(jnp.float32(key_size))
  w = jax.nn.softmax(logits, axis=-1)
  attn = jnp.einsum("bhtT,bThd->bthd", w, v).reshape(B, T, -1)
  x2 = x + attn @ p["wl"] + p["bl"][0]
  y = jnp.maximum(x2 @ p["w1"] + p["b1"][0], 0.0) @ p["w2"] + p["b2"][0]
  return x2 + y


if __name__ == "__main__":
  # Small but lane-dense shapes: D = num_heads * key_size = 128, F = 256.
  B, T = 2, 128
  num_heads, key_size = 4, 32
  D = num_heads * key_size        # 128
  F = 256                         # MLP hidden width
  num_layers = 2

  key = jax.random.PRNGKey(0)
  keys = jax.random.split(key, 1 + 12 * num_layers)
  x = jax.random.normal(keys[0], (B, T, D), dtype=jnp.float32)

  def nrm(k, shape, scale=0.1):
    return (scale * jax.random.normal(k, shape)).astype(jnp.float32)

  layer_params = []
  ki = 1
  for _ in range(num_layers):
    p = {
        "wq": nrm(keys[ki + 0], (D, D)),  "bq": nrm(keys[ki + 1], (1, D)),
        "wk": nrm(keys[ki + 2], (D, D)),  "bk": nrm(keys[ki + 3], (1, D)),
        "wv": nrm(keys[ki + 4], (D, D)),  "bv": nrm(keys[ki + 5], (1, D)),
        "wl": nrm(keys[ki + 6], (D, D)),  "bl": nrm(keys[ki + 7], (1, D)),
        "w1": nrm(keys[ki + 8], (D, F)),  "b1": nrm(keys[ki + 9], (1, F)),
        "w2": nrm(keys[ki + 10], (F, D)), "b2": nrm(keys[ki + 11], (1, D)),
    }
    layer_params.append(p)
    ki += 12

  out = transformer_module(x, layer_params, num_heads=num_heads,
                           key_size=key_size)
  out = jax.block_until_ready(out)

  # Correctness check against a pure-f32 JAX reference of the PyTorch forward
  # (bf16 matmul operands in the kernel => scale-normalized error tolerance).
  ref = x
  for p in layer_params:
    ref = _ref_layer(ref, p, num_heads, key_size)
  ref = jax.block_until_ready(ref)

  err = float(jnp.max(jnp.abs(out - ref)))
  scale = float(jnp.max(jnp.abs(ref))) + 1e-6
  assert err / scale < 2e-2, f"mismatch vs reference: max_err={err}, scale={scale}"

  print("KERNEL_OK")
</pallas_src>

<mosaic_0001>
module attributes {stable_mosaic.version = 11 : i64} {
  func.func @_transformer_stack_kernel(%arg0: i32, %arg1: memref<2x128x128xf32, #tpu.memory_space<vmem>>, %arg2: memref<1x128x384xbf16, #tpu.memory_space<vmem>>, %arg3: memref<1x128x128xbf16, #tpu.memory_space<vmem>>, %arg4: memref<1x128x256xbf16, #tpu.memory_space<vmem>>, %arg5: memref<1x256x128xbf16, #tpu.memory_space<vmem>>, %arg6: memref<1x8x256xf32, #tpu.memory_space<vmem>>, %arg7: memref<2x128x128xf32, #tpu.memory_space<vmem>>) attributes {dimension_semantics = [#tpu.dimension_semantics<arbitrary>], iteration_bounds = array<i64: 2>, scalar_prefetch = 0 : i64, scratch_operands = 0 : i64, tpu.core_type = #tpu.core_type<tc>, window_params = [{pipeline_mode = #tpu.pipeline_mode<synchronous>, transform_indices = @transform_0, window_bounds = array<i64: 2, 128, 128>}, {transform_indices = @transform_1, window_bounds = array<i64: 1, 128, 384>}, {transform_indices = @transform_2, window_bounds = array<i64: 1, 128, 128>}, {transform_indices = @transform_3, window_bounds = array<i64: 1, 128, 256>}, {transform_indices = @transform_4, window_bounds = array<i64: 1, 256, 128>}, {transform_indices = @transform_5, window_bounds = array<i64: 1, 8, 256>}, {pipeline_mode = #tpu.pipeline_mode<synchronous>, transform_indices = @transform_6, window_bounds = array<i64: 2, 128, 128>}]} {
    %c0_i32 = arith.constant 0 : i32
    %0 = arith.cmpi eq, %arg0, %c0_i32 : i32
    %1 = arith.extui %0 : i1 to i32
    %c0_i32_0 = arith.constant 0 : i32
    %2 = arith.cmpi ne, %1, %c0_i32_0 : i32
    scf.if %2 {
      %c0_44 = arith.constant 0 : index
      %c0_45 = arith.constant 0 : index
      %c0_46 = arith.constant 0 : index
      %138 = vector.load %arg1[%c0_44, %c0_45, %c0_46] : memref<2x128x128xf32, #tpu.memory_space<vmem>>, vector<2x128x128xf32>
      %c0_47 = arith.constant 0 : index
      %c0_48 = arith.constant 0 : index
      %c0_49 = arith.constant 0 : index
      %139 = vector.load %arg7[%c0_47, %c0_48, %c0_49] : memref<2x128x128xf32, #tpu.memory_space<vmem>>, vector<2x128x128xf32>
      tpu.vector_store %arg7[%c0_47, %c0_48, %c0_49], %138 {strides = array<i32>} : memref<2x128x128xf32, #tpu.memory_space<vmem>>, vector<2x128x128xf32>,
    } else {
    }
    %c0 = arith.constant 0 : index
    %c0_1 = arith.constant 0 : index
    %c0_2 = arith.constant 0 : index
    %3 = vector.load %arg6[%c0, %c0_1, %c0_2] : memref<1x8x256xf32, #tpu.memory_space<vmem>>, vector<1x8x256xf32>
    %4 = vector.shape_cast %3 : vector<1x8x256xf32> to vector<8x256xf32>
    %5 = vector.extract_strided_slice %4 {offsets = [0, 0], sizes = [1, 128], strides = [1, 1]} : vector<8x256xf32> to vector<1x128xf32>
    %6 = vector.extract_strided_slice %4 {offsets = [1, 0], sizes = [1, 128], strides = [1, 1]} : vector<8x256xf32> to vector<1x128xf32>
    %7 = vector.extract_strided_slice %4 {offsets = [2, 0], sizes = [1, 128], strides = [1, 1]} : vector<8x256xf32> to vector<1x128xf32>
    %8 = vector.extract_strided_slice %4 {offsets = [3, 0], sizes = [1, 128], strides = [1, 1]} : vector<8x256xf32> to vector<1x128xf32>
    %9 = vector.extract_strided_slice %4 {offsets = [4, 0], sizes = [1, 256], strides = [1, 1]} : vector<8x256xf32> to vector<1x256xf32>
    %10 = vector.extract_strided_slice %4 {offsets = [5, 0], sizes = [1, 128], strides = [1, 1]} : vector<8x256xf32> to vector<1x128xf32>
    %c0_3 = arith.constant 0 : index
    %c0_4 = arith.constant 0 : index
    %c0_5 = arith.constant 0 : index
    %11 = vector.load %arg7[%c0_3, %c0_4, %c0_5] : memref<2x128x128xf32, #tpu.memory_space<vmem>>, vector<2x128x128xf32>
    %12 = vector.shape_cast %11 : vector<2x128x128xf32> to vector<256x128xf32>
    %13 = arith.truncf %12 : vector<256x128xf32> to vector<256x128xbf16>
    %c0_6 = arith.constant 0 : index
    %c0_7 = arith.constant 0 : index
    %c0_8 = arith.constant 0 : index
    %14 = vector.load %arg2[%c0_6, %c0_7, %c0_8] : memref<1x128x384xbf16, #tpu.memory_space<vmem>>, vector<1x128x384xbf16>
    %15 = vector.shape_cast %14 : vector<1x128x384xbf16> to vector<128x384xbf16>
    %cst = arith.constant dense<0.000000e+00> : vector<256x384xf32>
    %16 = tpu.matmul %13, %15, %cst {dimension_numbers = #tpu.dot_dimension_numbers<[1], [0], [0], [1], [0, 0, 1, 1], [], []>} : vector<256x128xbf16>, vector<128x384xbf16>, vector<256x384xf32> -> vector<256x384xf32>
    %17 = vector.shape_cast %16 : vector<256x384xf32> to vector<2x128x384xf32>
    %18 = vector.extract_strided_slice %17 {offsets = [0, 0, 0], sizes = [2, 128, 128], strides = [1, 1, 1]} : vector<2x128x384xf32> to vector<2x128x128xf32>
    %19 = vector.shape_cast %5 : vector<1x128xf32> to vector<1x1x128xf32>
    %20 = vector.broadcast %19 : vector<1x1x128xf32> to vector<2x128x128xf32>
    %21 = arith.addf %18, %20 : vector<2x128x128xf32>
    %22 = arith.truncf %21 : vector<2x128x128xf32> to vector<2x128x128xbf16>
    %23 = vector.extract_strided_slice %17 {offsets = [0, 0, 128], sizes = [2, 128, 128], strides = [1, 1, 1]} : vector<2x128x384xf32> to vector<2x128x128xf32>
    %24 = vector.shape_cast %6 : vector<1x128xf32> to vector<1x1x128xf32>
    %25 = vector.broadcast %24 : vector<1x1x128xf32> to vector<2x128x128xf32>
    %26 = arith.addf %23, %25 : vector<2x128x128xf32>
    %27 = arith.truncf %26 : vector<2x128x128xf32> to vector<2x128x128xbf16>
    %28 = vector.extract_strided_slice %17 {offsets = [0, 0, 256], sizes = [2, 128, 128], strides = [1, 1, 1]} : vector<2x128x384xf32> to vector<2x128x128xf32>
    %29 = vector.shape_cast %7 : vector<1x128xf32> to vector<1x1x128xf32>
    %30 = vector.broadcast %29 : vector<1x1x128xf32> to vector<2x128x128xf32>
    %31 = arith.addf %28, %30 : vector<2x128x128xf32>
    %32 = arith.truncf %31 : vector<2x128x128xf32> to vector<2x128x128xbf16>
    %c0_9 = arith.constant 0 : index
    %c0_10 = arith.constant 0 : index
    %c0_11 = arith.constant 0 : index
    %33 = vector.load %arg3[%c0_9, %c0_10, %c0_11] : memref<1x128x128xbf16, #tpu.memory_space<vmem>>, vector<1x128x128xbf16>
    %34 = vector.shape_cast %33 : vector<1x128x128xbf16> to vector<128x128xbf16>
    %35 = vector.extract_strided_slice %22 {offsets = [0, 0, 0], sizes = [2, 128, 32], strides = [1, 1, 1]} : vector<2x128x128xbf16> to vector<2x128x32xbf16>
    %36 = vector.extract_strided_slice %27 {offsets = [0, 0, 0], sizes = [2, 128, 32], strides = [1, 1, 1]} : vector<2x128x128xbf16> to vector<2x128x32xbf16>
    %37 = vector.extract_strided_slice %32 {offsets = [0, 0, 0], sizes = [2, 128, 32], strides = [1, 1, 1]} : vector<2x128x128xbf16> to vector<2x128x32xbf16>
    "tpu.trace_start"() <{level = 10 : i32, message = "btk,bsk->bts"}> : () -> ()
    %cst_12 = arith.constant dense<0.000000e+00> : vector<2x128x128xf32>
    %38 = tpu.matmul %35, %36, %cst_12 {dimension_numbers = #tpu.dot_dimension_numbers<[2], [2], [1], [1], [0, 0, 0, 1, 1, 1], [0], [0]>} : vector<2x128x32xbf16>, vector<2x128x32xbf16>, vector<2x128x128xf32> -> vector<2x128x128xf32>
    "tpu.trace_stop"() : () -> ()
    %cst_13 = arith.constant dense<0xFF800000> : vector<2x128xf32>
    %39 = vector.multi_reduction <maximumf>, %38, %cst_13 [2] : vector<2x128x128xf32> to vector<2x128xf32>
    %40 = vector.shape_cast %39 : vector<2x128xf32> to vector<2x128x1xf32>
    %41 = vector.broadcast %40 : vector<2x128x1xf32> to vector<2x128x128xf32>
    %42 = arith.subf %38, %41 : vector<2x128x128xf32>
    %43 = math.exp %42 : vector<2x128x128xf32>
    %cst_14 = arith.constant dense<0.000000e+00> : vector<2x128xf32>
    %44 = vector.multi_reduction <add>, %43, %cst_14 [2] : vector<2x128x128xf32> to vector<2x128xf32>
    %45 = vector.shape_cast %44 : vector<2x128xf32> to vector<2x128x1xf32>
    %46 = tpu.reciprocal %45 {approx = true} : vector<2x128x1xf32> -> vector<2x128x1xf32>
    %47 = vector.broadcast %46 : vector<2x128x1xf32> to vector<2x128x128xf32>
    %48 = arith.mulf %43, %47 : vector<2x128x128xf32>
    %49 = arith.truncf %48 : vector<2x128x128xf32> to vector<2x128x128xbf16>
    "tpu.trace_start"() <{level = 10 : i32, message = "bts,bsk->btk"}> : () -> ()
    %cst_15 = arith.constant dense<0.000000e+00> : vector<2x128x32xf32>
    %50 = tpu.matmul %49, %37, %cst_15 {dimension_numbers = #tpu.dot_dimension_numbers<[2], [1], [1], [2], [0, 0, 0, 1, 1, 2], [0], [0]>} : vector<2x128x128xbf16>, vector<2x128x32xbf16>, vector<2x128x32xf32> -> vector<2x128x32xf32>
    "tpu.trace_stop"() : () -> ()
    %51 = vector.shape_cast %50 : vector<2x128x32xf32> to vector<256x32xf32>
    %52 = arith.truncf %51 : vector<256x32xf32> to vector<256x32xbf16>
    %53 = vector.extract_strided_slice %34 {offsets = [0, 0], sizes = [32, 128], strides = [1, 1]} : vector<128x128xbf16> to vector<32x128xbf16>
    %cst_16 = arith.constant dense<0.000000e+00> : vector<256x128xf32>
    %54 = tpu.matmul %52, %53, %cst_16 {dimension_numbers = #tpu.dot_dimension_numbers<[1], [0], [0], [1], [0, 0, 1, 1], [], []>} : vector<256x32xbf16>, vector<32x128xbf16>, vector<256x128xf32> -> vector<256x128xf32>
    %55 = vector.extract_strided_slice %22 {offsets = [0, 0, 32], sizes = [2, 128, 32], strides = [1, 1, 1]} : vector<2x128x128xbf16> to vector<2x128x32xbf16>
    %56 = vector.extract_strided_slice %27 {offsets = [0, 0, 32], sizes = [2, 128, 32], strides = [1, 1, 1]} : vector<2x128x128xbf16> to vector<2x128x32xbf16>
    %57 = vector.extract_strided_slice %32 {offsets = [0, 0, 32], sizes = [2, 128, 32], strides = [1, 1, 1]} : vector<2x128x128xbf16> to vector<2x128x32xbf16>
    "tpu.trace_start"() <{level = 10 : i32, message = "btk,bsk->bts"}> : () -> ()
    %cst_17 = arith.constant dense<0.000000e+00> : vector<2x128x128xf32>
    %58 = tpu.matmul %55, %56, %cst_17 {dimension_numbers = #tpu.dot_dimension_numbers<[2], [2], [1], [1], [0, 0, 0, 1, 1, 1], [0], [0]>} : vector<2x128x32xbf16>, vector<2x128x32xbf16>, vector<2x128x128xf32> -> vector<2x128x128xf32>
    "tpu.trace_stop"() : () -> ()
    %cst_18 = arith.constant dense<0xFF800000> : vector<2x128xf32>
    %59 = vector.multi_reduction <maximumf>, %58, %cst_18 [2] : vector<2x128x128xf32> to vector<2x128xf32>
    %60 = vector.shape_cast %59 : vector<2x128xf32> to vector<2x128x1xf32>
    %61 = vector.broadcast %60 : vector<2x128x1xf32> to vector<2x128x128xf32>
    %62 = arith.subf %58, %61 : vector<2x128x128xf32>
    %63 = math.exp %62 : vector<2x128x128xf32>
    %cst_19 = arith.constant dense<0.000000e+00> : vector<2x128xf32>
    %64 = vector.multi_reduction <add>, %63, %cst_19 [2] : vector<2x128x128xf32> to vector<2x128xf32>
    %65 = vector.shape_cast %64 : vector<2x128xf32> to vector<2x128x1xf32>
    %66 = tpu.reciprocal %65 {approx = true} : vector<2x128x1xf32> -> vector<2x128x1xf32>
    %67 = vector.broadcast %66 : vector<2x128x1xf32> to vector<2x128x128xf32>
    %68 = arith.mulf %63, %67 : vector<2x128x128xf32>
    %69 = arith.truncf %68 : vector<2x128x128xf32> to vector<2x128x128xbf16>
    "tpu.trace_start"() <{level = 10 : i32, message = "bts,bsk->btk"}> : () -> ()
    %cst_20 = arith.constant dense<0.000000e+00> : vector<2x128x32xf32>
    %70 = tpu.matmul %69, %57, %cst_20 {dimension_numbers = #tpu.dot_dimension_numbers<[2], [1], [1], [2], [0, 0, 0, 1, 1, 2], [0], [0]>} : vector<2x128x128xbf16>, vector<2x128x32xbf16>, vector<2x128x32xf32> -> vector<2x128x32xf32>
    "tpu.trace_stop"() : () -> ()
    %71 = vector.shape_cast %70 : vector<2x128x32xf32> to vector<256x32xf32>
    %72 = arith.truncf %71 : vector<256x32xf32> to vector<256x32xbf16>
    %73 = vector.extract_strided_slice %34 {offsets = [32, 0], sizes = [32, 128], strides = [1, 1]} : vector<128x128xbf16> to vector<32x128xbf16>
    %cst_21 = arith.constant dense<0.000000e+00> : vector<256x128xf32>
    %74 = tpu.matmul %72, %73, %cst_21 {dimension_numbers = #tpu.dot_dimension_numbers<[1], [0], [0], [1], [0, 0, 1, 1], [], []>} : vector<256x32xbf16>, vector<32x128xbf16>, vector<256x128xf32> -> vector<256x128xf32>
    %75 = arith.addf %54, %74 : vector<256x128xf32>
    %76 = vector.extract_strided_slice %22 {offsets = [0, 0, 64], sizes = [2, 128, 32], strides = [1, 1, 1]} : vector<2x128x128xbf16> to vector<2x128x32xbf16>
    %77 = vector.extract_strided_slice %27 {offsets = [0, 0, 64], sizes = [2, 128, 32], strides = [1, 1, 1]} : vector<2x128x128xbf16> to vector<2x128x32xbf16>
    %78 = vector.extract_strided_slice %32 {offsets = [0, 0, 64], sizes = [2, 128, 32], strides = [1, 1, 1]} : vector<2x128x128xbf16> to vector<2x128x32xbf16>
    "tpu.trace_start"() <{level = 10 : i32, message = "btk,bsk->bts"}> : () -> ()
    %cst_22 = arith.constant dense<0.000000e+00> : vector<2x128x128xf32>
    %79 = tpu.matmul %76, %77, %cst_22 {dimension_numbers = #tpu.dot_dimension_numbers<[2], [2], [1], [1], [0, 0, 0, 1, 1, 1], [0], [0]>} : vector<2x128x32xbf16>, vector<2x128x32xbf16>, vector<2x128x128xf32> -> vector<2x128x128xf32>
    "tpu.trace_stop"() : () -> ()
    %cst_23 = arith.constant dense<0xFF800000> : vector<2x128xf32>
    %80 = vector.multi_reduction <maximumf>, %79, %cst_23 [2] : vector<2x128x128xf32> to vector<2x128xf32>
    %81 = vector.shape_cast %80 : vector<2x128xf32> to vector<2x128x1xf32>
    %82 = vector.broadcast %81 : vector<2x128x1xf32> to vector<2x128x128xf32>
    %83 = arith.subf %79, %82 : vector<2x128x128xf32>
    %84 = math.exp %83 : vector<2x128x128xf32>
    %cst_24 = arith.constant dense<0.000000e+00> : vector<2x128xf32>
    %85 = vector.multi_reduction <add>, %84, %cst_24 [2] : vector<2x128x128xf32> to vector<2x128xf32>
    %86 = vector.shape_cast %85 : vector<2x128xf32> to vector<2x128x1xf32>
    %87 = tpu.reciprocal %86 {approx = true} : vector<2x128x1xf32> -> vector<2x128x1xf32>
    %88 = vector.broadcast %87 : vector<2x128x1xf32> to vector<2x128x128xf32>
    %89 = arith.mulf %84, %88 : vector<2x128x128xf32>
    %90 = arith.truncf %89 : vector<2x128x128xf32> to vector<2x128x128xbf16>
    "tpu.trace_start"() <{level = 10 : i32, message = "bts,bsk->btk"}> : () -> ()
    %cst_25 = arith.constant dense<0.000000e+00> : vector<2x128x32xf32>
    %91 = tpu.matmul %90, %78, %cst_25 {dimension_numbers = #tpu.dot_dimension_numbers<[2], [1], [1], [2], [0, 0, 0, 1, 1, 2], [0], [0]>} : vector<2x128x128xbf16>, vector<2x128x32xbf16>, vector<2x128x32xf32> -> vector<2x128x32xf32>
    "tpu.trace_stop"() : () -> ()
    %92 = vector.shape_cast %91 : vector<2x128x32xf32> to vector<256x32xf32>
    %93 = arith.truncf %92 : vector<256x32xf32> to vector<256x32xbf16>
    %94 = vector.extract_strided_slice %34 {offsets = [64, 0], sizes = [32, 128], strides = [1, 1]} : vector<128x128xbf16> to vector<32x128xbf16>
    %cst_26 = arith.constant dense<0.000000e+00> : vector<256x128xf32>
    %95 = tpu.matmul %93, %94, %cst_26 {dimension_numbers = #tpu.dot_dimension_numbers<[1], [0], [0], [1], [0, 0, 1, 1], [], []>} : vector<256x32xbf16>, vector<32x128xbf16>, vector<256x128xf32> -> vector<256x128xf32>
    %96 = arith.addf %75, %95 : vector<256x128xf32>
    %97 = vector.extract_strided_slice %22 {offsets = [0, 0, 96], sizes = [2, 128, 32], strides = [1, 1, 1]} : vector<2x128x128xbf16> to vector<2x128x32xbf16>
    %98 = vector.extract_strided_slice %27 {offsets = [0, 0, 96], sizes = [2, 128, 32], strides = [1, 1, 1]} : vector<2x128x128xbf16> to vector<2x128x32xbf16>
    %99 = vector.extract_strided_slice %32 {offsets = [0, 0, 96], sizes = [2, 128, 32], strides = [1, 1, 1]} : vector<2x128x128xbf16> to vector<2x128x32xbf16>
    "tpu.trace_start"() <{level = 10 : i32, message = "btk,bsk->bts"}> : () -> ()
    %cst_27 = arith.constant dense<0.000000e+00> : vector<2x128x128xf32>
    %100 = tpu.matmul %97, %98, %cst_27 {dimension_numbers = #tpu.dot_dimension_numbers<[2], [2], [1], [1], [0, 0, 0, 1, 1, 1], [0], [0]>} : vector<2x128x32xbf16>, vector<2x128x32xbf16>, vector<2x128x128xf32> -> vector<2x128x128xf32>
    "tpu.trace_stop"() : () -> ()
    %cst_28 = arith.constant dense<0xFF800000> : vector<2x128xf32>
    %101 = vector.multi_reduction <maximumf>, %100, %cst_28 [2] : vector<2x128x128xf32> to vector<2x128xf32>
    %102 = vector.shape_cast %101 : vector<2x128xf32> to vector<2x128x1xf32>
    %103 = vector.broadcast %102 : vector<2x128x1xf32> to vector<2x128x128xf32>
    %104 = arith.subf %100, %103 : vector<2x128x128xf32>
    %105 = math.exp %104 : vector<2x128x128xf32>
    %cst_29 = arith.constant dense<0.000000e+00> : vector<2x128xf32>
    %106 = vector.multi_reduction <add>, %105, %cst_29 [2] : vector<2x128x128xf32> to vector<2x128xf32>
    %107 = vector.shape_cast %106 : vector<2x128xf32> to vector<2x128x1xf32>
    %108 = tpu.reciprocal %107 {approx = true} : vector<2x128x1xf32> -> vector<2x128x1xf32>
    %109 = vector.broadcast %108 : vector<2x128x1xf32> to vector<2x128x128xf32>
    %110 = arith.mulf %105, %109 : vector<2x128x128xf32>
    %111 = arith.truncf %110 : vector<2x128x128xf32> to vector<2x128x128xbf16>
    "tpu.trace_start"() <{level = 10 : i32, message = "bts,bsk->btk"}> : () -> ()
    %cst_30 = arith.constant dense<0.000000e+00> : vector<2x128x32xf32>
    %112 = tpu.matmul %111, %99, %cst_30 {dimension_numbers = #tpu.dot_dimension_numbers<[2], [1], [1], [2], [0, 0, 0, 1, 1, 2], [0], [0]>} : vector<2x128x128xbf16>, vector<2x128x32xbf16>, vector<2x128x32xf32> -> vector<2x128x32xf32>
    "tpu.trace_stop"() : () -> ()
    %113 = vector.shape_cast %112 : vector<2x128x32xf32> to vector<256x32xf32>
    %114 = arith.truncf %113 : vector<256x32xf32> to vector<256x32xbf16>
    %115 = vector.extract_strided_slice %34 {offsets = [96, 0], sizes = [32, 128], strides = [1, 1]} : vector<128x128xbf16> to vector<32x128xbf16>
    %cst_31 = arith.constant dense<0.000000e+00> : vector<256x128xf32>
    %116 = tpu.matmul %114, %115, %cst_31 {dimension_numbers = #tpu.dot_dimension_numbers<[1], [0], [0], [1], [0, 0, 1, 1], [], []>} : vector<256x32xbf16>, vector<32x128xbf16>, vector<256x128xf32> -> vector<256x128xf32>
    %117 = arith.addf %96, %116 : vector<256x128xf32>
    %118 = arith.addf %12, %117 : vector<256x128xf32>
    %119 = vector.broadcast %8 : vector<1x128xf32> to vector<256x128xf32>
    %120 = arith.addf %118, %119 : vector<256x128xf32>
    %121 = arith.truncf %120 : vector<256x128xf32> to vector<256x128xbf16>
    %c0_32 = arith.constant 0 : index
    %c0_33 = arith.constant 0 : index
    %c0_34 = arith.constant 0 : index
    %122 = vector.load %arg4[%c0_32, %c0_33, %c0_34] : memref<1x128x256xbf16, #tpu.memory_space<vmem>>, vector<1x128x256xbf16>
    %123 = vector.shape_cast %122 : vector<1x128x256xbf16> to vector<128x256xbf16>
    %cst_35 = arith.constant dense<0.000000e+00> : vector<256x256xf32>
    %124 = tpu.matmul %121, %123, %cst_35 {dimension_numbers = #tpu.dot_dimension_numbers<[1], [0], [0], [1], [0, 0, 1, 1], [], []>} : vector<256x128xbf16>, vector<128x256xbf16>, vector<256x256xf32> -> vector<256x256xf32>
    %125 = vector.broadcast %9 : vector<1x256xf32> to vector<256x256xf32>
    %126 = arith.addf %124, %125 : vector<256x256xf32>
    %cst_36 = arith.constant 0.000000e+00 : f32
    %127 = vector.broadcast %cst_36 : f32 to vector<256x256xf32>
    %128 = arith.maximumf %126, %127 : vector<256x256xf32>
    %129 = arith.truncf %128 : vector<256x256xf32> to vector<256x256xbf16>
    %c0_37 = arith.constant 0 : index
    %c0_38 = arith.constant 0 : index
    %c0_39 = arith.constant 0 : index
    %130 = vector.load %arg5[%c0_37, %c0_38, %c0_39] : memref<1x256x128xbf16, #tpu.memory_space<vmem>>, vector<1x256x128xbf16>
    %131 = vector.shape_cast %130 : vector<1x256x128xbf16> to vector<256x128xbf16>
    %cst_40 = arith.constant dense<0.000000e+00> : vector<256x128xf32>
    %132 = tpu.matmul %129, %131, %cst_40 {dimension_numbers = #tpu.dot_dimension_numbers<[1], [0], [0], [1], [0, 0, 1, 1], [], []>} : vector<256x256xbf16>, vector<256x128xbf16>, vector<256x128xf32> -> vector<256x128xf32>
    %133 = vector.broadcast %10 : vector<1x128xf32> to vector<256x128xf32>
    %134 = arith.addf %132, %133 : vector<256x128xf32>
    %135 = arith.addf %120, %134 : vector<256x128xf32>
    %136 = vector.shape_cast %135 : vector<256x128xf32> to vector<2x128x128xf32>
    %c0_41 = arith.constant 0 : index
    %c0_42 = arith.constant 0 : index
    %c0_43 = arith.constant 0 : index
    %137 = vector.load %arg7[%c0_41, %c0_42, %c0_43] : memref<2x128x128xf32, #tpu.memory_space<vmem>>, vector<2x128x128xf32>
    tpu.vector_store %arg7[%c0_41, %c0_42, %c0_43], %136 {strides = array<i32>} : memref<2x128x128xf32, #tpu.memory_space<vmem>>, vector<2x128x128xf32>,
    return
  }
  func.func @transform_0(%arg0: i32) -> (i32, i32, i32) {
    %c0_i32 = arith.constant 0 : i32
    %c0_i32_0 = arith.constant 0 : i32
    %c0_i32_1 = arith.constant 0 : i32
    %c0_i32_2 = arith.constant 0 : i32
    return %c0_i32, %c0_i32_0, %c0_i32_1 : i32, i32, i32
  }
  func.func @transform_1(%arg0: i32) -> (i32, i32, i32) {
    %c0_i32 = arith.constant 0 : i32
    %c0_i32_0 = arith.constant 0 : i32
    %c0_i32_1 = arith.constant 0 : i32
    return %arg0, %c0_i32, %c0_i32_0 : i32, i32, i32
  }
  func.func @transform_2(%arg0: i32) -> (i32, i32, i32) {
    %c0_i32 = arith.constant 0 : i32
    %c0_i32_0 = arith.constant 0 : i32
    %c0_i32_1 = arith.constant 0 : i32
    return %arg0, %c0_i32, %c0_i32_0 : i32, i32, i32
  }
  func.func @transform_3(%arg0: i32) -> (i32, i32, i32) {
    %c0_i32 = arith.constant 0 : i32
    %c0_i32_0 = arith.constant 0 : i32
    %c0_i32_1 = arith.constant 0 : i32
    return %arg0, %c0_i32, %c0_i32_0 : i32, i32, i32
  }
  func.func @transform_4(%arg0: i32) -> (i32, i32, i32) {
    %c0_i32 = arith.constant 0 : i32
    %c0_i32_0 = arith.constant 0 : i32
    %c0_i32_1 = arith.constant 0 : i32
    return %arg0, %c0_i32, %c0_i32_0 : i32, i32, i32
  }
  func.func @transform_5(%arg0: i32) -> (i32, i32, i32) {
    %c0_i32 = arith.constant 0 : i32
    %c0_i32_0 = arith.constant 0 : i32
    %c0_i32_1 = arith.constant 0 : i32
    return %arg0, %c0_i32, %c0_i32_0 : i32, i32, i32
  }
  func.func @transform_6(%arg0: i32) -> (i32, i32, i32) {
    %c0_i32 = arith.constant 0 : i32
    %c0_i32_0 = arith.constant 0 : i32
    %c0_i32_1 = arith.constant 0 : i32
    %c0_i32_2 = arith.constant 0 : i32
    return %c0_i32, %c0_i32_0, %c0_i32_1 : i32, i32, i32
  }
}

</mosaic_0001>

<llo_original>
// kernel: tpu_custom_call.1
$region0: #{tpu_custom_call.1}
  #allocation0 [shape = 'u32[]', space=smem, size = 0x4, offset = 0x4, fixed_abs, tag = 'smem constant byte address 0x4 - core index']
  #allocation1 [shape = 'u32[144,128]{1,0:T(1,128)}', space=vmem, size = 0x12000, scoped, tag = 'internal scratch']
  %s0 = inlined_call_operand.hbm [shape: f32[2,128,128], index: 0, kind: input, shape index: {}]
  %s1 = inlined_call_operand.hbm [shape: bf16[2,128,384], index: 1, kind: input, shape index: {}]
  %s2 = inlined_call_operand.hbm [shape: bf16[2,128,128], index: 2, kind: input, shape index: {}]
  %s3 = inlined_call_operand.hbm [shape: bf16[2,128,256], index: 3, kind: input, shape index: {}]
  %s4 = inlined_call_operand.hbm [shape: bf16[2,256,128], index: 4, kind: input, shape index: {}]
  %s5 = inlined_call_operand.hbm [shape: f32[2,8,256], index: 5, kind: input, shape index: {}]
  %s6 = inlined_call_operand.hbm [shape: f32[2,128,128], index: 6, kind: output, shape index: {}]
  %s7 = sld [smem:[#allocation0]]
  $region85: #{tpu_custom_call.1} parent=0
    _
  %s9 = ssub.s32 1, %s7
  %s10 = scalar_select 0, %s9, %s7
  $region1: #{tpu_custom_call.1} parent=0
    #allocation2 [shape = 'u8[131072]{0}', space=vmem, size = 0x20000, scoped, tag = 'input window, operand 0, single buffered']
    #allocation3 [shape = 's32[2]{0}', space=sflag, size = 0x8, scoped, tag = 'scoped memory for tpu_custom_call.1']
    #allocation4 [shape = 's32[2]{0}', space=sflag, size = 0x8, scoped, tag = 'scoped memory for tpu_custom_call.1']
    #allocation5 [shape = 'u8[196608]{0}', space=vmem, size = 0x30000, scoped, tag = 'input window, operand 1']
    #allocation6 [shape = 's32[2]{0}', space=sflag, size = 0x8, scoped, tag = 'scoped memory for tpu_custom_call.1']
    #allocation7 [shape = 'u8[65536]{0}', space=vmem, size = 0x10000, scoped, tag = 'input window, operand 2']
    #allocation8 [shape = 'u8[131072]{0}', space=vmem, size = 0x20000, scoped, tag = 'input window, operand 3']
    #allocation9 [shape = 's32[2]{0}', space=sflag, size = 0x8, scoped, tag = 'scoped memory for tpu_custom_call.1']
    #allocation10 [shape = 'u8[131072]{0}', space=vmem, size = 0x20000, scoped, tag = 'input window, operand 4']
    #allocation11 [shape = 'u8[16384]{0}', space=vmem, size = 0x4000, scoped, tag = 'input window, operand 5']
    #allocation12 [shape = 's32[2]{0}', space=sflag, size = 0x8, scoped, tag = 'scoped memory for tpu_custom_call.1']
    #allocation13 [shape = 'u8[131072]{0}', space=vmem, size = 0x20000, scoped, tag = 'output window, operand 0, single buffered']
    %11 = vsyncpa [#allocation3], 0
    %12 = vsyncpa [#allocation6], 0
    %s13 = scalar_lea.sflag [#allocation6], 1
    %14 = vsyncpa %s13, 0
    %15 = vsyncpa [#allocation9], 0
    %s16 = scalar_lea.sflag [#allocation9], 1
    %17 = vsyncpa %s16, 0
    %18 = vsyncpa [#allocation12], 0
    %s19 = scalar_lea.sflag [#allocation12], 1
    %20 = vsyncpa %s19, 0
    %21 = vsyncpa [#allocation4], 0
    loop: start=0, step=1, limit=4
    $region2: #{tpu_custom_call.1} parent=1 // loop_pre_header
      _
    $region3: #{tpu_custom_call.1} parent=1 // loop_header
      %s23 = sphi 0, %s27
      %p24 = scmp.ge.s32.totalorder %s23, 4
      %s31 = sphi 0, %s31
      %s33 = sphi 0, %s31
      %s34 = sphi 0, %s33
      %s48 = sphi 0, %s34
      %s54 = sphi 0, %s56
      %s57 = sphi 0, %s54
      %s58 = sphi 0, %s57
      %s74 = sphi 0, %s58
      %s80 = sphi 0, %s82
      %s83 = sphi 0, %s80
      %s84 = sphi 0, %s83
      %s100 = sphi 0, %s84
      %s106 = sphi 0, %s108
      %s109 = sphi 0, %s106
      %s110 = sphi 0, %s109
      %s126 = sphi 0, %s110
      %s132 = sphi 0, %s134
      %s135 = sphi 0, %s132
      %s136 = sphi 0, %s135
      %s152 = sphi 0, %s136
      %s158 = sphi 0, %s160
      %s161 = sphi 0, %s158
      %s162 = sphi 0, %s161
      %s178 = sphi 0, %s162
      %s182 = sphi 0, %s182
      %s184 = sphi 0, %s182
      %s185 = sphi 0, %s184
      %s199 = sphi 0, %s185
    $region4: #{tpu_custom_call.1} parent=1 // loop_header_branch
      %26 = sbr.rel (%p24) target = $region8
    $region5: #{tpu_custom_call.1} parent=1 // loop_body
      %s28 = ssub.s32 %s23, 1
      %s29 = ssub.s32 %s23, 2
      %s30 = sadd.s32 %s23, 1
      %s32 = sadd.s32 %s31, 1
      %p35 = scmp.eq.s32.totalorder %s23, 1
      %p36 = scmp.ne.s32.totalorder %s31, %s33
      %p37 = scmp.eq.s32.totalorder %s23, 0
      %p38 = por %p36, %p37
      %p39 = scmp.ne.s32.totalorder %s31, %s33
      %p40 = scmp.eq.s32.totalorder %s28, 1
      %p41 = por %p39, %p40
      %p42 = scmp.ne.s32.totalorder %s33, %s34
      %p43 = scmp.eq.s32.totalorder %s28, 0
      %p44 = por %p42, %p43
      %p45 = scmp.ne.s32.totalorder %s33, %s34
      %p46 = scmp.eq.s32.totalorder %s29, 1
      %p47 = por %p45, %p46
      %p49 = scmp.ne.s32.totalorder %s34, %s48
      %p50 = scmp.eq.s32.totalorder %s29, 0
      %p51 = por %p49, %p50
      %s52 = ssub.s32 %s23, %s30
      %p53 = scmp.eq.s32.totalorder %s52, 0
      %s55 = sadd.s32 %s54, 1
      %s56 = scalar_select %p53, %s54, %s55
      %p59 = pneg %p53
      %p60 = scmp.eq.s32.totalorder %s23, 1
      %p61 = por %p59, %p60
      %p62 = scmp.ne.s32.totalorder %s54, %s57
      %p63 = scmp.eq.s32.totalorder %s23, 0
      %p64 = por %p62, %p63
      %p65 = scmp.ne.s32.totalorder %s54, %s57
      %p66 = scmp.eq.s32.totalorder %s28, 1
      %p67 = por %p65, %p66
      %p68 = scmp.ne.s32.totalorder %s57, %s58
      %p69 = scmp.eq.s32.totalorder %s28, 0
      %p70 = por %p68, %p69
      %p71 = scmp.ne.s32.totalorder %s57, %s58
      %p72 = scmp.eq.s32.totalorder %s29, 1
      %p73 = por %p71, %p72
      %p75 = scmp.ne.s32.totalorder %s58, %s74
      %p76 = scmp.eq.s32.totalorder %s29, 0
      %p77 = por %p75, %p76
      %s78 = ssub.s32 %s23, %s30
      %p79 = scmp.eq.s32.totalorder %s78, 0
      %s81 = sadd.s32 %s80, 1
      %s82 = scalar_select %p79, %s80, %s81
      %p85 = pneg %p79
      %p86 = scmp.eq.s32.totalorder %s23, 1
      %p87 = por %p85, %p86
      %p88 = scmp.ne.s32.totalorder %s80, %s83
      %p89 = scmp.eq.s32.totalorder %s23, 0
      %p90 = por %p88, %p89
      %p91 = scmp.ne.s32.totalorder %s80, %s83
      %p92 = scmp.eq.s32.totalorder %s28, 1
      %p93 = por %p91, %p92
      %p94 = scmp.ne.s32.totalorder %s83, %s84
      %p95 = scmp.eq.s32.totalorder %s28, 0
      %p96 = por %p94, %p95
      %p97 = scmp.ne.s32.totalorder %s83, %s84
      %p98 = scmp.eq.s32.totalorder %s29, 1
      %p99 = por %p97, %p98
      %p101 = scmp.ne.s32.totalorder %s84, %s100
      %p102 = scmp.eq.s32.totalorder %s29, 0
      %p103 = por %p101, %p102
      %s104 = ssub.s32 %s23, %s30
      %p105 = scmp.eq.s32.totalorder %s104, 0
      %s107 = sadd.s32 %s106, 1
      %s108 = scalar_select %p105, %s106, %s107
      %p111 = pneg %p105
      %p112 = scmp.eq.s32.totalorder %s23, 1
      %p113 = por %p111, %p112
      %p114 = scmp.ne.s32.totalorder %s106, %s109
      %p115 = scmp.eq.s32.totalorder %s23, 0
      %p116 = por %p114, %p115
      %p117 = scmp.ne.s32.totalorder %s106, %s109
      %p118 = scmp.eq.s32.totalorder %s28, 1
      %p119 = por %p117, %p118
      %p120 = scmp.ne.s32.totalorder %s109, %s110
      %p121 = scmp.eq.s32.totalorder %s28, 0
      %p122 = por %p120, %p121
      %p123 = scmp.ne.s32.totalorder %s109, %s110
      %p124 = scmp.eq.s32.totalorder %s29, 1
      %p125 = por %p123, %p124
      %p127 = scmp.ne.s32.totalorder %s110, %s126
      %p128 = scmp.eq.s32.totalorder %s29, 0
      %p129 = por %p127, %p128
      %s130 = ssub.s32 %s23, %s30
      %p131 = scmp.eq.s32.totalorder %s130, 0
      %s133 = sadd.s32 %s132, 1
      %s134 = scalar_select %p131, %s132, %s133
      %p137 = pneg %p131
      %p138 = scmp.eq.s32.totalorder %s23, 1
      %p139 = por %p137, %p138
      %p140 = scmp.ne.s32.totalorder %s132, %s135
      %p141 = scmp.eq.s32.totalorder %s23, 0
      %p142 = por %p140, %p141
      %p143 = scmp.ne.s32.totalorder %s132, %s135
      %p144 = scmp.eq.s32.totalorder %s28, 1
      %p145 = por %p143, %p144
      %p146 = scmp.ne.s32.totalorder %s135, %s136
      %p147 = scmp.eq.s32.totalorder %s28, 0
      %p148 = por %p146, %p147
      %p149 = scmp.ne.s32.totalorder %s135, %s136
      %p150 = scmp.eq.s32.totalorder %s29, 1
      %p151 = por %p149, %p150
      %p153 = scmp.ne.s32.totalorder %s136, %s152
      %p154 = scmp.eq.s32.totalorder %s29, 0
      %p155 = por %p153, %p154
      %s156 = ssub.s32 %s23, %s30
      %p157 = scmp.eq.s32.totalorder %s156, 0
      %s159 = sadd.s32 %s158, 1
      %s160 = scalar_select %p157, %s158, %s159
      %p163 = pneg %p157
      %p164 = scmp.eq.s32.totalorder %s23, 1
      %p165 = por %p163, %p164
      %p166 = scmp.ne.s32.totalorder %s158, %s161
      %p167 = scmp.eq.s32.totalorder %s23, 0
      %p168 = por %p166, %p167
      %p169 = scmp.ne.s32.totalorder %s158, %s161
      %p170 = scmp.eq.s32.totalorder %s28, 1
      %p171 = por %p169, %p170
      %p172 = scmp.ne.s32.totalorder %s161, %s162
      %p173 = scmp.eq.s32.totalorder %s28, 0
      %p174 = por %p172, %p173
      %p175 = scmp.ne.s32.totalorder %s161, %s162
      %p176 = scmp.eq.s32.totalorder %s29, 1
      %p177 = por %p175, %p176
      %p179 = scmp.ne.s32.totalorder %s162, %s178
      %p180 = scmp.eq.s32.totalorder %s29, 0
      %p181 = por %p179, %p180
      %s183 = sadd.s32 %s182, 1
      %p186 = scmp.eq.s32.totalorder %s23, 1
      %p187 = scmp.ne.s32.totalorder %s182, %s184
      %p188 = scmp.eq.s32.totalorder %s23, 0
      %p189 = por %p187, %p188
      %p190 = scmp.ne.s32.totalorder %s182, %s184
      %p191 = scmp.eq.s32.totalorder %s28, 1
      %p192 = por %p190, %p191
      %p193 = scmp.ne.s32.totalorder %s184, %s185
      %p194 = scmp.eq.s32.totalorder %s28, 0
      %p195 = por %p193, %p194
      %p196 = scmp.ne.s32.totalorder %s184, %s185
      %p197 = scmp.eq.s32.totalorder %s29, 1
      %p198 = por %p196, %p197
      %p200 = scmp.ne.s32.totalorder %s185, %s199
      %p201 = scmp.eq.s32.totalorder %s29, 0
      %p202 = por %p200, %p201
      %p203 = scmp.le.s32.totalorder 1, %s23
      %p204 = scmp.lt.s32.totalorder %s23, 3
      %p205 = pnand %p203, %p204
      %p206 = pneg %p205
      // Predicated region
      $region9: #{tpu_custom_call.1} parent=5 // pred_check
        _
      $region10: #{tpu_custom_call.1} parent=5 // pred_check_branch
        %208 = sbr.rel (%p205) target = $region12
      $region11: #{tpu_custom_call.1} parent=5 // pred_region
        %s209 = ssub.s32 %s23, 1
        // Predicated region
        $region13: #{tpu_custom_call.1} parent=11 // pred_check
          %p210 = pneg %p44
        $region14: #{tpu_custom_call.1} parent=11 // pred_check_branch
          %212 = sbr.rel (%p210) target = $region16
        $region15: #{tpu_custom_call.1} parent=11 // pred_region
          %s214 = ssub.s32 4096, 4096
          %215 = vsyncadd [#allocation3], %s214
          %s216 = sshll.u32 [#allocation2], 4
          %s217 = int_to_ptr.vmem [resolvable:$true] %s216
          %222 = dma.hbm_to_vmem [thread:$0]  %s0, 4096, %s217, [#allocation3], 128, 128, 8
        $region16: #{tpu_custom_call.1} parent=11 // pred_fallthru
          _
      $region12: #{tpu_custom_call.1} parent=5 // pred_fallthru
        _
      %p223 = scmp.lt.s32.totalorder %s23, 2
      // Predicated region
      $region17: #{tpu_custom_call.1} parent=5 // pred_check
        %p224 = pneg %p223
      $region18: #{tpu_custom_call.1} parent=5 // pred_check_branch
        %226 = sbr.rel (%p224) target = $region20
      $region19: #{tpu_custom_call.1} parent=5 // pred_region
        // Predicated region
        $region21: #{tpu_custom_call.1} parent=19 // pred_check
          %p227 = pneg %p64
        $region22: #{tpu_custom_call.1} parent=19 // pred_check_branch
          %229 = sbr.rel (%p227) target = $region24
        $region23: #{tpu_custom_call.1} parent=19 // pred_region
          %s230 = sand.u32 %s23, 1
          %s231 = scalar_lea.sflag [#allocation6], %s230
          %s232 = sand.u32 %s54, 1
          %s233 = smul.addr %s232, 192
          %s234 = scalar_lea.vmem [#allocation5], %s233
          %s236 = ssub.s32 3072, 3072
          %237 = vsyncadd %s231, %s236
          %s238 = smul.addr %s23, 48
          %s239 = smul.addr %s238, 64
          %s240 = scalar_lea.hbm %s1, %s239
          %s241 = sshll.u32 %s234, 4
          %s242 = int_to_ptr.vmem [resolvable:$true] %s241
          %247 = dma.hbm_to_vmem [thread:$0]  %s240, 3072, %s242, %s231, 192, 192, 12
        $region24: #{tpu_custom_call.1} parent=19 // pred_fallthru
          _
        // Predicated region
        $region25: #{tpu_custom_call.1} parent=19 // pred_check
          %p248 = pneg %p90
        $region26: #{tpu_custom_call.1} parent=19 // pred_check_branch
          %250 = sbr.rel (%p248) target = $region28
        $region27: #{tpu_custom_call.1} parent=19 // pred_region
          %s251 = sand.u32 %s23, 1
          %s252 = scalar_lea.sflag [#allocation6], %s251
          %s253 = sand.u32 %s80, 1
          %s254 = smul.addr %s253, 64
          %s255 = scalar_lea.vmem [#allocation7], %s254
          %s257 = ssub.s32 1024, 1024
          %258 = vsyncadd %s252, %s257
          %s259 = smul.addr %s23, 16
          %s260 = smul.addr %s259, 64
          %s261 = scalar_lea.hbm %s2, %s260
          %s262 = sshll.u32 %s255, 4
          %s263 = int_to_ptr.vmem [resolvable:$true] %s262
          %268 = dma.hbm_to_vmem [thread:$0]  %s261, 1024, %s263, %s252, 64, 64, 4
        $region28: #{tpu_custom_call.1} parent=19 // pred_fallthru
          _
        // Predicated region
        $region29: #{tpu_custom_call.1} parent=19 // pred_check
          %p269 = pneg %p116
        $region30: #{tpu_custom_call.1} parent=19 // pred_check_branch
          %271 = sbr.rel (%p269) target = $region32
        $region31: #{tpu_custom_call.1} parent=19 // pred_region
          %s272 = sand.u32 %s23, 1
          %s273 = scalar_lea.sflag [#allocation9], %s272
          %s274 = sand.u32 %s106, 1
          %s275 = smul.addr %s274, 128
          %s276 = scalar_lea.vmem [#allocation8], %s275
          %s278 = ssub.s32 2048, 2048
          %279 = vsyncadd %s273, %s278
          %s280 = smul.addr %s23, 32
          %s281 = smul.addr %s280, 64
          %s282 = scalar_lea.hbm %s3, %s281
          %s283 = sshll.u32 %s276, 4
          %s284 = int_to_ptr.vmem [resolvable:$true] %s283
          %289 = dma.hbm_to_vmem [thread:$0]  %s282, 2048, %s284, %s273, 128, 128, 8
        $region32: #{tpu_custom_call.1} parent=19 // pred_fallthru
          _
        // Predicated region
        $region33: #{tpu_custom_call.1} parent=19 // pred_check
          %p290 = pneg %p142
        $region34: #{tpu_custom_call.1} parent=19 // pred_check_branch
          %292 = sbr.rel (%p290) target = $region36
        $region35: #{tpu_custom_call.1} parent=19 // pred_region
          %s293 = sand.u32 %s23, 1
          %s294 = scalar_lea.sflag [#allocation9], %s293
          %s295 = sand.u32 %s132, 1
          %s296 = smul.addr %s295, 128
          %s297 = scalar_lea.vmem [#allocation10], %s296
          %s299 = ssub.s32 2048, 2048
          %300 = vsyncadd %s294, %s299
          %s301 = smul.addr %s23, 32
          %s302 = smul.addr %s301, 64
          %s303 = scalar_lea.hbm %s4, %s302
          %s304 = sshll.u32 %s297, 4
          %s305 = int_to_ptr.vmem [resolvable:$true] %s304
          %310 = dma.hbm_to_vmem [thread:$0]  %s303, 2048, %s305, %s294, 64, 64, 4
        $region36: #{tpu_custom_call.1} parent=19 // pred_fallthru
          _
        // Predicated region
        $region37: #{tpu_custom_call.1} parent=19 // pred_check
          %p311 = pneg %p168
        $region38: #{tpu_custom_call.1} parent=19 // pred_check_branch
          %313 = sbr.rel (%p311) target = $region40
        $region39: #{tpu_custom_call.1} parent=19 // pred_region
          %s314 = sand.u32 %s158, 1
          %s315 = scalar_lea.sflag [#allocation12], %s314
          %s316 = sand.u32 %s158, 1
          %s317 = smul.addr %s316, 16
          %s318 = scalar_lea.vmem [#allocation11], %s317
          %s320 = ssub.s32 256, 256
          %321 = vsyncadd %s315, %s320
          %s322 = smul.addr %s23, 2
          %s323 = smul.addr %s322, 128
          %s324 = scalar_lea.hbm %s5, %s323
          %s326 = sshll.u32 %s318, 4
          %s327 = int_to_ptr.vmem [resolvable:$true] %s326
          %329 = dma.hbm_to_vmem [thread:$0]  %s324, 256, %s327, %s315
        $region40: #{tpu_custom_call.1} parent=19 // pred_fallthru
          _
      $region20: #{tpu_custom_call.1} parent=5 // pred_fallthru
        _
      %p330 = scmp.le.s32.totalorder 1, %s23
      %p331 = scmp.lt.s32.totalorder %s23, 3
      %p332 = pnand %p330, %p331
      %p333 = pneg %p332
      // Predicated region
      $region41: #{tpu_custom_call.1} parent=5 // pred_check
        _
      $region42: #{tpu_custom_call.1} parent=5 // pred_check_branch
        %335 = sbr.rel (%p332) target = $region44
      $region43: #{tpu_custom_call.1} parent=5 // pred_region
        %s336 = ssub.s32 %s23, 1
        // Predicated region
        $region45: #{tpu_custom_call.1} parent=43 // pred_check
          %p337 = pneg %p44
        $region46: #{tpu_custom_call.1} parent=43 // pred_check_branch
          %339 = sbr.rel (%p337) target = $region48
        $region47: #{tpu_custom_call.1} parent=43 // pred_region
          %340 = dma.done [#allocation3], 4096
        $region48: #{tpu_custom_call.1} parent=43 // pred_fallthru
          _
        %s341 = sand.u32 %s28, 1
        %s342 = scalar_lea.sflag [#allocation6], %s341
        %s343 = sand.u32 %s57, 1
        %s344 = smul.addr %s343, 192
        %s345 = scalar_lea.vmem [#allocation5], %s344
        // Predicated region
        $region49: #{tpu_custom_call.1} parent=43 // pred_check
          %p346 = pneg %p70
        $region50: #{tpu_custom_call.1} parent=43 // pred_check_branch
          %348 = sbr.rel (%p346) target = $region52
        $region51: #{tpu_custom_call.1} parent=43 // pred_region
          %349 = dma.done %s342, 3072
        $region52: #{tpu_custom_call.1} parent=43 // pred_fallthru
          _
        %s350 = sand.u32 %s28, 1
        %s351 = scalar_lea.sflag [#allocation6], %s350
        %s352 = sand.u32 %s83, 1
        %s353 = smul.addr %s352, 64
        %s354 = scalar_lea.vmem [#allocation7], %s353
        // Predicated region
        $region53: #{tpu_custom_call.1} parent=43 // pred_check
          %p355 = pneg %p96
        $region54: #{tpu_custom_call.1} parent=43 // pred_check_branch
          %357 = sbr.rel (%p355) target = $region56
        $region55: #{tpu_custom_call.1} parent=43 // pred_region
          %358 = dma.done %s351, 1024
        $region56: #{tpu_custom_call.1} parent=43 // pred_fallthru
          _
        %s359 = sand.u32 %s28, 1
        %s360 = scalar_lea.sflag [#allocation9], %s359
        %s361 = sand.u32 %s109, 1
        %s362 = smul.addr %s361, 128
        %s363 = scalar_lea.vmem [#allocation8], %s362
        // Predicated region
        $region57: #{tpu_custom_call.1} parent=43 // pred_check
          %p364 = pneg %p122
        $region58: #{tpu_custom_call.1} parent=43 // pred_check_branch
          %366 = sbr.rel (%p364) target = $region60
        $region59: #{tpu_custom_call.1} parent=43 // pred_region
          %367 = dma.done %s360, 2048
        $region60: #{tpu_custom_call.1} parent=43 // pred_fallthru
          _
        %s368 = sand.u32 %s28, 1
        %s369 = scalar_lea.sflag [#allocation9], %s368
        %s370 = sand.u32 %s135, 1
        %s371 = smul.addr %s370, 128
        %s372 = scalar_lea.vmem [#allocation10], %s371
        // Predicated region
        $region61: #{tpu_custom_call.1} parent=43 // pred_check
          %p373 = pneg %p148
        $region62: #{tpu_custom_call.1} parent=43 // pred_check_branch
          %375 = sbr.rel (%p373) target = $region64
        $region63: #{tpu_custom_call.1} parent=43 // pred_region
          %376 = dma.done %s369, 2048
        $region64: #{tpu_custom_call.1} parent=43 // pred_fallthru
          _
        %s377 = sand.u32 %s161, 1
        %s378 = scalar_lea.sflag [#allocation12], %s377
        %s379 = sand.u32 %s161, 1
        %s380 = smul.addr %s379, 16
        %s381 = scalar_lea.vmem [#allocation11], %s380
        // Predicated region
        $region65: #{tpu_custom_call.1} parent=43 // pred_check
          %p382 = pneg %p174
        $region66: #{tpu_custom_call.1} parent=43 // pred_check_branch
          %384 = sbr.rel (%p382) target = $region68
        $region67: #{tpu_custom_call.1} parent=43 // pred_region
          %385 = dma.done %s378, 256
        $region68: #{tpu_custom_call.1} parent=43 // pred_fallthru
          _
        %p386 = pneg %p44
        %p387 = pneg %p41
        %s388 = sand.u32 %s28, 1
        %s389 = scalar_lea.sflag [#allocation6], %s388
        %s390 = sand.u32 %s57, 1
        %s391 = smul.addr %s390, 192
        %s392 = scalar_lea.vmem [#allocation5], %s391
        %p393 = pneg %p70
        %p394 = pneg %p67
        %s395 = sand.u32 %s28, 1
        %s396 = scalar_lea.sflag [#allocation6], %s395
        %s397 = sand.u32 %s83, 1
        %s398 = smul.addr %s397, 64
        %s399 = scalar_lea.vmem [#allocation7], %s398
        %p400 = pneg %p96
        %p401 = pneg %p93
        %s402 = sand.u32 %s28, 1
        %s403 = scalar_lea.sflag [#allocation9], %s402
        %s404 = sand.u32 %s109, 1
        %s405 = smul.addr %s404, 128
        %s406 = scalar_lea.vmem [#allocation8], %s405
        %p407 = pneg %p122
        %p408 = pneg %p119
        %s409 = sand.u32 %s28, 1
        %s410 = scalar_lea.sflag [#allocation9], %s409
        %s411 = sand.u32 %s135, 1
        %s412 = smul.addr %s411, 128
        %s413 = scalar_lea.vmem [#allocation10], %s412
        %p414 = pneg %p148
        %p415 = pneg %p145
        %s416 = sand.u32 %s161, 1
        %s417 = scalar_lea.sflag [#allocation12], %s416
        %s418 = sand.u32 %s161, 1
        %s419 = smul.addr %s418, 16
        %s420 = scalar_lea.vmem [#allocation11], %s419
        %p421 = pneg %p174
        %p422 = pneg %p171
        %p423 = pneg %p195
        %p424 = pneg %p192
        %p426 = scmp.eq.s32.totalorder %s28, 0
        // Predicated region
        $region69: #{tpu_custom_call.1} parent=43 // pred_check
          %p427 = pneg %p426
        $region70: #{tpu_custom_call.1} parent=43 // pred_check_branch
          %429 = sbr.rel (%p427) target = $region72
        $region71: #{tpu_custom_call.1} parent=43 // pred_region
          %v430 = vld [vmem:[#allocation2] sm:$0xff]
          %v431 = vld [vmem:[#allocation2 + $0x8] sm:$0xff]
          %v432 = vld [vmem:[#allocation2 + $0x10] sm:$0xff]
          %v433 = vld [vmem:[#allocation2 + $0x18] sm:$0xff]
          %v434 = vld [vmem:[#allocation2 + $0x20] sm:$0xff]
          %v435 = vld [vmem:[#allocation2 + $0x28] sm:$0xff]
          %v436 = vld [vmem:[#allocation2 + $0x30] sm:$0xff]
          %v437 = vld [vmem:[#allocation2 + $0x38] sm:$0xff]
          %v438 = vld [vmem:[#allocation2 + $0x40] sm:$0xff]
          %v439 = vld [vmem:[#allocation2 + $0x48] sm:$0xff]
          %v440 = vld [vmem:[#allocation2 + $0x50] sm:$0xff]
          %v441 = vld [vmem:[#allocation2 + $0x58] sm:$0xff]
          %v442 = vld [vmem:[#allocation2 + $0x60] sm:$0xff]
          %v443 = vld [vmem:[#allocation2 + $0x68] sm:$0xff]
          %v444 = vld [vmem:[#allocation2 + $0x70] sm:$0xff]
          %v445 = vld [vmem:[#allocation2 + $0x78] sm:$0xff]
          %v446 = vld [vmem:[#allocation2 + $0x80] sm:$0xff]
          %v447 = vld [vmem:[#allocation2 + $0x88] sm:$0xff]
          %v448 = vld [vmem:[#allocation2 + $0x90] sm:$0xff]
          %v449 = vld [vmem:[#allocation2 + $0x98] sm:$0xff]
          %v450 = vld [vmem:[#allocation2 + $0xa0] sm:$0xff]
          %v451 = vld [vmem:[#allocation2 + $0xa8] sm:$0xff]
          %v452 = vld [vmem:[#allocation2 + $0xb0] sm:$0xff]
          %v453 = vld [vmem:[#allocation2 + $0xb8] sm:$0xff]
          %v454 = vld [vmem:[#allocation2 + $0xc0] sm:$0xff]
          %v455 = vld [vmem:[#allocation2 + $0xc8] sm:$0xff]
          %v456 = vld [vmem:[#allocation2 + $0xd0] sm:$0xff]
          %v457 = vld [vmem:[#allocation2 + $0xd8] sm:$0xff]
          %v458 = vld [vmem:[#allocation2 + $0xe0] sm:$0xff]
          %v459 = vld [vmem:[#allocation2 + $0xe8] sm:$0xff]
          %v460 = vld [vmem:[#allocation2 + $0xf0] sm:$0xff]
          %v461 = vld [vmem:[#allocation2 + $0xf8] sm:$0xff]
          %462 = vst [vmem:[#allocation13] sm:$0xff] %v430
          %463 = vst [vmem:[#allocation13 + $0x8] sm:$0xff] %v431
          %464 = vst [vmem:[#allocation13 + $0x10] sm:$0xff] %v432
          %465 = vst [vmem:[#allocation13 + $0x18] sm:$0xff] %v433
          %466 = vst [vmem:[#allocation13 + $0x20] sm:$0xff] %v434
          %467 = vst [vmem:[#allocation13 + $0x28] sm:$0xff] %v435
          %468 = vst [vmem:[#allocation13 + $0x30] sm:$0xff] %v436
          %469 = vst [vmem:[#allocation13 + $0x38] sm:$0xff] %v437
          %470 = vst [vmem:[#allocation13 + $0x40] sm:$0xff] %v438
          %471 = vst [vmem:[#allocation13 + $0x48] sm:$0xff] %v439
          %472 = vst [vmem:[#allocation13 + $0x50] sm:$0xff] %v440
          %473 = vst [vmem:[#allocation13 + $0x58] sm:$0xff] %v441
          %474 = vst [vmem:[#allocation13 + $0x60] sm:$0xff] %v442
          %475 = vst [vmem:[#allocation13 + $0x68] sm:$0xff] %v443
          %476 = vst [vmem:[#allocation13 + $0x70] sm:$0xff] %v444
          %477 = vst [vmem:[#allocation13 + $0x78] sm:$0xff] %v445
          %478 = vst [vmem:[#allocation13 + $0x80] sm:$0xff] %v446
          %479 = vst [vmem:[#allocation13 + $0x88] sm:$0xff] %v447
          %480 = vst [vmem:[#allocation13 + $0x90] sm:$0xff] %v448
          %481 = vst [vmem:[#allocation13 + $0x98] sm:$0xff] %v449
          %482 = vst [vmem:[#allocation13 + $0xa0] sm:$0xff] %v450
          %483 = vst [vmem:[#allocation13 + $0xa8] sm:$0xff] %v451
          %484 = vst [vmem:[#allocation13 + $0xb0] sm:$0xff] %v452
          %485 = vst [vmem:[#allocation13 + $0xb8] sm:$0xff] %v453
          %486 = vst [vmem:[#allocation13 + $0xc0] sm:$0xff] %v454
          %487 = vst [vmem:[#allocation13 + $0xc8] sm:$0xff] %v455
          %488 = vst [vmem:[#allocation13 + $0xd0] sm:$0xff] %v456
          %489 = vst [vmem:[#allocation13 + $0xd8] sm:$0xff] %v457
          %490 = vst [vmem:[#allocation13 + $0xe0] sm:$0xff] %v458
          %491 = vst [vmem:[#allocation13 + $0xe8] sm:$0xff] %v459
          %492 = vst [vmem:[#allocation13 + $0xf0] sm:$0xff] %v460
          %493 = vst [vmem:[#allocation13 + $0xf8] sm:$0xff] %v461
        $region72: #{tpu_custom_call.1} parent=43 // pred_fallthru
          _
        %v494 = vld [vmem:[%s381] sm:$0xff]
        %v495 = vld [vmem:[%s381 + $0x8] sm:$0xff]
        %v496 = vld [vmem:[#allocation13] sm:$0xff]
        %v497 = vld [vmem:[#allocation13 + $0x8] sm:$0xff]
        %v498 = vld [vmem:[#allocation13 + $0x10] sm:$0xff]
        %v499 = vld [vmem:[#allocation13 + $0x18] sm:$0xff]
        %v500 = vld [vmem:[#allocation13 + $0x20] sm:$0xff]
        %v501 = vld [vmem:[#allocation13 + $0x28] sm:$0xff]
        %v502 = vld [vmem:[#allocation13 + $0x30] sm:$0xff]
        %v503 = vld [vmem:[#allocation13 + $0x38] sm:$0xff]
        %v504 = vld [vmem:[#allocation13 + $0x40] sm:$0xff]
        %v505 = vld [vmem:[#allocation13 + $0x48] sm:$0xff]
        %v506 = vld [vmem:[#allocation13 + $0x50] sm:$0xff]
        %v507 = vld [vmem:[#allocation13 + $0x58] sm:$0xff]
        %v508 = vld [vmem:[#allocation13 + $0x60] sm:$0xff]
        %v509 = vld [vmem:[#allocation13 + $0x68] sm:$0xff]
        %v510 = vld [vmem:[#allocation13 + $0x70] sm:$0xff]
        %v511 = vld [vmem:[#allocation13 + $0x78] sm:$0xff]
        %v512 = vld [vmem:[#allocation13 + $0x80] sm:$0xff]
        %v513 = vld [vmem:[#allocation13 + $0x88] sm:$0xff]
        %v514 = vld [vmem:[#allocation13 + $0x90] sm:$0xff]
        %v515 = vld [vmem:[#allocation13 + $0x98] sm:$0xff]
        %v516 = vld [vmem:[#allocation13 + $0xa0] sm:$0xff]
        %v517 = vld [vmem:[#allocation13 + $0xa8] sm:$0xff]
        %v518 = vld [vmem:[#allocation13 + $0xb0] sm:$0xff]
        %v519 = vld [vmem:[#allocation13 + $0xb8] sm:$0xff]
        %v520 = vld [vmem:[#allocation13 + $0xc0] sm:$0xff]
        %v521 = vld [vmem:[#allocation13 + $0xc8] sm:$0xff]
        %v522 = vld [vmem:[#allocation13 + $0xd0] sm:$0xff]
        %v523 = vld [vmem:[#allocation13 + $0xd8] sm:$0xff]
        %v524 = vld [vmem:[#allocation13 + $0xe0] sm:$0xff]
        %v525 = vld [vmem:[#allocation13 + $0xe8] sm:$0xff]
        %v526 = vld [vmem:[#allocation13 + $0xf0] sm:$0xff]
        %v527 = vld [vmem:[#allocation13 + $0xf8] sm:$0xff]
        %v528 = vpack.c.bf16 %v497, %v496
        %v529 = vpack.c.bf16 %v499, %v498
        %v530 = vpack.c.bf16 %v501, %v500
        %v531 = vpack.c.bf16 %v503, %v502
        %v532 = vpack.c.bf16 %v505, %v504
        %v533 = vpack.c.bf16 %v507, %v506
        %v534 = vpack.c.bf16 %v509, %v508
        %v535 = vpack.c.bf16 %v511, %v510
        %v536 = vpack.c.bf16 %v513, %v512
        %v537 = vpack.c.bf16 %v515, %v514
        %v538 = vpack.c.bf16 %v517, %v516
        %v539 = vpack.c.bf16 %v519, %v518
        %v540 = vpack.c.bf16 %v521, %v520
        %v541 = vpack.c.bf16 %v523, %v522
        %v542 = vpack.c.bf16 %v525, %v524
        %v543 = vpack.c.bf16 %v527, %v526
        %v544 = vld [vmem:[%s345] sm:$0xff]
        %v545 = vld [vmem:[%s345 + $0x8] sm:$0xf]
        %v546 = vld [vmem:[%s345 + $0xc] sm:$0xff]
        %v547 = vld [vmem:[%s345 + $0x14] sm:$0xf]
        %v548 = vld [vmem:[%s345 + $0x18] sm:$0xff]
        %v549 = vld [vmem:[%s345 + $0x20] sm:$0xf]
        %v550 = vld [vmem:[%s345 + $0x24] sm:$0xff]
        %v551 = vld [vmem:[%s345 + $0x2c] sm:$0xf]
        %v552 = vld [vmem:[%s345 + $0x30] sm:$0xff]
        %v553 = vld [vmem:[%s345 + $0x38] sm:$0xf]
        %v554 = vld [vmem:[%s345 + $0x3c] sm:$0xff]
        %v555 = vld [vmem:[%s345 + $0x44] sm:$0xf]
        %v556 = vld [vmem:[%s345 + $0x48] sm:$0xff]
        %v557 = vld [vmem:[%s345 + $0x50] sm:$0xf]
        %v558 = vld [vmem:[%s345 + $0x54] sm:$0xff]
        %v559 = vld [vmem:[%s345 + $0x5c] sm:$0xf]
        %v560 = vld [vmem:[%s345 + $0x60] sm:$0xff]
        %v561 = vld [vmem:[%s345 + $0x68] sm:$0xf]
        %v562 = vld [vmem:[%s345 + $0x6c] sm:$0xff]
        %v563 = vld [vmem:[%s345 + $0x74] sm:$0xf]
        %v564 = vld [vmem:[%s345 + $0x78] sm:$0xff]
        %v565 = vld [vmem:[%s345 + $0x80] sm:$0xf]
        %v566 = vld [vmem:[%s345 + $0x84] sm:$0xff]
        %v567 = vld [vmem:[%s345 + $0x8c] sm:$0xf]
        %v568 = vld [vmem:[%s345 + $0x90] sm:$0xff]
        %v569 = vld [vmem:[%s345 + $0x98] sm:$0xf]
        %v570 = vld [vmem:[%s345 + $0x9c] sm:$0xff]
        %v571 = vld [vmem:[%s345 + $0xa4] sm:$0xf]
        %v572 = vld [vmem:[%s345 + $0xa8] sm:$0xff]
        %v573 = vld [vmem:[%s345 + $0xb0] sm:$0xf]
        %v574 = vld [vmem:[%s345 + $0xb4] sm:$0xff]
        %v575 = vld [vmem:[%s345 + $0xbc] sm:$0xf]
        %v608 = vunpack.c.l.b16 %v544
        %v609 = vunpack.c.h.b16 %v544
        %v610 = vunpack.c.l.b16 %v545
        %v611 = vunpack.c.l.b16 %v546
        %v612 = vunpack.c.h.b16 %v546
        %v613 = vunpack.c.l.b16 %v547
        %v614 = vunpack.c.l.b16 %v548
        %v615 = vunpack.c.h.b16 %v548
        %v616 = vunpack.c.l.b16 %v549
        %v617 = vunpack.c.l.b16 %v550
        %v618 = vunpack.c.h.b16 %v550
        %v619 = vunpack.c.l.b16 %v551
        %v620 = vunpack.c.l.b16 %v552
        %v621 = vunpack.c.h.b16 %v552
        %v622 = vunpack.c.l.b16 %v553
        %v623 = vunpack.c.l.b16 %v554
        %v624 = vunpack.c.h.b16 %v554
        %v625 = vunpack.c.l.b16 %v555
        %v626 = vunpack.c.l.b16 %v556
        %v627 = vunpack.c.h.b16 %v556
        %v628 = vunpack.c.l.b16 %v557
        %v629 = vunpack.c.l.b16 %v558
        %v630 = vunpack.c.h.b16 %v558
        %v631 = vunpack.c.l.b16 %v559
        %v632 = vunpack.c.l.b16 %v560
        %v633 = vunpack.c.h.b16 %v560
        %v634 = vunpack.c.l.b16 %v561
        %v635 = vunpack.c.l.b16 %v562
        %v636 = vunpack.c.h.b16 %v562
        %v637 = vunpack.c.l.b16 %v563
        %v638 = vunpack.c.l.b16 %v564
        %v639 = vunpack.c.h.b16 %v564
        %v640 = vunpack.c.l.b16 %v565
        %v641 = vunpack.c.l.b16 %v566
        %v642 = vunpack.c.h.b16 %v566
        %v643 = vunpack.c.l.b16 %v567
        %v644 = vunpack.c.l.b16 %v568
        %v645 = vunpack.c.h.b16 %v568
        %v646 = vunpack.c.l.b16 %v569
        %v647 = vunpack.c.l.b16 %v570
        %v648 = vunpack.c.h.b16 %v570
        %v649 = vunpack.c.l.b16 %v571
        %v650 = vunpack.c.l.b16 %v572
        %v651 = vunpack.c.h.b16 %v572
        %v652 = vunpack.c.l.b16 %v573
        %v653 = vunpack.c.l.b16 %v574
        %v654 = vunpack.c.h.b16 %v574
        %v655 = vunpack.c.l.b16 %v575
        %v656 = vpack.c.b16 %v611, %v608
        %v657 = vpack.c.b16 %v612, %v609
        %v658 = vpack.c.b16 %v613, %v610
        %v659 = vpack.c.b16 %v617, %v614
        %v660 = vpack.c.b16 %v618, %v615
        %v661 = vpack.c.b16 %v619, %v616
        %v662 = vpack.c.b16 %v623, %v620
        %v663 = vpack.c.b16 %v624, %v621
        %v664 = vpack.c.b16 %v625, %v622
        %v665 = vpack.c.b16 %v629, %v626
        %v666 = vpack.c.b16 %v630, %v627
        %v667 = vpack.c.b16 %v631, %v628
        %v668 = vpack.c.b16 %v635, %v632
        %v669 = vpack.c.b16 %v636, %v633
        %v670 = vpack.c.b16 %v637, %v634
        %v671 = vpack.c.b16 %v641, %v638
        %v672 = vpack.c.b16 %v642, %v639
        %v673 = vpack.c.b16 %v643, %v640
        %v674 = vpack.c.b16 %v647, %v644
        %v675 = vpack.c.b16 %v648, %v645
        %v676 = vpack.c.b16 %v649, %v646
        %v677 = vpack.c.b16 %v653, %v650
        %v678 = vpack.c.b16 %v654, %v651
        %v679 = vpack.c.b16 %v655, %v652
        %704 = vmatprep.subr.bf16.mxu0 %v657
        %705 = vmatpush1.bf16.msra.mxu0 %v656
        %706 = vmatprep.subr.bf16.mxu0 %v660
        %707 = vmatpush1.bf16.msra.mxu0 %v659
        %708 = vmatprep.subr.bf16.mxu0 %v663
        %709 = vmatpush1.bf16.msra.mxu0 %v662
        %710 = vmatprep.subr.bf16.mxu0 %v666
        %711 = vmatpush1.bf16.msra.mxu0 %v665
        %712 = vmatprep.subr.bf16.mxu0 %v669
        %713 = vmatpush1.bf16.msra.mxu0 %v668
        %714 = vmatprep.subr.bf16.mxu0 %v672
        %715 = vmatpush1.bf16.msra.mxu0 %v671
        %716 = vmatprep.subr.bf16.mxu0 %v675
        %717 = vmatpush1.bf16.msra.mxu0 %v674
        %718 = vmatprep.subr.bf16.mxu0 %v678
        %719 = vmatpush1.bf16.msra.mxu0 %v677
        %720 = vmatprep.subr.bf16.mxu0 0
        %721 = vmatpush1.bf16.msra.mxu0 0
        %722 = vmatprep.subr.bf16.mxu0 0
        %723 = vmatpush1.bf16.msra.mxu0 0
        %724 = vmatprep.subr.bf16.mxu0 0
        %725 = vmatpush1.bf16.msra.mxu0 0
        %726 = vmatprep.subr.bf16.mxu0 0
        %727 = vmatpush1.bf16.msra.mxu0 0
        %728 = vmatprep.subr.bf16.mxu0 0
        %729 = vmatpush1.bf16.msra.mxu0 0
        %730 = vmatprep.subr.bf16.mxu0 0
        %731 = vmatpush1.bf16.msra.mxu0 0
        %732 = vmatprep.subr.bf16.mxu0 0
        %733 = vmatpush1.bf16.msra.mxu0 0
        %734 = vmatprep.subr.bf16.mxu0 0
        %735 = vmatpush1.bf16.msra.mxu0 0
        %736 = vmatprep.mubr.bf16.mxu0 0
        %737 = vmatmul.mubr.bf16.gmra.mrb[0].mxu0 %v528
        %v738 = vpop.f32.mrb[0].mxu0
        %v739 = vadd.f32 0.0, %v738
        %v740 = vpop.f32.mrb[0].mxu0
        %v741 = vadd.f32 0.0, %v740
        %v742 = vpop.f32.mrb[0].mxu0
        %v743 = vadd.f32 0.0, %v742
        %v744 = vpop.f32.mrb[0].mxu0
        %v745 = vadd.f32 0.0, %v744
        %746 = vmatprep.mubr.bf16.mxu0 0
        %747 = vmatmul.mubr.bf16.gmra.mrb[0].mxu0 %v529
        %v748 = vpop.f32.mrb[0].mxu0
        %v749 = vadd.f32 0.0, %v748
        %v750 = vpop.f32.mrb[0].mxu0
        %v751 = vadd.f32 0.0, %v750
        %v752 = vpop.f32.mrb[0].mxu0
        %v753 = vadd.f32 0.0, %v752
        %v754 = vpop.f32.mrb[0].mxu0
        %v755 = vadd.f32 0.0, %v754
        %756 = vmatprep.mubr.bf16.mxu0 0
        %757 = vmatmul.mubr.bf16.gmra.mrb[0].mxu0 %v530
        %v758 = vpop.f32.mrb[0].mxu0
        %v759 = vadd.f32 0.0, %v758
        %v760 = vpop.f32.mrb[0].mxu0
        %v761 = vadd.f32 0.0, %v760
        %v762 = vpop.f32.mrb[0].mxu0
        %v763 = vadd.f32 0.0, %v762
        %v764 = vpop.f32.mrb[0].mxu0
        %v765 = vadd.f32 0.0, %v764
        %766 = vmatprep.mubr.bf16.mxu0 0
        %767 = vmatmul.mubr.bf16.gmra.mrb[0].mxu0 %v531
        %v768 = vpop.f32.mrb[0].mxu0
        %v769 = vadd.f32 0.0, %v768
        %v770 = vpop.f32.mrb[0].mxu0
        %v771 = vadd.f32 0.0, %v770
        %v772 = vpop.f32.mrb[0].mxu0
        %v773 = vadd.f32 0.0, %v772
        %v774 = vpop.f32.mrb[0].mxu0
        %v775 = vadd.f32 0.0, %v774
        %776 = vmatprep.mubr.bf16.mxu0 0
        %777 = vmatmul.mubr.bf16.gmra.mrb[0].mxu0 %v532
        %v778 = vpop.f32.mrb[0].mxu0
        %v779 = vadd.f32 0.0, %v778
        %v780 = vpop.f32.mrb[0].mxu0
        %v781 = vadd.f32 0.0, %v780
        %v782 = vpop.f32.mrb[0].mxu0
        %v783 = vadd.f32 0.0, %v782
        %v784 = vpop.f32.mrb[0].mxu0
        %v785 = vadd.f32 0.0, %v784
        %786 = vmatprep.mubr.bf16.mxu0 0
        %787 = vmatmul.mubr.bf16.gmra.mrb[0].mxu0 %v533
        %v788 = vpop.f32.mrb[0].mxu0
        %v789 = vadd.f32 0.0, %v788
        %v790 = vpop.f32.mrb[0].mxu0
        %v791 = vadd.f32 0.0, %v790
        %v792 = vpop.f32.mrb[0].mxu0
        %v793 = vadd.f32 0.0, %v792
        %v794 = vpop.f32.mrb[0].mxu0
        %v795 = vadd.f32 0.0, %v794
        %796 = vmatprep.mubr.bf16.mxu0 0
        %797 = vmatmul.mubr.bf16.gmra.mrb[0].mxu0 %v534
        %v798 = vpop.f32.mrb[0].mxu0
        %v799 = vadd.f32 0.0, %v798
        %v800 = vpop.f32.mrb[0].mxu0
        %v801 = vadd.f32 0.0, %v800
        %v802 = vpop.f32.mrb[0].mxu0
        %v803 = vadd.f32 0.0, %v802
        %v804 = vpop.f32.mrb[0].mxu0
        %v805 = vadd.f32 0.0, %v804
        %806 = vmatprep.mubr.bf16.mxu0 0
        %807 = vmatmul.mubr.bf16.gmra.mrb[0].mxu0 %v535
        %v808 = vpop.f32.mrb[0].mxu0
        %v809 = vadd.f32 0.0, %v808
        %v810 = vpop.f32.mrb[0].mxu0
        %v811 = vadd.f32 0.0, %v810
        %v812 = vpop.f32.mrb[0].mxu0
        %v813 = vadd.f32 0.0, %v812
        %v814 = vpop.f32.mrb[0].mxu0
        %v815 = vadd.f32 0.0, %v814
        %816 = vmatprep.mubr.bf16.mxu0 0
        %817 = vmatmul.mubr.bf16.gmra.mrb[0].mxu0 %v536
        %v818 = vpop.f32.mrb[0].mxu0
        %v819 = vadd.f32 0.0, %v818
        %v820 = vpop.f32.mrb[0].mxu0
        %v821 = vadd.f32 0.0, %v820
        %v822 = vpop.f32.mrb[0].mxu0
        %v823 = vadd.f32 0.0, %v822
        %v824 = vpop.f32.mrb[0].mxu0
        %v825 = vadd.f32 0.0, %v824
        %826 = vmatprep.mubr.bf16.mxu0 0
        %827 = vmatmul.mubr.bf16.gmra.mrb[0].mxu0 %v537
        %v828 = vpop.f32.mrb[0].mxu0
        %v829 = vadd.f32 0.0, %v828
        %v830 = vpop.f32.mrb[0].mxu0
        %v831 = vadd.f32 0.0, %v830
        %v832 = vpop.f32.mrb[0].mxu0
        %v833 = vadd.f32 0.0, %v832
        %v834 = vpop.f32.mrb[0].mxu0
        %v835 = vadd.f32 0.0, %v834
        %836 = vmatprep.mubr.bf16.mxu0 0
        %837 = vmatmul.mubr.bf16.gmra.mrb[0].mxu0 %v538
        %v838 = vpop.f32.mrb[0].mxu0
        %v839 = vadd.f32 0.0, %v838
        %v840 = vpop.f32.mrb[0].mxu0
        %v841 = vadd.f32 0.0, %v840
        %v842 = vpop.f32.mrb[0].mxu0
        %v843 = vadd.f32 0.0, %v842
        %v844 = vpop.f32.mrb[0].mxu0
        %v845 = vadd.f32 0.0, %v844
        %846 = vmatprep.mubr.bf16.mxu0 0
        %847 = vmatmul.mubr.bf16.gmra.mrb[0].mxu0 %v539
        %v848 = vpop.f32.mrb[0].mxu0
        %v849 = vadd.f32 0.0, %v848
        %v850 = vpop.f32.mrb[0].mxu0
        %v851 = vadd.f32 0.0, %v850
        %v852 = vpop.f32.mrb[0].mxu0
        %v853 = vadd.f32 0.0, %v852
        %v854 = vpop.f32.mrb[0].mxu0
        %v855 = vadd.f32 0.0, %v854
        %856 = vmatprep.mubr.bf16.mxu0 0
        %857 = vmatmul.mubr.bf16.gmra.mrb[0].mxu0 %v540
        %v858 = vpop.f32.mrb[0].mxu0
        %v859 = vadd.f32 0.0, %v858
        %v860 = vpop.f32.mrb[0].mxu0
        %v861 = vadd.f32 0.0, %v860
        %v862 = vpop.f32.mrb[0].mxu0
        %v863 = vadd.f32 0.0, %v862
        %v864 = vpop.f32.mrb[0].mxu0
        %v865 = vadd.f32 0.0, %v864
        %866 = vmatprep.mubr.bf16.mxu0 0
        %867 = vmatmul.mubr.bf16.gmra.mrb[0].mxu0 %v541
        %v868 = vpop.f32.mrb[0].mxu0
        %v869 = vadd.f32 0.0, %v868
        %v870 = vpop.f32.mrb[0].mxu0
        %v871 = vadd.f32 0.0, %v870
        %v872 = vpop.f32.mrb[0].mxu0
        %v873 = vadd.f32 0.0, %v872
        %v874 = vpop.f32.mrb[0].mxu0
        %v875 = vadd.f32 0.0, %v874
        %876 = vmatprep.mubr.bf16.mxu0 0
        %877 = vmatmul.mubr.bf16.gmra.mrb[0].mxu0 %v542
        %v878 = vpop.f32.mrb[0].mxu0
        %v879 = vadd.f32 0.0, %v878
        %v880 = vpop.f32.mrb[0].mxu0
        %v881 = vadd.f32 0.0, %v880
        %v882 = vpop.f32.mrb[0].mxu0
        %v883 = vadd.f32 0.0, %v882
        %v884 = vpop.f32.mrb[0].mxu0
        %v885 = vadd.f32 0.0, %v884
        %886 = vmatprep.mubr.bf16.mxu0 0
        %887 = vmatmul.mubr.bf16.gmra.mrb[0].mxu0 %v543
        %v888 = vpop.f32.mrb[0].mxu0
        %v889 = vadd.f32 0.0, %v888
        %v890 = vpop.f32.mrb[0].mxu0
        %v891 = vadd.f32 0.0, %v890
        %v892 = vpop.f32.mrb[0].mxu0
        %v893 = vadd.f32 0.0, %v892
        %v894 = vpop.f32.mrb[0].mxu0
        %v895 = vadd.f32 0.0, %v894
        %896 = vdwg.mxu0
        %897 = vmatprep.subr.bf16.mxu0 0
        %898 = vmatpush1.bf16.msra.mxu0 %v658
        %899 = vmatprep.subr.bf16.mxu0 0
        %900 = vmatpush1.bf16.msra.mxu0 %v661
        %901 = vmatprep.subr.bf16.mxu0 0
        %902 = vmatpush1.bf16.msra.mxu0 %v664
        %903 = vmatprep.subr.bf16.mxu0 0
        %904 = vmatpush1.bf16.msra.mxu0 %v667
        %905 = vmatprep.subr.bf16.mxu0 0
        %906 = vmatpush1.bf16.msra.mxu0 %v670
        %907 = vmatprep.subr.bf16.mxu0 0
        %908 = vmatpush1.bf16.msra.mxu0 %v673
        %909 = vmatprep.subr.bf16.mxu0 0
        %910 = vmatpush1.bf16.msra.mxu0 %v676
        %911 = vmatprep.subr.bf16.mxu0 0
        %912 = vmatpush1.bf16.msra.mxu0 %v679
        %913 = vmatprep.subr.bf16.mxu0 0
        %914 = vmatpush1.bf16.msra.mxu0 0
        %915 = vmatprep.subr.bf16.mxu0 0
        %916 = vmatpush1.bf16.msra.mxu0 0
        %917 = vmatprep.subr.bf16.mxu0 0
        %918 = vmatpush1.bf16.msra.mxu0 0
        %919 = vmatprep.subr.bf16.mxu0 0
        %920 = vmatpush1.bf16.msra.mxu0 0
        %921 = vmatprep.subr.bf16.mxu0 0
        %922 = vmatpush1.bf16.msra.mxu0 0
        %923 = vmatprep.subr.bf16.mxu0 0
        %924 = vmatpush1.bf16.msra.mxu0 0
        %925 = vmatprep.subr.bf16.mxu0 0
        %926 = vmatpush1.bf16.msra.mxu0 0
        %927 = vmatprep.subr.bf16.mxu0 0
        %928 = vmatpush1.bf16.msra.mxu0 0
        %929 = vmatprep.mubr.bf16.mxu0 0
        %930 = vmatmul.mubr.bf16.gmra.mrb[0].mxu0 %v528
        %v931 = vpop.f32.mrb[0].mxu0
        %v932 = vadd.f32 0.0, %v931
        %v933 = vpop.f32.mrb[0].mxu0
        %v934 = vpop.f32.mrb[0].mxu0
        %v935 = vadd.f32 0.0, %v934
        %v936 = vpop.f32.mrb[0].mxu0
        %937 = vmatprep.mubr.bf16.mxu0 0
        %938 = vmatmul.mubr.bf16.gmra.mrb[0].mxu0 %v529
        %v939 = vpop.f32.mrb[0].mxu0
        %v940 = vadd.f32 0.0, %v939
        %v941 = vpop.f32.mrb[0].mxu0
        %v942 = vpop.f32.mrb[0].mxu0
        %v943 = vadd.f32 0.0, %v942
        %v944 = vpop.f32.mrb[0].mxu0
        %945 = vmatprep.mubr.bf16.mxu0 0
        %946 = vmatmul.mubr.bf16.gmra.mrb[0].mxu0 %v530
        %v947 = vpop.f32.mrb[0].mxu0
        %v948 = vadd.f32 0.0, %v947
        %v949 = vpop.f32.mrb[0].mxu0
        %v950 = vpop.f32.mrb[0].mxu0
        %v951 = vadd.f32 0.0, %v950
        %v952 = vpop.f32.mrb[0].mxu0
        %953 = vmatprep.mubr.bf16.mxu0 0
        %954 = vmatmul.mubr.bf16.gmra.mrb[0].mxu0 %v531
        %v955 = vpop.f32.mrb[0].mxu0
        %v956 = vadd.f32 0.0, %v955
        %v957 = vpop.f32.mrb[0].mxu0
        %v958 = vpop.f32.mrb[0].mxu0
        %v959 = vadd.f32 0.0, %v958
        %v960 = vpop.f32.mrb[0].mxu0
        %961 = vmatprep.mubr.bf16.mxu0 0
        %962 = vmatmul.mubr.bf16.gmra.mrb[0].mxu0 %v532
        %v963 = vpop.f32.mrb[0].mxu0
        %v964 = vadd.f32 0.0, %v963
        %v965 = vpop.f32.mrb[0].mxu0
        %v966 = vpop.f32.mrb[0].mxu0
        %v967 = vadd.f32 0.0, %v966
        %v968 = vpop.f32.mrb[0].mxu0
        %969 = vmatprep.mubr.bf16.mxu0 0
        %970 = vmatmul.mubr.bf16.gmra.mrb[0].mxu0 %v533
        %v971 = vpop.f32.mrb[0].mxu0
        %v972 = vadd.f32 0.0, %v971
        %v973 = vpop.f32.mrb[0].mxu0
        %v974 = vpop.f32.mrb[0].mxu0
        %v975 = vadd.f32 0.0, %v974
        %v976 = vpop.f32.mrb[0].mxu0
        %977 = vmatprep.mubr.bf16.mxu0 0
        %978 = vmatmul.mubr.bf16.gmra.mrb[0].mxu0 %v534
        %v979 = vpop.f32.mrb[0].mxu0
        %v980 = vadd.f32 0.0, %v979
        %v981 = vpop.f32.mrb[0].mxu0
        %v982 = vpop.f32.mrb[0].mxu0
        %v983 = vadd.f32 0.0, %v982
        %v984 = vpop.f32.mrb[0].mxu0
        %985 = vmatprep.mubr.bf16.mxu0 0
        %986 = vmatmul.mubr.bf16.gmra.mrb[0].mxu0 %v535
        %v987 = vpop.f32.mrb[0].mxu0
        %v988 = vadd.f32 0.0, %v987
        %v989 = vpop.f32.mrb[0].mxu0
        %v990 = vpop.f32.mrb[0].mxu0
        %v991 = vadd.f32 0.0, %v990
        %v992 = vpop.f32.mrb[0].mxu0
        %993 = vmatprep.mubr.bf16.mxu0 0
        %994 = vmatmul.mubr.bf16.gmra.mrb[0].mxu0 %v536
        %v995 = vpop.f32.mrb[0].mxu0
        %v996 = vadd.f32 0.0, %v995
        %v997 = vpop.f32.mrb[0].mxu0
        %v998 = vpop.f32.mrb[0].mxu0
        %v999 = vadd.f32 0.0, %v998
        %v1000 = vpop.f32.mrb[0].mxu0
        %1001 = vmatprep.mubr.bf16.mxu0 0
        %1002 = vmatmul.mubr.bf16.gmra.mrb[0].mxu0 %v537
        %v1003 = vpop.f32.mrb[0].mxu0
        %v1004 = vadd.f32 0.0, %v1003
        %v1005 = vpop.f32.mrb[0].mxu0
        %v1006 = vpop.f32.mrb[0].mxu0
        %v1007 = vadd.f32 0.0, %v1006
        %v1008 = vpop.f32.mrb[0].mxu0
        %1009 = vmatprep.mubr.bf16.mxu0 0
        %1010 = vmatmul.mubr.bf16.gmra.mrb[0].mxu0 %v538
        %v1011 = vpop.f32.mrb[0].mxu0
        %v1012 = vadd.f32 0.0, %v1011
        %v1013 = vpop.f32.mrb[0].mxu0
        %v1014 = vpop.f32.mrb[0].mxu0
        %v1015 = vadd.f32 0.0, %v1014
        %v1016 = vpop.f32.mrb[0].mxu0
        %1017 = vmatprep.mubr.bf16.mxu0 0
        %1018 = vmatmul.mubr.bf16.gmra.mrb[0].mxu0 %v539
        %v1019 = vpop.f32.mrb[0].mxu0
        %v1020 = vadd.f32 0.0, %v1019
        %v1021 = vpop.f32.mrb[0].mxu0
        %v1022 = vpop.f32.mrb[0].mxu0
        %v1023 = vadd.f32 0.0, %v1022
        %v1024 = vpop.f32.mrb[0].mxu0
        %1025 = vmatprep.mubr.bf16.mxu0 0
        %1026 = vmatmul.mubr.bf16.gmra.mrb[0].mxu0 %v540
        %v1027 = vpop.f32.mrb[0].mxu0
        %v1028 = vadd.f32 0.0, %v1027
        %v1029 = vpop.f32.mrb[0].mxu0
        %v1030 = vpop.f32.mrb[0].mxu0
        %v1031 = vadd.f32 0.0, %v1030
        %v1032 = vpop.f32.mrb[0].mxu0
        %1033 = vmatprep.mubr.bf16.mxu0 0
        %1034 = vmatmul.mubr.bf16.gmra.mrb[0].mxu0 %v541
        %v1035 = vpop.f32.mrb[0].mxu0
        %v1036 = vadd.f32 0.0, %v1035
        %v1037 = vpop.f32.mrb[0].mxu0
        %v1038 = vpop.f32.mrb[0].mxu0
        %v1039 = vadd.f32 0.0, %v1038
        %v1040 = vpop.f32.mrb[0].mxu0
        %1041 = vmatprep.mubr.bf16.mxu0 0
        %1042 = vmatmul.mubr.bf16.gmra.mrb[0].mxu0 %v542
        %v1043 = vpop.f32.mrb[0].mxu0
        %v1044 = vadd.f32 0.0, %v1043
        %v1045 = vpop.f32.mrb[0].mxu0
        %v1046 = vpop.f32.mrb[0].mxu0
        %v1047 = vadd.f32 0.0, %v1046
        %v1048 = vpop.f32.mrb[0].mxu0
        %1049 = vmatprep.mubr.bf16.mxu0 0
        %1050 = vmatmul.mubr.bf16.gmra.mrb[0].mxu0 %v543
        %v1051 = vpop.f32.mrb[0].mxu0
        %v1052 = vadd.f32 0.0, %v1051
        %v1053 = vpop.f32.mrb[0].mxu0
        %v1054 = vpop.f32.mrb[0].mxu0
        %v1055 = vadd.f32 0.0, %v1054
        %v1056 = vpop.f32.mrb[0].mxu0
        %1057 = vdwg.mxu0
        %v1058 = vlaneseq
        %v1059 = vshrl.u32 %v1058, 7
        %v1060 = vsub.s32 0, %v1059
        %v1061 = vrot.slane %v494, %v1060
        %v1062 = vadd.f32 %v739, %v1061
        %v1063 = vadd.f32 %v743, %v1061
        %v1064 = vadd.f32 %v749, %v1061
        %v1065 = vadd.f32 %v753, %v1061
        %v1066 = vadd.f32 %v759, %v1061
        %v1067 = vadd.f32 %v763, %v1061
        %v1068 = vadd.f32 %v769, %v1061
        %v1069 = vadd.f32 %v773, %v1061
        %v1070 = vadd.f32 %v779, %v1061
        %v1071 = vadd.f32 %v783, %v1061
        %v1072 = vadd.f32 %v789, %v1061
        %v1073 = vadd.f32 %v793, %v1061
        %v1074 = vadd.f32 %v799, %v1061
        %v1075 = vadd.f32 %v803, %v1061
        %v1076 = vadd.f32 %v809, %v1061
        %v1077 = vadd.f32 %v813, %v1061
        %v1078 = vadd.f32 %v819, %v1061
        %v1079 = vadd.f32 %v823, %v1061
        %v1080 = vadd.f32 %v829, %v1061
        %v1081 = vadd.f32 %v833, %v1061
        %v1082 = vadd.f32 %v839, %v1061
        %v1083 = vadd.f32 %v843, %v1061
        %v1084 = vadd.f32 %v849, %v1061
        %v1085 = vadd.f32 %v853, %v1061
        %v1086 = vadd.f32 %v859, %v1061
        %v1087 = vadd.f32 %v863, %v1061
        %v1088 = vadd.f32 %v869, %v1061
        %v1089 = vadd.f32 %v873, %v1061
        %v1090 = vadd.f32 %v879, %v1061
        %v1091 = vadd.f32 %v883, %v1061
        %v1092 = vadd.f32 %v889, %v1061
        %v1093 = vadd.f32 %v893, %v1061
        %v1094 = vpack.c.bf16 %v1063, %v1062
        %v1095 = vpack.c.bf16 %v1065, %v1064
        %v1096 = vpack.c.bf16 %v1067, %v1066
        %v1097 = vpack.c.bf16 %v1069, %v1068
        %v1098 = vpack.c.bf16 %v1071, %v1070
        %v1099 = vpack.c.bf16 %v1073, %v1072
        %v1100 = vpack.c.bf16 %v1075, %v1074
        %v1101 = vpack.c.bf16 %v1077, %v1076
        %v1102 = vpack.c.bf16 %v1079, %v1078
        %v1103 = vpack.c.bf16 %v1081, %v1080
        %v1104 = vpack.c.bf16 %v1083, %v1082
        %v1105 = vpack.c.bf16 %v1085, %v1084
        %v1106 = vpack.c.bf16 %v1087, %v1086
        %v1107 = vpack.c.bf16 %v1089, %v1088
        %v1108 = vpack.c.bf16 %v1091, %v1090
        %v1109 = vpack.c.bf16 %v1093, %v1092
        %v1110 = vlaneseq
        %v1111 = vshrl.u32 %v1110, 7
        %v1112 = vsub.s32 1, %v1111
        %v1113 = vrot.slane %v494, %v1112
        %v1114 = vadd.f32 %v741, %v1113
        %v1115 = vadd.f32 %v745, %v1113
        %v1116 = vadd.f32 %v751, %v1113
        %v1117 = vadd.f32 %v755, %v1113
        %v1118 = vadd.f32 %v761, %v1113
        %v1119 = vadd.f32 %v765, %v1113
        %v1120 = vadd.f32 %v771, %v1113
        %v1121 = vadd.f32 %v775, %v1113
        %v1122 = vadd.f32 %v781, %v1113
        %v1123 = vadd.f32 %v785, %v1113
        %v1124 = vadd.f32 %v791, %v1113
        %v1125 = vadd.f32 %v795, %v1113
        %v1126 = vadd.f32 %v801, %v1113
        %v1127 = vadd.f32 %v805, %v1113
        %v1128 = vadd.f32 %v811, %v1113
        %v1129 = vadd.f32 %v815, %v1113
        %v1130 = vadd.f32 %v821, %v1113
        %v1131 = vadd.f32 %v825, %v1113
        %v1132 = vadd.f32 %v831, %v1113
        %v1133 = vadd.f32 %v835, %v1113
        %v1134 = vadd.f32 %v841, %v1113
        %v1135 = vadd.f32 %v845, %v1113
        %v1136 = vadd.f32 %v851, %v1113
        %v1137 = vadd.f32 %v855, %v1113
        %v1138 = vadd.f32 %v861, %v1113
        %v1139 = vadd.f32 %v865, %v1113
        %v1140 = vadd.f32 %v871, %v1113
        %v1141 = vadd.f32 %v875, %v1113
        %v1142 = vadd.f32 %v881, %v1113
        %v1143 = vadd.f32 %v885, %v1113
        %v1144 = vadd.f32 %v891, %v1113
        %v1145 = vadd.f32 %v895, %v1113
        %v1146 = vpack.c.bf16 %v1115, %v1114
        %v1147 = vpack.c.bf16 %v1117, %v1116
        %v1148 = vpack.c.bf16 %v1119, %v1118
        %v1149 = vpack.c.bf16 %v1121, %v1120
        %v1150 = vpack.c.bf16 %v1123, %v1122
        %v1151 = vpack.c.bf16 %v1125, %v1124
        %v1152 = vpack.c.bf16 %v1127, %v1126
        %v1153 = vpack.c.bf16 %v1129, %v1128
        %v1154 = vpack.c.bf16 %v1131, %v1130
        %v1155 = vpack.c.bf16 %v1133, %v1132
        %v1156 = vpack.c.bf16 %v1135, %v1134
        %v1157 = vpack.c.bf16 %v1137, %v1136
        %v1158 = vpack.c.bf16 %v1139, %v1138
        %v1159 = vpack.c.bf16 %v1141, %v1140
        %v1160 = vpack.c.bf16 %v1143, %v1142
        %v1161 = vpack.c.bf16 %v1145, %v1144
        %v1162 = vlaneseq
        %v1163 = vshrl.u32 %v1162, 7
        %v1164 = vsub.s32 2, %v1163
        %v1165 = vrot.slane %v494, %v1164
        %v1166 = vadd.f32 %v932, %v1165
        %v1167 = vadd.f32 %v935, %v1165
        %v1168 = vadd.f32 %v940, %v1165
        %v1169 = vadd.f32 %v943, %v1165
        %v1170 = vadd.f32 %v948, %v1165
        %v1171 = vadd.f32 %v951, %v1165
        %v1172 = vadd.f32 %v956, %v1165
        %v1173 = vadd.f32 %v959, %v1165
        %v1174 = vadd.f32 %v964, %v1165
        %v1175 = vadd.f32 %v967, %v1165
        %v1176 = vadd.f32 %v972, %v1165
        %v1177 = vadd.f32 %v975, %v1165
        %v1178 = vadd.f32 %v980, %v1165
        %v1179 = vadd.f32 %v983, %v1165
        %v1180 = vadd.f32 %v988, %v1165
        %v1181 = vadd.f32 %v991, %v1165
        %v1182 = vadd.f32 %v996, %v1165
        %v1183 = vadd.f32 %v999, %v1165
        %v1184 = vadd.f32 %v1004, %v1165
        %v1185 = vadd.f32 %v1007, %v1165
        %v1186 = vadd.f32 %v1012, %v1165
        %v1187 = vadd.f32 %v1015, %v1165
        %v1188 = vadd.f32 %v1020, %v1165
        %v1189 = vadd.f32 %v1023, %v1165
        %v1190 = vadd.f32 %v1028, %v1165
        %v1191 = vadd.f32 %v1031, %v1165
        %v1192 = vadd.f32 %v1036, %v1165
        %v1193 = vadd.f32 %v1039, %v1165
        %v1194 = vadd.f32 %v1044, %v1165
        %v1195 = vadd.f32 %v1047, %v1165
        %v1196 = vadd.f32 %v1052, %v1165
        %v1197 = vadd.f32 %v1055, %v1165
        %v1198 = vpack.c.bf16 %v1167, %v1166
        %v1199 = vpack.c.bf16 %v1169, %v1168
        %v1200 = vpack.c.bf16 %v1171, %v1170
        %v1201 = vpack.c.bf16 %v1173, %v1172
        %v1202 = vpack.c.bf16 %v1175, %v1174
        %v1203 = vpack.c.bf16 %v1177, %v1176
        %v1204 = vpack.c.bf16 %v1179, %v1178
        %v1205 = vpack.c.bf16 %v1181, %v1180
        %v1206 = vpack.c.bf16 %v1183, %v1182
        %v1207 = vpack.c.bf16 %v1185, %v1184
        %v1208 = vpack.c.bf16 %v1187, %v1186
        %v1209 = vpack.c.bf16 %v1189, %v1188
        %v1210 = vpack.c.bf16 %v1191, %v1190
        %v1211 = vpack.c.bf16 %v1193, %v1192
        %v1212 = vpack.c.bf16 %v1195, %v1194
        %v1213 = vpack.c.bf16 %v1197, %v1196
        %v1214 = vld [vmem:[%s354] sm:$0xf]
        %v1215 = vld [vmem:[%s354 + $0x4] sm:$0xf]
        %v1216 = vld [vmem:[%s354 + $0x8] sm:$0xf]
        %v1217 = vld [vmem:[%s354 + $0xc] sm:$0xf]
        %v1218 = vld [vmem:[%s354 + $0x10] sm:$0xf]
        %v1219 = vld [vmem:[%s354 + $0x14] sm:$0xf]
        %v1220 = vld [vmem:[%s354 + $0x18] sm:$0xf]
        %v1221 = vld [vmem:[%s354 + $0x1c] sm:$0xf]
        %v1222 = vld [vmem:[%s354 + $0x20] sm:$0xf]
        %v1223 = vld [vmem:[%s354 + $0x24] sm:$0xf]
        %v1224 = vld [vmem:[%s354 + $0x28] sm:$0xf]
        %v1225 = vld [vmem:[%s354 + $0x2c] sm:$0xf]
        %v1226 = vld [vmem:[%s354 + $0x30] sm:$0xf]
        %v1227 = vld [vmem:[%s354 + $0x34] sm:$0xf]
        %v1228 = vld [vmem:[%s354 + $0x38] sm:$0xf]
        %v1229 = vld [vmem:[%s354 + $0x3c] sm:$0xf]
        %vm1230 = vcmask 261120
        %v1232 = vsel %vm1230, %v1094, 0
        %v1235 = vsel %vm1230, %v1095, 0
        %v1238 = vsel %vm1230, %v1096, 0
        %v1241 = vsel %vm1230, %v1097, 0
        %v1244 = vsel %vm1230, %v1098, 0
        %v1247 = vsel %vm1230, %v1099, 0
        %v1250 = vsel %vm1230, %v1100, 0
        %v1253 = vsel %vm1230, %v1101, 0
        %v1256 = vsel %vm1230, %v1146, 0
        %v1259 = vsel %vm1230, %v1147, 0
        %v1262 = vsel %vm1230, %v1148, 0
        %v1265 = vsel %vm1230, %v1149, 0
        %v1268 = vsel %vm1230, %v1150, 0
        %v1271 = vsel %vm1230, %v1151, 0
        %v1274 = vsel %vm1230, %v1152, 0
        %v1277 = vsel %vm1230, %v1153, 0
        %1279 = vmatprep.subr.bf16.mxu0 0
        %1280 = vmatpush1.bf16.xpose.msra.mxu0 %v1256
        %1281 = vmatprep.subr.bf16.mxu0 0
        %1282 = vmatpush1.bf16.xpose.msra.mxu0 %v1259
        %1283 = vmatprep.subr.bf16.mxu0 0
        %1284 = vmatpush1.bf16.xpose.msra.mxu0 %v1262
        %1285 = vmatprep.subr.bf16.mxu0 0
        %1286 = vmatpush1.bf16.xpose.msra.mxu0 %v1265
        %1287 = vmatprep.subr.bf16.mxu0 0
        %1288 = vmatpush1.bf16.xpose.msra.mxu0 %v1268
        %1289 = vmatprep.subr.bf16.mxu0 0
        %1290 = vmatpush1.bf16.xpose.msra.mxu0 %v1271
        %1291 = vmatprep.subr.bf16.mxu0 0
        %1292 = vmatpush1.bf16.xpose.msra.mxu0 %v1274
        %1293 = vmatprep.subr.bf16.mxu0 0
        %1294 = vmatpush1.bf16.xpose.msra.mxu0 %v1277
        %1295 = vmatprep.subr.bf16.mxu0 0
        %1296 = vmatpush1.bf16.xpose.msra.mxu0 0
        %1297 = vmatprep.subr.bf16.mxu0 0
        %1298 = vmatpush1.bf16.xpose.msra.mxu0 0
        %1299 = vmatprep.subr.bf16.mxu0 0
        %1300 = vmatpush1.bf16.xpose.msra.mxu0 0
        %1301 = vmatprep.subr.bf16.mxu0 0
        %1302 = vmatpush1.bf16.xpose.msra.mxu0 0
        %1303 = vmatprep.subr.bf16.mxu0 0
        %1304 = vmatpush1.bf16.xpose.msra.mxu0 0
        %1305 = vmatprep.subr.bf16.mxu0 0
        %1306 = vmatpush1.bf16.xpose.msra.mxu0 0
        %1307 = vmatprep.subr.bf16.mxu0 0
        %1308 = vmatpush1.bf16.xpose.msra.mxu0 0
        %1309 = vmatprep.subr.bf16.mxu0 0
        %1310 = vmatpush1.bf16.xpose.msra.mxu0 0
        %1311 = vmatprep.mubr.bf16.mxu0 0
        %1312 = vmatmul.mubr.bf16.gmra.mrb[0].mxu0 %v1232
        %v1313 = vpop.f32.mrb[0].mxu0
        %v1314 = vadd.f32 0.0, %v1313
        %v1315 = vpop.f32.mrb[0].mxu0
        %v1316 = vpop.f32.mrb[0].mxu0
        %v1317 = vadd.f32 0.0, %v1316
        %v1318 = vpop.f32.mrb[0].mxu0
        %1319 = vmatprep.mubr.bf16.mxu0 0
        %1320 = vmatmul.mubr.bf16.gmra.mrb[0].mxu0 %v1235
        %v1321 = vpop.f32.mrb[0].mxu0
        %v1322 = vadd.f32 0.0, %v1321
        %v1323 = vpop.f32.mrb[0].mxu0
        %v1324 = vpop.f32.mrb[0].mxu0
        %v1325 = vadd.f32 0.0, %v1324
        %v1326 = vpop.f32.mrb[0].mxu0
        %1327 = vmatprep.mubr.bf16.mxu0 0
        %1328 = vmatmul.mubr.bf16.gmra.mrb[0].mxu0 %v1238
        %v1329 = vpop.f32.mrb[0].mxu0
        %v1330 = vadd.f32 0.0, %v1329
        %v1331 = vpop.f32.mrb[0].mxu0
        %v1332 = vpop.f32.mrb[0].mxu0
        %v1333 = vadd.f32 0.0, %v1332
        %v1334 = vpop.f32.mrb[0].mxu0
        %1335 = vmatprep.mubr.bf16.mxu0 0
        %1336 = vmatmul.mubr.bf16.gmra.mrb[0].mxu0 %v1241
        %v1337 = vpop.f32.mrb[0].mxu0
        %v1338 = vadd.f32 0.0, %v1337
        %v1339 = vpop.f32.mrb[0].mxu0
        %v1340 = vpop.f32.mrb[0].mxu0
        %v1341 = vadd.f32 0.0, %v1340
        %v1342 = vpop.f32.mrb[0].mxu0
        %1343 = vmatprep.mubr.bf16.mxu0 0
        %1344 = vmatmul.mubr.bf16.gmra.mrb[0].mxu0 %v1244
        %v1345 = vpop.f32.mrb[0].mxu0
        %v1346 = vadd.f32 0.0, %v1345
        %v1347 = vpop.f32.mrb[0].mxu0
        %v1348 = vpop.f32.mrb[0].mxu0
        %v1349 = vadd.f32 0.0, %v1348
        %v1350 = vpop.f32.mrb[0].mxu0
        %1351 = vmatprep.mubr.bf16.mxu0 0
        %1352 = vmatmul.mubr.bf16.gmra.mrb[0].mxu0 %v1247
        %v1353 = vpop.f32.mrb[0].mxu0
        %v1354 = vadd.f32 0.0, %v1353
        %v1355 = vpop.f32.mrb[0].mxu0
        %v1356 = vpop.f32.mrb[0].mxu0
        %v1357 = vadd.f32 0.0, %v1356
        %v1358 = vpop.f32.mrb[0].mxu0
        %1359 = vmatprep.mubr.bf16.mxu0 0
        %1360 = vmatmul.mubr.bf16.gmra.mrb[0].mxu0 %v1250
        %v1361 = vpop.f32.mrb[0].mxu0
        %v1362 = vadd.f32 0.0, %v1361
        %v1363 = vpop.f32.mrb[0].mxu0
        %v1364 = vpop.f32.mrb[0].mxu0
        %v1365 = vadd.f32 0.0, %v1364
        %v1366 = vpop.f32.mrb[0].mxu0
        %1367 = vmatprep.mubr.bf16.mxu0 0
        %1368 = vmatmul.mubr.bf16.gmra.mrb[0].mxu0 %v1253
        %v1369 = vpop.f32.mrb[0].mxu0
        %v1370 = vadd.f32 0.0, %v1369
        %v1371 = vpop.f32.mrb[0].mxu0
        %v1372 = vpop.f32.mrb[0].mxu0
        %v1373 = vadd.f32 0.0, %v1372
        %v1374 = vpop.f32.mrb[0].mxu0
        %1375 = vdwg.mxu0
        %v1377 = vsel %vm1230, %v1102, 0
        %v1380 = vsel %vm1230, %v1103, 0
        %v1383 = vsel %vm1230, %v1104, 0
        %v1386 = vsel %vm1230, %v1105, 0
        %v1389 = vsel %vm1230, %v1106, 0
        %v1392 = vsel %vm1230, %v1107, 0
        %v1395 = vsel %vm1230, %v1108, 0
        %v1398 = vsel %vm1230, %v1109, 0
        %v1401 = vsel %vm1230, %v1154, 0
        %v1404 = vsel %vm1230, %v1155, 0
        %v1407 = vsel %vm1230, %v1156, 0
        %v1410 = vsel %vm1230, %v1157, 0
        %v1413 = vsel %vm1230, %v1158, 0
        %v1416 = vsel %vm1230, %v1159, 0
        %v1419 = vsel %vm1230, %v1160, 0
        %v1422 = vsel %vm1230, %v1161, 0
        %1424 = vmatprep.subr.bf16.mxu0 0
        %1425 = vmatpush1.bf16.xpose.msra.mxu0 %v1401
        %1426 = vmatprep.subr.bf16.mxu0 0
        %1427 = vmatpush1.bf16.xpose.msra.mxu0 %v1404
        %1428 = vmatprep.subr.bf16.mxu0 0
        %1429 = vmatpush1.bf16.xpose.msra.mxu0 %v1407
        %1430 = vmatprep.subr.bf16.mxu0 0
        %1431 = vmatpush1.bf16.xpose.msra.mxu0 %v1410
        %1432 = vmatprep.subr.bf16.mxu0 0
        %1433 = vmatpush1.bf16.xpose.msra.mxu0 %v1413
        %1434 = vmatprep.subr.bf16.mxu0 0
        %1435 = vmatpush1.bf16.xpose.msra.mxu0 %v1416
        %1436 = vmatprep.subr.bf16.mxu0 0
        %1437 = vmatpush1.bf16.xpose.msra.mxu0 %v1419
        %1438 = vmatprep.subr.bf16.mxu0 0
        %1439 = vmatpush1.bf16.xpose.msra.mxu0 %v1422
        %1440 = vmatprep.subr.bf16.mxu0 0
        %1441 = vmatpush1.bf16.xpose.msra.mxu0 0
        %1442 = vmatprep.subr.bf16.mxu0 0
        %1443 = vmatpush1.bf16.xpose.msra.mxu0 0
        %1444 = vmatprep.subr.bf16.mxu0 0
        %1445 = vmatpush1.bf16.xpose.msra.mxu0 0
        %1446 = vmatprep.subr.bf16.mxu0 0
        %1447 = vmatpush1.bf16.xpose.msra.mxu0 0
        %1448 = vmatprep.subr.bf16.mxu0 0
        %1449 = vmatpush1.bf16.xpose.msra.mxu0 0
        %1450 = vmatprep.subr.bf16.mxu0 0
        %1451 = vmatpush1.bf16.xpose.msra.mxu0 0
        %1452 = vmatprep.subr.bf16.mxu0 0
        %1453 = vmatpush1.bf16.xpose.msra.mxu0 0
        %1454 = vmatprep.subr.bf16.mxu0 0
        %1455 = vmatpush1.bf16.xpose.msra.mxu0 0
        %1456 = vmatprep.mubr.bf16.mxu0 0
        %1457 = vmatmul.mubr.bf16.gmra.mrb[0].mxu0 %v1377
        %v1458 = vpop.f32.mrb[0].mxu0
        %v1459 = vadd.f32 0.0, %v1458
        %v1460 = vpop.f32.mrb[0].mxu0
        %v1461 = vpop.f32.mrb[0].mxu0
        %v1462 = vadd.f32 0.0, %v1461
        %v1463 = vpop.f32.mrb[0].mxu0
        %1464 = vmatprep.mubr.bf16.mxu0 0
        %1465 = vmatmul.mubr.bf16.gmra.mrb[0].mxu0 %v1380
        %v1466 = vpop.f32.mrb[0].mxu0
        %v1467 = vadd.f32 0.0, %v1466
        %v1468 = vpop.f32.mrb[0].mxu0
        %v1469 = vpop.f32.mrb[0].mxu0
        %v1470 = vadd.f32 0.0, %v1469
        %v1471 = vpop.f32.mrb[0].mxu0
        %1472 = vmatprep.mubr.bf16.mxu0 0
        %1473 = vmatmul.mubr.bf16.gmra.mrb[0].mxu0 %v1383
        %v1474 = vpop.f32.mrb[0].mxu0
        %v1475 = vadd.f32 0.0, %v1474
        %v1476 = vpop.f32.mrb[0].mxu0
        %v1477 = vpop.f32.mrb[0].mxu0
        %v1478 = vadd.f32 0.0, %v1477
        %v1479 = vpop.f32.mrb[0].mxu0
        %1480 = vmatprep.mubr.bf16.mxu0 0
        %1481 = vmatmul.mubr.bf16.gmra.mrb[0].mxu0 %v1386
        %v1482 = vpop.f32.mrb[0].mxu0
        %v1483 = vadd.f32 0.0, %v1482
        %v1484 = vpop.f32.mrb[0].mxu0
        %v1485 = vpop.f32.mrb[0].mxu0
        %v1486 = vadd.f32 0.0, %v1485
        %v1487 = vpop.f32.mrb[0].mxu0
        %1488 = vmatprep.mubr.bf16.mxu0 0
        %1489 = vmatmul.mubr.bf16.gmra.mrb[0].mxu0 %v1389
        %v1490 = vpop.f32.mrb[0].mxu0
        %v1491 = vadd.f32 0.0, %v1490
        %v1492 = vpop.f32.mrb[0].mxu0
        %v1493 = vpop.f32.mrb[0].mxu0
        %v1494 = vadd.f32 0.0, %v1493
        %v1495 = vpop.f32.mrb[0].mxu0
        %1496 = vmatprep.mubr.bf16.mxu0 0
        %1497 = vmatmul.mubr.bf16.gmra.mrb[0].mxu0 %v1392
        %v1498 = vpop.f32.mrb[0].mxu0
        %v1499 = vadd.f32 0.0, %v1498
        %v1500 = vpop.f32.mrb[0].mxu0
        %v1501 = vpop.f32.mrb[0].mxu0
        %v1502 = vadd.f32 0.0, %v1501
        %v1503 = vpop.f32.mrb[0].mxu0
        %1504 = vmatprep.mubr.bf16.mxu0 0
        %1505 = vmatmul.mubr.bf16.gmra.mrb[0].mxu0 %v1395
        %v1506 = vpop.f32.mrb[0].mxu0
        %v1507 = vadd.f32 0.0, %v1506
        %v1508 = vpop.f32.mrb[0].mxu0
        %v1509 = vpop.f32.mrb[0].mxu0
        %v1510 = vadd.f32 0.0, %v1509
        %v1511 = vpop.f32.mrb[0].mxu0
        %1512 = vmatprep.mubr.bf16.mxu0 0
        %1513 = vmatmul.mubr.bf16.gmra.mrb[0].mxu0 %v1398
        %v1514 = vpop.f32.mrb[0].mxu0
        %v1515 = vadd.f32 0.0, %v1514
        %v1516 = vpop.f32.mrb[0].mxu0
        %v1517 = vpop.f32.mrb[0].mxu0
        %v1518 = vadd.f32 0.0, %v1517
        %v1519 = vpop.f32.mrb[0].mxu0
        %1520 = vdwg.mxu0
        %1521 = vmax.xlane.f32.xlu0 %v1314
        %v1522 = vpop.xlane.xlu0 %1521
        %1523 = vmax.xlane.f32.xlu0 %v1317
        %v1524 = vpop.xlane.xlu0 %1523
        %1525 = vmax.xlane.f32.xlu0 %v1322
        %v1526 = vpop.xlane.xlu0 %1525
        %1527 = vmax.xlane.f32.xlu0 %v1325
        %v1528 = vpop.xlane.xlu0 %1527
        %1529 = vmax.xlane.f32.xlu0 %v1330
        %v1530 = vpop.xlane.xlu0 %1529
        %1531 = vmax.xlane.f32.xlu0 %v1333
        %v1532 = vpop.xlane.xlu0 %1531
        %1533 = vmax.xlane.f32.xlu0 %v1338
        %v1534 = vpop.xlane.xlu0 %1533
        %1535 = vmax.xlane.f32.xlu0 %v1341
        %v1536 = vpop.xlane.xlu0 %1535
        %1537 = vmax.xlane.f32.xlu0 %v1346
        %v1538 = vpop.xlane.xlu0 %1537
        %1539 = vmax.xlane.f32.xlu0 %v1349
        %v1540 = vpop.xlane.xlu0 %1539
        %1541 = vmax.xlane.f32.xlu0 %v1354
        %v1542 = vpop.xlane.xlu0 %1541
        %1543 = vmax.xlane.f32.xlu0 %v1357
        %v1544 = vpop.xlane.xlu0 %1543
        %1545 = vmax.xlane.f32.xlu0 %v1362
        %v1546 = vpop.xlane.xlu0 %1545
        %1547 = vmax.xlane.f32.xlu0 %v1365
        %v1548 = vpop.xlane.xlu0 %1547
        %1549 = vmax.xlane.f32.xlu0 %v1370
        %v1550 = vpop.xlane.xlu0 %1549
        %1551 = vmax.xlane.f32.xlu0 %v1373
        %v1552 = vpop.xlane.xlu0 %1551
        %1553 = vmax.xlane.f32.xlu0 %v1459
        %v1554 = vpop.xlane.xlu0 %1553
        %1555 = vmax.xlane.f32.xlu0 %v1462
        %v1556 = vpop.xlane.xlu0 %1555
        %1557 = vmax.xlane.f32.xlu0 %v1467
        %v1558 = vpop.xlane.xlu0 %1557
        %1559 = vmax.xlane.f32.xlu0 %v1470
        %v1560 = vpop.xlane.xlu0 %1559
        %1561 = vmax.xlane.f32.xlu0 %v1475
        %v1562 = vpop.xlane.xlu0 %1561
        %1563 = vmax.xlane.f32.xlu0 %v1478
        %v1564 = vpop.xlane.xlu0 %1563
        %1565 = vmax.xlane.f32.xlu0 %v1483
        %v1566 = vpop.xlane.xlu0 %1565
        %1567 = vmax.xlane.f32.xlu0 %v1486
        %v1568 = vpop.xlane.xlu0 %1567
        %1569 = vmax.xlane.f32.xlu0 %v1491
        %v1570 = vpop.xlane.xlu0 %1569
        %1571 = vmax.xlane.f32.xlu0 %v1494
        %v1572 = vpop.xlane.xlu0 %1571
        %1573 = vmax.xlane.f32.xlu0 %v1499
        %v1574 = vpop.xlane.xlu0 %1573
        %1575 = vmax.xlane.f32.xlu0 %v1502
        %v1576 = vpop.xlane.xlu0 %1575
        %1577 = vmax.xlane.f32.xlu0 %v1507
        %v1578 = vpop.xlane.xlu0 %1577
        %1579 = vmax.xlane.f32.xlu0 %v1510
        %v1580 = vpop.xlane.xlu0 %1579
        %1581 = vmax.xlane.f32.xlu0 %v1515
        %v1582 = vpop.xlane.xlu0 %1581
        %1583 = vmax.xlane.f32.xlu0 %v1518
        %v1584 = vpop.xlane.xlu0 %1583
        %v1585 = vsub.f32 %v1314, %v1522
        %v1586 = vsub.f32 %v1317, %v1524
        %v1587 = vsub.f32 %v1322, %v1526
        %v1588 = vsub.f32 %v1325, %v1528
        %v1589 = vsub.f32 %v1330, %v1530
        %v1590 = vsub.f32 %v1333, %v1532
        %v1591 = vsub.f32 %v1338, %v1534
        %v1592 = vsub.f32 %v1341, %v1536
        %v1593 = vsub.f32 %v1346, %v1538
        %v1594 = vsub.f32 %v1349, %v1540
        %v1595 = vsub.f32 %v1354, %v1542
        %v1596 = vsub.f32 %v1357, %v1544
        %v1597 = vsub.f32 %v1362, %v1546
        %v1598 = vsub.f32 %v1365, %v1548
        %v1599 = vsub.f32 %v1370, %v1550
        %v1600 = vsub.f32 %v1373, %v1552
        %v1601 = vsub.f32 %v1459, %v1554
        %v1602 = vsub.f32 %v1462, %v1556
        %v1603 = vsub.f32 %v1467, %v1558
        %v1604 = vsub.f32 %v1470, %v1560
        %v1605 = vsub.f32 %v1475, %v1562
        %v1606 = vsub.f32 %v1478, %v1564
        %v1607 = vsub.f32 %v1483, %v1566
        %v1608 = vsub.f32 %v1486, %v1568
        %v1609 = vsub.f32 %v1491, %v1570
        %v1610 = vsub.f32 %v1494, %v1572
        %v1611 = vsub.f32 %v1499, %v1574
        %v1612 = vsub.f32 %v1502, %v1576
        %v1613 = vsub.f32 %v1507, %v1578
        %v1614 = vsub.f32 %v1510, %v1580
        %v1615 = vsub.f32 %v1515, %v1582
        %v1616 = vsub.f32 %v1518, %v1584
        %v1617 = vmul.f32 %v1585, 1.442695
        %v1618 = vpow.pop %v1617
        %v1619 = vmul.f32 %v1586, 1.442695
        %v1620 = vpow.pop %v1619
        %v1621 = vmul.f32 %v1587, 1.442695
        %v1622 = vpow.pop %v1621
        %v1623 = vmul.f32 %v1588, 1.442695
        %v1624 = vpow.pop %v1623
        %v1625 = vmul.f32 %v1589, 1.442695
        %v1626 = vpow.pop %v1625
        %v1627 = vmul.f32 %v1590, 1.442695
        %v1628 = vpow.pop %v1627
        %v1629 = vmul.f32 %v1591, 1.442695
        %v1630 = vpow.pop %v1629
        %v1631 = vmul.f32 %v1592, 1.442695
        %v1632 = vpow.pop %v1631
        %v1633 = vmul.f32 %v1593, 1.442695
        %v1634 = vpow.pop %v1633
        %v1635 = vmul.f32 %v1594, 1.442695
        %v1636 = vpow.pop %v1635
        %v1637 = vmul.f32 %v1595, 1.442695
        %v1638 = vpow.pop %v1637
        %v1639 = vmul.f32 %v1596, 1.442695
        %v1640 = vpow.pop %v1639
        %v1641 = vmul.f32 %v1597, 1.442695
        %v1642 = vpow.pop %v1641
        %v1643 = vmul.f32 %v1598, 1.442695
        %v1644 = vpow.pop %v1643
        %v1645 = vmul.f32 %v1599, 1.442695
        %v1646 = vpow.pop %v1645
        %v1647 = vmul.f32 %v1600, 1.442695
        %v1648 = vpow.pop %v1647
        %v1649 = vmul.f32 %v1601, 1.442695
        %v1650 = vpow.pop %v1649
        %v1651 = vmul.f32 %v1602, 1.442695
        %v1652 = vpow.pop %v1651
        %v1653 = vmul.f32 %v1603, 1.442695
        %v1654 = vpow.pop %v1653
        %v1655 = vmul.f32 %v1604, 1.442695
        %v1656 = vpow.pop %v1655
        %v1657 = vmul.f32 %v1605, 1.442695
        %v1658 = vpow.pop %v1657
        %v1659 = vmul.f32 %v1606, 1.442695
        %v1660 = vpow.pop %v1659
        %v1661 = vmul.f32 %v1607, 1.442695
        %v1662 = vpow.pop %v1661
        %v1663 = vmul.f32 %v1608, 1.442695
        %v1664 = vpow.pop %v1663
        %v1665 = vmul.f32 %v1609, 1.442695
        %v1666 = vpow.pop %v1665
        %v1667 = vmul.f32 %v1610, 1.442695
        %v1668 = vpow.pop %v1667
        %v1669 = vmul.f32 %v1611, 1.442695
        %v1670 = vpow.pop %v1669
        %v1671 = vmul.f32 %v1612, 1.442695
        %v1672 = vpow.pop %v1671
        %v1673 = vmul.f32 %v1613, 1.442695
        %v1674 = vpow.pop %v1673
        %v1675 = vmul.f32 %v1614, 1.442695
        %v1676 = vpow.pop %v1675
        %v1677 = vmul.f32 %v1615, 1.442695
        %v1678 = vpow.pop %v1677
        %v1679 = vmul.f32 %v1616, 1.442695
        %v1680 = vpow.pop %v1679
        %1681 = vadd.xlane.f32.xlu0 %v1618
        %v1682 = vpop.xlane.xlu0 %1681
        %1683 = vadd.xlane.f32.xlu0 %v1620
        %v1684 = vpop.xlane.xlu0 %1683
        %1685 = vadd.xlane.f32.xlu0 %v1622
        %v1686 = vpop.xlane.xlu0 %1685
        %1687 = vadd.xlane.f32.xlu0 %v1624
        %v1688 = vpop.xlane.xlu0 %1687
        %1689 = vadd.xlane.f32.xlu0 %v1626
        %v1690 = vpop.xlane.xlu0 %1689
        %1691 = vadd.xlane.f32.xlu0 %v1628
        %v1692 = vpop.xlane.xlu0 %1691
        %1693 = vadd.xlane.f32.xlu0 %v1630
        %v1694 = vpop.xlane.xlu0 %1693
        %1695 = vadd.xlane.f32.xlu0 %v1632
        %v1696 = vpop.xlane.xlu0 %1695
        %1697 = vadd.xlane.f32.xlu0 %v1634
        %v1698 = vpop.xlane.xlu0 %1697
        %1699 = vadd.xlane.f32.xlu0 %v1636
        %v1700 = vpop.xlane.xlu0 %1699
        %1701 = vadd.xlane.f32.xlu0 %v1638
        %v1702 = vpop.xlane.xlu0 %1701
        %1703 = vadd.xlane.f32.xlu0 %v1640
        %v1704 = vpop.xlane.xlu0 %1703
        %1705 = vadd.xlane.f32.xlu0 %v1642
        %v1706 = vpop.xlane.xlu0 %1705
        %1707 = vadd.xlane.f32.xlu0 %v1644
        %v1708 = vpop.xlane.xlu0 %1707
        %1709 = vadd.xlane.f32.xlu0 %v1646
        %v1710 = vpop.xlane.xlu0 %1709
        %1711 = vadd.xlane.f32.xlu0 %v1648
        %v1712 = vpop.xlane.xlu0 %1711
        %1713 = vadd.xlane.f32.xlu0 %v1650
        %v1714 = vpop.xlane.xlu0 %1713
        %1715 = vadd.xlane.f32.xlu0 %v1652
        %v1716 = vpop.xlane.xlu0 %1715
        %1717 = vadd.xlane.f32.xlu0 %v1654
        %v1718 = vpop.xlane.xlu0 %1717
        %1719 = vadd.xlane.f32.xlu0 %v1656
        %v1720 = vpop.xlane.xlu0 %1719
        %1721 = vadd.xlane.f32.xlu0 %v1658
        %v1722 = vpop.xlane.xlu0 %1721
        %1723 = vadd.xlane.f32.xlu0 %v1660
        %v1724 = vpop.xlane.xlu0 %1723
        %1725 = vadd.xlane.f32.xlu0 %v1662
        %v1726 = vpop.xlane.xlu0 %1725
        %1727 = vadd.xlane.f32.xlu0 %v1664
        %v1728 = vpop.xlane.xlu0 %1727
        %1729 = vadd.xlane.f32.xlu0 %v1666
        %v1730 = vpop.xlane.xlu0 %1729
        %1731 = vadd.xlane.f32.xlu0 %v1668
        %v1732 = vpop.xlane.xlu0 %1731
        %1733 = vadd.xlane.f32.xlu0 %v1670
        %v1734 = vpop.xlane.xlu0 %1733
        %1735 = vadd.xlane.f32.xlu0 %v1672
        %v1736 = vpop.xlane.xlu0 %1735
        %1737 = vadd.xlane.f32.xlu0 %v1674
        %v1738 = vpop.xlane.xlu0 %1737
        %1739 = vadd.xlane.f32.xlu0 %v1676
        %v1740 = vpop.xlane.xlu0 %1739
        %1741 = vadd.xlane.f32.xlu0 %v1678
        %v1742 = vpop.xlane.xlu0 %1741
        %1743 = vadd.xlane.f32.xlu0 %v1680
        %v1744 = vpop.xlane.xlu0 %1743
        %v1745 = vrcp.pop %v1682
        %v1746 = vrcp.pop %v1684
        %v1747 = vrcp.pop %v1686
        %v1748 = vrcp.pop %v1688
        %v1749 = vrcp.pop %v1690
        %v1750 = vrcp.pop %v1692
        %v1751 = vrcp.pop %v1694
        %v1752 = vrcp.pop %v1696
        %v1753 = vrcp.pop %v1698
        %v1754 = vrcp.pop %v1700
        %v1755 = vrcp.pop %v1702
        %v1756 = vrcp.pop %v1704
        %v1757 = vrcp.pop %v1706
        %v1758 = vrcp.pop %v1708
        %v1759 = vrcp.pop %v1710
        %v1760 = vrcp.pop %v1712
        %v1761 = vrcp.pop %v1714
        %v1762 = vrcp.pop %v1716
        %v1763 = vrcp.pop %v1718
        %v1764 = vrcp.pop %v1720
        %v1765 = vrcp.pop %v1722
        %v1766 = vrcp.pop %v1724
        %v1767 = vrcp.pop %v1726
        %v1768 = vrcp.pop %v1728
        %v1769 = vrcp.pop %v1730
        %v1770 = vrcp.pop %v1732
        %v1771 = vrcp.pop %v1734
        %v1772 = vrcp.pop %v1736
        %v1773 = vrcp.pop %v1738
        %v1774 = vrcp.pop %v1740
        %v1775 = vrcp.pop %v1742
        %v1776 = vrcp.pop %v1744
        %v1777 = vmul.f32 %v1618, %v1745
        %v1778 = vmul.f32 %v1620, %v1746
        %v1779 = vmul.f32 %v1622, %v1747
        %v1780 = vmul.f32 %v1624, %v1748
        %v1781 = vmul.f32 %v1626, %v1749
        %v1782 = vmul.f32 %v1628, %v1750
        %v1783 = vmul.f32 %v1630, %v1751
        %v1784 = vmul.f32 %v1632, %v1752
        %v1785 = vmul.f32 %v1634, %v1753
        %v1786 = vmul.f32 %v1636, %v1754
        %v1787 = vmul.f32 %v1638, %v1755
        %v1788 = vmul.f32 %v1640, %v1756
        %v1789 = vmul.f32 %v1642, %v1757
        %v1790 = vmul.f32 %v1644, %v1758
        %v1791 = vmul.f32 %v1646, %v1759
        %v1792 = vmul.f32 %v1648, %v1760
        %v1793 = vmul.f32 %v1650, %v1761
        %v1794 = vmul.f32 %v1652, %v1762
        %v1795 = vmul.f32 %v1654, %v1763
        %v1796 = vmul.f32 %v1656, %v1764
        %v1797 = vmul.f32 %v1658, %v1765
        %v1798 = vmul.f32 %v1660, %v1766
        %v1799 = vmul.f32 %v1662, %v1767
        %v1800 = vmul.f32 %v1664, %v1768
        %v1801 = vmul.f32 %v1666, %v1769
        %v1802 = vmul.f32 %v1668, %v1770
        %v1803 = vmul.f32 %v1670, %v1771
        %v1804 = vmul.f32 %v1672, %v1772
        %v1805 = vmul.f32 %v1674, %v1773
        %v1806 = vmul.f32 %v1676, %v1774
        %v1807 = vmul.f32 %v1678, %v1775
        %v1808 = vmul.f32 %v1680, %v1776
        %v1809 = vpack.c.bf16 %v1778, %v1777
        %v1810 = vpack.c.bf16 %v1780, %v1779
        %v1811 = vpack.c.bf16 %v1782, %v1781
        %v1812 = vpack.c.bf16 %v1784, %v1783
        %v1813 = vpack.c.bf16 %v1786, %v1785
        %v1814 = vpack.c.bf16 %v1788, %v1787
        %v1815 = vpack.c.bf16 %v1790, %v1789
        %v1816 = vpack.c.bf16 %v1792, %v1791
        %v1817 = vpack.c.bf16 %v1794, %v1793
        %v1818 = vpack.c.bf16 %v1796, %v1795
        %v1819 = vpack.c.bf16 %v1798, %v1797
        %v1820 = vpack.c.bf16 %v1800, %v1799
        %v1821 = vpack.c.bf16 %v1802, %v1801
        %v1822 = vpack.c.bf16 %v1804, %v1803
        %v1823 = vpack.c.bf16 %v1806, %v1805
        %v1824 = vpack.c.bf16 %v1808, %v1807
        %1825 = vmatprep.subr.bf16.mxu0 0
        %1826 = vmatpush1.bf16.msra.mxu0 %v1198
        %1827 = vmatprep.subr.bf16.mxu0 0
        %1828 = vmatpush1.bf16.msra.mxu0 %v1199
        %1829 = vmatprep.subr.bf16.mxu0 0
        %1830 = vmatpush1.bf16.msra.mxu0 %v1200
        %1831 = vmatprep.subr.bf16.mxu0 0
        %1832 = vmatpush1.bf16.msra.mxu0 %v1201
        %1833 = vmatprep.subr.bf16.mxu0 0
        %1834 = vmatpush1.bf16.msra.mxu0 %v1202
        %1835 = vmatprep.subr.bf16.mxu0 0
        %1836 = vmatpush1.bf16.msra.mxu0 %v1203
        %1837 = vmatprep.subr.bf16.mxu0 0
        %1838 = vmatpush1.bf16.msra.mxu0 %v1204
        %1839 = vmatprep.subr.bf16.mxu0 0
        %1840 = vmatpush1.bf16.msra.mxu0 %v1205
        %1841 = vmatprep.subr.bf16.mxu0 0
        %1842 = vmatpush1.bf16.msra.mxu0 0
        %1843 = vmatprep.subr.bf16.mxu0 0
        %1844 = vmatpush1.bf16.msra.mxu0 0
        %1845 = vmatprep.subr.bf16.mxu0 0
        %1846 = vmatpush1.bf16.msra.mxu0 0
        %1847 = vmatprep.subr.bf16.mxu0 0
        %1848 = vmatpush1.bf16.msra.mxu0 0
        %1849 = vmatprep.subr.bf16.mxu0 0
        %1850 = vmatpush1.bf16.msra.mxu0 0
        %1851 = vmatprep.subr.bf16.mxu0 0
        %1852 = vmatpush1.bf16.msra.mxu0 0
        %1853 = vmatprep.subr.bf16.mxu0 0
        %1854 = vmatpush1.bf16.msra.mxu0 0
        %1855 = vmatprep.subr.bf16.mxu0 0
        %1856 = vmatpush1.bf16.msra.mxu0 0
        %1857 = vmatprep.mubr.bf16.mxu0 0
        %1858 = vmatmul.mubr.bf16.gmra.mrb[0].mxu0 %v1809
        %v1859 = vpop.f32.mrb[0].mxu0
        %v1860 = vadd.f32 0.0, %v1859
        %v1861 = vpop.f32.mrb[0].mxu0
        %v1862 = vpop.f32.mrb[0].mxu0
        %v1863 = vadd.f32 0.0, %v1862
        %v1864 = vpop.f32.mrb[0].mxu0
        %1865 = vmatprep.mubr.bf16.mxu0 0
        %1866 = vmatmul.mubr.bf16.gmra.mrb[0].mxu0 %v1810
        %v1867 = vpop.f32.mrb[0].mxu0
        %v1868 = vadd.f32 0.0, %v1867
        %v1869 = vpop.f32.mrb[0].mxu0
        %v1870 = vpop.f32.mrb[0].mxu0
        %v1871 = vadd.f32 0.0, %v1870
        %v1872 = vpop.f32.mrb[0].mxu0
        %1873 = vmatprep.mubr.bf16.mxu0 0
        %1874 = vmatmul.mubr.bf16.gmra.mrb[0].mxu0 %v1811
        %v1875 = vpop.f32.mrb[0].mxu0
        %v1876 = vadd.f32 0.0, %v1875
        %v1877 = vpop.f32.mrb[0].mxu0
        %v1878 = vpop.f32.mrb[0].mxu0
        %v1879 = vadd.f32 0.0, %v1878
        %v1880 = vpop.f32.mrb[0].mxu0
        %1881 = vmatprep.mubr.bf16.mxu0 0
        %1882 = vmatmul.mubr.bf16.gmra.mrb[0].mxu0 %v1812
        %v1883 = vpop.f32.mrb[0].mxu0
        %v1884 = vadd.f32 0.0, %v1883
        %v1885 = vpop.f32.mrb[0].mxu0
        %v1886 = vpop.f32.mrb[0].mxu0
        %v1887 = vadd.f32 0.0, %v1886
        %v1888 = vpop.f32.mrb[0].mxu0
        %1889 = vmatprep.mubr.bf16.mxu0 0
        %1890 = vmatmul.mubr.bf16.gmra.mrb[0].mxu0 %v1813
        %v1891 = vpop.f32.mrb[0].mxu0
        %v1892 = vadd.f32 0.0, %v1891
        %v1893 = vpop.f32.mrb[0].mxu0
        %v1894 = vpop.f32.mrb[0].mxu0
        %v1895 = vadd.f32 0.0, %v1894
        %v1896 = vpop.f32.mrb[0].mxu0
        %1897 = vmatprep.mubr.bf16.mxu0 0
        %1898 = vmatmul.mubr.bf16.gmra.mrb[0].mxu0 %v1814
        %v1899 = vpop.f32.mrb[0].mxu0
        %v1900 = vadd.f32 0.0, %v1899
        %v1901 = vpop.f32.mrb[0].mxu0
        %v1902 = vpop.f32.mrb[0].mxu0
        %v1903 = vadd.f32 0.0, %v1902
        %v1904 = vpop.f32.mrb[0].mxu0
        %1905 = vmatprep.mubr.bf16.mxu0 0
        %1906 = vmatmul.mubr.bf16.gmra.mrb[0].mxu0 %v1815
        %v1907 = vpop.f32.mrb[0].mxu0
        %v1908 = vadd.f32 0.0, %v1907
        %v1909 = vpop.f32.mrb[0].mxu0
        %v1910 = vpop.f32.mrb[0].mxu0
        %v1911 = vadd.f32 0.0, %v1910
        %v1912 = vpop.f32.mrb[0].mxu0
        %1913 = vmatprep.mubr.bf16.mxu0 0
        %1914 = vmatmul.mubr.bf16.gmra.mrb[0].mxu0 %v1816
        %v1915 = vpop.f32.mrb[0].mxu0
        %v1916 = vadd.f32 0.0, %v1915
        %v1917 = vpop.f32.mrb[0].mxu0
        %v1918 = vpop.f32.mrb[0].mxu0
        %v1919 = vadd.f32 0.0, %v1918
        %v1920 = vpop.f32.mrb[0].mxu0
        %1921 = vdwg.mxu0
        %1922 = vmatprep.subr.bf16.mxu0 0
        %1923 = vmatpush1.bf16.msra.mxu0 %v1206
        %1924 = vmatprep.subr.bf16.mxu0 0
        %1925 = vmatpush1.bf16.msra.mxu0 %v1207
        %1926 = vmatprep.subr.bf16.mxu0 0
        %1927 = vmatpush1.bf16.msra.mxu0 %v1208
        %1928 = vmatprep.subr.bf16.mxu0 0
        %1929 = vmatpush1.bf16.msra.mxu0 %v1209
        %1930 = vmatprep.subr.bf16.mxu0 0
        %1931 = vmatpush1.bf16.msra.mxu0 %v1210
        %1932 = vmatprep.subr.bf16.mxu0 0
        %1933 = vmatpush1.bf16.msra.mxu0 %v1211
        %1934 = vmatprep.subr.bf16.mxu0 0
        %1935 = vmatpush1.bf16.msra.mxu0 %v1212
        %1936 = vmatprep.subr.bf16.mxu0 0
        %1937 = vmatpush1.bf16.msra.mxu0 %v1213
        %1938 = vmatprep.subr.bf16.mxu0 0
        %1939 = vmatpush1.bf16.msra.mxu0 0
        %1940 = vmatprep.subr.bf16.mxu0 0
        %1941 = vmatpush1.bf16.msra.mxu0 0
        %1942 = vmatprep.subr.bf16.mxu0 0
        %1943 = vmatpush1.bf16.msra.mxu0 0
        %1944 = vmatprep.subr.bf16.mxu0 0
        %1945 = vmatpush1.bf16.msra.mxu0 0
        %1946 = vmatprep.subr.bf16.mxu0 0
        %1947 = vmatpush1.bf16.msra.mxu0 0
        %1948 = vmatprep.subr.bf16.mxu0 0
        %1949 = vmatpush1.bf16.msra.mxu0 0
        %1950 = vmatprep.subr.bf16.mxu0 0
        %1951 = vmatpush1.bf16.msra.mxu0 0
        %1952 = vmatprep.subr.bf16.mxu0 0
        %1953 = vmatpush1.bf16.msra.mxu0 0
        %1954 = vmatprep.mubr.bf16.mxu0 0
        %1955 = vmatmul.mubr.bf16.gmra.mrb[0].mxu0 %v1817
        %v1956 = vpop.f32.mrb[0].mxu0
        %v1957 = vadd.f32 0.0, %v1956
        %v1958 = vpop.f32.mrb[0].mxu0
        %v1959 = vpop.f32.mrb[0].mxu0
        %v1960 = vadd.f32 0.0, %v1959
        %v1961 = vpop.f32.mrb[0].mxu0
        %1962 = vmatprep.mubr.bf16.mxu0 0
        %1963 = vmatmul.mubr.bf16.gmra.mrb[0].mxu0 %v1818
        %v1964 = vpop.f32.mrb[0].mxu0
        %v1965 = vadd.f32 0.0, %v1964
        %v1966 = vpop.f32.mrb[0].mxu0
        %v1967 = vpop.f32.mrb[0].mxu0
        %v1968 = vadd.f32 0.0, %v1967
        %v1969 = vpop.f32.mrb[0].mxu0
        %1970 = vmatprep.mubr.bf16.mxu0 0
        %1971 = vmatmul.mubr.bf16.gmra.mrb[0].mxu0 %v1819
        %v1972 = vpop.f32.mrb[0].mxu0
        %v1973 = vadd.f32 0.0, %v1972
        %v1974 = vpop.f32.mrb[0].mxu0
        %v1975 = vpop.f32.mrb[0].mxu0
        %v1976 = vadd.f32 0.0, %v1975
        %v1977 = vpop.f32.mrb[0].mxu0
        %1978 = vmatprep.mubr.bf16.mxu0 0
        %1979 = vmatmul.mubr.bf16.gmra.mrb[0].mxu0 %v1820
        %v1980 = vpop.f32.mrb[0].mxu0
        %v1981 = vadd.f32 0.0, %v1980
        %v1982 = vpop.f32.mrb[0].mxu0
        %v1983 = vpop.f32.mrb[0].mxu0
        %v1984 = vadd.f32 0.0, %v1983
        %v1985 = vpop.f32.mrb[0].mxu0
        %1986 = vmatprep.mubr.bf16.mxu0 0
        %1987 = vmatmul.mubr.bf16.gmra.mrb[0].mxu0 %v1821
        %v1988 = vpop.f32.mrb[0].mxu0
        %v1989 = vadd.f32 0.0, %v1988
        %v1990 = vpop.f32.mrb[0].mxu0
        %v1991 = vpop.f32.mrb[0].mxu0
        %v1992 = vadd.f32 0.0, %v1991
        %v1993 = vpop.f32.mrb[0].mxu0
        %1994 = vmatprep.mubr.bf16.mxu0 0
        %1995 = vmatmul.mubr.bf16.gmra.mrb[0].mxu0 %v1822
        %v1996 = vpop.f32.mrb[0].mxu0
        %v1997 = vadd.f32 0.0, %v1996
        %v1998 = vpop.f32.mrb[0].mxu0
        %v1999 = vpop.f32.mrb[0].mxu0
        %v2000 = vadd.f32 0.0, %v1999
        %v2001 = vpop.f32.mrb[0].mxu0
        %2002 = vmatprep.mubr.bf16.mxu0 0
        %2003 = vmatmul.mubr.bf16.gmra.mrb[0].mxu0 %v1823
        %v2004 = vpop.f32.mrb[0].mxu0
        %v2005 = vadd.f32 0.0, %v2004
        %v2006 = vpop.f32.mrb[0].mxu0
        %v2007 = vpop.f32.mrb[0].mxu0
        %v2008 = vadd.f32 0.0, %v2007
        %v2009 = vpop.f32.mrb[0].mxu0
        %2010 = vmatprep.mubr.bf16.mxu0 0
        %2011 = vmatmul.mubr.bf16.gmra.mrb[0].mxu0 %v1824
        %v2012 = vpop.f32.mrb[0].mxu0
        %v2013 = vadd.f32 0.0, %v2012
        %v2014 = vpop.f32.mrb[0].mxu0
        %v2015 = vpop.f32.mrb[0].mxu0
        %v2016 = vadd.f32 0.0, %v2015
        %v2017 = vpop.f32.mrb[0].mxu0
        %2018 = vdwg.mxu0
        %v2019 = vpack.c.bf16 %v1863, %v1860
        %v2020 = vpack.c.bf16 %v1871, %v1868
        %v2021 = vpack.c.bf16 %v1879, %v1876
        %v2022 = vpack.c.bf16 %v1887, %v1884
        %v2023 = vpack.c.bf16 %v1895, %v1892
        %v2024 = vpack.c.bf16 %v1903, %v1900
        %v2025 = vpack.c.bf16 %v1911, %v1908
        %v2026 = vpack.c.bf16 %v1919, %v1916
        %v2027 = vpack.c.bf16 %v1960, %v1957
        %v2028 = vpack.c.bf16 %v1968, %v1965
        %v2029 = vpack.c.bf16 %v1976, %v1973
        %v2030 = vpack.c.bf16 %v1984, %v1981
        %v2031 = vpack.c.bf16 %v1992, %v1989
        %v2032 = vpack.c.bf16 %v2000, %v1997
        %v2033 = vpack.c.bf16 %v2008, %v2005
        %v2034 = vpack.c.bf16 %v2016, %v2013
        %2043 = vrot.lane.b32.xlu0 %v1094, 96
        %v2044 = vpop.permute.xlu0 %2043
        %2045 = vrot.lane.b32.xlu0 %v1095, 96
        %v2046 = vpop.permute.xlu0 %2045
        %2047 = vrot.lane.b32.xlu0 %v1096, 96
        %v2048 = vpop.permute.xlu0 %2047
        %2049 = vrot.lane.b32.xlu0 %v1097, 96
        %v2050 = vpop.permute.xlu0 %2049
        %2051 = vrot.lane.b32.xlu0 %v1098, 96
        %v2052 = vpop.permute.xlu0 %2051
        %2053 = vrot.lane.b32.xlu0 %v1099, 96
        %v2054 = vpop.permute.xlu0 %2053
        %2055 = vrot.lane.b32.xlu0 %v1100, 96
        %v2056 = vpop.permute.xlu0 %2055
        %2057 = vrot.lane.b32.xlu0 %v1101, 96
        %v2058 = vpop.permute.xlu0 %2057
        %2067 = vrot.lane.b32.xlu0 %v1146, 96
        %v2068 = vpop.permute.xlu0 %2067
        %2069 = vrot.lane.b32.xlu0 %v1147, 96
        %v2070 = vpop.permute.xlu0 %2069
        %2071 = vrot.lane.b32.xlu0 %v1148, 96
        %v2072 = vpop.permute.xlu0 %2071
        %2073 = vrot.lane.b32.xlu0 %v1149, 96
        %v2074 = vpop.permute.xlu0 %2073
        %2075 = vrot.lane.b32.xlu0 %v1150, 96
        %v2076 = vpop.permute.xlu0 %2075
        %2077 = vrot.lane.b32.xlu0 %v1151, 96
        %v2078 = vpop.permute.xlu0 %2077
        %2079 = vrot.lane.b32.xlu0 %v1152, 96
        %v2080 = vpop.permute.xlu0 %2079
        %2081 = vrot.lane.b32.xlu0 %v1153, 96
        %v2082 = vpop.permute.xlu0 %2081
        %v2084 = vsel %vm1230, %v2044, 0
        %v2087 = vsel %vm1230, %v2046, 0
        %v2090 = vsel %vm1230, %v2048, 0
        %v2093 = vsel %vm1230, %v2050, 0
        %v2096 = vsel %vm1230, %v2052, 0
        %v2099 = vsel %vm1230, %v2054, 0
        %v2102 = vsel %vm1230, %v2056, 0
        %v2105 = vsel %vm1230, %v2058, 0
        %v2108 = vsel %vm1230, %v2068, 0
        %v2111 = vsel %vm1230, %v2070, 0
        %v2114 = vsel %vm1230, %v2072, 0
        %v2117 = vsel %vm1230, %v2074, 0
        %v2120 = vsel %vm1230, %v2076, 0
        %v2123 = vsel %vm1230, %v2078, 0
        %v2126 = vsel %vm1230, %v2080, 0
        %v2129 = vsel %vm1230, %v2082, 0
        %2131 = vmatprep.subr.bf16.mxu0 0
        %2132 = vmatpush1.bf16.xpose.msra.mxu0 %v2108
        %2133 = vmatprep.subr.bf16.mxu0 0
        %2134 = vmatpush1.bf16.xpose.msra.mxu0 %v2111
        %2135 = vmatprep.subr.bf16.mxu0 0
        %2136 = vmatpush1.bf16.xpose.msra.mxu0 %v2114
        %2137 = vmatprep.subr.bf16.mxu0 0
        %2138 = vmatpush1.bf16.xpose.msra.mxu0 %v2117
        %2139 = vmatprep.subr.bf16.mxu0 0
        %2140 = vmatpush1.bf16.xpose.msra.mxu0 %v2120
        %2141 = vmatprep.subr.bf16.mxu0 0
        %2142 = vmatpush1.bf16.xpose.msra.mxu0 %v2123
        %2143 = vmatprep.subr.bf16.mxu0 0
        %2144 = vmatpush1.bf16.xpose.msra.mxu0 %v2126
        %2145 = vmatprep.subr.bf16.mxu0 0
        %2146 = vmatpush1.bf16.xpose.msra.mxu0 %v2129
        %2147 = vmatprep.subr.bf16.mxu0 0
        %2148 = vmatpush1.bf16.xpose.msra.mxu0 0
        %2149 = vmatprep.subr.bf16.mxu0 0
        %2150 = vmatpush1.bf16.xpose.msra.mxu0 0
        %2151 = vmatprep.subr.bf16.mxu0 0
        %2152 = vmatpush1.bf16.xpose.msra.mxu0 0
        %2153 = vmatprep.subr.bf16.mxu0 0
        %2154 = vmatpush1.bf16.xpose.msra.mxu0 0
        %2155 = vmatprep.subr.bf16.mxu0 0
        %2156 = vmatpush1.bf16.xpose.msra.mxu0 0
        %2157 = vmatprep.subr.bf16.mxu0 0
        %2158 = vmatpush1.bf16.xpose.msra.mxu0 0
        %2159 = vmatprep.subr.bf16.mxu0 0
        %2160 = vmatpush1.bf16.xpose.msra.mxu0 0
        %2161 = vmatprep.subr.bf16.mxu0 0
        %2162 = vmatpush1.bf16.xpose.msra.mxu0 0
        %2163 = vmatprep.mubr.bf16.mxu0 0
        %2164 = vmatmul.mubr.bf16.gmra.mrb[0].mxu0 %v2084
        %v2165 = vpop.f32.mrb[0].mxu0
        %v2166 = vadd.f32 0.0, %v2165
        %v2167 = vpop.f32.mrb[0].mxu0
        %v2168 = vpop.f32.mrb[0].mxu0
        %v2169 = vadd.f32 0.0, %v2168
        %v2170 = vpop.f32.mrb[0].mxu0
        %2171 = vmatprep.mubr.bf16.mxu0 0
        %2172 = vmatmul.mubr.bf16.gmra.mrb[0].mxu0 %v2087
        %v2173 = vpop.f32.mrb[0].mxu0
        %v2174 = vadd.f32 0.0, %v2173
        %v2175 = vpop.f32.mrb[0].mxu0
        %v2176 = vpop.f32.mrb[0].mxu0
        %v2177 = vadd.f32 0.0, %v2176
        %v2178 = vpop.f32.mrb[0].mxu0
        %2179 = vmatprep.mubr.bf16.mxu0 0
        %2180 = vmatmul.mubr.bf16.gmra.mrb[0].mxu0 %v2090
        %v2181 = vpop.f32.mrb[0].mxu0
        %v2182 = vadd.f32 0.0, %v2181
        %v2183 = vpop.f32.mrb[0].mxu0
        %v2184 = vpop.f32.mrb[0].mxu0
        %v2185 = vadd.f32 0.0, %v2184
        %v2186 = vpop.f32.mrb[0].mxu0
        %2187 = vmatprep.mubr.bf16.mxu0 0
        %2188 = vmatmul.mubr.bf16.gmra.mrb[0].mxu0 %v2093
        %v2189 = vpop.f32.mrb[0].mxu0
        %v2190 = vadd.f32 0.0, %v2189
        %v2191 = vpop.f32.mrb[0].mxu0
        %v2192 = vpop.f32.mrb[0].mxu0
        %v2193 = vadd.f32 0.0, %v2192
        %v2194 = vpop.f32.mrb[0].mxu0
        %2195 = vmatprep.mubr.bf16.mxu0 0
        %2196 = vmatmul.mubr.bf16.gmra.mrb[0].mxu0 %v2096
        %v2197 = vpop.f32.mrb[0].mxu0
        %v2198 = vadd.f32 0.0, %v2197
        %v2199 = vpop.f32.mrb[0].mxu0
        %v2200 = vpop.f32.mrb[0].mxu0
        %v2201 = vadd.f32 0.0, %v2200
        %v2202 = vpop.f32.mrb[0].mxu0
        %2203 = vmatprep.mubr.bf16.mxu0 0
        %2204 = vmatmul.mubr.bf16.gmra.mrb[0].mxu0 %v2099
        %v2205 = vpop.f32.mrb[0].mxu0
        %v2206 = vadd.f32 0.0, %v2205
        %v2207 = vpop.f32.mrb[0].mxu0
        %v2208 = vpop.f32.mrb[0].mxu0
        %v2209 = vadd.f32 0.0, %v2208
        %v2210 = vpop.f32.mrb[0].mxu0
        %2211 = vmatprep.mubr.bf16.mxu0 0
        %2212 = vmatmul.mubr.bf16.gmra.mrb[0].mxu0 %v2102
        %v2213 = vpop.f32.mrb[0].mxu0
        %v2214 = vadd.f32 0.0, %v2213
        %v2215 = vpop.f32.mrb[0].mxu0
        %v2216 = vpop.f32.mrb[0].mxu0
        %v2217 = vadd.f32 0.0, %v2216
        %v2218 = vpop.f32.mrb[0].mxu0
        %2219 = vmatprep.mubr.bf16.mxu0 0
        %2220 = vmatmul.mubr.bf16.gmra.mrb[0].mxu0 %v2105
        %v2221 = vpop.f32.mrb[0].mxu0
        %v2222 = vadd.f32 0.0, %v2221
        %v2223 = vpop.f32.mrb[0].mxu0
        %v2224 = vpop.f32.mrb[0].mxu0
        %v2225 = vadd.f32 0.0, %v2224
        %v2226 = vpop.f32.mrb[0].mxu0
        %2227 = vdwg.mxu0
        %2236 = vrot.lane.b32.xlu0 %v1102, 96
        %v2237 = vpop.permute.xlu0 %2236
        %2238 = vrot.lane.b32.xlu0 %v1103, 96
        %v2239 = vpop.permute.xlu0 %2238
        %2240 = vrot.lane.b32.xlu0 %v1104, 96
        %v2241 = vpop.permute.xlu0 %2240
        %2242 = vrot.lane.b32.xlu0 %v1105, 96
        %v2243 = vpop.permute.xlu0 %2242
        %2244 = vrot.lane.b32.xlu0 %v1106, 96
        %v2245 = vpop.permute.xlu0 %2244
        %2246 = vrot.lane.b32.xlu0 %v1107, 96
        %v2247 = vpop.permute.xlu0 %2246
        %2248 = vrot.lane.b32.xlu0 %v1108, 96
        %v2249 = vpop.permute.xlu0 %2248
        %2250 = vrot.lane.b32.xlu0 %v1109, 96
        %v2251 = vpop.permute.xlu0 %2250
        %2260 = vrot.lane.b32.xlu0 %v1154, 96
        %v2261 = vpop.permute.xlu0 %2260
        %2262 = vrot.lane.b32.xlu0 %v1155, 96
        %v2263 = vpop.permute.xlu0 %2262
        %2264 = vrot.lane.b32.xlu0 %v1156, 96
        %v2265 = vpop.permute.xlu0 %2264
        %2266 = vrot.lane.b32.xlu0 %v1157, 96
        %v2267 = vpop.permute.xlu0 %2266
        %2268 = vrot.lane.b32.xlu0 %v1158, 96
        %v2269 = vpop.permute.xlu0 %2268
        %2270 = vrot.lane.b32.xlu0 %v1159, 96
        %v2271 = vpop.permute.xlu0 %2270
        %2272 = vrot.lane.b32.xlu0 %v1160, 96
        %v2273 = vpop.permute.xlu0 %2272
        %2274 = vrot.lane.b32.xlu0 %v1161, 96
        %v2275 = vpop.permute.xlu0 %2274
        %v2277 = vsel %vm1230, %v2237, 0
        %v2280 = vsel %vm1230, %v2239, 0
        %v2283 = vsel %vm1230, %v2241, 0
        %v2286 = vsel %vm1230, %v2243, 0
        %v2289 = vsel %vm1230, %v2245, 0
        %v2292 = vsel %vm1230, %v2247, 0
        %v2295 = vsel %vm1230, %v2249, 0
        %v2298 = vsel %vm1230, %v2251, 0
        %v2301 = vsel %vm1230, %v2261, 0
        %v2304 = vsel %vm1230, %v2263, 0
        %v2307 = vsel %vm1230, %v2265, 0
        %v2310 = vsel %vm1230, %v2267, 0
        %v2313 = vsel %vm1230, %v2269, 0
        %v2316 = vsel %vm1230, %v2271, 0
        %v2319 = vsel %vm1230, %v2273, 0
        %v2322 = vsel %vm1230, %v2275, 0
        %2324 = vmatprep.subr.bf16.mxu0 0
        %2325 = vmatpush1.bf16.xpose.msra.mxu0 %v2301
        %2326 = vmatprep.subr.bf16.mxu0 0
        %2327 = vmatpush1.bf16.xpose.msra.mxu0 %v2304
        %2328 = vmatprep.subr.bf16.mxu0 0
        %2329 = vmatpush1.bf16.xpose.msra.mxu0 %v2307
        %2330 = vmatprep.subr.bf16.mxu0 0
        %2331 = vmatpush1.bf16.xpose.msra.mxu0 %v2310
        %2332 = vmatprep.subr.bf16.mxu0 0
        %2333 = vmatpush1.bf16.xpose.msra.mxu0 %v2313
        %2334 = vmatprep.subr.bf16.mxu0 0
        %2335 = vmatpush1.bf16.xpose.msra.mxu0 %v2316
        %2336 = vmatprep.subr.bf16.mxu0 0
        %2337 = vmatpush1.bf16.xpose.msra.mxu0 %v2319
        %2338 = vmatprep.subr.bf16.mxu0 0
        %2339 = vmatpush1.bf16.xpose.msra.mxu0 %v2322
        %2340 = vmatprep.subr.bf16.mxu0 0
        %2341 = vmatpush1.bf16.xpose.msra.mxu0 0
        %2342 = vmatprep.subr.bf16.mxu0 0
        %2343 = vmatpush1.bf16.xpose.msra.mxu0 0
        %2344 = vmatprep.subr.bf16.mxu0 0
        %2345 = vmatpush1.bf16.xpose.msra.mxu0 0
        %2346 = vmatprep.subr.bf16.mxu0 0
        %2347 = vmatpush1.bf16.xpose.msra.mxu0 0
        %2348 = vmatprep.subr.bf16.mxu0 0
        %2349 = vmatpush1.bf16.xpose.msra.mxu0 0
        %2350 = vmatprep.subr.bf16.mxu0 0
        %2351 = vmatpush1.bf16.xpose.msra.mxu0 0
        %2352 = vmatprep.subr.bf16.mxu0 0
        %2353 = vmatpush1.bf16.xpose.msra.mxu0 0
        %2354 = vmatprep.subr.bf16.mxu0 0
        %2355 = vmatpush1.bf16.xpose.msra.mxu0 0
        %2356 = vmatprep.mubr.bf16.mxu0 0
        %2357 = vmatmul.mubr.bf16.gmra.mrb[0].mxu0 %v2277
        %v2358 = vpop.f32.mrb[0].mxu0
        %v2359 = vadd.f32 0.0, %v2358
        %v2360 = vpop.f32.mrb[0].mxu0
        %v2361 = vpop.f32.mrb[0].mxu0
        %v2362 = vadd.f32 0.0, %v2361
        %v2363 = vpop.f32.mrb[0].mxu0
        %2364 = vmatprep.mubr.bf16.mxu0 0
        %2365 = vmatmul.mubr.bf16.gmra.mrb[0].mxu0 %v2280
        %v2366 = vpop.f32.mrb[0].mxu0
        %v2367 = vadd.f32 0.0, %v2366
        %v2368 = vpop.f32.mrb[0].mxu0
        %v2369 = vpop.f32.mrb[0].mxu0
        %v2370 = vadd.f32 0.0, %v2369
        %v2371 = vpop.f32.mrb[0].mxu0
        %2372 = vmatprep.mubr.bf16.mxu0 0
        %2373 = vmatmul.mubr.bf16.gmra.mrb[0].mxu0 %v2283
        %v2374 = vpop.f32.mrb[0].mxu0
        %v2375 = vadd.f32 0.0, %v2374
        %v2376 = vpop.f32.mrb[0].mxu0
        %v2377 = vpop.f32.mrb[0].mxu0
        %v2378 = vadd.f32 0.0, %v2377
        %v2379 = vpop.f32.mrb[0].mxu0
        %2380 = vmatprep.mubr.bf16.mxu0 0
        %2381 = vmatmul.mubr.bf16.gmra.mrb[0].mxu0 %v2286
        %v2382 = vpop.f32.mrb[0].mxu0
        %v2383 = vadd.f32 0.0, %v2382
        %v2384 = vpop.f32.mrb[0].mxu0
        %v2385 = vpop.f32.mrb[0].mxu0
        %v2386 = vadd.f32 0.0, %v2385
        %v2387 = vpop.f32.mrb[0].mxu0
        %2388 = vmatprep.mubr.bf16.mxu0 0
        %2389 = vmatmul.mubr.bf16.gmra.mrb[0].mxu0 %v2289
        %v2390 = vpop.f32.mrb[0].mxu0
        %v2391 = vadd.f32 0.0, %v2390
        %v2392 = vpop.f32.mrb[0].mxu0
        %v2393 = vpop.f32.mrb[0].mxu0
        %v2394 = vadd.f32 0.0, %v2393
        %v2395 = vpop.f32.mrb[0].mxu0
        %2396 = vmatprep.mubr.bf16.mxu0 0
        %2397 = vmatmul.mubr.bf16.gmra.mrb[0].mxu0 %v2292
        %v2398 = vpop.f32.mrb[0].mxu0
        %v2399 = vadd.f32 0.0, %v2398
        %v2400 = vpop.f32.mrb[0].mxu0
        %v2401 = vpop.f32.mrb[0].mxu0
        %v2402 = vadd.f32 0.0, %v2401
        %v2403 = vpop.f32.mrb[0].mxu0
        %2404 = vmatprep.mubr.bf16.mxu0 0
        %2405 = vmatmul.mubr.bf16.gmra.mrb[0].mxu0 %v2295
        %v2406 = vpop.f32.mrb[0].mxu0
        %v2407 = vadd.f32 0.0, %v2406
        %v2408 = vpop.f32.mrb[0].mxu0
        %v2409 = vpop.f32.mrb[0].mxu0
        %v2410 = vadd.f32 0.0, %v2409
        %v2411 = vpop.f32.mrb[0].mxu0
        %2412 = vmatprep.mubr.bf16.mxu0 0
        %2413 = vmatmul.mubr.bf16.gmra.mrb[0].mxu0 %v2298
        %v2414 = vpop.f32.mrb[0].mxu0
        %v2415 = vadd.f32 0.0, %v2414
        %v2416 = vpop.f32.mrb[0].mxu0
        %v2417 = vpop.f32.mrb[0].mxu0
        %v2418 = vadd.f32 0.0, %v2417
        %v2419 = vpop.f32.mrb[0].mxu0
        %2420 = vdwg.mxu0
        %2421 = vmax.xlane.f32.xlu0 %v2166
        %v2422 = vpop.xlane.xlu0 %2421
        %2423 = vmax.xlane.f32.xlu0 %v2169
        %v2424 = vpop.xlane.xlu0 %2423
        %2425 = vmax.xlane.f32.xlu0 %v2174
        %v2426 = vpop.xlane.xlu0 %2425
        %2427 = vmax.xlane.f32.xlu0 %v2177
        %v2428 = vpop.xlane.xlu0 %2427
        %2429 = vmax.xlane.f32.xlu0 %v2182
        %v2430 = vpop.xlane.xlu0 %2429
        %2431 = vmax.xlane.f32.xlu0 %v2185
        %v2432 = vpop.xlane.xlu0 %2431
        %2433 = vmax.xlane.f32.xlu0 %v2190
        %v2434 = vpop.xlane.xlu0 %2433
        %2435 = vmax.xlane.f32.xlu0 %v2193
        %v2436 = vpop.xlane.xlu0 %2435
        %2437 = vmax.xlane.f32.xlu0 %v2198
        %v2438 = vpop.xlane.xlu0 %2437
        %2439 = vmax.xlane.f32.xlu0 %v2201
        %v2440 = vpop.xlane.xlu0 %2439
        %2441 = vmax.xlane.f32.xlu0 %v2206
        %v2442 = vpop.xlane.xlu0 %2441
        %2443 = vmax.xlane.f32.xlu0 %v2209
        %v2444 = vpop.xlane.xlu0 %2443
        %2445 = vmax.xlane.f32.xlu0 %v2214
        %v2446 = vpop.xlane.xlu0 %2445
        %2447 = vmax.xlane.f32.xlu0 %v2217
        %v2448 = vpop.xlane.xlu0 %2447
        %2449 = vmax.xlane.f32.xlu0 %v2222
        %v2450 = vpop.xlane.xlu0 %2449
        %2451 = vmax.xlane.f32.xlu0 %v2225
        %v2452 = vpop.xlane.xlu0 %2451
        %2453 = vmax.xlane.f32.xlu0 %v2359
        %v2454 = vpop.xlane.xlu0 %2453
        %2455 = vmax.xlane.f32.xlu0 %v2362
        %v2456 = vpop.xlane.xlu0 %2455
        %2457 = vmax.xlane.f32.xlu0 %v2367
        %v2458 = vpop.xlane.xlu0 %2457
        %2459 = vmax.xlane.f32.xlu0 %v2370
        %v2460 = vpop.xlane.xlu0 %2459
        %2461 = vmax.xlane.f32.xlu0 %v2375
        %v2462 = vpop.xlane.xlu0 %2461
        %2463 = vmax.xlane.f32.xlu0 %v2378
        %v2464 = vpop.xlane.xlu0 %2463
        %2465 = vmax.xlane.f32.xlu0 %v2383
        %v2466 = vpop.xlane.xlu0 %2465
        %2467 = vmax.xlane.f32.xlu0 %v2386
        %v2468 = vpop.xlane.xlu0 %2467
        %2469 = vmax.xlane.f32.xlu0 %v2391
        %v2470 = vpop.xlane.xlu0 %2469
        %2471 = vmax.xlane.f32.xlu0 %v2394
        %v2472 = vpop.xlane.xlu0 %2471
        %2473 = vmax.xlane.f32.xlu0 %v2399
        %v2474 = vpop.xlane.xlu0 %2473
        %2475 = vmax.xlane.f32.xlu0 %v2402
        %v2476 = vpop.xlane.xlu0 %2475
        %2477 = vmax.xlane.f32.xlu0 %v2407
        %v2478 = vpop.xlane.xlu0 %2477
        %2479 = vmax.xlane.f32.xlu0 %v2410
        %v2480 = vpop.xlane.xlu0 %2479
        %2481 = vmax.xlane.f32.xlu0 %v2415
        %v2482 = vpop.xlane.xlu0 %2481
        %2483 = vmax.xlane.f32.xlu0 %v2418
        %v2484 = vpop.xlane.xlu0 %2483
        %v2485 = vsub.f32 %v2166, %v2422
        %v2486 = vsub.f32 %v2169, %v2424
        %v2487 = vsub.f32 %v2174, %v2426
        %v2488 = vsub.f32 %v2177, %v2428
        %v2489 = vsub.f32 %v2182, %v2430
        %v2490 = vsub.f32 %v2185, %v2432
        %v2491 = vsub.f32 %v2190, %v2434
        %v2492 = vsub.f32 %v2193, %v2436
        %v2493 = vsub.f32 %v2198, %v2438
        %v2494 = vsub.f32 %v2201, %v2440
        %v2495 = vsub.f32 %v2206, %v2442
        %v2496 = vsub.f32 %v2209, %v2444
        %v2497 = vsub.f32 %v2214, %v2446
        %v2498 = vsub.f32 %v2217, %v2448
        %v2499 = vsub.f32 %v2222, %v2450
        %v2500 = vsub.f32 %v2225, %v2452
        %v2501 = vsub.f32 %v2359, %v2454
        %v2502 = vsub.f32 %v2362, %v2456
        %v2503 = vsub.f32 %v2367, %v2458
        %v2504 = vsub.f32 %v2370, %v2460
        %v2505 = vsub.f32 %v2375, %v2462
        %v2506 = vsub.f32 %v2378, %v2464
        %v2507 = vsub.f32 %v2383, %v2466
        %v2508 = vsub.f32 %v2386, %v2468
        %v2509 = vsub.f32 %v2391, %v2470
        %v2510 = vsub.f32 %v2394, %v2472
        %v2511 = vsub.f32 %v2399, %v2474
        %v2512 = vsub.f32 %v2402, %v2476
        %v2513 = vsub.f32 %v2407, %v2478
        %v2514 = vsub.f32 %v2410, %v2480
        %v2515 = vsub.f32 %v2415, %v2482
        %v2516 = vsub.f32 %v2418, %v2484
        %v2517 = vmul.f32 %v2485, 1.442695
        %v2518 = vpow.pop %v2517
        %v2519 = vmul.f32 %v2486, 1.442695
        %v2520 = vpow.pop %v2519
        %v2521 = vmul.f32 %v2487, 1.442695
        %v2522 = vpow.pop %v2521
        %v2523 = vmul.f32 %v2488, 1.442695
        %v2524 = vpow.pop %v2523
        %v2525 = vmul.f32 %v2489, 1.442695
        %v2526 = vpow.pop %v2525
        %v2527 = vmul.f32 %v2490, 1.442695
        %v2528 = vpow.pop %v2527
        %v2529 = vmul.f32 %v2491, 1.442695
        %v2530 = vpow.pop %v2529
        %v2531 = vmul.f32 %v2492, 1.442695
        %v2532 = vpow.pop %v2531
        %v2533 = vmul.f32 %v2493, 1.442695
        %v2534 = vpow.pop %v2533
        %v2535 = vmul.f32 %v2494, 1.442695
        %v2536 = vpow.pop %v2535
        %v2537 = vmul.f32 %v2495, 1.442695
        %v2538 = vpow.pop %v2537
        %v2539 = vmul.f32 %v2496, 1.442695
        %v2540 = vpow.pop %v2539
        %v2541 = vmul.f32 %v2497, 1.442695
        %v2542 = vpow.pop %v2541
        %v2543 = vmul.f32 %v2498, 1.442695
        %v2544 = vpow.pop %v2543
        %v2545 = vmul.f32 %v2499, 1.442695
        %v2546 = vpow.pop %v2545
        %v2547 = vmul.f32 %v2500, 1.442695
        %v2548 = vpow.pop %v2547
        %v2549 = vmul.f32 %v2501, 1.442695
        %v2550 = vpow.pop %v2549
        %v2551 = vmul.f32 %v2502, 1.442695
        %v2552 = vpow.pop %v2551
        %v2553 = vmul.f32 %v2503, 1.442695
        %v2554 = vpow.pop %v2553
        %v2555 = vmul.f32 %v2504, 1.442695
        %v2556 = vpow.pop %v2555
        %v2557 = vmul.f32 %v2505, 1.442695
        %v2558 = vpow.pop %v2557
        %v2559 = vmul.f32 %v2506, 1.442695
        %v2560 = vpow.pop %v2559
        %v2561 = vmul.f32 %v2507, 1.442695
        %v2562 = vpow.pop %v2561
        %v2563 = vmul.f32 %v2508, 1.442695
        %v2564 = vpow.pop %v2563
        %v2565 = vmul.f32 %v2509, 1.442695
        %v2566 = vpow.pop %v2565
        %v2567 = vmul.f32 %v2510, 1.442695
        %v2568 = vpow.pop %v2567
        %v2569 = vmul.f32 %v2511, 1.442695
        %v2570 = vpow.pop %v2569
        %v2571 = vmul.f32 %v2512, 1.442695
        %v2572 = vpow.pop %v2571
        %v2573 = vmul.f32 %v2513, 1.442695
        %v2574 = vpow.pop %v2573
        %v2575 = vmul.f32 %v2514, 1.442695
        %v2576 = vpow.pop %v2575
        %v2577 = vmul.f32 %v2515, 1.442695
        %v2578 = vpow.pop %v2577
        %v2579 = vmul.f32 %v2516, 1.442695
        %v2580 = vpow.pop %v2579
        %2581 = vadd.xlane.f32.xlu0 %v2518
        %v2582 = vpop.xlane.xlu0 %2581
        %2583 = vadd.xlane.f32.xlu0 %v2520
        %v2584 = vpop.xlane.xlu0 %2583
        %2585 = vadd.xlane.f32.xlu0 %v2522
        %v2586 = vpop.xlane.xlu0 %2585
        %2587 = vadd.xlane.f32.xlu0 %v2524
        %v2588 = vpop.xlane.xlu0 %2587
        %2589 = vadd.xlane.f32.xlu0 %v2526
        %v2590 = vpop.xlane.xlu0 %2589
        %2591 = vadd.xlane.f32.xlu0 %v2528
        %v2592 = vpop.xlane.xlu0 %2591
        %2593 = vadd.xlane.f32.xlu0 %v2530
        %v2594 = vpop.xlane.xlu0 %2593
        %2595 = vadd.xlane.f32.xlu0 %v2532
        %v2596 = vpop.xlane.xlu0 %2595
        %2597 = vadd.xlane.f32.xlu0 %v2534
        %v2598 = vpop.xlane.xlu0 %2597
        %2599 = vadd.xlane.f32.xlu0 %v2536
        %v2600 = vpop.xlane.xlu0 %2599
        %2601 = vadd.xlane.f32.xlu0 %v2538
        %v2602 = vpop.xlane.xlu0 %2601
        %2603 = vadd.xlane.f32.xlu0 %v2540
        %v2604 = vpop.xlane.xlu0 %2603
        %2605 = vadd.xlane.f32.xlu0 %v2542
        %v2606 = vpop.xlane.xlu0 %2605
        %2607 = vadd.xlane.f32.xlu0 %v2544
        %v2608 = vpop.xlane.xlu0 %2607
        %2609 = vadd.xlane.f32.xlu0 %v2546
        %v2610 = vpop.xlane.xlu0 %2609
        %2611 = vadd.xlane.f32.xlu0 %v2548
        %v2612 = vpop.xlane.xlu0 %2611
        %2613 = vadd.xlane.f32.xlu0 %v2550
        %v2614 = vpop.xlane.xlu0 %2613
        %2615 = vadd.xlane.f32.xlu0 %v2552
        %v2616 = vpop.xlane.xlu0 %2615
        %2617 = vadd.xlane.f32.xlu0 %v2554
        %v2618 = vpop.xlane.xlu0 %2617
        %2619 = vadd.xlane.f32.xlu0 %v2556
        %v2620 = vpop.xlane.xlu0 %2619
        %2621 = vadd.xlane.f32.xlu0 %v2558
        %v2622 = vpop.xlane.xlu0 %2621
        %2623 = vadd.xlane.f32.xlu0 %v2560
        %v2624 = vpop.xlane.xlu0 %2623
        %2625 = vadd.xlane.f32.xlu0 %v2562
        %v2626 = vpop.xlane.xlu0 %2625
        %2627 = vadd.xlane.f32.xlu0 %v2564
        %v2628 = vpop.xlane.xlu0 %2627
        %2629 = vadd.xlane.f32.xlu0 %v2566
        %v2630 = vpop.xlane.xlu0 %2629
        %2631 = vadd.xlane.f32.xlu0 %v2568
        %v2632 = vpop.xlane.xlu0 %2631
        %2633 = vadd.xlane.f32.xlu0 %v2570
        %v2634 = vpop.xlane.xlu0 %2633
        %2635 = vadd.xlane.f32.xlu0 %v2572
        %v2636 = vpop.xlane.xlu0 %2635
        %2637 = vadd.xlane.f32.xlu0 %v2574
        %v2638 = vpop.xlane.xlu0 %2637
        %2639 = vadd.xlane.f32.xlu0 %v2576
        %v2640 = vpop.xlane.xlu0 %2639
        %2641 = vadd.xlane.f32.xlu0 %v2578
        %v2642 = vpop.xlane.xlu0 %2641
        %2643 = vadd.xlane.f32.xlu0 %v2580
        %v2644 = vpop.xlane.xlu0 %2643
        %v2645 = vrcp.pop %v2582
        %v2646 = vrcp.pop %v2584
        %v2647 = vrcp.pop %v2586
        %v2648 = vrcp.pop %v2588
        %v2649 = vrcp.pop %v2590
        %v2650 = vrcp.pop %v2592
        %v2651 = vrcp.pop %v2594
        %v2652 = vrcp.pop %v2596
        %v2653 = vrcp.pop %v2598
        %v2654 = vrcp.pop %v2600
        %v2655 = vrcp.pop %v2602
        %v2656 = vrcp.pop %v2604
        %v2657 = vrcp.pop %v2606
        %v2658 = vrcp.pop %v2608
        %v2659 = vrcp.pop %v2610
        %v2660 = vrcp.pop %v2612
        %v2661 = vrcp.pop %v2614
        %v2662 = vrcp.pop %v2616
        %v2663 = vrcp.pop %v2618
        %v2664 = vrcp.pop %v2620
        %v2665 = vrcp.pop %v2622
        %v2666 = vrcp.pop %v2624
        %v2667 = vrcp.pop %v2626
        %v2668 = vrcp.pop %v2628
        %v2669 = vrcp.pop %v2630
        %v2670 = vrcp.pop %v2632
        %v2671 = vrcp.pop %v2634
        %v2672 = vrcp.pop %v2636
        %v2673 = vrcp.pop %v2638
        %v2674 = vrcp.pop %v2640
        %v2675 = vrcp.pop %v2642
        %v2676 = vrcp.pop %v2644
        %v2677 = vmul.f32 %v2518, %v2645
        %v2678 = vmul.f32 %v2520, %v2646
        %v2679 = vmul.f32 %v2522, %v2647
        %v2680 = vmul.f32 %v2524, %v2648
        %v2681 = vmul.f32 %v2526, %v2649
        %v2682 = vmul.f32 %v2528, %v2650
        %v2683 = vmul.f32 %v2530, %v2651
        %v2684 = vmul.f32 %v2532, %v2652
        %v2685 = vmul.f32 %v2534, %v2653
        %v2686 = vmul.f32 %v2536, %v2654
        %v2687 = vmul.f32 %v2538, %v2655
        %v2688 = vmul.f32 %v2540, %v2656
        %v2689 = vmul.f32 %v2542, %v2657
        %v2690 = vmul.f32 %v2544, %v2658
        %v2691 = vmul.f32 %v2546, %v2659
        %v2692 = vmul.f32 %v2548, %v2660
        %v2693 = vmul.f32 %v2550, %v2661
        %v2694 = vmul.f32 %v2552, %v2662
        %v2695 = vmul.f32 %v2554, %v2663
        %v2696 = vmul.f32 %v2556, %v2664
        %v2697 = vmul.f32 %v2558, %v2665
        %v2698 = vmul.f32 %v2560, %v2666
        %v2699 = vmul.f32 %v2562, %v2667
        %v2700 = vmul.f32 %v2564, %v2668
        %v2701 = vmul.f32 %v2566, %v2669
        %v2702 = vmul.f32 %v2568, %v2670
        %v2703 = vmul.f32 %v2570, %v2671
        %v2704 = vmul.f32 %v2572, %v2672
        %v2705 = vmul.f32 %v2574, %v2673
        %v2706 = vmul.f32 %v2576, %v2674
        %v2707 = vmul.f32 %v2578, %v2675
        %v2708 = vmul.f32 %v2580, %v2676
        %v2709 = vpack.c.bf16 %v2678, %v2677
        %v2710 = vpack.c.bf16 %v2680, %v2679
        %v2711 = vpack.c.bf16 %v2682, %v2681
        %v2712 = vpack.c.bf16 %v2684, %v2683
        %v2713 = vpack.c.bf16 %v2686, %v2685
        %v2714 = vpack.c.bf16 %v2688, %v2687
        %v2715 = vpack.c.bf16 %v2690, %v2689
        %v2716 = vpack.c.bf16 %v2692, %v2691
        %v2717 = vpack.c.bf16 %v2694, %v2693
        %v2718 = vpack.c.bf16 %v2696, %v2695
        %v2719 = vpack.c.bf16 %v2698, %v2697
        %v2720 = vpack.c.bf16 %v2700, %v2699
        %v2721 = vpack.c.bf16 %v2702, %v2701
        %v2722 = vpack.c.bf16 %v2704, %v2703
        %v2723 = vpack.c.bf16 %v2706, %v2705
        %v2724 = vpack.c.bf16 %v2708, %v2707
        %2733 = vrot.lane.b32.xlu0 %v1198, 96
        %v2734 = vpop.permute.xlu0 %2733
        %2735 = vrot.lane.b32.xlu0 %v1199, 96
        %v2736 = vpop.permute.xlu0 %2735
        %2737 = vrot.lane.b32.xlu0 %v1200, 96
        %v2738 = vpop.permute.xlu0 %2737
        %2739 = vrot.lane.b32.xlu0 %v1201, 96
        %v2740 = vpop.permute.xlu0 %2739
        %2741 = vrot.lane.b32.xlu0 %v1202, 96
        %v2742 = vpop.permute.xlu0 %2741
        %2743 = vrot.lane.b32.xlu0 %v1203, 96
        %v2744 = vpop.permute.xlu0 %2743
        %2745 = vrot.lane.b32.xlu0 %v1204, 96
        %v2746 = vpop.permute.xlu0 %2745
        %2747 = vrot.lane.b32.xlu0 %v1205, 96
        %v2748 = vpop.permute.xlu0 %2747
        %2757 = vmatprep.subr.bf16.mxu0 0
        %2758 = vmatpush1.bf16.msra.mxu0 %v2734
        %2759 = vmatprep.subr.bf16.mxu0 0
        %2760 = vmatpush1.bf16.msra.mxu0 %v2736
        %2761 = vmatprep.subr.bf16.mxu0 0
        %2762 = vmatpush1.bf16.msra.mxu0 %v2738
        %2763 = vmatprep.subr.bf16.mxu0 0
        %2764 = vmatpush1.bf16.msra.mxu0 %v2740
        %2765 = vmatprep.subr.bf16.mxu0 0
        %2766 = vmatpush1.bf16.msra.mxu0 %v2742
        %2767 = vmatprep.subr.bf16.mxu0 0
        %2768 = vmatpush1.bf16.msra.mxu0 %v2744
        %2769 = vmatprep.subr.bf16.mxu0 0
        %2770 = vmatpush1.bf16.msra.mxu0 %v2746
        %2771 = vmatprep.subr.bf16.mxu0 0
        %2772 = vmatpush1.bf16.msra.mxu0 %v2748
        %2773 = vmatprep.subr.bf16.mxu0 0
        %2774 = vmatpush1.bf16.msra.mxu0 0
        %2775 = vmatprep.subr.bf16.mxu0 0
        %2776 = vmatpush1.bf16.msra.mxu0 0
        %2777 = vmatprep.subr.bf16.mxu0 0
        %2778 = vmatpush1.bf16.msra.mxu0 0
        %2779 = vmatprep.subr.bf16.mxu0 0
        %2780 = vmatpush1.bf16.msra.mxu0 0
        %2781 = vmatprep.subr.bf16.mxu0 0
        %2782 = vmatpush1.bf16.msra.mxu0 0
        %2783 = vmatprep.subr.bf16.mxu0 0
        %2784 = vmatpush1.bf16.msra.mxu0 0
        %2785 = vmatprep.subr.bf16.mxu0 0
        %2786 = vmatpush1.bf16.msra.mxu0 0
        %2787 = vmatprep.subr.bf16.mxu0 0
        %2788 = vmatpush1.bf16.msra.mxu0 0
        %2789 = vmatprep.mubr.bf16.mxu0 0
        %2790 = vmatmul.mubr.bf16.gmra.mrb[0].mxu0 %v2709
        %v2791 = vpop.f32.mrb[0].mxu0
        %v2792 = vadd.f32 0.0, %v2791
        %v2793 = vpop.f32.mrb[0].mxu0
        %v2794 = vpop.f32.mrb[0].mxu0
        %v2795 = vadd.f32 0.0, %v2794
        %v2796 = vpop.f32.mrb[0].mxu0
        %2797 = vmatprep.mubr.bf16.mxu0 0
        %2798 = vmatmul.mubr.bf16.gmra.mrb[0].mxu0 %v2710
        %v2799 = vpop.f32.mrb[0].mxu0
        %v2800 = vadd.f32 0.0, %v2799
        %v2801 = vpop.f32.mrb[0].mxu0
        %v2802 = vpop.f32.mrb[0].mxu0
        %v2803 = vadd.f32 0.0, %v2802
        %v2804 = vpop.f32.mrb[0].mxu0
        %2805 = vmatprep.mubr.bf16.mxu0 0
        %2806 = vmatmul.mubr.bf16.gmra.mrb[0].mxu0 %v2711
        %v2807 = vpop.f32.mrb[0].mxu0
        %v2808 = vadd.f32 0.0, %v2807
        %v2809 = vpop.f32.mrb[0].mxu0
        %v2810 = vpop.f32.mrb[0].mxu0
        %v2811 = vadd.f32 0.0, %v2810
        %v2812 = vpop.f32.mrb[0].mxu0
        %2813 = vmatprep.mubr.bf16.mxu0 0
        %2814 = vmatmul.mubr.bf16.gmra.mrb[0].mxu0 %v2712
        %v2815 = vpop.f32.mrb[0].mxu0
        %v2816 = vadd.f32 0.0, %v2815
        %v2817 = vpop.f32.mrb[0].mxu0
        %v2818 = vpop.f32.mrb[0].mxu0
        %v2819 = vadd.f32 0.0, %v2818
        %v2820 = vpop.f32.mrb[0].mxu0
        %2821 = vmatprep.mubr.bf16.mxu0 0
        %2822 = vmatmul.mubr.bf16.gmra.mrb[0].mxu0 %v2713
        %v2823 = vpop.f32.mrb[0].mxu0
        %v2824 = vadd.f32 0.0, %v2823
        %v2825 = vpop.f32.mrb[0].mxu0
        %v2826 = vpop.f32.mrb[0].mxu0
        %v2827 = vadd.f32 0.0, %v2826
        %v2828 = vpop.f32.mrb[0].mxu0
        %2829 = vmatprep.mubr.bf16.mxu0 0
        %2830 = vmatmul.mubr.bf16.gmra.mrb[0].mxu0 %v2714
        %v2831 = vpop.f32.mrb[0].mxu0
        %v2832 = vadd.f32 0.0, %v2831
        %v2833 = vpop.f32.mrb[0].mxu0
        %v2834 = vpop.f32.mrb[0].mxu0
        %v2835 = vadd.f32 0.0, %v2834
        %v2836 = vpop.f32.mrb[0].mxu0
        %2837 = vmatprep.mubr.bf16.mxu0 0
        %2838 = vmatmul.mubr.bf16.gmra.mrb[0].mxu0 %v2715
        %v2839 = vpop.f32.mrb[0].mxu0
        %v2840 = vadd.f32 0.0, %v2839
        %v2841 = vpop.f32.mrb[0].mxu0
        %v2842 = vpop.f32.mrb[0].mxu0
        %v2843 = vadd.f32 0.0, %v2842
        %v2844 = vpop.f32.mrb[0].mxu0
        %2845 = vmatprep.mubr.bf16.mxu0 0
        %2846 = vmatmul.mubr.bf16.gmra.mrb[0].mxu0 %v2716
        %v2847 = vpop.f32.mrb[0].mxu0
        %v2848 = vadd.f32 0.0, %v2847
        %v2849 = vpop.f32.mrb[0].mxu0
        %v2850 = vpop.f32.mrb[0].mxu0
        %v2851 = vadd.f32 0.0, %v2850
        %v2852 = vpop.f32.mrb[0].mxu0
        %2853 = vdwg.mxu0
        %2862 = vrot.lane.b32.xlu0 %v1206, 96
        %v2863 = vpop.permute.xlu0 %2862
        %2864 = vrot.lane.b32.xlu0 %v1207, 96
        %v2865 = vpop.permute.xlu0 %2864
        %2866 = vrot.lane.b32.xlu0 %v1208, 96
        %v2867 = vpop.permute.xlu0 %2866
        %2868 = vrot.lane.b32.xlu0 %v1209, 96
        %v2869 = vpop.permute.xlu0 %2868
        %2870 = vrot.lane.b32.xlu0 %v1210, 96
        %v2871 = vpop.permute.xlu0 %2870
        %2872 = vrot.lane.b32.xlu0 %v1211, 96
        %v2873 = vpop.permute.xlu0 %2872
        %2874 = vrot.lane.b32.xlu0 %v1212, 96
        %v2875 = vpop.permute.xlu0 %2874
        %2876 = vrot.lane.b32.xlu0 %v1213, 96
        %v2877 = vpop.permute.xlu0 %2876
        %2886 = vmatprep.subr.bf16.mxu0 0
        %2887 = vmatpush1.bf16.msra.mxu0 %v2863
        %2888 = vmatprep.subr.bf16.mxu0 0
        %2889 = vmatpush1.bf16.msra.mxu0 %v2865
        %2890 = vmatprep.subr.bf16.mxu0 0
        %2891 = vmatpush1.bf16.msra.mxu0 %v2867
        %2892 = vmatprep.subr.bf16.mxu0 0
        %2893 = vmatpush1.bf16.msra.mxu0 %v2869
        %2894 = vmatprep.subr.bf16.mxu0 0
        %2895 = vmatpush1.bf16.msra.mxu0 %v2871
        %2896 = vmatprep.subr.bf16.mxu0 0
        %2897 = vmatpush1.bf16.msra.mxu0 %v2873
        %2898 = vmatprep.subr.bf16.mxu0 0
        %2899 = vmatpush1.bf16.msra.mxu0 %v2875
        %2900 = vmatprep.subr.bf16.mxu0 0
        %2901 = vmatpush1.bf16.msra.mxu0 %v2877
        %2902 = vmatprep.subr.bf16.mxu0 0
        %2903 = vmatpush1.bf16.msra.mxu0 0
        %2904 = vmatprep.subr.bf16.mxu0 0
        %2905 = vmatpush1.bf16.msra.mxu0 0
        %2906 = vmatprep.subr.bf16.mxu0 0
        %2907 = vmatpush1.bf16.msra.mxu0 0
        %2908 = vmatprep.subr.bf16.mxu0 0
        %2909 = vmatpush1.bf16.msra.mxu0 0
        %2910 = vmatprep.subr.bf16.mxu0 0
        %2911 = vmatpush1.bf16.msra.mxu0 0
        %2912 = vmatprep.subr.bf16.mxu0 0
        %2913 = vmatpush1.bf16.msra.mxu0 0
        %2914 = vmatprep.subr.bf16.mxu0 0
        %2915 = vmatpush1.bf16.msra.mxu0 0
        %2916 = vmatprep.subr.bf16.mxu0 0
        %2917 = vmatpush1.bf16.msra.mxu0 0
        %2918 = vmatprep.mubr.bf16.mxu0 0
        %2919 = vmatmul.mubr.bf16.gmra.mrb[0].mxu0 %v2717
        %v2920 = vpop.f32.mrb[0].mxu0
        %v2921 = vadd.f32 0.0, %v2920
        %v2922 = vpop.f32.mrb[0].mxu0
        %v2923 = vpop.f32.mrb[0].mxu0
        %v2924 = vadd.f32 0.0, %v2923
        %v2925 = vpop.f32.mrb[0].mxu0
        %2926 = vmatprep.mubr.bf16.mxu0 0
        %2927 = vmatmul.mubr.bf16.gmra.mrb[0].mxu0 %v2718
        %v2928 = vpop.f32.mrb[0].mxu0
        %v2929 = vadd.f32 0.0, %v2928
        %v2930 = vpop.f32.mrb[0].mxu0
        %v2931 = vpop.f32.mrb[0].mxu0
        %v2932 = vadd.f32 0.0, %v2931
        %v2933 = vpop.f32.mrb[0].mxu0
        %2934 = vmatprep.mubr.bf16.mxu0 0
        %2935 = vmatmul.mubr.bf16.gmra.mrb[0].mxu0 %v2719
        %v2936 = vpop.f32.mrb[0].mxu0
        %v2937 = vadd.f32 0.0, %v2936
        %v2938 = vpop.f32.mrb[0].mxu0
        %v2939 = vpop.f32.mrb[0].mxu0
        %v2940 = vadd.f32 0.0, %v2939
        %v2941 = vpop.f32.mrb[0].mxu0
        %2942 = vmatprep.mubr.bf16.mxu0 0
        %2943 = vmatmul.mubr.bf16.gmra.mrb[0].mxu0 %v2720
        %v2944 = vpop.f32.mrb[0].mxu0
        %v2945 = vadd.f32 0.0, %v2944
        %v2946 = vpop.f32.mrb[0].mxu0
        %v2947 = vpop.f32.mrb[0].mxu0
        %v2948 = vadd.f32 0.0, %v2947
        %v2949 = vpop.f32.mrb[0].mxu0
        %2950 = vmatprep.mubr.bf16.mxu0 0
        %2951 = vmatmul.mubr.bf16.gmra.mrb[0].mxu0 %v2721
        %v2952 = vpop.f32.mrb[0].mxu0
        %v2953 = vadd.f32 0.0, %v2952
        %v2954 = vpop.f32.mrb[0].mxu0
        %v2955 = vpop.f32.mrb[0].mxu0
        %v2956 = vadd.f32 0.0, %v2955
        %v2957 = vpop.f32.mrb[0].mxu0
        %2958 = vmatprep.mubr.bf16.mxu0 0
        %2959 = vmatmul.mubr.bf16.gmra.mrb[0].mxu0 %v2722
        %v2960 = vpop.f32.mrb[0].mxu0
        %v2961 = vadd.f32 0.0, %v2960
        %v2962 = vpop.f32.mrb[0].mxu0
        %v2963 = vpop.f32.mrb[0].mxu0
        %v2964 = vadd.f32 0.0, %v2963
        %v2965 = vpop.f32.mrb[0].mxu0
        %2966 = vmatprep.mubr.bf16.mxu0 0
        %2967 = vmatmul.mubr.bf16.gmra.mrb[0].mxu0 %v2723
        %v2968 = vpop.f32.mrb[0].mxu0
        %v2969 = vadd.f32 0.0, %v2968
        %v2970 = vpop.f32.mrb[0].mxu0
        %v2971 = vpop.f32.mrb[0].mxu0
        %v2972 = vadd.f32 0.0, %v2971
        %v2973 = vpop.f32.mrb[0].mxu0
        %2974 = vmatprep.mubr.bf16.mxu0 0
        %2975 = vmatmul.mubr.bf16.gmra.mrb[0].mxu0 %v2724
        %v2976 = vpop.f32.mrb[0].mxu0
        %v2977 = vadd.f32 0.0, %v2976
        %v2978 = vpop.f32.mrb[0].mxu0
        %v2979 = vpop.f32.mrb[0].mxu0
        %v2980 = vadd.f32 0.0, %v2979
        %v2981 = vpop.f32.mrb[0].mxu0
        %2982 = vdwg.mxu0
        %v2983 = vpack.c.bf16 %v2795, %v2792
        %v2984 = vpack.c.bf16 %v2803, %v2800
        %v2985 = vpack.c.bf16 %v2811, %v2808
        %v2986 = vpack.c.bf16 %v2819, %v2816
        %v2987 = vpack.c.bf16 %v2827, %v2824
        %v2988 = vpack.c.bf16 %v2835, %v2832
        %v2989 = vpack.c.bf16 %v2843, %v2840
        %v2990 = vpack.c.bf16 %v2851, %v2848
        %v2991 = vpack.c.bf16 %v2924, %v2921
        %v2992 = vpack.c.bf16 %v2932, %v2929
        %v2993 = vpack.c.bf16 %v2940, %v2937
        %v2994 = vpack.c.bf16 %v2948, %v2945
        %v2995 = vpack.c.bf16 %v2956, %v2953
        %v2996 = vpack.c.bf16 %v2964, %v2961
        %v2997 = vpack.c.bf16 %v2972, %v2969
        %v2998 = vpack.c.bf16 %v2980, %v2977
        %v3003 = vunpack.c.l.b16 %v1218
        %v3004 = vunpack.c.l.b16 %v1219
        %v3005 = vunpack.c.l.b16 %v1220
        %v3006 = vunpack.c.l.b16 %v1221
        %v3007 = vpack.c.b16 %v3004, %v3003
        %v3008 = vpack.c.b16 %v3006, %v3005
        %v3012 = vsel %vm1230, %v2983, 0
        %v3015 = vsel %vm1230, %v2984, 0
        %v3018 = vsel %vm1230, %v2985, 0
        %v3021 = vsel %vm1230, %v2986, 0
        %v3024 = vsel %vm1230, %v2987, 0
        %v3027 = vsel %vm1230, %v2988, 0
        %v3030 = vsel %vm1230, %v2989, 0
        %v3033 = vsel %vm1230, %v2990, 0
        %v3036 = vsel %vm1230, %v2991, 0
        %v3039 = vsel %vm1230, %v2992, 0
        %v3042 = vsel %vm1230, %v2993, 0
        %v3045 = vsel %vm1230, %v2994, 0
        %v3048 = vsel %vm1230, %v2995, 0
        %v3051 = vsel %vm1230, %v2996, 0
        %v3054 = vsel %vm1230, %v2997, 0
        %v3057 = vsel %vm1230, %v2998, 0
        %3059 = vmatprep.subr.bf16.mxu0 0
        %3060 = vmatpush1.bf16.msra.mxu0 %v3007
        %3061 = vmatprep.subr.bf16.mxu0 0
        %3062 = vmatpush1.bf16.msra.mxu0 %v3008
        %3063 = vmatprep.subr.bf16.mxu0 0
        %3064 = vmatpush1.bf16.msra.mxu0 0
        %3065 = vmatprep.subr.bf16.mxu0 0
        %3066 = vmatpush1.bf16.msra.mxu0 0
        %3067 = vmatprep.subr.bf16.mxu0 0
        %3068 = vmatpush1.bf16.msra.mxu0 0
        %3069 = vmatprep.subr.bf16.mxu0 0
        %3070 = vmatpush1.bf16.msra.mxu0 0
        %3071 = vmatprep.subr.bf16.mxu0 0
        %3072 = vmatpush1.bf16.msra.mxu0 0
        %3073 = vmatprep.subr.bf16.mxu0 0
        %3074 = vmatpush1.bf16.msra.mxu0 0
        %3075 = vmatprep.subr.bf16.mxu0 0
        %3076 = vmatpush1.bf16.msra.mxu0 0
        %3077 = vmatprep.subr.bf16.mxu0 0
        %3078 = vmatpush1.bf16.msra.mxu0 0
        %3079 = vmatprep.subr.bf16.mxu0 0
        %3080 = vmatpush1.bf16.msra.mxu0 0
        %3081 = vmatprep.subr.bf16.mxu0 0
        %3082 = vmatpush1.bf16.msra.mxu0 0
        %3083 = vmatprep.subr.bf16.mxu0 0
        %3084 = vmatpush1.bf16.msra.mxu0 0
        %3085 = vmatprep.subr.bf16.mxu0 0
        %3086 = vmatpush1.bf16.msra.mxu0 0
        %3087 = vmatprep.subr.bf16.mxu0 0
        %3088 = vmatpush1.bf16.msra.mxu0 0
        %3089 = vmatprep.subr.bf16.mxu0 0
        %3090 = vmatpush1.bf16.msra.mxu0 0
        %3091 = vmatprep.mubr.bf16.mxu0 0
        %3092 = vmatmul.mubr.bf16.gmra.mrb[0].mxu0 %v3012
        %v3093 = vpop.f32.mrb[0].mxu0
        %v3094 = vadd.f32 0.0, %v3093
        %v3095 = vpop.f32.mrb[0].mxu0
        %v3096 = vpop.f32.mrb[0].mxu0
        %v3097 = vadd.f32 0.0, %v3096
        %v3098 = vpop.f32.mrb[0].mxu0
        %3099 = vmatprep.mubr.bf16.mxu0 0
        %3100 = vmatmul.mubr.bf16.gmra.mrb[0].mxu0 %v3015
        %v3101 = vpop.f32.mrb[0].mxu0
        %v3102 = vadd.f32 0.0, %v3101
        %v3103 = vpop.f32.mrb[0].mxu0
        %v3104 = vpop.f32.mrb[0].mxu0
        %v3105 = vadd.f32 0.0, %v3104
        %v3106 = vpop.f32.mrb[0].mxu0
        %3107 = vmatprep.mubr.bf16.mxu0 0
        %3108 = vmatmul.mubr.bf16.gmra.mrb[0].mxu0 %v3018
        %v3109 = vpop.f32.mrb[0].mxu0
        %v3110 = vadd.f32 0.0, %v3109
        %v3111 = vpop.f32.mrb[0].mxu0
        %v3112 = vpop.f32.mrb[0].mxu0
        %v3113 = vadd.f32 0.0, %v3112
        %v3114 = vpop.f32.mrb[0].mxu0
        %3115 = vmatprep.mubr.bf16.mxu0 0
        %3116 = vmatmul.mubr.bf16.gmra.mrb[0].mxu0 %v3021
        %v3117 = vpop.f32.mrb[0].mxu0
        %v3118 = vadd.f32 0.0, %v3117
        %v3119 = vpop.f32.mrb[0].mxu0
        %v3120 = vpop.f32.mrb[0].mxu0
        %v3121 = vadd.f32 0.0, %v3120
        %v3122 = vpop.f32.mrb[0].mxu0
        %3123 = vmatprep.mubr.bf16.mxu0 0
        %3124 = vmatmul.mubr.bf16.gmra.mrb[0].mxu0 %v3024
        %v3125 = vpop.f32.mrb[0].mxu0
        %v3126 = vadd.f32 0.0, %v3125
        %v3127 = vpop.f32.mrb[0].mxu0
        %v3128 = vpop.f32.mrb[0].mxu0
        %v3129 = vadd.f32 0.0, %v3128
        %v3130 = vpop.f32.mrb[0].mxu0
        %3131 = vmatprep.mubr.bf16.mxu0 0
        %3132 = vmatmul.mubr.bf16.gmra.mrb[0].mxu0 %v3027
        %v3133 = vpop.f32.mrb[0].mxu0
        %v3134 = vadd.f32 0.0, %v3133
        %v3135 = vpop.f32.mrb[0].mxu0
        %v3136 = vpop.f32.mrb[0].mxu0
        %v3137 = vadd.f32 0.0, %v3136
        %v3138 = vpop.f32.mrb[0].mxu0
        %3139 = vmatprep.mubr.bf16.mxu0 0
        %3140 = vmatmul.mubr.bf16.gmra.mrb[0].mxu0 %v3030
        %v3141 = vpop.f32.mrb[0].mxu0
        %v3142 = vadd.f32 0.0, %v3141
        %v3143 = vpop.f32.mrb[0].mxu0
        %v3144 = vpop.f32.mrb[0].mxu0
        %v3145 = vadd.f32 0.0, %v3144
        %v3146 = vpop.f32.mrb[0].mxu0
        %3147 = vmatprep.mubr.bf16.mxu0 0
        %3148 = vmatmul.mubr.bf16.gmra.mrb[0].mxu0 %v3033
        %v3149 = vpop.f32.mrb[0].mxu0
        %v3150 = vadd.f32 0.0, %v3149
        %v3151 = vpop.f32.mrb[0].mxu0
        %v3152 = vpop.f32.mrb[0].mxu0
        %v3153 = vadd.f32 0.0, %v3152
        %v3154 = vpop.f32.mrb[0].mxu0
        %3155 = vmatprep.mubr.bf16.mxu0 0
        %3156 = vmatmul.mubr.bf16.gmra.mrb[0].mxu0 %v3036
        %v3157 = vpop.f32.mrb[0].mxu0
        %v3158 = vadd.f32 0.0, %v3157
        %v3159 = vpop.f32.mrb[0].mxu0
        %v3160 = vpop.f32.mrb[0].mxu0
        %v3161 = vadd.f32 0.0, %v3160
        %v3162 = vpop.f32.mrb[0].mxu0
        %3163 = vmatprep.mubr.bf16.mxu0 0
        %3164 = vmatmul.mubr.bf16.gmra.mrb[0].mxu0 %v3039
        %v3165 = vpop.f32.mrb[0].mxu0
        %v3166 = vadd.f32 0.0, %v3165
        %v3167 = vpop.f32.mrb[0].mxu0
        %v3168 = vpop.f32.mrb[0].mxu0
        %v3169 = vadd.f32 0.0, %v3168
        %v3170 = vpop.f32.mrb[0].mxu0
        %3171 = vmatprep.mubr.bf16.mxu0 0
        %3172 = vmatmul.mubr.bf16.gmra.mrb[0].mxu0 %v3042
        %v3173 = vpop.f32.mrb[0].mxu0
        %v3174 = vadd.f32 0.0, %v3173
        %v3175 = vpop.f32.mrb[0].mxu0
        %v3176 = vpop.f32.mrb[0].mxu0
        %v3177 = vadd.f32 0.0, %v3176
        %v3178 = vpop.f32.mrb[0].mxu0
        %3179 = vmatprep.mubr.bf16.mxu0 0
        %3180 = vmatmul.mubr.bf16.gmra.mrb[0].mxu0 %v3045
        %v3181 = vpop.f32.mrb[0].mxu0
        %v3182 = vadd.f32 0.0, %v3181
        %v3183 = vpop.f32.mrb[0].mxu0
        %v3184 = vpop.f32.mrb[0].mxu0
        %v3185 = vadd.f32 0.0, %v3184
        %v3186 = vpop.f32.mrb[0].mxu0
        %3187 = vmatprep.mubr.bf16.mxu0 0
        %3188 = vmatmul.mubr.bf16.gmra.mrb[0].mxu0 %v3048
        %v3189 = vpop.f32.mrb[0].mxu0
        %v3190 = vadd.f32 0.0, %v3189
        %v3191 = vpop.f32.mrb[0].mxu0
        %v3192 = vpop.f32.mrb[0].mxu0
        %v3193 = vadd.f32 0.0, %v3192
        %v3194 = vpop.f32.mrb[0].mxu0
        %3195 = vmatprep.mubr.bf16.mxu0 0
        %3196 = vmatmul.mubr.bf16.gmra.mrb[0].mxu0 %v3051
        %v3197 = vpop.f32.mrb[0].mxu0
        %v3198 = vadd.f32 0.0, %v3197
        %v3199 = vpop.f32.mrb[0].mxu0
        %v3200 = vpop.f32.mrb[0].mxu0
        %v3201 = vadd.f32 0.0, %v3200
        %v3202 = vpop.f32.mrb[0].mxu0
        %3203 = vmatprep.mubr.bf16.mxu0 0
        %3204 = vmatmul.mubr.bf16.gmra.mrb[0].mxu0 %v3054
        %v3205 = vpop.f32.mrb[0].mxu0
        %v3206 = vadd.f32 0.0, %v3205
        %v3207 = vpop.f32.mrb[0].mxu0
        %v3208 = vpop.f32.mrb[0].mxu0
        %v3209 = vadd.f32 0.0, %v3208
        %v3210 = vpop.f32.mrb[0].mxu0
        %3211 = vmatprep.mubr.bf16.mxu0 0
        %3212 = vmatmul.mubr.bf16.gmra.mrb[0].mxu0 %v3057
        %v3213 = vpop.f32.mrb[0].mxu0
        %v3214 = vadd.f32 0.0, %v3213
        %v3215 = vpop.f32.mrb[0].mxu0
        %v3216 = vpop.f32.mrb[0].mxu0
        %v3217 = vadd.f32 0.0, %v3216
        %v3218 = vpop.f32.mrb[0].mxu0
        %3219 = vdwg.mxu0
        %v3224 = vunpack.c.l.b16 %v1214
        %v3225 = vunpack.c.l.b16 %v1215
        %v3226 = vunpack.c.l.b16 %v1216
        %v3227 = vunpack.c.l.b16 %v1217
        %v3228 = vpack.c.b16 %v3225, %v3224
        %v3229 = vpack.c.b16 %v3227, %v3226
        %v3233 = vsel %vm1230, %v2019, 0
        %v3236 = vsel %vm1230, %v2020, 0
        %v3239 = vsel %vm1230, %v2021, 0
        %v3242 = vsel %vm1230, %v2022, 0
        %v3245 = vsel %vm1230, %v2023, 0
        %v3248 = vsel %vm1230, %v2024, 0
        %v3251 = vsel %vm1230, %v2025, 0
        %v3254 = vsel %vm1230, %v2026, 0
        %v3257 = vsel %vm1230, %v2027, 0
        %v3260 = vsel %vm1230, %v2028, 0
        %v3263 = vsel %vm1230, %v2029, 0
        %v3266 = vsel %vm1230, %v2030, 0
        %v3269 = vsel %vm1230, %v2031, 0
        %v3272 = vsel %vm1230, %v2032, 0
        %v3275 = vsel %vm1230, %v2033, 0
        %v3278 = vsel %vm1230, %v2034, 0
        %3280 = vmatprep.subr.bf16.mxu0 0
        %3281 = vmatpush1.bf16.msra.mxu0 %v3228
        %3282 = vmatprep.subr.bf16.mxu0 0
        %3283 = vmatpush1.bf16.msra.mxu0 %v3229
        %3284 = vmatprep.subr.bf16.mxu0 0
        %3285 = vmatpush1.bf16.msra.mxu0 0
        %3286 = vmatprep.subr.bf16.mxu0 0
        %3287 = vmatpush1.bf16.msra.mxu0 0
        %3288 = vmatprep.subr.bf16.mxu0 0
        %3289 = vmatpush1.bf16.msra.mxu0 0
        %3290 = vmatprep.subr.bf16.mxu0 0
        %3291 = vmatpush1.bf16.msra.mxu0 0
        %3292 = vmatprep.subr.bf16.mxu0 0
        %3293 = vmatpush1.bf16.msra.mxu0 0
        %3294 = vmatprep.subr.bf16.mxu0 0
        %3295 = vmatpush1.bf16.msra.mxu0 0
        %3296 = vmatprep.subr.bf16.mxu0 0
        %3297 = vmatpush1.bf16.msra.mxu0 0
        %3298 = vmatprep.subr.bf16.mxu0 0
        %3299 = vmatpush1.bf16.msra.mxu0 0
        %3300 = vmatprep.subr.bf16.mxu0 0
        %3301 = vmatpush1.bf16.msra.mxu0 0
        %3302 = vmatprep.subr.bf16.mxu0 0
        %3303 = vmatpush1.bf16.msra.mxu0 0
        %3304 = vmatprep.subr.bf16.mxu0 0
        %3305 = vmatpush1.bf16.msra.mxu0 0
        %3306 = vmatprep.subr.bf16.mxu0 0
        %3307 = vmatpush1.bf16.msra.mxu0 0
        %3308 = vmatprep.subr.bf16.mxu0 0
        %3309 = vmatpush1.bf16.msra.mxu0 0
        %3310 = vmatprep.subr.bf16.mxu0 0
        %3311 = vmatpush1.bf16.msra.mxu0 0
        %3312 = vmatprep.mubr.bf16.mxu0 0
        %3313 = vmatmul.mubr.bf16.gmra.mrb[0].mxu0 %v3233
        %v3314 = vpop.f32.mrb[0].mxu0
        %v3315 = vadd.f32 %v3094, %v3314
        %v3316 = vpop.f32.mrb[0].mxu0
        %v3317 = vpop.f32.mrb[0].mxu0
        %v3318 = vadd.f32 %v3097, %v3317
        %v3319 = vpop.f32.mrb[0].mxu0
        %3320 = vmatprep.mubr.bf16.mxu0 0
        %3321 = vmatmul.mubr.bf16.gmra.mrb[0].mxu0 %v3236
        %v3322 = vpop.f32.mrb[0].mxu0
        %v3323 = vadd.f32 %v3102, %v3322
        %v3324 = vpop.f32.mrb[0].mxu0
        %v3325 = vpop.f32.mrb[0].mxu0
        %v3326 = vadd.f32 %v3105, %v3325
        %v3327 = vpop.f32.mrb[0].mxu0
        %3328 = vmatprep.mubr.bf16.mxu0 0
        %3329 = vmatmul.mubr.bf16.gmra.mrb[0].mxu0 %v3239
        %v3330 = vpop.f32.mrb[0].mxu0
        %v3331 = vadd.f32 %v3110, %v3330
        %v3332 = vpop.f32.mrb[0].mxu0
        %v3333 = vpop.f32.mrb[0].mxu0
        %v3334 = vadd.f32 %v3113, %v3333
        %v3335 = vpop.f32.mrb[0].mxu0
        %3336 = vmatprep.mubr.bf16.mxu0 0
        %3337 = vmatmul.mubr.bf16.gmra.mrb[0].mxu0 %v3242
        %v3338 = vpop.f32.mrb[0].mxu0
        %v3339 = vadd.f32 %v3118, %v3338
        %v3340 = vpop.f32.mrb[0].mxu0
        %v3341 = vpop.f32.mrb[0].mxu0
        %v3342 = vadd.f32 %v3121, %v3341
        %v3343 = vpop.f32.mrb[0].mxu0
        %3344 = vmatprep.mubr.bf16.mxu0 0
        %3345 = vmatmul.mubr.bf16.gmra.mrb[0].mxu0 %v3245
        %v3346 = vpop.f32.mrb[0].mxu0
        %v3347 = vadd.f32 %v3126, %v3346
        %v3348 = vpop.f32.mrb[0].mxu0
        %v3349 = vpop.f32.mrb[0].mxu0
        %v3350 = vadd.f32 %v3129, %v3349
        %v3351 = vpop.f32.mrb[0].mxu0
        %3352 = vmatprep.mubr.bf16.mxu0 0
        %3353 = vmatmul.mubr.bf16.gmra.mrb[0].mxu0 %v3248
        %v3354 = vpop.f32.mrb[0].mxu0
        %v3355 = vadd.f32 %v3134, %v3354
        %v3356 = vpop.f32.mrb[0].mxu0
        %v3357 = vpop.f32.mrb[0].mxu0
        %v3358 = vadd.f32 %v3137, %v3357
        %v3359 = vpop.f32.mrb[0].mxu0
        %3360 = vmatprep.mubr.bf16.mxu0 0
        %3361 = vmatmul.mubr.bf16.gmra.mrb[0].mxu0 %v3251
        %v3362 = vpop.f32.mrb[0].mxu0
        %v3363 = vadd.f32 %v3142, %v3362
        %v3364 = vpop.f32.mrb[0].mxu0
        %v3365 = vpop.f32.mrb[0].mxu0
        %v3366 = vadd.f32 %v3145, %v3365
        %v3367 = vpop.f32.mrb[0].mxu0
        %3368 = vmatprep.mubr.bf16.mxu0 0
        %3369 = vmatmul.mubr.bf16.gmra.mrb[0].mxu0 %v3254
        %v3370 = vpop.f32.mrb[0].mxu0
        %v3371 = vadd.f32 %v3150, %v3370
        %v3372 = vpop.f32.mrb[0].mxu0
        %v3373 = vpop.f32.mrb[0].mxu0
        %v3374 = vadd.f32 %v3153, %v3373
        %v3375 = vpop.f32.mrb[0].mxu0
        %3376 = vmatprep.mubr.bf16.mxu0 0
        %3377 = vmatmul.mubr.bf16.gmra.mrb[0].mxu0 %v3257
        %v3378 = vpop.f32.mrb[0].mxu0
        %v3379 = vadd.f32 %v3158, %v3378
        %v3380 = vpop.f32.mrb[0].mxu0
        %v3381 = vpop.f32.mrb[0].mxu0
        %v3382 = vadd.f32 %v3161, %v3381
        %v3383 = vpop.f32.mrb[0].mxu0
        %3384 = vmatprep.mubr.bf16.mxu0 0
        %3385 = vmatmul.mubr.bf16.gmra.mrb[0].mxu0 %v3260
        %v3386 = vpop.f32.mrb[0].mxu0
        %v3387 = vadd.f32 %v3166, %v3386
        %v3388 = vpop.f32.mrb[0].mxu0
        %v3389 = vpop.f32.mrb[0].mxu0
        %v3390 = vadd.f32 %v3169, %v3389
        %v3391 = vpop.f32.mrb[0].mxu0
        %3392 = vmatprep.mubr.bf16.mxu0 0
        %3393 = vmatmul.mubr.bf16.gmra.mrb[0].mxu0 %v3263
        %v3394 = vpop.f32.mrb[0].mxu0
        %v3395 = vadd.f32 %v3174, %v3394
        %v3396 = vpop.f32.mrb[0].mxu0
        %v3397 = vpop.f32.mrb[0].mxu0
        %v3398 = vadd.f32 %v3177, %v3397
        %v3399 = vpop.f32.mrb[0].mxu0
        %3400 = vmatprep.mubr.bf16.mxu0 0
        %3401 = vmatmul.mubr.bf16.gmra.mrb[0].mxu0 %v3266
        %v3402 = vpop.f32.mrb[0].mxu0
        %v3403 = vadd.f32 %v3182, %v3402
        %v3404 = vpop.f32.mrb[0].mxu0
        %v3405 = vpop.f32.mrb[0].mxu0
        %v3406 = vadd.f32 %v3185, %v3405
        %v3407 = vpop.f32.mrb[0].mxu0
        %3408 = vmatprep.mubr.bf16.mxu0 0
        %3409 = vmatmul.mubr.bf16.gmra.mrb[0].mxu0 %v3269
        %v3410 = vpop.f32.mrb[0].mxu0
        %v3411 = vadd.f32 %v3190, %v3410
        %v3412 = vpop.f32.mrb[0].mxu0
        %v3413 = vpop.f32.mrb[0].mxu0
        %v3414 = vadd.f32 %v3193, %v3413
        %v3415 = vpop.f32.mrb[0].mxu0
        %3416 = vmatprep.mubr.bf16.mxu0 0
        %3417 = vmatmul.mubr.bf16.gmra.mrb[0].mxu0 %v3272
        %v3418 = vpop.f32.mrb[0].mxu0
        %v3419 = vadd.f32 %v3198, %v3418
        %v3420 = vpop.f32.mrb[0].mxu0
        %v3421 = vpop.f32.mrb[0].mxu0
        %v3422 = vadd.f32 %v3201, %v3421
        %v3423 = vpop.f32.mrb[0].mxu0
        %3424 = vmatprep.mubr.bf16.mxu0 0
        %3425 = vmatmul.mubr.bf16.gmra.mrb[0].mxu0 %v3275
        %v3426 = vpop.f32.mrb[0].mxu0
        %v3427 = vadd.f32 %v3206, %v3426
        %v3428 = vpop.f32.mrb[0].mxu0
        %v3429 = vpop.f32.mrb[0].mxu0
        %v3430 = vadd.f32 %v3209, %v3429
        %v3431 = vpop.f32.mrb[0].mxu0
        %3432 = vmatprep.mubr.bf16.mxu0 0
        %3433 = vmatmul.mubr.bf16.gmra.mrb[0].mxu0 %v3278
        %v3434 = vpop.f32.mrb[0].mxu0
        %v3435 = vadd.f32 %v3214, %v3434
        %v3436 = vpop.f32.mrb[0].mxu0
        %v3437 = vpop.f32.mrb[0].mxu0
        %v3438 = vadd.f32 %v3217, %v3437
        %v3439 = vpop.f32.mrb[0].mxu0
        %3440 = vdwg.mxu0
        %3441 = vrot.lane.b32.xlu0 %v1094, 64
        %v3442 = vpop.permute.xlu0 %3441
        %3443 = vrot.lane.b32.xlu0 %v1095, 64
        %v3444 = vpop.permute.xlu0 %3443
        %3445 = vrot.lane.b32.xlu0 %v1096, 64
        %v3446 = vpop.permute.xlu0 %3445
        %3447 = vrot.lane.b32.xlu0 %v1097, 64
        %v3448 = vpop.permute.xlu0 %3447
        %3449 = vrot.lane.b32.xlu0 %v1098, 64
        %v3450 = vpop.permute.xlu0 %3449
        %3451 = vrot.lane.b32.xlu0 %v1099, 64
        %v3452 = vpop.permute.xlu0 %3451
        %3453 = vrot.lane.b32.xlu0 %v1100, 64
        %v3454 = vpop.permute.xlu0 %3453
        %3455 = vrot.lane.b32.xlu0 %v1101, 64
        %v3456 = vpop.permute.xlu0 %3455
        %3457 = vrot.lane.b32.xlu0 %v1146, 64
        %v3458 = vpop.permute.xlu0 %3457
        %3459 = vrot.lane.b32.xlu0 %v1147, 64
        %v3460 = vpop.permute.xlu0 %3459
        %3461 = vrot.lane.b32.xlu0 %v1148, 64
        %v3462 = vpop.permute.xlu0 %3461
        %3463 = vrot.lane.b32.xlu0 %v1149, 64
        %v3464 = vpop.permute.xlu0 %3463
        %3465 = vrot.lane.b32.xlu0 %v1150, 64
        %v3466 = vpop.permute.xlu0 %3465
        %3467 = vrot.lane.b32.xlu0 %v1151, 64
        %v3468 = vpop.permute.xlu0 %3467
        %3469 = vrot.lane.b32.xlu0 %v1152, 64
        %v3470 = vpop.permute.xlu0 %3469
        %3471 = vrot.lane.b32.xlu0 %v1153, 64
        %v3472 = vpop.permute.xlu0 %3471
        %v3474 = vsel %vm1230, %v3442, 0
        %v3477 = vsel %vm1230, %v3444, 0
        %v3480 = vsel %vm1230, %v3446, 0
        %v3483 = vsel %vm1230, %v3448, 0
        %v3486 = vsel %vm1230, %v3450, 0
        %v3489 = vsel %vm1230, %v3452, 0
        %v3492 = vsel %vm1230, %v3454, 0
        %v3495 = vsel %vm1230, %v3456, 0
        %v3498 = vsel %vm1230, %v3458, 0
        %v3501 = vsel %vm1230, %v3460, 0
        %v3504 = vsel %vm1230, %v3462, 0
        %v3507 = vsel %vm1230, %v3464, 0
        %v3510 = vsel %vm1230, %v3466, 0
        %v3513 = vsel %vm1230, %v3468, 0
        %v3516 = vsel %vm1230, %v3470, 0
        %v3519 = vsel %vm1230, %v3472, 0
        %3521 = vmatprep.subr.bf16.mxu0 0
        %3522 = vmatpush1.bf16.xpose.msra.mxu0 %v3498
        %3523 = vmatprep.subr.bf16.mxu0 0
        %3524 = vmatpush1.bf16.xpose.msra.mxu0 %v3501
        %3525 = vmatprep.subr.bf16.mxu0 0
        %3526 = vmatpush1.bf16.xpose.msra.mxu0 %v3504
        %3527 = vmatprep.subr.bf16.mxu0 0
        %3528 = vmatpush1.bf16.xpose.msra.mxu0 %v3507
        %3529 = vmatprep.subr.bf16.mxu0 0
        %3530 = vmatpush1.bf16.xpose.msra.mxu0 %v3510
        %3531 = vmatprep.subr.bf16.mxu0 0
        %3532 = vmatpush1.bf16.xpose.msra.mxu0 %v3513
        %3533 = vmatprep.subr.bf16.mxu0 0
        %3534 = vmatpush1.bf16.xpose.msra.mxu0 %v3516
        %3535 = vmatprep.subr.bf16.mxu0 0
        %3536 = vmatpush1.bf16.xpose.msra.mxu0 %v3519
        %3537 = vmatprep.subr.bf16.mxu0 0
        %3538 = vmatpush1.bf16.xpose.msra.mxu0 0
        %3539 = vmatprep.subr.bf16.mxu0 0
        %3540 = vmatpush1.bf16.xpose.msra.mxu0 0
        %3541 = vmatprep.subr.bf16.mxu0 0
        %3542 = vmatpush1.bf16.xpose.msra.mxu0 0
        %3543 = vmatprep.subr.bf16.mxu0 0
        %3544 = vmatpush1.bf16.xpose.msra.mxu0 0
        %3545 = vmatprep.subr.bf16.mxu0 0
        %3546 = vmatpush1.bf16.xpose.msra.mxu0 0
        %3547 = vmatprep.subr.bf16.mxu0 0
        %3548 = vmatpush1.bf16.xpose.msra.mxu0 0
        %3549 = vmatprep.subr.bf16.mxu0 0
        %3550 = vmatpush1.bf16.xpose.msra.mxu0 0
        %3551 = vmatprep.subr.bf16.mxu0 0
        %3552 = vmatpush1.bf16.xpose.msra.mxu0 0
        %3553 = vmatprep.mubr.bf16.mxu0 0
        %3554 = vmatmul.mubr.bf16.gmra.mrb[0].mxu0 %v3474
        %v3555 = vpop.f32.mrb[0].mxu0
        %v3556 = vadd.f32 0.0, %v3555
        %v3557 = vpop.f32.mrb[0].mxu0
        %v3558 = vpop.f32.mrb[0].mxu0
        %v3559 = vadd.f32 0.0, %v3558
        %v3560 = vpop.f32.mrb[0].mxu0
        %3561 = vmatprep.mubr.bf16.mxu0 0
        %3562 = vmatmul.mubr.bf16.gmra.mrb[0].mxu0 %v3477
        %v3563 = vpop.f32.mrb[0].mxu0
        %v3564 = vadd.f32 0.0, %v3563
        %v3565 = vpop.f32.mrb[0].mxu0
        %v3566 = vpop.f32.mrb[0].mxu0
        %v3567 = vadd.f32 0.0, %v3566
        %v3568 = vpop.f32.mrb[0].mxu0
        %3569 = vmatprep.mubr.bf16.mxu0 0
        %3570 = vmatmul.mubr.bf16.gmra.mrb[0].mxu0 %v3480
        %v3571 = vpop.f32.mrb[0].mxu0
        %v3572 = vadd.f32 0.0, %v3571
        %v3573 = vpop.f32.mrb[0].mxu0
        %v3574 = vpop.f32.mrb[0].mxu0
        %v3575 = vadd.f32 0.0, %v3574
        %v3576 = vpop.f32.mrb[0].mxu0
        %3577 = vmatprep.mubr.bf16.mxu0 0
        %3578 = vmatmul.mubr.bf16.gmra.mrb[0].mxu0 %v3483
        %v3579 = vpop.f32.mrb[0].mxu0
        %v3580 = vadd.f32 0.0, %v3579
        %v3581 = vpop.f32.mrb[0].mxu0
        %v3582 = vpop.f32.mrb[0].mxu0
        %v3583 = vadd.f32 0.0, %v3582
        %v3584 = vpop.f32.mrb[0].mxu0
        %3585 = vmatprep.mubr.bf16.mxu0 0
        %3586 = vmatmul.mubr.bf16.gmra.mrb[0].mxu0 %v3486
        %v3587 = vpop.f32.mrb[0].mxu0
        %v3588 = vadd.f32 0.0, %v3587
        %v3589 = vpop.f32.mrb[0].mxu0
        %v3590 = vpop.f32.mrb[0].mxu0
        %v3591 = vadd.f32 0.0, %v3590
        %v3592 = vpop.f32.mrb[0].mxu0
        %3593 = vmatprep.mubr.bf16.mxu0 0
        %3594 = vmatmul.mubr.bf16.gmra.mrb[0].mxu0 %v3489
        %v3595 = vpop.f32.mrb[0].mxu0
        %v3596 = vadd.f32 0.0, %v3595
        %v3597 = vpop.f32.mrb[0].mxu0
        %v3598 = vpop.f32.mrb[0].mxu0
        %v3599 = vadd.f32 0.0, %v3598
        %v3600 = vpop.f32.mrb[0].mxu0
        %3601 = vmatprep.mubr.bf16.mxu0 0
        %3602 = vmatmul.mubr.bf16.gmra.mrb[0].mxu0 %v3492
        %v3603 = vpop.f32.mrb[0].mxu0
        %v3604 = vadd.f32 0.0, %v3603
        %v3605 = vpop.f32.mrb[0].mxu0
        %v3606 = vpop.f32.mrb[0].mxu0
        %v3607 = vadd.f32 0.0, %v3606
        %v3608 = vpop.f32.mrb[0].mxu0
        %3609 = vmatprep.mubr.bf16.mxu0 0
        %3610 = vmatmul.mubr.bf16.gmra.mrb[0].mxu0 %v3495
        %v3611 = vpop.f32.mrb[0].mxu0
        %v3612 = vadd.f32 0.0, %v3611
        %v3613 = vpop.f32.mrb[0].mxu0
        %v3614 = vpop.f32.mrb[0].mxu0
        %v3615 = vadd.f32 0.0, %v3614
        %v3616 = vpop.f32.mrb[0].mxu0
        %3617 = vdwg.mxu0
        %3618 = vrot.lane.b32.xlu0 %v1102, 64
        %v3619 = vpop.permute.xlu0 %3618
        %3620 = vrot.lane.b32.xlu0 %v1103, 64
        %v3621 = vpop.permute.xlu0 %3620
        %3622 = vrot.lane.b32.xlu0 %v1104, 64
        %v3623 = vpop.permute.xlu0 %3622
        %3624 = vrot.lane.b32.xlu0 %v1105, 64
        %v3625 = vpop.permute.xlu0 %3624
        %3626 = vrot.lane.b32.xlu0 %v1106, 64
        %v3627 = vpop.permute.xlu0 %3626
        %3628 = vrot.lane.b32.xlu0 %v1107, 64
        %v3629 = vpop.permute.xlu0 %3628
        %3630 = vrot.lane.b32.xlu0 %v1108, 64
        %v3631 = vpop.permute.xlu0 %3630
        %3632 = vrot.lane.b32.xlu0 %v1109, 64
        %v3633 = vpop.permute.xlu0 %3632
        %3634 = vrot.lane.b32.xlu0 %v1154, 64
        %v3635 = vpop.permute.xlu0 %3634
        %3636 = vrot.lane.b32.xlu0 %v1155, 64
        %v3637 = vpop.permute.xlu0 %3636
        %3638 = vrot.lane.b32.xlu0 %v1156, 64
        %v3639 = vpop.permute.xlu0 %3638
        %3640 = vrot.lane.b32.xlu0 %v1157, 64
        %v3641 = vpop.permute.xlu0 %3640
        %3642 = vrot.lane.b32.xlu0 %v1158, 64
        %v3643 = vpop.permute.xlu0 %3642
        %3644 = vrot.lane.b32.xlu0 %v1159, 64
        %v3645 = vpop.permute.xlu0 %3644
        %3646 = vrot.lane.b32.xlu0 %v1160, 64
        %v3647 = vpop.permute.xlu0 %3646
        %3648 = vrot.lane.b32.xlu0 %v1161, 64
        %v3649 = vpop.permute.xlu0 %3648
        %v3651 = vsel %vm1230, %v3619, 0
        %v3654 = vsel %vm1230, %v3621, 0
        %v3657 = vsel %vm1230, %v3623, 0
        %v3660 = vsel %vm1230, %v3625, 0
        %v3663 = vsel %vm1230, %v3627, 0
        %v3666 = vsel %vm1230, %v3629, 0
        %v3669 = vsel %vm1230, %v3631, 0
        %v3672 = vsel %vm1230, %v3633, 0
        %v3675 = vsel %vm1230, %v3635, 0
        %v3678 = vsel %vm1230, %v3637, 0
        %v3681 = vsel %vm1230, %v3639, 0
        %v3684 = vsel %vm1230, %v3641, 0
        %v3687 = vsel %vm1230, %v3643, 0
        %v3690 = vsel %vm1230, %v3645, 0
        %v3693 = vsel %vm1230, %v3647, 0
        %v3696 = vsel %vm1230, %v3649, 0
        %3698 = vmatprep.subr.bf16.mxu0 0
        %3699 = vmatpush1.bf16.xpose.msra.mxu0 %v3675
        %3700 = vmatprep.subr.bf16.mxu0 0
        %3701 = vmatpush1.bf16.xpose.msra.mxu0 %v3678
        %3702 = vmatprep.subr.bf16.mxu0 0
        %3703 = vmatpush1.bf16.xpose.msra.mxu0 %v3681
        %3704 = vmatprep.subr.bf16.mxu0 0
        %3705 = vmatpush1.bf16.xpose.msra.mxu0 %v3684
        %3706 = vmatprep.subr.bf16.mxu0 0
        %3707 = vmatpush1.bf16.xpose.msra.mxu0 %v3687
        %3708 = vmatprep.subr.bf16.mxu0 0
        %3709 = vmatpush1.bf16.xpose.msra.mxu0 %v3690
        %3710 = vmatprep.subr.bf16.mxu0 0
        %3711 = vmatpush1.bf16.xpose.msra.mxu0 %v3693
        %3712 = vmatprep.subr.bf16.mxu0 0
        %3713 = vmatpush1.bf16.xpose.msra.mxu0 %v3696
        %3714 = vmatprep.subr.bf16.mxu0 0
        %3715 = vmatpush1.bf16.xpose.msra.mxu0 0
        %3716 = vmatprep.subr.bf16.mxu0 0
        %3717 = vmatpush1.bf16.xpose.msra.mxu0 0
        %3718 = vmatprep.subr.bf16.mxu0 0
        %3719 = vmatpush1.bf16.xpose.msra.mxu0 0
        %3720 = vmatprep.subr.bf16.mxu0 0
        %3721 = vmatpush1.bf16.xpose.msra.mxu0 0
        %3722 = vmatprep.subr.bf16.mxu0 0
        %3723 = vmatpush1.bf16.xpose.msra.mxu0 0
        %3724 = vmatprep.subr.bf16.mxu0 0
        %3725 = vmatpush1.bf16.xpose.msra.mxu0 0
        %3726 = vmatprep.subr.bf16.mxu0 0
        %3727 = vmatpush1.bf16.xpose.msra.mxu0 0
        %3728 = vmatprep.subr.bf16.mxu0 0
        %3729 = vmatpush1.bf16.xpose.msra.mxu0 0
        %3730 = vmatprep.mubr.bf16.mxu0 0
        %3731 = vmatmul.mubr.bf16.gmra.mrb[0].mxu0 %v3651
        %v3732 = vpop.f32.mrb[0].mxu0
        %v3733 = vadd.f32 0.0, %v3732
        %v3734 = vpop.f32.mrb[0].mxu0
        %v3735 = vpop.f32.mrb[0].mxu0
        %v3736 = vadd.f32 0.0, %v3735
        %v3737 = vpop.f32.mrb[0].mxu0
        %3738 = vmatprep.mubr.bf16.mxu0 0
        %3739 = vmatmul.mubr.bf16.gmra.mrb[0].mxu0 %v3654
        %v3740 = vpop.f32.mrb[0].mxu0
        %v3741 = vadd.f32 0.0, %v3740
        %v3742 = vpop.f32.mrb[0].mxu0
        %v3743 = vpop.f32.mrb[0].mxu0
        %v3744 = vadd.f32 0.0, %v3743
        %v3745 = vpop.f32.mrb[0].mxu0
        %3746 = vmatprep.mubr.bf16.mxu0 0
        %3747 = vmatmul.mubr.bf16.gmra.mrb[0].mxu0 %v3657
        %v3748 = vpop.f32.mrb[0].mxu0
        %v3749 = vadd.f32 0.0, %v3748
        %v3750 = vpop.f32.mrb[0].mxu0
        %v3751 = vpop.f32.mrb[0].mxu0
        %v3752 = vadd.f32 0.0, %v3751
        %v3753 = vpop.f32.mrb[0].mxu0
        %3754 = vmatprep.mubr.bf16.mxu0 0
        %3755 = vmatmul.mubr.bf16.gmra.mrb[0].mxu0 %v3660
        %v3756 = vpop.f32.mrb[0].mxu0
        %v3757 = vadd.f32 0.0, %v3756
        %v3758 = vpop.f32.mrb[0].mxu0
        %v3759 = vpop.f32.mrb[0].mxu0
        %v3760 = vadd.f32 0.0, %v3759
        %v3761 = vpop.f32.mrb[0].mxu0
        %3762 = vmatprep.mubr.bf16.mxu0 0
        %3763 = vmatmul.mubr.bf16.gmra.mrb[0].mxu0 %v3663
        %v3764 = vpop.f32.mrb[0].mxu0
        %v3765 = vadd.f32 0.0, %v3764
        %v3766 = vpop.f32.mrb[0].mxu0
        %v3767 = vpop.f32.mrb[0].mxu0
        %v3768 = vadd.f32 0.0, %v3767
        %v3769 = vpop.f32.mrb[0].mxu0
        %3770 = vmatprep.mubr.bf16.mxu0 0
        %3771 = vmatmul.mubr.bf16.gmra.mrb[0].mxu0 %v3666
        %v3772 = vpop.f32.mrb[0].mxu0
        %v3773 = vadd.f32 0.0, %v3772
        %v3774 = vpop.f32.mrb[0].mxu0
        %v3775 = vpop.f32.mrb[0].mxu0
        %v3776 = vadd.f32 0.0, %v3775
        %v3777 = vpop.f32.mrb[0].mxu0
        %3778 = vmatprep.mubr.bf16.mxu0 0
        %3779 = vmatmul.mubr.bf16.gmra.mrb[0].mxu0 %v3669
        %v3780 = vpop.f32.mrb[0].mxu0
        %v3781 = vadd.f32 0.0, %v3780
        %v3782 = vpop.f32.mrb[0].mxu0
        %v3783 = vpop.f32.mrb[0].mxu0
        %v3784 = vadd.f32 0.0, %v3783
        %v3785 = vpop.f32.mrb[0].mxu0
        %3786 = vmatprep.mubr.bf16.mxu0 0
        %3787 = vmatmul.mubr.bf16.gmra.mrb[0].mxu0 %v3672
        %v3788 = vpop.f32.mrb[0].mxu0
        %v3789 = vadd.f32 0.0, %v3788
        %v3790 = vpop.f32.mrb[0].mxu0
        %v3791 = vpop.f32.mrb[0].mxu0
        %v3792 = vadd.f32 0.0, %v3791
        %v3793 = vpop.f32.mrb[0].mxu0
        %3794 = vdwg.mxu0
        %3795 = vmax.xlane.f32.xlu0 %v3556
        %v3796 = vpop.xlane.xlu0 %3795
        %3797 = vmax.xlane.f32.xlu0 %v3559
        %v3798 = vpop.xlane.xlu0 %3797
        %3799 = vmax.xlane.f32.xlu0 %v3564
        %v3800 = vpop.xlane.xlu0 %3799
        %3801 = vmax.xlane.f32.xlu0 %v3567
        %v3802 = vpop.xlane.xlu0 %3801
        %3803 = vmax.xlane.f32.xlu0 %v3572
        %v3804 = vpop.xlane.xlu0 %3803
        %3805 = vmax.xlane.f32.xlu0 %v3575
        %v3806 = vpop.xlane.xlu0 %3805
        %3807 = vmax.xlane.f32.xlu0 %v3580
        %v3808 = vpop.xlane.xlu0 %3807
        %3809 = vmax.xlane.f32.xlu0 %v3583
        %v3810 = vpop.xlane.xlu0 %3809
        %3811 = vmax.xlane.f32.xlu0 %v3588
        %v3812 = vpop.xlane.xlu0 %3811
        %3813 = vmax.xlane.f32.xlu0 %v3591
        %v3814 = vpop.xlane.xlu0 %3813
        %3815 = vmax.xlane.f32.xlu0 %v3596
        %v3816 = vpop.xlane.xlu0 %3815
        %3817 = vmax.xlane.f32.xlu0 %v3599
        %v3818 = vpop.xlane.xlu0 %3817
        %3819 = vmax.xlane.f32.xlu0 %v3604
        %v3820 = vpop.xlane.xlu0 %3819
        %3821 = vmax.xlane.f32.xlu0 %v3607
        %v3822 = vpop.xlane.xlu0 %3821
        %3823 = vmax.xlane.f32.xlu0 %v3612
        %v3824 = vpop.xlane.xlu0 %3823
        %3825 = vmax.xlane.f32.xlu0 %v3615
        %v3826 = vpop.xlane.xlu0 %3825
        %3827 = vmax.xlane.f32.xlu0 %v3733
        %v3828 = vpop.xlane.xlu0 %3827
        %3829 = vmax.xlane.f32.xlu0 %v3736
        %v3830 = vpop.xlane.xlu0 %3829
        %3831 = vmax.xlane.f32.xlu0 %v3741
        %v3832 = vpop.xlane.xlu0 %3831
        %3833 = vmax.xlane.f32.xlu0 %v3744
        %v3834 = vpop.xlane.xlu0 %3833
        %3835 = vmax.xlane.f32.xlu0 %v3749
        %v3836 = vpop.xlane.xlu0 %3835
        %3837 = vmax.xlane.f32.xlu0 %v3752
        %v3838 = vpop.xlane.xlu0 %3837
        %3839 = vmax.xlane.f32.xlu0 %v3757
        %v3840 = vpop.xlane.xlu0 %3839
        %3841 = vmax.xlane.f32.xlu0 %v3760
        %v3842 = vpop.xlane.xlu0 %3841
        %3843 = vmax.xlane.f32.xlu0 %v3765
        %v3844 = vpop.xlane.xlu0 %3843
        %3845 = vmax.xlane.f32.xlu0 %v3768
        %v3846 = vpop.xlane.xlu0 %3845
        %3847 = vmax.xlane.f32.xlu0 %v3773
        %v3848 = vpop.xlane.xlu0 %3847
        %3849 = vmax.xlane.f32.xlu0 %v3776
        %v3850 = vpop.xlane.xlu0 %3849
        %3851 = vmax.xlane.f32.xlu0 %v3781
        %v3852 = vpop.xlane.xlu0 %3851
        %3853 = vmax.xlane.f32.xlu0 %v3784
        %v3854 = vpop.xlane.xlu0 %3853
        %3855 = vmax.xlane.f32.xlu0 %v3789
        %v3856 = vpop.xlane.xlu0 %3855
        %3857 = vmax.xlane.f32.xlu0 %v3792
        %v3858 = vpop.xlane.xlu0 %3857
        %v3859 = vsub.f32 %v3556, %v3796
        %v3860 = vsub.f32 %v3559, %v3798
        %v3861 = vsub.f32 %v3564, %v3800
        %v3862 = vsub.f32 %v3567, %v3802
        %v3863 = vsub.f32 %v3572, %v3804
        %v3864 = vsub.f32 %v3575, %v3806
        %v3865 = vsub.f32 %v3580, %v3808
        %v3866 = vsub.f32 %v3583, %v3810
        %v3867 = vsub.f32 %v3588, %v3812
        %v3868 = vsub.f32 %v3591, %v3814
        %v3869 = vsub.f32 %v3596, %v3816
        %v3870 = vsub.f32 %v3599, %v3818
        %v3871 = vsub.f32 %v3604, %v3820
        %v3872 = vsub.f32 %v3607, %v3822
        %v3873 = vsub.f32 %v3612, %v3824
        %v3874 = vsub.f32 %v3615, %v3826
        %v3875 = vsub.f32 %v3733, %v3828
        %v3876 = vsub.f32 %v3736, %v3830
        %v3877 = vsub.f32 %v3741, %v3832
        %v3878 = vsub.f32 %v3744, %v3834
        %v3879 = vsub.f32 %v3749, %v3836
        %v3880 = vsub.f32 %v3752, %v3838
        %v3881 = vsub.f32 %v3757, %v3840
        %v3882 = vsub.f32 %v3760, %v3842
        %v3883 = vsub.f32 %v3765, %v3844
        %v3884 = vsub.f32 %v3768, %v3846
        %v3885 = vsub.f32 %v3773, %v3848
        %v3886 = vsub.f32 %v3776, %v3850
        %v3887 = vsub.f32 %v3781, %v3852
        %v3888 = vsub.f32 %v3784, %v3854
        %v3889 = vsub.f32 %v3789, %v3856
        %v3890 = vsub.f32 %v3792, %v3858
        %v3891 = vmul.f32 %v3859, 1.442695
        %v3892 = vpow.pop %v3891
        %v3893 = vmul.f32 %v3860, 1.442695
        %v3894 = vpow.pop %v3893
        %v3895 = vmul.f32 %v3861, 1.442695
        %v3896 = vpow.pop %v3895
        %v3897 = vmul.f32 %v3862, 1.442695
        %v3898 = vpow.pop %v3897
        %v3899 = vmul.f32 %v3863, 1.442695
        %v3900 = vpow.pop %v3899
        %v3901 = vmul.f32 %v3864, 1.442695
        %v3902 = vpow.pop %v3901
        %v3903 = vmul.f32 %v3865, 1.442695
        %v3904 = vpow.pop %v3903
        %v3905 = vmul.f32 %v3866, 1.442695
        %v3906 = vpow.pop %v3905
        %v3907 = vmul.f32 %v3867, 1.442695
        %v3908 = vpow.pop %v3907
        %v3909 = vmul.f32 %v3868, 1.442695
        %v3910 = vpow.pop %v3909
        %v3911 = vmul.f32 %v3869, 1.442695
        %v3912 = vpow.pop %v3911
        %v3913 = vmul.f32 %v3870, 1.442695
        %v3914 = vpow.pop %v3913
        %v3915 = vmul.f32 %v3871, 1.442695
        %v3916 = vpow.pop %v3915
        %v3917 = vmul.f32 %v3872, 1.442695
        %v3918 = vpow.pop %v3917
        %v3919 = vmul.f32 %v3873, 1.442695
        %v3920 = vpow.pop %v3919
        %v3921 = vmul.f32 %v3874, 1.442695
        %v3922 = vpow.pop %v3921
        %v3923 = vmul.f32 %v3875, 1.442695
        %v3924 = vpow.pop %v3923
        %v3925 = vmul.f32 %v3876, 1.442695
        %v3926 = vpow.pop %v3925
        %v3927 = vmul.f32 %v3877, 1.442695
        %v3928 = vpow.pop %v3927
        %v3929 = vmul.f32 %v3878, 1.442695
        %v3930 = vpow.pop %v3929
        %v3931 = vmul.f32 %v3879, 1.442695
        %v3932 = vpow.pop %v3931
        %v3933 = vmul.f32 %v3880, 1.442695
        %v3934 = vpow.pop %v3933
        %v3935 = vmul.f32 %v3881, 1.442695
        %v3936 = vpow.pop %v3935
        %v3937 = vmul.f32 %v3882, 1.442695
        %v3938 = vpow.pop %v3937
        %v3939 = vmul.f32 %v3883, 1.442695
        %v3940 = vpow.pop %v3939
        %v3941 = vmul.f32 %v3884, 1.442695
        %v3942 = vpow.pop %v3941
        %v3943 = vmul.f32 %v3885, 1.442695
        %v3944 = vpow.pop %v3943
        %v3945 = vmul.f32 %v3886, 1.442695
        %v3946 = vpow.pop %v3945
        %v3947 = vmul.f32 %v3887, 1.442695
        %v3948 = vpow.pop %v3947
        %v3949 = vmul.f32 %v3888, 1.442695
        %v3950 = vpow.pop %v3949
        %v3951 = vmul.f32 %v3889, 1.442695
        %v3952 = vpow.pop %v3951
        %v3953 = vmul.f32 %v3890, 1.442695
        %v3954 = vpow.pop %v3953
        %3955 = vadd.xlane.f32.xlu0 %v3892
        %v3956 = vpop.xlane.xlu0 %3955
        %3957 = vadd.xlane.f32.xlu0 %v3894
        %v3958 = vpop.xlane.xlu0 %3957
        %3959 = vadd.xlane.f32.xlu0 %v3896
        %v3960 = vpop.xlane.xlu0 %3959
        %3961 = vadd.xlane.f32.xlu0 %v3898
        %v3962 = vpop.xlane.xlu0 %3961
        %3963 = vadd.xlane.f32.xlu0 %v3900
        %v3964 = vpop.xlane.xlu0 %3963
        %3965 = vadd.xlane.f32.xlu0 %v3902
        %v3966 = vpop.xlane.xlu0 %3965
        %3967 = vadd.xlane.f32.xlu0 %v3904
        %v3968 = vpop.xlane.xlu0 %3967
        %3969 = vadd.xlane.f32.xlu0 %v3906
        %v3970 = vpop.xlane.xlu0 %3969
        %3971 = vadd.xlane.f32.xlu0 %v3908
        %v3972 = vpop.xlane.xlu0 %3971
        %3973 = vadd.xlane.f32.xlu0 %v3910
        %v3974 = vpop.xlane.xlu0 %3973
        %3975 = vadd.xlane.f32.xlu0 %v3912
        %v3976 = vpop.xlane.xlu0 %3975
        %3977 = vadd.xlane.f32.xlu0 %v3914
        %v3978 = vpop.xlane.xlu0 %3977
        %3979 = vadd.xlane.f32.xlu0 %v3916
        %v3980 = vpop.xlane.xlu0 %3979
        %3981 = vadd.xlane.f32.xlu0 %v3918
        %v3982 = vpop.xlane.xlu0 %3981
        %3983 = vadd.xlane.f32.xlu0 %v3920
        %v3984 = vpop.xlane.xlu0 %3983
        %3985 = vadd.xlane.f32.xlu0 %v3922
        %v3986 = vpop.xlane.xlu0 %3985
        %3987 = vadd.xlane.f32.xlu0 %v3924
        %v3988 = vpop.xlane.xlu0 %3987
        %3989 = vadd.xlane.f32.xlu0 %v3926
        %v3990 = vpop.xlane.xlu0 %3989
        %3991 = vadd.xlane.f32.xlu0 %v3928
        %v3992 = vpop.xlane.xlu0 %3991
        %3993 = vadd.xlane.f32.xlu0 %v3930
        %v3994 = vpop.xlane.xlu0 %3993
        %3995 = vadd.xlane.f32.xlu0 %v3932
        %v3996 = vpop.xlane.xlu0 %3995
        %3997 = vadd.xlane.f32.xlu0 %v3934
        %v3998 = vpop.xlane.xlu0 %3997
        %3999 = vadd.xlane.f32.xlu0 %v3936
        %v4000 = vpop.xlane.xlu0 %3999
        %4001 = vadd.xlane.f32.xlu0 %v3938
        %v4002 = vpop.xlane.xlu0 %4001
        %4003 = vadd.xlane.f32.xlu0 %v3940
        %v4004 = vpop.xlane.xlu0 %4003
        %4005 = vadd.xlane.f32.xlu0 %v3942
        %v4006 = vpop.xlane.xlu0 %4005
        %4007 = vadd.xlane.f32.xlu0 %v3944
        %v4008 = vpop.xlane.xlu0 %4007
        %4009 = vadd.xlane.f32.xlu0 %v3946
        %v4010 = vpop.xlane.xlu0 %4009
        %4011 = vadd.xlane.f32.xlu0 %v3948
        %v4012 = vpop.xlane.xlu0 %4011
        %4013 = vadd.xlane.f32.xlu0 %v3950
        %v4014 = vpop.xlane.xlu0 %4013
        %4015 = vadd.xlane.f32.xlu0 %v3952
        %v4016 = vpop.xlane.xlu0 %4015
        %4017 = vadd.xlane.f32.xlu0 %v3954
        %v4018 = vpop.xlane.xlu0 %4017
        %v4019 = vrcp.pop %v3956
        %v4020 = vrcp.pop %v3958
        %v4021 = vrcp.pop %v3960
        %v4022 = vrcp.pop %v3962
        %v4023 = vrcp.pop %v3964
        %v4024 = vrcp.pop %v3966
        %v4025 = vrcp.pop %v3968
        %v4026 = vrcp.pop %v3970
        %v4027 = vrcp.pop %v3972
        %v4028 = vrcp.pop %v3974
        %v4029 = vrcp.pop %v3976
        %v4030 = vrcp.pop %v3978
        %v4031 = vrcp.pop %v3980
        %v4032 = vrcp.pop %v3982
        %v4033 = vrcp.pop %v3984
        %v4034 = vrcp.pop %v3986
        %v4035 = vrcp.pop %v3988
        %v4036 = vrcp.pop %v3990
        %v4037 = vrcp.pop %v3992
        %v4038 = vrcp.pop %v3994
        %v4039 = vrcp.pop %v3996
        %v4040 = vrcp.pop %v3998
        %v4041 = vrcp.pop %v4000
        %v4042 = vrcp.pop %v4002
        %v4043 = vrcp.pop %v4004
        %v4044 = vrcp.pop %v4006
        %v4045 = vrcp.pop %v4008
        %v4046 = vrcp.pop %v4010
        %v4047 = vrcp.pop %v4012
        %v4048 = vrcp.pop %v4014
        %v4049 = vrcp.pop %v4016
        %v4050 = vrcp.pop %v4018
        %v4051 = vmul.f32 %v3892, %v4019
        %v4052 = vmul.f32 %v3894, %v4020
        %v4053 = vmul.f32 %v3896, %v4021
        %v4054 = vmul.f32 %v3898, %v4022
        %v4055 = vmul.f32 %v3900, %v4023
        %v4056 = vmul.f32 %v3902, %v4024
        %v4057 = vmul.f32 %v3904, %v4025
        %v4058 = vmul.f32 %v3906, %v4026
        %v4059 = vmul.f32 %v3908, %v4027
        %v4060 = vmul.f32 %v3910, %v4028
        %v4061 = vmul.f32 %v3912, %v4029
        %v4062 = vmul.f32 %v3914, %v4030
        %v4063 = vmul.f32 %v3916, %v4031
        %v4064 = vmul.f32 %v3918, %v4032
        %v4065 = vmul.f32 %v3920, %v4033
        %v4066 = vmul.f32 %v3922, %v4034
        %v4067 = vmul.f32 %v3924, %v4035
        %v4068 = vmul.f32 %v3926, %v4036
        %v4069 = vmul.f32 %v3928, %v4037
        %v4070 = vmul.f32 %v3930, %v4038
        %v4071 = vmul.f32 %v3932, %v4039
        %v4072 = vmul.f32 %v3934, %v4040
        %v4073 = vmul.f32 %v3936, %v4041
        %v4074 = vmul.f32 %v3938, %v4042
        %v4075 = vmul.f32 %v3940, %v4043
        %v4076 = vmul.f32 %v3942, %v4044
        %v4077 = vmul.f32 %v3944, %v4045
        %v4078 = vmul.f32 %v3946, %v4046
        %v4079 = vmul.f32 %v3948, %v4047
        %v4080 = vmul.f32 %v3950, %v4048
        %v4081 = vmul.f32 %v3952, %v4049
        %v4082 = vmul.f32 %v3954, %v4050
        %v4083 = vpack.c.bf16 %v4052, %v4051
        %v4084 = vpack.c.bf16 %v4054, %v4053
        %v4085 = vpack.c.bf16 %v4056, %v4055
        %v4086 = vpack.c.bf16 %v4058, %v4057
        %v4087 = vpack.c.bf16 %v4060, %v4059
        %v4088 = vpack.c.bf16 %v4062, %v4061
        %v4089 = vpack.c.bf16 %v4064, %v4063
        %v4090 = vpack.c.bf16 %v4066, %v4065
        %v4091 = vpack.c.bf16 %v4068, %v4067
        %v4092 = vpack.c.bf16 %v4070, %v4069
        %v4093 = vpack.c.bf16 %v4072, %v4071
        %v4094 = vpack.c.bf16 %v4074, %v4073
        %v4095 = vpack.c.bf16 %v4076, %v4075
        %v4096 = vpack.c.bf16 %v4078, %v4077
        %v4097 = vpack.c.bf16 %v4080, %v4079
        %v4098 = vpack.c.bf16 %v4082, %v4081
        %4099 = vrot.lane.b32.xlu0 %v1198, 64
        %v4100 = vpop.permute.xlu0 %4099
        %4101 = vrot.lane.b32.xlu0 %v1199, 64
        %v4102 = vpop.permute.xlu0 %4101
        %4103 = vrot.lane.b32.xlu0 %v1200, 64
        %v4104 = vpop.permute.xlu0 %4103
        %4105 = vrot.lane.b32.xlu0 %v1201, 64
        %v4106 = vpop.permute.xlu0 %4105
        %4107 = vrot.lane.b32.xlu0 %v1202, 64
        %v4108 = vpop.permute.xlu0 %4107
        %4109 = vrot.lane.b32.xlu0 %v1203, 64
        %v4110 = vpop.permute.xlu0 %4109
        %4111 = vrot.lane.b32.xlu0 %v1204, 64
        %v4112 = vpop.permute.xlu0 %4111
        %4113 = vrot.lane.b32.xlu0 %v1205, 64
        %v4114 = vpop.permute.xlu0 %4113
        %4123 = vmatprep.subr.bf16.mxu0 0
        %4124 = vmatpush1.bf16.msra.mxu0 %v4100
        %4125 = vmatprep.subr.bf16.mxu0 0
        %4126 = vmatpush1.bf16.msra.mxu0 %v4102
        %4127 = vmatprep.subr.bf16.mxu0 0
        %4128 = vmatpush1.bf16.msra.mxu0 %v4104
        %4129 = vmatprep.subr.bf16.mxu0 0
        %4130 = vmatpush1.bf16.msra.mxu0 %v4106
        %4131 = vmatprep.subr.bf16.mxu0 0
        %4132 = vmatpush1.bf16.msra.mxu0 %v4108
        %4133 = vmatprep.subr.bf16.mxu0 0
        %4134 = vmatpush1.bf16.msra.mxu0 %v4110
        %4135 = vmatprep.subr.bf16.mxu0 0
        %4136 = vmatpush1.bf16.msra.mxu0 %v4112
        %4137 = vmatprep.subr.bf16.mxu0 0
        %4138 = vmatpush1.bf16.msra.mxu0 %v4114
        %4139 = vmatprep.subr.bf16.mxu0 0
        %4140 = vmatpush1.bf16.msra.mxu0 0
        %4141 = vmatprep.subr.bf16.mxu0 0
        %4142 = vmatpush1.bf16.msra.mxu0 0
        %4143 = vmatprep.subr.bf16.mxu0 0
        %4144 = vmatpush1.bf16.msra.mxu0 0
        %4145 = vmatprep.subr.bf16.mxu0 0
        %4146 = vmatpush1.bf16.msra.mxu0 0
        %4147 = vmatprep.subr.bf16.mxu0 0
        %4148 = vmatpush1.bf16.msra.mxu0 0
        %4149 = vmatprep.subr.bf16.mxu0 0
        %4150 = vmatpush1.bf16.msra.mxu0 0
        %4151 = vmatprep.subr.bf16.mxu0 0
        %4152 = vmatpush1.bf16.msra.mxu0 0
        %4153 = vmatprep.subr.bf16.mxu0 0
        %4154 = vmatpush1.bf16.msra.mxu0 0
        %4155 = vmatprep.mubr.bf16.mxu0 0
        %4156 = vmatmul.mubr.bf16.gmra.mrb[0].mxu0 %v4083
        %v4157 = vpop.f32.mrb[0].mxu0
        %v4158 = vadd.f32 0.0, %v4157
        %v4159 = vpop.f32.mrb[0].mxu0
        %v4160 = vpop.f32.mrb[0].mxu0
        %v4161 = vadd.f32 0.0, %v4160
        %v4162 = vpop.f32.mrb[0].mxu0
        %4163 = vmatprep.mubr.bf16.mxu0 0
        %4164 = vmatmul.mubr.bf16.gmra.mrb[0].mxu0 %v4084
        %v4165 = vpop.f32.mrb[0].mxu0
        %v4166 = vadd.f32 0.0, %v4165
        %v4167 = vpop.f32.mrb[0].mxu0
        %v4168 = vpop.f32.mrb[0].mxu0
        %v4169 = vadd.f32 0.0, %v4168
        %v4170 = vpop.f32.mrb[0].mxu0
        %4171 = vmatprep.mubr.bf16.mxu0 0
        %4172 = vmatmul.mubr.bf16.gmra.mrb[0].mxu0 %v4085
        %v4173 = vpop.f32.mrb[0].mxu0
        %v4174 = vadd.f32 0.0, %v4173
        %v4175 = vpop.f32.mrb[0].mxu0
        %v4176 = vpop.f32.mrb[0].mxu0
        %v4177 = vadd.f32 0.0, %v4176
        %v4178 = vpop.f32.mrb[0].mxu0
        %4179 = vmatprep.mubr.bf16.mxu0 0
        %4180 = vmatmul.mubr.bf16.gmra.mrb[0].mxu0 %v4086
        %v4181 = vpop.f32.mrb[0].mxu0
        %v4182 = vadd.f32 0.0, %v4181
        %v4183 = vpop.f32.mrb[0].mxu0
        %v4184 = vpop.f32.mrb[0].mxu0
        %v4185 = vadd.f32 0.0, %v4184
        %v4186 = vpop.f32.mrb[0].mxu0
        %4187 = vmatprep.mubr.bf16.mxu0 0
        %4188 = vmatmul.mubr.bf16.gmra.mrb[0].mxu0 %v4087
        %v4189 = vpop.f32.mrb[0].mxu0
        %v4190 = vadd.f32 0.0, %v4189
        %v4191 = vpop.f32.mrb[0].mxu0
        %v4192 = vpop.f32.mrb[0].mxu0
        %v4193 = vadd.f32 0.0, %v4192
        %v4194 = vpop.f32.mrb[0].mxu0
        %4195 = vmatprep.mubr.bf16.mxu0 0
        %4196 = vmatmul.mubr.bf16.gmra.mrb[0].mxu0 %v4088
        %v4197 = vpop.f32.mrb[0].mxu0
        %v4198 = vadd.f32 0.0, %v4197
        %v4199 = vpop.f32.mrb[0].mxu0
        %v4200 = vpop.f32.mrb[0].mxu0
        %v4201 = vadd.f32 0.0, %v4200
        %v4202 = vpop.f32.mrb[0].mxu0
        %4203 = vmatprep.mubr.bf16.mxu0 0
        %4204 = vmatmul.mubr.bf16.gmra.mrb[0].mxu0 %v4089
        %v4205 = vpop.f32.mrb[0].mxu0
        %v4206 = vadd.f32 0.0, %v4205
        %v4207 = vpop.f32.mrb[0].mxu0
        %v4208 = vpop.f32.mrb[0].mxu0
        %v4209 = vadd.f32 0.0, %v4208
        %v4210 = vpop.f32.mrb[0].mxu0
        %4211 = vmatprep.mubr.bf16.mxu0 0
        %4212 = vmatmul.mubr.bf16.gmra.mrb[0].mxu0 %v4090
        %v4213 = vpop.f32.mrb[0].mxu0
        %v4214 = vadd.f32 0.0, %v4213
        %v4215 = vpop.f32.mrb[0].mxu0
        %v4216 = vpop.f32.mrb[0].mxu0
        %v4217 = vadd.f32 0.0, %v4216
        %v4218 = vpop.f32.mrb[0].mxu0
        %4219 = vdwg.mxu0
        %4220 = vrot.lane.b32.xlu0 %v1206, 64
        %v4221 = vpop.permute.xlu0 %4220
        %4222 = vrot.lane.b32.xlu0 %v1207, 64
        %v4223 = vpop.permute.xlu0 %4222
        %4224 = vrot.lane.b32.xlu0 %v1208, 64
        %v4225 = vpop.permute.xlu0 %4224
        %4226 = vrot.lane.b32.xlu0 %v1209, 64
        %v4227 = vpop.permute.xlu0 %4226
        %4228 = vrot.lane.b32.xlu0 %v1210, 64
        %v4229 = vpop.permute.xlu0 %4228
        %4230 = vrot.lane.b32.xlu0 %v1211, 64
        %v4231 = vpop.permute.xlu0 %4230
        %4232 = vrot.lane.b32.xlu0 %v1212, 64
        %v4233 = vpop.permute.xlu0 %4232
        %4234 = vrot.lane.b32.xlu0 %v1213, 64
        %v4235 = vpop.permute.xlu0 %4234
        %4244 = vmatprep.subr.bf16.mxu0 0
        %4245 = vmatpush1.bf16.msra.mxu0 %v4221
        %4246 = vmatprep.subr.bf16.mxu0 0
        %4247 = vmatpush1.bf16.msra.mxu0 %v4223
        %4248 = vmatprep.subr.bf16.mxu0 0
        %4249 = vmatpush1.bf16.msra.mxu0 %v4225
        %4250 = vmatprep.subr.bf16.mxu0 0
        %4251 = vmatpush1.bf16.msra.mxu0 %v4227
        %4252 = vmatprep.subr.bf16.mxu0 0
        %4253 = vmatpush1.bf16.msra.mxu0 %v4229
        %4254 = vmatprep.subr.bf16.mxu0 0
        %4255 = vmatpush1.bf16.msra.mxu0 %v4231
        %4256 = vmatprep.subr.bf16.mxu0 0
        %4257 = vmatpush1.bf16.msra.mxu0 %v4233
        %4258 = vmatprep.subr.bf16.mxu0 0
        %4259 = vmatpush1.bf16.msra.mxu0 %v4235
        %4260 = vmatprep.subr.bf16.mxu0 0
        %4261 = vmatpush1.bf16.msra.mxu0 0
        %4262 = vmatprep.subr.bf16.mxu0 0
        %4263 = vmatpush1.bf16.msra.mxu0 0
        %4264 = vmatprep.subr.bf16.mxu0 0
        %4265 = vmatpush1.bf16.msra.mxu0 0
        %4266 = vmatprep.subr.bf16.mxu0 0
        %4267 = vmatpush1.bf16.msra.mxu0 0
        %4268 = vmatprep.subr.bf16.mxu0 0
        %4269 = vmatpush1.bf16.msra.mxu0 0
        %4270 = vmatprep.subr.bf16.mxu0 0
        %4271 = vmatpush1.bf16.msra.mxu0 0
        %4272 = vmatprep.subr.bf16.mxu0 0
        %4273 = vmatpush1.bf16.msra.mxu0 0
        %4274 = vmatprep.subr.bf16.mxu0 0
        %4275 = vmatpush1.bf16.msra.mxu0 0
        %4276 = vmatprep.mubr.bf16.mxu0 0
        %4277 = vmatmul.mubr.bf16.gmra.mrb[0].mxu0 %v4091
        %v4278 = vpop.f32.mrb[0].mxu0
        %v4279 = vadd.f32 0.0, %v4278
        %v4280 = vpop.f32.mrb[0].mxu0
        %v4281 = vpop.f32.mrb[0].mxu0
        %v4282 = vadd.f32 0.0, %v4281
        %v4283 = vpop.f32.mrb[0].mxu0
        %4284 = vmatprep.mubr.bf16.mxu0 0
        %4285 = vmatmul.mubr.bf16.gmra.mrb[0].mxu0 %v4092
        %v4286 = vpop.f32.mrb[0].mxu0
        %v4287 = vadd.f32 0.0, %v4286
        %v4288 = vpop.f32.mrb[0].mxu0
        %v4289 = vpop.f32.mrb[0].mxu0
        %v4290 = vadd.f32 0.0, %v4289
        %v4291 = vpop.f32.mrb[0].mxu0
        %4292 = vmatprep.mubr.bf16.mxu0 0
        %4293 = vmatmul.mubr.bf16.gmra.mrb[0].mxu0 %v4093
        %v4294 = vpop.f32.mrb[0].mxu0
        %v4295 = vadd.f32 0.0, %v4294
        %v4296 = vpop.f32.mrb[0].mxu0
        %v4297 = vpop.f32.mrb[0].mxu0
        %v4298 = vadd.f32 0.0, %v4297
        %v4299 = vpop.f32.mrb[0].mxu0
        %4300 = vmatprep.mubr.bf16.mxu0 0
        %4301 = vmatmul.mubr.bf16.gmra.mrb[0].mxu0 %v4094
        %v4302 = vpop.f32.mrb[0].mxu0
        %v4303 = vadd.f32 0.0, %v4302
        %v4304 = vpop.f32.mrb[0].mxu0
        %v4305 = vpop.f32.mrb[0].mxu0
        %v4306 = vadd.f32 0.0, %v4305
        %v4307 = vpop.f32.mrb[0].mxu0
        %4308 = vmatprep.mubr.bf16.mxu0 0
        %4309 = vmatmul.mubr.bf16.gmra.mrb[0].mxu0 %v4095
        %v4310 = vpop.f32.mrb[0].mxu0
        %v4311 = vadd.f32 0.0, %v4310
        %v4312 = vpop.f32.mrb[0].mxu0
        %v4313 = vpop.f32.mrb[0].mxu0
        %v4314 = vadd.f32 0.0, %v4313
        %v4315 = vpop.f32.mrb[0].mxu0
        %4316 = vmatprep.mubr.bf16.mxu0 0
        %4317 = vmatmul.mubr.bf16.gmra.mrb[0].mxu0 %v4096
        %v4318 = vpop.f32.mrb[0].mxu0
        %v4319 = vadd.f32 0.0, %v4318
        %v4320 = vpop.f32.mrb[0].mxu0
        %v4321 = vpop.f32.mrb[0].mxu0
        %v4322 = vadd.f32 0.0, %v4321
        %v4323 = vpop.f32.mrb[0].mxu0
        %4324 = vmatprep.mubr.bf16.mxu0 0
        %4325 = vmatmul.mubr.bf16.gmra.mrb[0].mxu0 %v4097
        %v4326 = vpop.f32.mrb[0].mxu0
        %v4327 = vadd.f32 0.0, %v4326
        %v4328 = vpop.f32.mrb[0].mxu0
        %v4329 = vpop.f32.mrb[0].mxu0
        %v4330 = vadd.f32 0.0, %v4329
        %v4331 = vpop.f32.mrb[0].mxu0
        %4332 = vmatprep.mubr.bf16.mxu0 0
        %4333 = vmatmul.mubr.bf16.gmra.mrb[0].mxu0 %v4098
        %v4334 = vpop.f32.mrb[0].mxu0
        %v4335 = vadd.f32 0.0, %v4334
        %v4336 = vpop.f32.mrb[0].mxu0
        %v4337 = vpop.f32.mrb[0].mxu0
        %v4338 = vadd.f32 0.0, %v4337
        %v4339 = vpop.f32.mrb[0].mxu0
        %4340 = vdwg.mxu0
        %v4341 = vpack.c.bf16 %v4161, %v4158
        %v4342 = vpack.c.bf16 %v4169, %v4166
        %v4343 = vpack.c.bf16 %v4177, %v4174
        %v4344 = vpack.c.bf16 %v4185, %v4182
        %v4345 = vpack.c.bf16 %v4193, %v4190
        %v4346 = vpack.c.bf16 %v4201, %v4198
        %v4347 = vpack.c.bf16 %v4209, %v4206
        %v4348 = vpack.c.bf16 %v4217, %v4214
        %v4349 = vpack.c.bf16 %v4282, %v4279
        %v4350 = vpack.c.bf16 %v4290, %v4287
        %v4351 = vpack.c.bf16 %v4298, %v4295
        %v4352 = vpack.c.bf16 %v4306, %v4303
        %v4353 = vpack.c.bf16 %v4314, %v4311
        %v4354 = vpack.c.bf16 %v4322, %v4319
        %v4355 = vpack.c.bf16 %v4330, %v4327
        %v4356 = vpack.c.bf16 %v4338, %v4335
        %v4361 = vunpack.c.l.b16 %v1222
        %v4362 = vunpack.c.l.b16 %v1223
        %v4363 = vunpack.c.l.b16 %v1224
        %v4364 = vunpack.c.l.b16 %v1225
        %v4365 = vpack.c.b16 %v4362, %v4361
        %v4366 = vpack.c.b16 %v4364, %v4363
        %v4370 = vsel %vm1230, %v4341, 0
        %v4373 = vsel %vm1230, %v4342, 0
        %v4376 = vsel %vm1230, %v4343, 0
        %v4379 = vsel %vm1230, %v4344, 0
        %v4382 = vsel %vm1230, %v4345, 0
        %v4385 = vsel %vm1230, %v4346, 0
        %v4388 = vsel %vm1230, %v4347, 0
        %v4391 = vsel %vm1230, %v4348, 0
        %v4394 = vsel %vm1230, %v4349, 0
        %v4397 = vsel %vm1230, %v4350, 0
        %v4400 = vsel %vm1230, %v4351, 0
        %v4403 = vsel %vm1230, %v4352, 0
        %v4406 = vsel %vm1230, %v4353, 0
        %v4409 = vsel %vm1230, %v4354, 0
        %v4412 = vsel %vm1230, %v4355, 0
        %v4415 = vsel %vm1230, %v4356, 0
        %4417 = vmatprep.subr.bf16.mxu0 0
        %4418 = vmatpush1.bf16.msra.mxu0 %v4365
        %4419 = vmatprep.subr.bf16.mxu0 0
        %4420 = vmatpush1.bf16.msra.mxu0 %v4366
        %4421 = vmatprep.subr.bf16.mxu0 0
        %4422 = vmatpush1.bf16.msra.mxu0 0
        %4423 = vmatprep.subr.bf16.mxu0 0
        %4424 = vmatpush1.bf16.msra.mxu0 0
        %4425 = vmatprep.subr.bf16.mxu0 0
        %4426 = vmatpush1.bf16.msra.mxu0 0
        %4427 = vmatprep.subr.bf16.mxu0 0
        %4428 = vmatpush1.bf16.msra.mxu0 0
        %4429 = vmatprep.subr.bf16.mxu0 0
        %4430 = vmatpush1.bf16.msra.mxu0 0
        %4431 = vmatprep.subr.bf16.mxu0 0
        %4432 = vmatpush1.bf16.msra.mxu0 0
        %4433 = vmatprep.subr.bf16.mxu0 0
        %4434 = vmatpush1.bf16.msra.mxu0 0
        %4435 = vmatprep.subr.bf16.mxu0 0
        %4436 = vmatpush1.bf16.msra.mxu0 0
        %4437 = vmatprep.subr.bf16.mxu0 0
        %4438 = vmatpush1.bf16.msra.mxu0 0
        %4439 = vmatprep.subr.bf16.mxu0 0
        %4440 = vmatpush1.bf16.msra.mxu0 0
        %4441 = vmatprep.subr.bf16.mxu0 0
        %4442 = vmatpush1.bf16.msra.mxu0 0
        %4443 = vmatprep.subr.bf16.mxu0 0
        %4444 = vmatpush1.bf16.msra.mxu0 0
        %4445 = vmatprep.subr.bf16.mxu0 0
        %4446 = vmatpush1.bf16.msra.mxu0 0
        %4447 = vmatprep.subr.bf16.mxu0 0
        %4448 = vmatpush1.bf16.msra.mxu0 0
        %4449 = vmatprep.mubr.bf16.mxu0 0
        %4450 = vmatmul.mubr.bf16.gmra.mrb[0].mxu0 %v4370
        %v4451 = vpop.f32.mrb[0].mxu0
        %v4452 = vadd.f32 0.0, %v4451
        %v4453 = vpop.f32.mrb[0].mxu0
        %v4454 = vpop.f32.mrb[0].mxu0
        %v4455 = vadd.f32 0.0, %v4454
        %v4456 = vpop.f32.mrb[0].mxu0
        %4457 = vmatprep.mubr.bf16.mxu0 0
        %4458 = vmatmul.mubr.bf16.gmra.mrb[0].mxu0 %v4373
        %v4459 = vpop.f32.mrb[0].mxu0
        %v4460 = vadd.f32 0.0, %v4459
        %v4461 = vpop.f32.mrb[0].mxu0
        %v4462 = vpop.f32.mrb[0].mxu0
        %v4463 = vadd.f32 0.0, %v4462
        %v4464 = vpop.f32.mrb[0].mxu0
        %4465 = vmatprep.mubr.bf16.mxu0 0
        %4466 = vmatmul.mubr.bf16.gmra.mrb[0].mxu0 %v4376
        %v4467 = vpop.f32.mrb[0].mxu0
        %v4468 = vadd.f32 0.0, %v4467
        %v4469 = vpop.f32.mrb[0].mxu0
        %v4470 = vpop.f32.mrb[0].mxu0
        %v4471 = vadd.f32 0.0, %v4470
        %v4472 = vpop.f32.mrb[0].mxu0
        %4473 = vmatprep.mubr.bf16.mxu0 0
        %4474 = vmatmul.mubr.bf16.gmra.mrb[0].mxu0 %v4379
        %v4475 = vpop.f32.mrb[0].mxu0
        %v4476 = vadd.f32 0.0, %v4475
        %v4477 = vpop.f32.mrb[0].mxu0
        %v4478 = vpop.f32.mrb[0].mxu0
        %v4479 = vadd.f32 0.0, %v4478
        %v4480 = vpop.f32.mrb[0].mxu0
        %4481 = vmatprep.mubr.bf16.mxu0 0
        %4482 = vmatmul.mubr.bf16.gmra.mrb[0].mxu0 %v4382
        %v4483 = vpop.f32.mrb[0].mxu0
        %v4484 = vadd.f32 0.0, %v4483
        %v4485 = vpop.f32.mrb[0].mxu0
        %v4486 = vpop.f32.mrb[0].mxu0
        %v4487 = vadd.f32 0.0, %v4486
        %v4488 = vpop.f32.mrb[0].mxu0
        %4489 = vmatprep.mubr.bf16.mxu0 0
        %4490 = vmatmul.mubr.bf16.gmra.mrb[0].mxu0 %v4385
        %v4491 = vpop.f32.mrb[0].mxu0
        %v4492 = vadd.f32 0.0, %v4491
        %v4493 = vpop.f32.mrb[0].mxu0
        %v4494 = vpop.f32.mrb[0].mxu0
        %v4495 = vadd.f32 0.0, %v4494
        %v4496 = vpop.f32.mrb[0].mxu0
        %4497 = vmatprep.mubr.bf16.mxu0 0
        %4498 = vmatmul.mubr.bf16.gmra.mrb[0].mxu0 %v4388
        %v4499 = vpop.f32.mrb[0].mxu0
        %v4500 = vadd.f32 0.0, %v4499
        %v4501 = vpop.f32.mrb[0].mxu0
        %v4502 = vpop.f32.mrb[0].mxu0
        %v4503 = vadd.f32 0.0, %v4502
        %v4504 = vpop.f32.mrb[0].mxu0
        %4505 = vmatprep.mubr.bf16.mxu0 0
        %4506 = vmatmul.mubr.bf16.gmra.mrb[0].mxu0 %v4391
        %v4507 = vpop.f32.mrb[0].mxu0
        %v4508 = vadd.f32 0.0, %v4507
        %v4509 = vpop.f32.mrb[0].mxu0
        %v4510 = vpop.f32.mrb[0].mxu0
        %v4511 = vadd.f32 0.0, %v4510
        %v4512 = vpop.f32.mrb[0].mxu0
        %4513 = vmatprep.mubr.bf16.mxu0 0
        %4514 = vmatmul.mubr.bf16.gmra.mrb[0].mxu0 %v4394
        %v4515 = vpop.f32.mrb[0].mxu0
        %v4516 = vadd.f32 0.0, %v4515
        %v4517 = vpop.f32.mrb[0].mxu0
        %v4518 = vpop.f32.mrb[0].mxu0
        %v4519 = vadd.f32 0.0, %v4518
        %v4520 = vpop.f32.mrb[0].mxu0
        %4521 = vmatprep.mubr.bf16.mxu0 0
        %4522 = vmatmul.mubr.bf16.gmra.mrb[0].mxu0 %v4397
        %v4523 = vpop.f32.mrb[0].mxu0
        %v4524 = vadd.f32 0.0, %v4523
        %v4525 = vpop.f32.mrb[0].mxu0
        %v4526 = vpop.f32.mrb[0].mxu0
        %v4527 = vadd.f32 0.0, %v4526
        %v4528 = vpop.f32.mrb[0].mxu0
        %4529 = vmatprep.mubr.bf16.mxu0 0
        %4530 = vmatmul.mubr.bf16.gmra.mrb[0].mxu0 %v4400
        %v4531 = vpop.f32.mrb[0].mxu0
        %v4532 = vadd.f32 0.0, %v4531
        %v4533 = vpop.f32.mrb[0].mxu0
        %v4534 = vpop.f32.mrb[0].mxu0
        %v4535 = vadd.f32 0.0, %v4534
        %v4536 = vpop.f32.mrb[0].mxu0
        %4537 = vmatprep.mubr.bf16.mxu0 0
        %4538 = vmatmul.mubr.bf16.gmra.mrb[0].mxu0 %v4403
        %v4539 = vpop.f32.mrb[0].mxu0
        %v4540 = vadd.f32 0.0, %v4539
        %v4541 = vpop.f32.mrb[0].mxu0
        %v4542 = vpop.f32.mrb[0].mxu0
        %v4543 = vadd.f32 0.0, %v4542
        %v4544 = vpop.f32.mrb[0].mxu0
        %4545 = vmatprep.mubr.bf16.mxu0 0
        %4546 = vmatmul.mubr.bf16.gmra.mrb[0].mxu0 %v4406
        %v4547 = vpop.f32.mrb[0].mxu0
        %v4548 = vadd.f32 0.0, %v4547
        %v4549 = vpop.f32.mrb[0].mxu0
        %v4550 = vpop.f32.mrb[0].mxu0
        %v4551 = vadd.f32 0.0, %v4550
        %v4552 = vpop.f32.mrb[0].mxu0
        %4553 = vmatprep.mubr.bf16.mxu0 0
        %4554 = vmatmul.mubr.bf16.gmra.mrb[0].mxu0 %v4409
        %v4555 = vpop.f32.mrb[0].mxu0
        %v4556 = vadd.f32 0.0, %v4555
        %v4557 = vpop.f32.mrb[0].mxu0
        %v4558 = vpop.f32.mrb[0].mxu0
        %v4559 = vadd.f32 0.0, %v4558
        %v4560 = vpop.f32.mrb[0].mxu0
        %4561 = vmatprep.mubr.bf16.mxu0 0
        %4562 = vmatmul.mubr.bf16.gmra.mrb[0].mxu0 %v4412
        %v4563 = vpop.f32.mrb[0].mxu0
        %v4564 = vadd.f32 0.0, %v4563
        %v4565 = vpop.f32.mrb[0].mxu0
        %v4566 = vpop.f32.mrb[0].mxu0
        %v4567 = vadd.f32 0.0, %v4566
        %v4568 = vpop.f32.mrb[0].mxu0
        %4569 = vmatprep.mubr.bf16.mxu0 0
        %4570 = vmatmul.mubr.bf16.gmra.mrb[0].mxu0 %v4415
        %v4571 = vpop.f32.mrb[0].mxu0
        %v4572 = vadd.f32 0.0, %v4571
        %v4573 = vpop.f32.mrb[0].mxu0
        %v4574 = vpop.f32.mrb[0].mxu0
        %v4575 = vadd.f32 0.0, %v4574
        %v4576 = vpop.f32.mrb[0].mxu0
        %4577 = vdwg.mxu0
        %v4578 = vadd.f32 %v3315, %v4452
        %v4579 = vadd.f32 %v3318, %v4455
        %v4580 = vadd.f32 %v3323, %v4460
        %v4581 = vadd.f32 %v3326, %v4463
        %v4582 = vadd.f32 %v3331, %v4468
        %v4583 = vadd.f32 %v3334, %v4471
        %v4584 = vadd.f32 %v3339, %v4476
        %v4585 = vadd.f32 %v3342, %v4479
        %v4586 = vadd.f32 %v3347, %v4484
        %v4587 = vadd.f32 %v3350, %v4487
        %v4588 = vadd.f32 %v3355, %v4492
        %v4589 = vadd.f32 %v3358, %v4495
        %v4590 = vadd.f32 %v3363, %v4500
        %v4591 = vadd.f32 %v3366, %v4503
        %v4592 = vadd.f32 %v3371, %v4508
        %v4593 = vadd.f32 %v3374, %v4511
        %v4594 = vadd.f32 %v3379, %v4516
        %v4595 = vadd.f32 %v3382, %v4519
        %v4596 = vadd.f32 %v3387, %v4524
        %v4597 = vadd.f32 %v3390, %v4527
        %v4598 = vadd.f32 %v3395, %v4532
        %v4599 = vadd.f32 %v3398, %v4535
        %v4600 = vadd.f32 %v3403, %v4540
        %v4601 = vadd.f32 %v3406, %v4543
        %v4602 = vadd.f32 %v3411, %v4548
        %v4603 = vadd.f32 %v3414, %v4551
        %v4604 = vadd.f32 %v3419, %v4556
        %v4605 = vadd.f32 %v3422, %v4559
        %v4606 = vadd.f32 %v3427, %v4564
        %v4607 = vadd.f32 %v3430, %v4567
        %v4608 = vadd.f32 %v3435, %v4572
        %v4609 = vadd.f32 %v3438, %v4575
        %4610 = vrot.lane.b32.xlu0 %v1094, 32
        %v4611 = vpop.permute.xlu0 %4610
        %4612 = vrot.lane.b32.xlu0 %v1095, 32
        %v4613 = vpop.permute.xlu0 %4612
        %4614 = vrot.lane.b32.xlu0 %v1096, 32
        %v4615 = vpop.permute.xlu0 %4614
        %4616 = vrot.lane.b32.xlu0 %v1097, 32
        %v4617 = vpop.permute.xlu0 %4616
        %4618 = vrot.lane.b32.xlu0 %v1098, 32
        %v4619 = vpop.permute.xlu0 %4618
        %4620 = vrot.lane.b32.xlu0 %v1099, 32
        %v4621 = vpop.permute.xlu0 %4620
        %4622 = vrot.lane.b32.xlu0 %v1100, 32
        %v4623 = vpop.permute.xlu0 %4622
        %4624 = vrot.lane.b32.xlu0 %v1101, 32
        %v4625 = vpop.permute.xlu0 %4624
        %4626 = vrot.lane.b32.xlu0 %v1146, 32
        %v4627 = vpop.permute.xlu0 %4626
        %4628 = vrot.lane.b32.xlu0 %v1147, 32
        %v4629 = vpop.permute.xlu0 %4628
        %4630 = vrot.lane.b32.xlu0 %v1148, 32
        %v4631 = vpop.permute.xlu0 %4630
        %4632 = vrot.lane.b32.xlu0 %v1149, 32
        %v4633 = vpop.permute.xlu0 %4632
        %4634 = vrot.lane.b32.xlu0 %v1150, 32
        %v4635 = vpop.permute.xlu0 %4634
        %4636 = vrot.lane.b32.xlu0 %v1151, 32
        %v4637 = vpop.permute.xlu0 %4636
        %4638 = vrot.lane.b32.xlu0 %v1152, 32
        %v4639 = vpop.permute.xlu0 %4638
        %4640 = vrot.lane.b32.xlu0 %v1153, 32
        %v4641 = vpop.permute.xlu0 %4640
        %v4643 = vsel %vm1230, %v4611, 0
        %v4646 = vsel %vm1230, %v4613, 0
        %v4649 = vsel %vm1230, %v4615, 0
        %v4652 = vsel %vm1230, %v4617, 0
        %v4655 = vsel %vm1230, %v4619, 0
        %v4658 = vsel %vm1230, %v4621, 0
        %v4661 = vsel %vm1230, %v4623, 0
        %v4664 = vsel %vm1230, %v4625, 0
        %v4667 = vsel %vm1230, %v4627, 0
        %v4670 = vsel %vm1230, %v4629, 0
        %v4673 = vsel %vm1230, %v4631, 0
        %v4676 = vsel %vm1230, %v4633, 0
        %v4679 = vsel %vm1230, %v4635, 0
        %v4682 = vsel %vm1230, %v4637, 0
        %v4685 = vsel %vm1230, %v4639, 0
        %v4688 = vsel %vm1230, %v4641, 0
        %4690 = vmatprep.subr.bf16.mxu0 0
        %4691 = vmatpush1.bf16.xpose.msra.mxu0 %v4667
        %4692 = vmatprep.subr.bf16.mxu0 0
        %4693 = vmatpush1.bf16.xpose.msra.mxu0 %v4670
        %4694 = vmatprep.subr.bf16.mxu0 0
        %4695 = vmatpush1.bf16.xpose.msra.mxu0 %v4673
        %4696 = vmatprep.subr.bf16.mxu0 0
        %4697 = vmatpush1.bf16.xpose.msra.mxu0 %v4676
        %4698 = vmatprep.subr.bf16.mxu0 0
        %4699 = vmatpush1.bf16.xpose.msra.mxu0 %v4679
        %4700 = vmatprep.subr.bf16.mxu0 0
        %4701 = vmatpush1.bf16.xpose.msra.mxu0 %v4682
        %4702 = vmatprep.subr.bf16.mxu0 0
        %4703 = vmatpush1.bf16.xpose.msra.mxu0 %v4685
        %4704 = vmatprep.subr.bf16.mxu0 0
        %4705 = vmatpush1.bf16.xpose.msra.mxu0 %v4688
        %4706 = vmatprep.subr.bf16.mxu0 0
        %4707 = vmatpush1.bf16.xpose.msra.mxu0 0
        %4708 = vmatprep.subr.bf16.mxu0 0
        %4709 = vmatpush1.bf16.xpose.msra.mxu0 0
        %4710 = vmatprep.subr.bf16.mxu0 0
        %4711 = vmatpush1.bf16.xpose.msra.mxu0 0
        %4712 = vmatprep.subr.bf16.mxu0 0
        %4713 = vmatpush1.bf16.xpose.msra.mxu0 0
        %4714 = vmatprep.subr.bf16.mxu0 0
        %4715 = vmatpush1.bf16.xpose.msra.mxu0 0
        %4716 = vmatprep.subr.bf16.mxu0 0
        %4717 = vmatpush1.bf16.xpose.msra.mxu0 0
        %4718 = vmatprep.subr.bf16.mxu0 0
        %4719 = vmatpush1.bf16.xpose.msra.mxu0 0
        %4720 = vmatprep.subr.bf16.mxu0 0
        %4721 = vmatpush1.bf16.xpose.msra.mxu0 0
        %4722 = vmatprep.mubr.bf16.mxu0 0
        %4723 = vmatmul.mubr.bf16.gmra.mrb[0].mxu0 %v4643
        %v4724 = vpop.f32.mrb[0].mxu0
        %v4725 = vadd.f32 0.0, %v4724
        %v4726 = vpop.f32.mrb[0].mxu0
        %v4727 = vpop.f32.mrb[0].mxu0
        %v4728 = vadd.f32 0.0, %v4727
        %v4729 = vpop.f32.mrb[0].mxu0
        %4730 = vmatprep.mubr.bf16.mxu0 0
        %4731 = vmatmul.mubr.bf16.gmra.mrb[0].mxu0 %v4646
        %v4732 = vpop.f32.mrb[0].mxu0
        %v4733 = vadd.f32 0.0, %v4732
        %v4734 = vpop.f32.mrb[0].mxu0
        %v4735 = vpop.f32.mrb[0].mxu0
        %v4736 = vadd.f32 0.0, %v4735
        %v4737 = vpop.f32.mrb[0].mxu0
        %4738 = vmatprep.mubr.bf16.mxu0 0
        %4739 = vmatmul.mubr.bf16.gmra.mrb[0].mxu0 %v4649
        %v4740 = vpop.f32.mrb[0].mxu0
        %v4741 = vadd.f32 0.0, %v4740
        %v4742 = vpop.f32.mrb[0].mxu0
        %v4743 = vpop.f32.mrb[0].mxu0
        %v4744 = vadd.f32 0.0, %v4743
        %v4745 = vpop.f32.mrb[0].mxu0
        %4746 = vmatprep.mubr.bf16.mxu0 0
        %4747 = vmatmul.mubr.bf16.gmra.mrb[0].mxu0 %v4652
        %v4748 = vpop.f32.mrb[0].mxu0
        %v4749 = vadd.f32 0.0, %v4748
        %v4750 = vpop.f32.mrb[0].mxu0
        %v4751 = vpop.f32.mrb[0].mxu0
        %v4752 = vadd.f32 0.0, %v4751
        %v4753 = vpop.f32.mrb[0].mxu0
        %4754 = vmatprep.mubr.bf16.mxu0 0
        %4755 = vmatmul.mubr.bf16.gmra.mrb[0].mxu0 %v4655
        %v4756 = vpop.f32.mrb[0].mxu0
        %v4757 = vadd.f32 0.0, %v4756
        %v4758 = vpop.f32.mrb[0].mxu0
        %v4759 = vpop.f32.mrb[0].mxu0
        %v4760 = vadd.f32 0.0, %v4759
        %v4761 = vpop.f32.mrb[0].mxu0
        %4762 = vmatprep.mubr.bf16.mxu0 0
        %4763 = vmatmul.mubr.bf16.gmra.mrb[0].mxu0 %v4658
        %v4764 = vpop.f32.mrb[0].mxu0
        %v4765 = vadd.f32 0.0, %v4764
        %v4766 = vpop.f32.mrb[0].mxu0
        %v4767 = vpop.f32.mrb[0].mxu0
        %v4768 = vadd.f32 0.0, %v4767
        %v4769 = vpop.f32.mrb[0].mxu0
        %4770 = vmatprep.mubr.bf16.mxu0 0
        %4771 = vmatmul.mubr.bf16.gmra.mrb[0].mxu0 %v4661
        %v4772 = vpop.f32.mrb[0].mxu0
        %v4773 = vadd.f32 0.0, %v4772
        %v4774 = vpop.f32.mrb[0].mxu0
        %v4775 = vpop.f32.mrb[0].mxu0
        %v4776 = vadd.f32 0.0, %v4775
        %v4777 = vpop.f32.mrb[0].mxu0
        %4778 = vmatprep.mubr.bf16.mxu0 0
        %4779 = vmatmul.mubr.bf16.gmra.mrb[0].mxu0 %v4664
        %v4780 = vpop.f32.mrb[0].mxu0
        %v4781 = vadd.f32 0.0, %v4780
        %v4782 = vpop.f32.mrb[0].mxu0
        %v4783 = vpop.f32.mrb[0].mxu0
        %v4784 = vadd.f32 0.0, %v4783
        %v4785 = vpop.f32.mrb[0].mxu0
        %4786 = vdwg.mxu0
        %4787 = vrot.lane.b32.xlu0 %v1102, 32
        %v4788 = vpop.permute.xlu0 %4787
        %4789 = vrot.lane.b32.xlu0 %v1103, 32
        %v4790 = vpop.permute.xlu0 %4789
        %4791 = vrot.lane.b32.xlu0 %v1104, 32
        %v4792 = vpop.permute.xlu0 %4791
        %4793 = vrot.lane.b32.xlu0 %v1105, 32
        %v4794 = vpop.permute.xlu0 %4793
        %4795 = vrot.lane.b32.xlu0 %v1106, 32
        %v4796 = vpop.permute.xlu0 %4795
        %4797 = vrot.lane.b32.xlu0 %v1107, 32
        %v4798 = vpop.permute.xlu0 %4797
        %4799 = vrot.lane.b32.xlu0 %v1108, 32
        %v4800 = vpop.permute.xlu0 %4799
        %4801 = vrot.lane.b32.xlu0 %v1109, 32
        %v4802 = vpop.permute.xlu0 %4801
        %4803 = vrot.lane.b32.xlu0 %v1154, 32
        %v4804 = vpop.permute.xlu0 %4803
        %4805 = vrot.lane.b32.xlu0 %v1155, 32
        %v4806 = vpop.permute.xlu0 %4805
        %4807 = vrot.lane.b32.xlu0 %v1156, 32
        %v4808 = vpop.permute.xlu0 %4807
        %4809 = vrot.lane.b32.xlu0 %v1157, 32
        %v4810 = vpop.permute.xlu0 %4809
        %4811 = vrot.lane.b32.xlu0 %v1158, 32
        %v4812 = vpop.permute.xlu0 %4811
        %4813 = vrot.lane.b32.xlu0 %v1159, 32
        %v4814 = vpop.permute.xlu0 %4813
        %4815 = vrot.lane.b32.xlu0 %v1160, 32
        %v4816 = vpop.permute.xlu0 %4815
        %4817 = vrot.lane.b32.xlu0 %v1161, 32
        %v4818 = vpop.permute.xlu0 %4817
        %v4820 = vsel %vm1230, %v4788, 0
        %v4823 = vsel %vm1230, %v4790, 0
        %v4826 = vsel %vm1230, %v4792, 0
        %v4829 = vsel %vm1230, %v4794, 0
        %v4832 = vsel %vm1230, %v4796, 0
        %v4835 = vsel %vm1230, %v4798, 0
        %v4838 = vsel %vm1230, %v4800, 0
        %v4841 = vsel %vm1230, %v4802, 0
        %v4844 = vsel %vm1230, %v4804, 0
        %v4847 = vsel %vm1230, %v4806, 0
        %v4850 = vsel %vm1230, %v4808, 0
        %v4853 = vsel %vm1230, %v4810, 0
        %v4856 = vsel %vm1230, %v4812, 0
        %v4859 = vsel %vm1230, %v4814, 0
        %v4862 = vsel %vm1230, %v4816, 0
        %v4865 = vsel %vm1230, %v4818, 0
        %4867 = vmatprep.subr.bf16.mxu0 0
        %4868 = vmatpush1.bf16.xpose.msra.mxu0 %v4844
        %4869 = vmatprep.subr.bf16.mxu0 0
        %4870 = vmatpush1.bf16.xpose.msra.mxu0 %v4847
        %4871 = vmatprep.subr.bf16.mxu0 0
        %4872 = vmatpush1.bf16.xpose.msra.mxu0 %v4850
        %4873 = vmatprep.subr.bf16.mxu0 0
        %4874 = vmatpush1.bf16.xpose.msra.mxu0 %v4853
        %4875 = vmatprep.subr.bf16.mxu0 0
        %4876 = vmatpush1.bf16.xpose.msra.mxu0 %v4856
        %4877 = vmatprep.subr.bf16.mxu0 0
        %4878 = vmatpush1.bf16.xpose.msra.mxu0 %v4859
        %4879 = vmatprep.subr.bf16.mxu0 0
        %4880 = vmatpush1.bf16.xpose.msra.mxu0 %v4862
        %4881 = vmatprep.subr.bf16.mxu0 0
        %4882 = vmatpush1.bf16.xpose.msra.mxu0 %v4865
        %4883 = vmatprep.subr.bf16.mxu0 0
        %4884 = vmatpush1.bf16.xpose.msra.mxu0 0
        %4885 = vmatprep.subr.bf16.mxu0 0
        %4886 = vmatpush1.bf16.xpose.msra.mxu0 0
        %4887 = vmatprep.subr.bf16.mxu0 0
        %4888 = vmatpush1.bf16.xpose.msra.mxu0 0
        %4889 = vmatprep.subr.bf16.mxu0 0
        %4890 = vmatpush1.bf16.xpose.msra.mxu0 0
        %4891 = vmatprep.subr.bf16.mxu0 0
        %4892 = vmatpush1.bf16.xpose.msra.mxu0 0
        %4893 = vmatprep.subr.bf16.mxu0 0
        %4894 = vmatpush1.bf16.xpose.msra.mxu0 0
        %4895 = vmatprep.subr.bf16.mxu0 0
        %4896 = vmatpush1.bf16.xpose.msra.mxu0 0
        %4897 = vmatprep.subr.bf16.mxu0 0
        %4898 = vmatpush1.bf16.xpose.msra.mxu0 0
        %4899 = vmatprep.mubr.bf16.mxu0 0
        %4900 = vmatmul.mubr.bf16.gmra.mrb[0].mxu0 %v4820
        %v4901 = vpop.f32.mrb[0].mxu0
        %v4902 = vadd.f32 0.0, %v4901
        %v4903 = vpop.f32.mrb[0].mxu0
        %v4904 = vpop.f32.mrb[0].mxu0
        %v4905 = vadd.f32 0.0, %v4904
        %v4906 = vpop.f32.mrb[0].mxu0
        %4907 = vmatprep.mubr.bf16.mxu0 0
        %4908 = vmatmul.mubr.bf16.gmra.mrb[0].mxu0 %v4823
        %v4909 = vpop.f32.mrb[0].mxu0
        %v4910 = vadd.f32 0.0, %v4909
        %v4911 = vpop.f32.mrb[0].mxu0
        %v4912 = vpop.f32.mrb[0].mxu0
        %v4913 = vadd.f32 0.0, %v4912
        %v4914 = vpop.f32.mrb[0].mxu0
        %4915 = vmatprep.mubr.bf16.mxu0 0
        %4916 = vmatmul.mubr.bf16.gmra.mrb[0].mxu0 %v4826
        %v4917 = vpop.f32.mrb[0].mxu0
        %v4918 = vadd.f32 0.0, %v4917
        %v4919 = vpop.f32.mrb[0].mxu0
        %v4920 = vpop.f32.mrb[0].mxu0
        %v4921 = vadd.f32 0.0, %v4920
        %v4922 = vpop.f32.mrb[0].mxu0
        %4923 = vmatprep.mubr.bf16.mxu0 0
        %4924 = vmatmul.mubr.bf16.gmra.mrb[0].mxu0 %v4829
        %v4925 = vpop.f32.mrb[0].mxu0
        %v4926 = vadd.f32 0.0, %v4925
        %v4927 = vpop.f32.mrb[0].mxu0
        %v4928 = vpop.f32.mrb[0].mxu0
        %v4929 = vadd.f32 0.0, %v4928
        %v4930 = vpop.f32.mrb[0].mxu0
        %4931 = vmatprep.mubr.bf16.mxu0 0
        %4932 = vmatmul.mubr.bf16.gmra.mrb[0].mxu0 %v4832
        %v4933 = vpop.f32.mrb[0].mxu0
        %v4934 = vadd.f32 0.0, %v4933
        %v4935 = vpop.f32.mrb[0].mxu0
        %v4936 = vpop.f32.mrb[0].mxu0
        %v4937 = vadd.f32 0.0, %v4936
        %v4938 = vpop.f32.mrb[0].mxu0
        %4939 = vmatprep.mubr.bf16.mxu0 0
        %4940 = vmatmul.mubr.bf16.gmra.mrb[0].mxu0 %v4835
        %v4941 = vpop.f32.mrb[0].mxu0
        %v4942 = vadd.f32 0.0, %v4941
        %v4943 = vpop.f32.mrb[0].mxu0
        %v4944 = vpop.f32.mrb[0].mxu0
        %v4945 = vadd.f32 0.0, %v4944
        %v4946 = vpop.f32.mrb[0].mxu0
        %4947 = vmatprep.mubr.bf16.mxu0 0
        %4948 = vmatmul.mubr.bf16.gmra.mrb[0].mxu0 %v4838
        %v4949 = vpop.f32.mrb[0].mxu0
        %v4950 = vadd.f32 0.0, %v4949
        %v4951 = vpop.f32.mrb[0].mxu0
        %v4952 = vpop.f32.mrb[0].mxu0
        %v4953 = vadd.f32 0.0, %v4952
        %v4954 = vpop.f32.mrb[0].mxu0
        %4955 = vmatprep.mubr.bf16.mxu0 0
        %4956 = vmatmul.mubr.bf16.gmra.mrb[0].mxu0 %v4841
        %v4957 = vpop.f32.mrb[0].mxu0
        %v4958 = vadd.f32 0.0, %v4957
        %v4959 = vpop.f32.mrb[0].mxu0
        %v4960 = vpop.f32.mrb[0].mxu0
        %v4961 = vadd.f32 0.0, %v4960
        %v4962 = vpop.f32.mrb[0].mxu0
        %4963 = vdwg.mxu0
        %4964 = vmax.xlane.f32.xlu0 %v4725
        %v4965 = vpop.xlane.xlu0 %4964
        %4966 = vmax.xlane.f32.xlu0 %v4728
        %v4967 = vpop.xlane.xlu0 %4966
        %4968 = vmax.xlane.f32.xlu0 %v4733
        %v4969 = vpop.xlane.xlu0 %4968
        %4970 = vmax.xlane.f32.xlu0 %v4736
        %v4971 = vpop.xlane.xlu0 %4970
        %4972 = vmax.xlane.f32.xlu0 %v4741
        %v4973 = vpop.xlane.xlu0 %4972
        %4974 = vmax.xlane.f32.xlu0 %v4744
        %v4975 = vpop.xlane.xlu0 %4974
        %4976 = vmax.xlane.f32.xlu0 %v4749
        %v4977 = vpop.xlane.xlu0 %4976
        %4978 = vmax.xlane.f32.xlu0 %v4752
        %v4979 = vpop.xlane.xlu0 %4978
        %4980 = vmax.xlane.f32.xlu0 %v4757
        %v4981 = vpop.xlane.xlu0 %4980
        %4982 = vmax.xlane.f32.xlu0 %v4760
        %v4983 = vpop.xlane.xlu0 %4982
        %4984 = vmax.xlane.f32.xlu0 %v4765
        %v4985 = vpop.xlane.xlu0 %4984
        %4986 = vmax.xlane.f32.xlu0 %v4768
        %v4987 = vpop.xlane.xlu0 %4986
        %4988 = vmax.xlane.f32.xlu0 %v4773
        %v4989 = vpop.xlane.xlu0 %4988
        %4990 = vmax.xlane.f32.xlu0 %v4776
        %v4991 = vpop.xlane.xlu0 %4990
        %4992 = vmax.xlane.f32.xlu0 %v4781
        %v4993 = vpop.xlane.xlu0 %4992
        %4994 = vmax.xlane.f32.xlu0 %v4784
        %v4995 = vpop.xlane.xlu0 %4994
        %4996 = vmax.xlane.f32.xlu0 %v4902
        %v4997 = vpop.xlane.xlu0 %4996
        %4998 = vmax.xlane.f32.xlu0 %v4905
        %v4999 = vpop.xlane.xlu0 %4998
        %5000 = vmax.xlane.f32.xlu0 %v4910
        %v5001 = vpop.xlane.xlu0 %5000
        %5002 = vmax.xlane.f32.xlu0 %v4913
        %v5003 = vpop.xlane.xlu0 %5002
        %5004 = vmax.xlane.f32.xlu0 %v4918
        %v5005 = vpop.xlane.xlu0 %5004
        %5006 = vmax.xlane.f32.xlu0 %v4921
        %v5007 = vpop.xlane.xlu0 %5006
        %5008 = vmax.xlane.f32.xlu0 %v4926
        %v5009 = vpop.xlane.xlu0 %5008
        %5010 = vmax.xlane.f32.xlu0 %v4929
        %v5011 = vpop.xlane.xlu0 %5010
        %5012 = vmax.xlane.f32.xlu0 %v4934
        %v5013 = vpop.xlane.xlu0 %5012
        %5014 = vmax.xlane.f32.xlu0 %v4937
        %v5015 = vpop.xlane.xlu0 %5014
        %5016 = vmax.xlane.f32.xlu0 %v4942
        %v5017 = vpop.xlane.xlu0 %5016
        %5018 = vmax.xlane.f32.xlu0 %v4945
        %v5019 = vpop.xlane.xlu0 %5018
        %5020 = vmax.xlane.f32.xlu0 %v4950
        %v5021 = vpop.xlane.xlu0 %5020
        %5022 = vmax.xlane.f32.xlu0 %v4953
        %v5023 = vpop.xlane.xlu0 %5022
        %5024 = vmax.xlane.f32.xlu0 %v4958
        %v5025 = vpop.xlane.xlu0 %5024
        %5026 = vmax.xlane.f32.xlu0 %v4961
        %v5027 = vpop.xlane.xlu0 %5026
        %v5028 = vsub.f32 %v4725, %v4965
        %v5029 = vsub.f32 %v4728, %v4967
        %v5030 = vsub.f32 %v4733, %v4969
        %v5031 = vsub.f32 %v4736, %v4971
        %v5032 = vsub.f32 %v4741, %v4973
        %v5033 = vsub.f32 %v4744, %v4975
        %v5034 = vsub.f32 %v4749, %v4977
        %v5035 = vsub.f32 %v4752, %v4979
        %v5036 = vsub.f32 %v4757, %v4981
        %v5037 = vsub.f32 %v4760, %v4983
        %v5038 = vsub.f32 %v4765, %v4985
        %v5039 = vsub.f32 %v4768, %v4987
        %v5040 = vsub.f32 %v4773, %v4989
        %v5041 = vsub.f32 %v4776, %v4991
        %v5042 = vsub.f32 %v4781, %v4993
        %v5043 = vsub.f32 %v4784, %v4995
        %v5044 = vsub.f32 %v4902, %v4997
        %v5045 = vsub.f32 %v4905, %v4999
        %v5046 = vsub.f32 %v4910, %v5001
        %v5047 = vsub.f32 %v4913, %v5003
        %v5048 = vsub.f32 %v4918, %v5005
        %v5049 = vsub.f32 %v4921, %v5007
        %v5050 = vsub.f32 %v4926, %v5009
        %v5051 = vsub.f32 %v4929, %v5011
        %v5052 = vsub.f32 %v4934, %v5013
        %v5053 = vsub.f32 %v4937, %v5015
        %v5054 = vsub.f32 %v4942, %v5017
        %v5055 = vsub.f32 %v4945, %v5019
        %v5056 = vsub.f32 %v4950, %v5021
        %v5057 = vsub.f32 %v4953, %v5023
        %v5058 = vsub.f32 %v4958, %v5025
        %v5059 = vsub.f32 %v4961, %v5027
        %v5060 = vmul.f32 %v5028, 1.442695
        %v5061 = vpow.pop %v5060
        %v5062 = vmul.f32 %v5029, 1.442695
        %v5063 = vpow.pop %v5062
        %v5064 = vmul.f32 %v5030, 1.442695
        %v5065 = vpow.pop %v5064
        %v5066 = vmul.f32 %v5031, 1.442695
        %v5067 = vpow.pop %v5066
        %v5068 = vmul.f32 %v5032, 1.442695
        %v5069 = vpow.pop %v5068
        %v5070 = vmul.f32 %v5033, 1.442695
        %v5071 = vpow.pop %v5070
        %v5072 = vmul.f32 %v5034, 1.442695
        %v5073 = vpow.pop %v5072
        %v5074 = vmul.f32 %v5035, 1.442695
        %v5075 = vpow.pop %v5074
        %v5076 = vmul.f32 %v5036, 1.442695
        %v5077 = vpow.pop %v5076
        %v5078 = vmul.f32 %v5037, 1.442695
        %v5079 = vpow.pop %v5078
        %v5080 = vmul.f32 %v5038, 1.442695
        %v5081 = vpow.pop %v5080
        %v5082 = vmul.f32 %v5039, 1.442695
        %v5083 = vpow.pop %v5082
        %v5084 = vmul.f32 %v5040, 1.442695
        %v5085 = vpow.pop %v5084
        %v5086 = vmul.f32 %v5041, 1.442695
        %v5087 = vpow.pop %v5086
        %v5088 = vmul.f32 %v5042, 1.442695
        %v5089 = vpow.pop %v5088
        %v5090 = vmul.f32 %v5043, 1.442695
        %v5091 = vpow.pop %v5090
        %v5092 = vmul.f32 %v5044, 1.442695
        %v5093 = vpow.pop %v5092
        %v5094 = vmul.f32 %v5045, 1.442695
        %v5095 = vpow.pop %v5094
        %v5096 = vmul.f32 %v5046, 1.442695
        %v5097 = vpow.pop %v5096
        %v5098 = vmul.f32 %v5047, 1.442695
        %v5099 = vpow.pop %v5098
        %v5100 = vmul.f32 %v5048, 1.442695
        %v5101 = vpow.pop %v5100
        %v5102 = vmul.f32 %v5049, 1.442695
        %v5103 = vpow.pop %v5102
        %v5104 = vmul.f32 %v5050, 1.442695
        %v5105 = vpow.pop %v5104
        %v5106 = vmul.f32 %v5051, 1.442695
        %v5107 = vpow.pop %v5106
        %v5108 = vmul.f32 %v5052, 1.442695
        %v5109 = vpow.pop %v5108
        %v5110 = vmul.f32 %v5053, 1.442695
        %v5111 = vpow.pop %v5110
        %v5112 = vmul.f32 %v5054, 1.442695
        %v5113 = vpow.pop %v5112
        %v5114 = vmul.f32 %v5055, 1.442695
        %v5115 = vpow.pop %v5114
        %v5116 = vmul.f32 %v5056, 1.442695
        %v5117 = vpow.pop %v5116
        %v5118 = vmul.f32 %v5057, 1.442695
        %v5119 = vpow.pop %v5118
        %v5120 = vmul.f32 %v5058, 1.442695
        %v5121 = vpow.pop %v5120
        %v5122 = vmul.f32 %v5059, 1.442695
        %v5123 = vpow.pop %v5122
        %5124 = vadd.xlane.f32.xlu0 %v5061
        %v5125 = vpop.xlane.xlu0 %5124
        %5126 = vadd.xlane.f32.xlu0 %v5063
        %v5127 = vpop.xlane.xlu0 %5126
        %5128 = vadd.xlane.f32.xlu0 %v5065
        %v5129 = vpop.xlane.xlu0 %5128
        %5130 = vadd.xlane.f32.xlu0 %v5067
        %v5131 = vpop.xlane.xlu0 %5130
        %5132 = vadd.xlane.f32.xlu0 %v5069
        %v5133 = vpop.xlane.xlu0 %5132
        %5134 = vadd.xlane.f32.xlu0 %v5071
        %v5135 = vpop.xlane.xlu0 %5134
        %5136 = vadd.xlane.f32.xlu0 %v5073
        %v5137 = vpop.xlane.xlu0 %5136
        %5138 = vadd.xlane.f32.xlu0 %v5075
        %v5139 = vpop.xlane.xlu0 %5138
        %5140 = vadd.xlane.f32.xlu0 %v5077
        %v5141 = vpop.xlane.xlu0 %5140
        %5142 = vadd.xlane.f32.xlu0 %v5079
        %v5143 = vpop.xlane.xlu0 %5142
        %5144 = vadd.xlane.f32.xlu0 %v5081
        %v5145 = vpop.xlane.xlu0 %5144
        %5146 = vadd.xlane.f32.xlu0 %v5083
        %v5147 = vpop.xlane.xlu0 %5146
        %5148 = vadd.xlane.f32.xlu0 %v5085
        %v5149 = vpop.xlane.xlu0 %5148
        %5150 = vadd.xlane.f32.xlu0 %v5087
        %v5151 = vpop.xlane.xlu0 %5150
        %5152 = vadd.xlane.f32.xlu0 %v5089
        %v5153 = vpop.xlane.xlu0 %5152
        %5154 = vadd.xlane.f32.xlu0 %v5091
        %v5155 = vpop.xlane.xlu0 %5154
        %5156 = vadd.xlane.f32.xlu0 %v5093
        %v5157 = vpop.xlane.xlu0 %5156
        %5158 = vadd.xlane.f32.xlu0 %v5095
        %v5159 = vpop.xlane.xlu0 %5158
        %5160 = vadd.xlane.f32.xlu0 %v5097
        %v5161 = vpop.xlane.xlu0 %5160
        %5162 = vadd.xlane.f32.xlu0 %v5099
        %v5163 = vpop.xlane.xlu0 %5162
        %5164 = vadd.xlane.f32.xlu0 %v5101
        %v5165 = vpop.xlane.xlu0 %5164
        %5166 = vadd.xlane.f32.xlu0 %v5103
        %v5167 = vpop.xlane.xlu0 %5166
        %5168 = vadd.xlane.f32.xlu0 %v5105
        %v5169 = vpop.xlane.xlu0 %5168
        %5170 = vadd.xlane.f32.xlu0 %v5107
        %v5171 = vpop.xlane.xlu0 %5170
        %5172 = vadd.xlane.f32.xlu0 %v5109
        %v5173 = vpop.xlane.xlu0 %5172
        %5174 = vadd.xlane.f32.xlu0 %v5111
        %v5175 = vpop.xlane.xlu0 %5174
        %5176 = vadd.xlane.f32.xlu0 %v5113
        %v5177 = vpop.xlane.xlu0 %5176
        %5178 = vadd.xlane.f32.xlu0 %v5115
        %v5179 = vpop.xlane.xlu0 %5178
        %5180 = vadd.xlane.f32.xlu0 %v5117
        %v5181 = vpop.xlane.xlu0 %5180
        %5182 = vadd.xlane.f32.xlu0 %v5119
        %v5183 = vpop.xlane.xlu0 %5182
        %5184 = vadd.xlane.f32.xlu0 %v5121
        %v5185 = vpop.xlane.xlu0 %5184
        %5186 = vadd.xlane.f32.xlu0 %v5123
        %v5187 = vpop.xlane.xlu0 %5186
        %v5188 = vrcp.pop %v5125
        %v5189 = vrcp.pop %v5127
        %v5190 = vrcp.pop %v5129
        %v5191 = vrcp.pop %v5131
        %v5192 = vrcp.pop %v5133
        %v5193 = vrcp.pop %v5135
        %v5194 = vrcp.pop %v5137
        %v5195 = vrcp.pop %v5139
        %v5196 = vrcp.pop %v5141
        %v5197 = vrcp.pop %v5143
        %v5198 = vrcp.pop %v5145
        %v5199 = vrcp.pop %v5147
        %v5200 = vrcp.pop %v5149
        %v5201 = vrcp.pop %v5151
        %v5202 = vrcp.pop %v5153
        %v5203 = vrcp.pop %v5155
        %v5204 = vrcp.pop %v5157
        %v5205 = vrcp.pop %v5159
        %v5206 = vrcp.pop %v5161
        %v5207 = vrcp.pop %v5163
        %v5208 = vrcp.pop %v5165
        %v5209 = vrcp.pop %v5167
        %v5210 = vrcp.pop %v5169
        %v5211 = vrcp.pop %v5171
        %v5212 = vrcp.pop %v5173
        %v5213 = vrcp.pop %v5175
        %v5214 = vrcp.pop %v5177
        %v5215 = vrcp.pop %v5179
        %v5216 = vrcp.pop %v5181
        %v5217 = vrcp.pop %v5183
        %v5218 = vrcp.pop %v5185
        %v5219 = vrcp.pop %v5187
        %v5220 = vmul.f32 %v5061, %v5188
        %v5221 = vmul.f32 %v5063, %v5189
        %v5222 = vmul.f32 %v5065, %v5190
        %v5223 = vmul.f32 %v5067, %v5191
        %v5224 = vmul.f32 %v5069, %v5192
        %v5225 = vmul.f32 %v5071, %v5193
        %v5226 = vmul.f32 %v5073, %v5194
        %v5227 = vmul.f32 %v5075, %v5195
        %v5228 = vmul.f32 %v5077, %v5196
        %v5229 = vmul.f32 %v5079, %v5197
        %v5230 = vmul.f32 %v5081, %v5198
        %v5231 = vmul.f32 %v5083, %v5199
        %v5232 = vmul.f32 %v5085, %v5200
        %v5233 = vmul.f32 %v5087, %v5201
        %v5234 = vmul.f32 %v5089, %v5202
        %v5235 = vmul.f32 %v5091, %v5203
        %v5236 = vmul.f32 %v5093, %v5204
        %v5237 = vmul.f32 %v5095, %v5205
        %v5238 = vmul.f32 %v5097, %v5206
        %v5239 = vmul.f32 %v5099, %v5207
        %v5240 = vmul.f32 %v5101, %v5208
        %v5241 = vmul.f32 %v5103, %v5209
        %v5242 = vmul.f32 %v5105, %v5210
        %v5243 = vmul.f32 %v5107, %v5211
        %v5244 = vmul.f32 %v5109, %v5212
        %v5245 = vmul.f32 %v5111, %v5213
        %v5246 = vmul.f32 %v5113, %v5214
        %v5247 = vmul.f32 %v5115, %v5215
        %v5248 = vmul.f32 %v5117, %v5216
        %v5249 = vmul.f32 %v5119, %v5217
        %v5250 = vmul.f32 %v5121, %v5218
        %v5251 = vmul.f32 %v5123, %v5219
        %v5252 = vpack.c.bf16 %v5221, %v5220
        %v5253 = vpack.c.bf16 %v5223, %v5222
        %v5254 = vpack.c.bf16 %v5225, %v5224
        %v5255 = vpack.c.bf16 %v5227, %v5226
        %v5256 = vpack.c.bf16 %v5229, %v5228
        %v5257 = vpack.c.bf16 %v5231, %v5230
        %v5258 = vpack.c.bf16 %v5233, %v5232
        %v5259 = vpack.c.bf16 %v5235, %v5234
        %v5260 = vpack.c.bf16 %v5237, %v5236
        %v5261 = vpack.c.bf16 %v5239, %v5238
        %v5262 = vpack.c.bf16 %v5241, %v5240
        %v5263 = vpack.c.bf16 %v5243, %v5242
        %v5264 = vpack.c.bf16 %v5245, %v5244
        %v5265 = vpack.c.bf16 %v5247, %v5246
        %v5266 = vpack.c.bf16 %v5249, %v5248
        %v5267 = vpack.c.bf16 %v5251, %v5250
        %5268 = vrot.lane.b32.xlu0 %v1198, 32
        %v5269 = vpop.permute.xlu0 %5268
        %5270 = vrot.lane.b32.xlu0 %v1199, 32
        %v5271 = vpop.permute.xlu0 %5270
        %5272 = vrot.lane.b32.xlu0 %v1200, 32
        %v5273 = vpop.permute.xlu0 %5272
        %5274 = vrot.lane.b32.xlu0 %v1201, 32
        %v5275 = vpop.permute.xlu0 %5274
        %5276 = vrot.lane.b32.xlu0 %v1202, 32
        %v5277 = vpop.permute.xlu0 %5276
        %5278 = vrot.lane.b32.xlu0 %v1203, 32
        %v5279 = vpop.permute.xlu0 %5278
        %5280 = vrot.lane.b32.xlu0 %v1204, 32
        %v5281 = vpop.permute.xlu0 %5280
        %5282 = vrot.lane.b32.xlu0 %v1205, 32
        %v5283 = vpop.permute.xlu0 %5282
        %5292 = vmatprep.subr.bf16.mxu0 0
        %5293 = vmatpush1.bf16.msra.mxu0 %v5269
        %5294 = vmatprep.subr.bf16.mxu0 0
        %5295 = vmatpush1.bf16.msra.mxu0 %v5271
        %5296 = vmatprep.subr.bf16.mxu0 0
        %5297 = vmatpush1.bf16.msra.mxu0 %v5273
        %5298 = vmatprep.subr.bf16.mxu0 0
        %5299 = vmatpush1.bf16.msra.mxu0 %v5275
        %5300 = vmatprep.subr.bf16.mxu0 0
        %5301 = vmatpush1.bf16.msra.mxu0 %v5277
        %5302 = vmatprep.subr.bf16.mxu0 0
        %5303 = vmatpush1.bf16.msra.mxu0 %v5279
        %5304 = vmatprep.subr.bf16.mxu0 0
        %5305 = vmatpush1.bf16.msra.mxu0 %v5281
        %5306 = vmatprep.subr.bf16.mxu0 0
        %5307 = vmatpush1.bf16.msra.mxu0 %v5283
        %5308 = vmatprep.subr.bf16.mxu0 0
        %5309 = vmatpush1.bf16.msra.mxu0 0
        %5310 = vmatprep.subr.bf16.mxu0 0
        %5311 = vmatpush1.bf16.msra.mxu0 0
        %5312 = vmatprep.subr.bf16.mxu0 0
        %5313 = vmatpush1.bf16.msra.mxu0 0
        %5314 = vmatprep.subr.bf16.mxu0 0
        %5315 = vmatpush1.bf16.msra.mxu0 0
        %5316 = vmatprep.subr.bf16.mxu0 0
        %5317 = vmatpush1.bf16.msra.mxu0 0
        %5318 = vmatprep.subr.bf16.mxu0 0
        %5319 = vmatpush1.bf16.msra.mxu0 0
        %5320 = vmatprep.subr.bf16.mxu0 0
        %5321 = vmatpush1.bf16.msra.mxu0 0
        %5322 = vmatprep.subr.bf16.mxu0 0
        %5323 = vmatpush1.bf16.msra.mxu0 0
        %5324 = vmatprep.mubr.bf16.mxu0 0
        %5325 = vmatmul.mubr.bf16.gmra.mrb[0].mxu0 %v5252
        %v5326 = vpop.f32.mrb[0].mxu0
        %v5327 = vadd.f32 0.0, %v5326
        %v5328 = vpop.f32.mrb[0].mxu0
        %v5329 = vpop.f32.mrb[0].mxu0
        %v5330 = vadd.f32 0.0, %v5329
        %v5331 = vpop.f32.mrb[0].mxu0
        %5332 = vmatprep.mubr.bf16.mxu0 0
        %5333 = vmatmul.mubr.bf16.gmra.mrb[0].mxu0 %v5253
        %v5334 = vpop.f32.mrb[0].mxu0
        %v5335 = vadd.f32 0.0, %v5334
        %v5336 = vpop.f32.mrb[0].mxu0
        %v5337 = vpop.f32.mrb[0].mxu0
        %v5338 = vadd.f32 0.0, %v5337
        %v5339 = vpop.f32.mrb[0].mxu0
        %5340 = vmatprep.mubr.bf16.mxu0 0
        %5341 = vmatmul.mubr.bf16.gmra.mrb[0].mxu0 %v5254
        %v5342 = vpop.f32.mrb[0].mxu0
        %v5343 = vadd.f32 0.0, %v5342
        %v5344 = vpop.f32.mrb[0].mxu0
        %v5345 = vpop.f32.mrb[0].mxu0
        %v5346 = vadd.f32 0.0, %v5345
        %v5347 = vpop.f32.mrb[0].mxu0
        %5348 = vmatprep.mubr.bf16.mxu0 0
        %5349 = vmatmul.mubr.bf16.gmra.mrb[0].mxu0 %v5255
        %v5350 = vpop.f32.mrb[0].mxu0
        %v5351 = vadd.f32 0.0, %v5350
        %v5352 = vpop.f32.mrb[0].mxu0
        %v5353 = vpop.f32.mrb[0].mxu0
        %v5354 = vadd.f32 0.0, %v5353
        %v5355 = vpop.f32.mrb[0].mxu0
        %5356 = vmatprep.mubr.bf16.mxu0 0
        %5357 = vmatmul.mubr.bf16.gmra.mrb[0].mxu0 %v5256
        %v5358 = vpop.f32.mrb[0].mxu0
        %v5359 = vadd.f32 0.0, %v5358
        %v5360 = vpop.f32.mrb[0].mxu0
        %v5361 = vpop.f32.mrb[0].mxu0
        %v5362 = vadd.f32 0.0, %v5361
        %v5363 = vpop.f32.mrb[0].mxu0
        %5364 = vmatprep.mubr.bf16.mxu0 0
        %5365 = vmatmul.mubr.bf16.gmra.mrb[0].mxu0 %v5257
        %v5366 = vpop.f32.mrb[0].mxu0
        %v5367 = vadd.f32 0.0, %v5366
        %v5368 = vpop.f32.mrb[0].mxu0
        %v5369 = vpop.f32.mrb[0].mxu0
        %v5370 = vadd.f32 0.0, %v5369
        %v5371 = vpop.f32.mrb[0].mxu0
        %5372 = vmatprep.mubr.bf16.mxu0 0
        %5373 = vmatmul.mubr.bf16.gmra.mrb[0].mxu0 %v5258
        %v5374 = vpop.f32.mrb[0].mxu0
        %v5375 = vadd.f32 0.0, %v5374
        %v5376 = vpop.f32.mrb[0].mxu0
        %v5377 = vpop.f32.mrb[0].mxu0
        %v5378 = vadd.f32 0.0, %v5377
        %v5379 = vpop.f32.mrb[0].mxu0
        %5380 = vmatprep.mubr.bf16.mxu0 0
        %5381 = vmatmul.mubr.bf16.gmra.mrb[0].mxu0 %v5259
        %v5382 = vpop.f32.mrb[0].mxu0
        %v5383 = vadd.f32 0.0, %v5382
        %v5384 = vpop.f32.mrb[0].mxu0
        %v5385 = vpop.f32.mrb[0].mxu0
        %v5386 = vadd.f32 0.0, %v5385
        %v5387 = vpop.f32.mrb[0].mxu0
        %5388 = vdwg.mxu0
        %5389 = vrot.lane.b32.xlu0 %v1206, 32
        %v5390 = vpop.permute.xlu0 %5389
        %5391 = vrot.lane.b32.xlu0 %v1207, 32
        %v5392 = vpop.permute.xlu0 %5391
        %5393 = vrot.lane.b32.xlu0 %v1208, 32
        %v5394 = vpop.permute.xlu0 %5393
        %5395 = vrot.lane.b32.xlu0 %v1209, 32
        %v5396 = vpop.permute.xlu0 %5395
        %5397 = vrot.lane.b32.xlu0 %v1210, 32
        %v5398 = vpop.permute.xlu0 %5397
        %5399 = vrot.lane.b32.xlu0 %v1211, 32
        %v5400 = vpop.permute.xlu0 %5399
        %5401 = vrot.lane.b32.xlu0 %v1212, 32
        %v5402 = vpop.permute.xlu0 %5401
        %5403 = vrot.lane.b32.xlu0 %v1213, 32
        %v5404 = vpop.permute.xlu0 %5403
        %5413 = vmatprep.subr.bf16.mxu0 0
        %5414 = vmatpush1.bf16.msra.mxu0 %v5390
        %5415 = vmatprep.subr.bf16.mxu0 0
        %5416 = vmatpush1.bf16.msra.mxu0 %v5392
        %5417 = vmatprep.subr.bf16.mxu0 0
        %5418 = vmatpush1.bf16.msra.mxu0 %v5394
        %5419 = vmatprep.subr.bf16.mxu0 0
        %5420 = vmatpush1.bf16.msra.mxu0 %v5396
        %5421 = vmatprep.subr.bf16.mxu0 0
        %5422 = vmatpush1.bf16.msra.mxu0 %v5398
        %5423 = vmatprep.subr.bf16.mxu0 0
        %5424 = vmatpush1.bf16.msra.mxu0 %v5400
        %5425 = vmatprep.subr.bf16.mxu0 0
        %5426 = vmatpush1.bf16.msra.mxu0 %v5402
        %5427 = vmatprep.subr.bf16.mxu0 0
        %5428 = vmatpush1.bf16.msra.mxu0 %v5404
        %5429 = vmatprep.subr.bf16.mxu0 0
        %5430 = vmatpush1.bf16.msra.mxu0 0
        %5431 = vmatprep.subr.bf16.mxu0 0
        %5432 = vmatpush1.bf16.msra.mxu0 0
        %5433 = vmatprep.subr.bf16.mxu0 0
        %5434 = vmatpush1.bf16.msra.mxu0 0
        %5435 = vmatprep.subr.bf16.mxu0 0
        %5436 = vmatpush1.bf16.msra.mxu0 0
        %5437 = vmatprep.subr.bf16.mxu0 0
        %5438 = vmatpush1.bf16.msra.mxu0 0
        %5439 = vmatprep.subr.bf16.mxu0 0
        %5440 = vmatpush1.bf16.msra.mxu0 0
        %5441 = vmatprep.subr.bf16.mxu0 0
        %5442 = vmatpush1.bf16.msra.mxu0 0
        %5443 = vmatprep.subr.bf16.mxu0 0
        %5444 = vmatpush1.bf16.msra.mxu0 0
        %5445 = vmatprep.mubr.bf16.mxu0 0
        %5446 = vmatmul.mubr.bf16.gmra.mrb[0].mxu0 %v5260
        %v5447 = vpop.f32.mrb[0].mxu0
        %v5448 = vadd.f32 0.0, %v5447
        %v5449 = vpop.f32.mrb[0].mxu0
        %v5450 = vpop.f32.mrb[0].mxu0
        %v5451 = vadd.f32 0.0, %v5450
        %v5452 = vpop.f32.mrb[0].mxu0
        %5453 = vmatprep.mubr.bf16.mxu0 0
        %5454 = vmatmul.mubr.bf16.gmra.mrb[0].mxu0 %v5261
        %v5455 = vpop.f32.mrb[0].mxu0
        %v5456 = vadd.f32 0.0, %v5455
        %v5457 = vpop.f32.mrb[0].mxu0
        %v5458 = vpop.f32.mrb[0].mxu0
        %v5459 = vadd.f32 0.0, %v5458
        %v5460 = vpop.f32.mrb[0].mxu0
        %5461 = vmatprep.mubr.bf16.mxu0 0
        %5462 = vmatmul.mubr.bf16.gmra.mrb[0].mxu0 %v5262
        %v5463 = vpop.f32.mrb[0].mxu0
        %v5464 = vadd.f32 0.0, %v5463
        %v5465 = vpop.f32.mrb[0].mxu0
        %v5466 = vpop.f32.mrb[0].mxu0
        %v5467 = vadd.f32 0.0, %v5466
        %v5468 = vpop.f32.mrb[0].mxu0
        %5469 = vmatprep.mubr.bf16.mxu0 0
        %5470 = vmatmul.mubr.bf16.gmra.mrb[0].mxu0 %v5263
        %v5471 = vpop.f32.mrb[0].mxu0
        %v5472 = vadd.f32 0.0, %v5471
        %v5473 = vpop.f32.mrb[0].mxu0
        %v5474 = vpop.f32.mrb[0].mxu0
        %v5475 = vadd.f32 0.0, %v5474
        %v5476 = vpop.f32.mrb[0].mxu0
        %5477 = vmatprep.mubr.bf16.mxu0 0
        %5478 = vmatmul.mubr.bf16.gmra.mrb[0].mxu0 %v5264
        %v5479 = vpop.f32.mrb[0].mxu0
        %v5480 = vadd.f32 0.0, %v5479
        %v5481 = vpop.f32.mrb[0].mxu0
        %v5482 = vpop.f32.mrb[0].mxu0
        %v5483 = vadd.f32 0.0, %v5482
        %v5484 = vpop.f32.mrb[0].mxu0
        %5485 = vmatprep.mubr.bf16.mxu0 0
        %5486 = vmatmul.mubr.bf16.gmra.mrb[0].mxu0 %v5265
        %v5487 = vpop.f32.mrb[0].mxu0
        %v5488 = vadd.f32 0.0, %v5487
        %v5489 = vpop.f32.mrb[0].mxu0
        %v5490 = vpop.f32.mrb[0].mxu0
        %v5491 = vadd.f32 0.0, %v5490
        %v5492 = vpop.f32.mrb[0].mxu0
        %5493 = vmatprep.mubr.bf16.mxu0 0
        %5494 = vmatmul.mubr.bf16.gmra.mrb[0].mxu0 %v5266
        %v5495 = vpop.f32.mrb[0].mxu0
        %v5496 = vadd.f32 0.0, %v5495
        %v5497 = vpop.f32.mrb[0].mxu0
        %v5498 = vpop.f32.mrb[0].mxu0
        %v5499 = vadd.f32 0.0, %v5498
        %v5500 = vpop.f32.mrb[0].mxu0
        %5501 = vmatprep.mubr.bf16.mxu0 0
        %5502 = vmatmul.mubr.bf16.gmra.mrb[0].mxu0 %v5267
        %v5503 = vpop.f32.mrb[0].mxu0
        %v5504 = vadd.f32 0.0, %v5503
        %v5505 = vpop.f32.mrb[0].mxu0
        %v5506 = vpop.f32.mrb[0].mxu0
        %v5507 = vadd.f32 0.0, %v5506
        %v5508 = vpop.f32.mrb[0].mxu0
        %5509 = vdwg.mxu0
        %v5510 = vpack.c.bf16 %v5330, %v5327
        %v5511 = vpack.c.bf16 %v5338, %v5335
        %v5512 = vpack.c.bf16 %v5346, %v5343
        %v5513 = vpack.c.bf16 %v5354, %v5351
        %v5514 = vpack.c.bf16 %v5362, %v5359
        %v5515 = vpack.c.bf16 %v5370, %v5367
        %v5516 = vpack.c.bf16 %v5378, %v5375
        %v5517 = vpack.c.bf16 %v5386, %v5383
        %v5518 = vpack.c.bf16 %v5451, %v5448
        %v5519 = vpack.c.bf16 %v5459, %v5456
        %v5520 = vpack.c.bf16 %v5467, %v5464
        %v5521 = vpack.c.bf16 %v5475, %v5472
        %v5522 = vpack.c.bf16 %v5483, %v5480
        %v5523 = vpack.c.bf16 %v5491, %v5488
        %v5524 = vpack.c.bf16 %v5499, %v5496
        %v5525 = vpack.c.bf16 %v5507, %v5504
        %v5530 = vunpack.c.l.b16 %v1226
        %v5531 = vunpack.c.l.b16 %v1227
        %v5532 = vunpack.c.l.b16 %v1228
        %v5533 = vunpack.c.l.b16 %v1229
        %v5534 = vpack.c.b16 %v5531, %v5530
        %v5535 = vpack.c.b16 %v5533, %v5532
        %v5539 = vsel %vm1230, %v5510, 0
        %v5542 = vsel %vm1230, %v5511, 0
        %v5545 = vsel %vm1230, %v5512, 0
        %v5548 = vsel %vm1230, %v5513, 0
        %v5551 = vsel %vm1230, %v5514, 0
        %v5554 = vsel %vm1230, %v5515, 0
        %v5557 = vsel %vm1230, %v5516, 0
        %v5560 = vsel %vm1230, %v5517, 0
        %v5563 = vsel %vm1230, %v5518, 0
        %v5566 = vsel %vm1230, %v5519, 0
        %v5569 = vsel %vm1230, %v5520, 0
        %v5572 = vsel %vm1230, %v5521, 0
        %v5575 = vsel %vm1230, %v5522, 0
        %v5578 = vsel %vm1230, %v5523, 0
        %v5581 = vsel %vm1230, %v5524, 0
        %v5584 = vsel %vm1230, %v5525, 0
        %5586 = vmatprep.subr.bf16.mxu0 0
        %5587 = vmatpush1.bf16.msra.mxu0 %v5534
        %5588 = vmatprep.subr.bf16.mxu0 0
        %5589 = vmatpush1.bf16.msra.mxu0 %v5535
        %5590 = vmatprep.subr.bf16.mxu0 0
        %5591 = vmatpush1.bf16.msra.mxu0 0
        %5592 = vmatprep.subr.bf16.mxu0 0
        %5593 = vmatpush1.bf16.msra.mxu0 0
        %5594 = vmatprep.subr.bf16.mxu0 0
        %5595 = vmatpush1.bf16.msra.mxu0 0
        %5596 = vmatprep.subr.bf16.mxu0 0
        %5597 = vmatpush1.bf16.msra.mxu0 0
        %5598 = vmatprep.subr.bf16.mxu0 0
        %5599 = vmatpush1.bf16.msra.mxu0 0
        %5600 = vmatprep.subr.bf16.mxu0 0
        %5601 = vmatpush1.bf16.msra.mxu0 0
        %5602 = vmatprep.subr.bf16.mxu0 0
        %5603 = vmatpush1.bf16.msra.mxu0 0
        %5604 = vmatprep.subr.bf16.mxu0 0
        %5605 = vmatpush1.bf16.msra.mxu0 0
        %5606 = vmatprep.subr.bf16.mxu0 0
        %5607 = vmatpush1.bf16.msra.mxu0 0
        %5608 = vmatprep.subr.bf16.mxu0 0
        %5609 = vmatpush1.bf16.msra.mxu0 0
        %5610 = vmatprep.subr.bf16.mxu0 0
        %5611 = vmatpush1.bf16.msra.mxu0 0
        %5612 = vmatprep.subr.bf16.mxu0 0
        %5613 = vmatpush1.bf16.msra.mxu0 0
        %5614 = vmatprep.subr.bf16.mxu0 0
        %5615 = vmatpush1.bf16.msra.mxu0 0
        %5616 = vmatprep.subr.bf16.mxu0 0
        %5617 = vmatpush1.bf16.msra.mxu0 0
        %5618 = vmatprep.mubr.bf16.mxu0 0
        %5619 = vmatmul.mubr.bf16.gmra.mrb[0].mxu0 %v5539
        %v5620 = vpop.f32.mrb[0].mxu0
        %v5621 = vadd.f32 0.0, %v5620
        %v5622 = vpop.f32.mrb[0].mxu0
        %v5623 = vpop.f32.mrb[0].mxu0
        %v5624 = vadd.f32 0.0, %v5623
        %v5625 = vpop.f32.mrb[0].mxu0
        %5626 = vmatprep.mubr.bf16.mxu0 0
        %5627 = vmatmul.mubr.bf16.gmra.mrb[0].mxu0 %v5542
        %v5628 = vpop.f32.mrb[0].mxu0
        %v5629 = vadd.f32 0.0, %v5628
        %v5630 = vpop.f32.mrb[0].mxu0
        %v5631 = vpop.f32.mrb[0].mxu0
        %v5632 = vadd.f32 0.0, %v5631
        %v5633 = vpop.f32.mrb[0].mxu0
        %5634 = vmatprep.mubr.bf16.mxu0 0
        %5635 = vmatmul.mubr.bf16.gmra.mrb[0].mxu0 %v5545
        %v5636 = vpop.f32.mrb[0].mxu0
        %v5637 = vadd.f32 0.0, %v5636
        %v5638 = vpop.f32.mrb[0].mxu0
        %v5639 = vpop.f32.mrb[0].mxu0
        %v5640 = vadd.f32 0.0, %v5639
        %v5641 = vpop.f32.mrb[0].mxu0
        %5642 = vmatprep.mubr.bf16.mxu0 0
        %5643 = vmatmul.mubr.bf16.gmra.mrb[0].mxu0 %v5548
        %v5644 = vpop.f32.mrb[0].mxu0
        %v5645 = vadd.f32 0.0, %v5644
        %v5646 = vpop.f32.mrb[0].mxu0
        %v5647 = vpop.f32.mrb[0].mxu0
        %v5648 = vadd.f32 0.0, %v5647
        %v5649 = vpop.f32.mrb[0].mxu0
        %5650 = vmatprep.mubr.bf16.mxu0 0
        %5651 = vmatmul.mubr.bf16.gmra.mrb[0].mxu0 %v5551
        %v5652 = vpop.f32.mrb[0].mxu0
        %v5653 = vadd.f32 0.0, %v5652
        %v5654 = vpop.f32.mrb[0].mxu0
        %v5655 = vpop.f32.mrb[0].mxu0
        %v5656 = vadd.f32 0.0, %v5655
        %v5657 = vpop.f32.mrb[0].mxu0
        %5658 = vmatprep.mubr.bf16.mxu0 0
        %5659 = vmatmul.mubr.bf16.gmra.mrb[0].mxu0 %v5554
        %v5660 = vpop.f32.mrb[0].mxu0
        %v5661 = vadd.f32 0.0, %v5660
        %v5662 = vpop.f32.mrb[0].mxu0
        %v5663 = vpop.f32.mrb[0].mxu0
        %v5664 = vadd.f32 0.0, %v5663
        %v5665 = vpop.f32.mrb[0].mxu0
        %5666 = vmatprep.mubr.bf16.mxu0 0
        %5667 = vmatmul.mubr.bf16.gmra.mrb[0].mxu0 %v5557
        %v5668 = vpop.f32.mrb[0].mxu0
        %v5669 = vadd.f32 0.0, %v5668
        %v5670 = vpop.f32.mrb[0].mxu0
        %v5671 = vpop.f32.mrb[0].mxu0
        %v5672 = vadd.f32 0.0, %v5671
        %v5673 = vpop.f32.mrb[0].mxu0
        %5674 = vmatprep.mubr.bf16.mxu0 0
        %5675 = vmatmul.mubr.bf16.gmra.mrb[0].mxu0 %v5560
        %v5676 = vpop.f32.mrb[0].mxu0
        %v5677 = vadd.f32 0.0, %v5676
        %v5678 = vpop.f32.mrb[0].mxu0
        %v5679 = vpop.f32.mrb[0].mxu0
        %v5680 = vadd.f32 0.0, %v5679
        %v5681 = vpop.f32.mrb[0].mxu0
        %5682 = vmatprep.mubr.bf16.mxu0 0
        %5683 = vmatmul.mubr.bf16.gmra.mrb[0].mxu0 %v5563
        %v5684 = vpop.f32.mrb[0].mxu0
        %v5685 = vadd.f32 0.0, %v5684
        %v5686 = vpop.f32.mrb[0].mxu0
        %v5687 = vpop.f32.mrb[0].mxu0
        %v5688 = vadd.f32 0.0, %v5687
        %v5689 = vpop.f32.mrb[0].mxu0
        %5690 = vmatprep.mubr.bf16.mxu0 0
        %5691 = vmatmul.mubr.bf16.gmra.mrb[0].mxu0 %v5566
        %v5692 = vpop.f32.mrb[0].mxu0
        %v5693 = vadd.f32 0.0, %v5692
        %v5694 = vpop.f32.mrb[0].mxu0
        %v5695 = vpop.f32.mrb[0].mxu0
        %v5696 = vadd.f32 0.0, %v5695
        %v5697 = vpop.f32.mrb[0].mxu0
        %5698 = vmatprep.mubr.bf16.mxu0 0
        %5699 = vmatmul.mubr.bf16.gmra.mrb[0].mxu0 %v5569
        %v5700 = vpop.f32.mrb[0].mxu0
        %v5701 = vadd.f32 0.0, %v5700
        %v5702 = vpop.f32.mrb[0].mxu0
        %v5703 = vpop.f32.mrb[0].mxu0
        %v5704 = vadd.f32 0.0, %v5703
        %v5705 = vpop.f32.mrb[0].mxu0
        %5706 = vmatprep.mubr.bf16.mxu0 0
        %5707 = vmatmul.mubr.bf16.gmra.mrb[0].mxu0 %v5572
        %v5708 = vpop.f32.mrb[0].mxu0
        %v5709 = vadd.f32 0.0, %v5708
        %v5710 = vpop.f32.mrb[0].mxu0
        %v5711 = vpop.f32.mrb[0].mxu0
        %v5712 = vadd.f32 0.0, %v5711
        %v5713 = vpop.f32.mrb[0].mxu0
        %5714 = vmatprep.mubr.bf16.mxu0 0
        %5715 = vmatmul.mubr.bf16.gmra.mrb[0].mxu0 %v5575
        %v5716 = vpop.f32.mrb[0].mxu0
        %v5717 = vadd.f32 0.0, %v5716
        %v5718 = vpop.f32.mrb[0].mxu0
        %v5719 = vpop.f32.mrb[0].mxu0
        %v5720 = vadd.f32 0.0, %v5719
        %v5721 = vpop.f32.mrb[0].mxu0
        %5722 = vmatprep.mubr.bf16.mxu0 0
        %5723 = vmatmul.mubr.bf16.gmra.mrb[0].mxu0 %v5578
        %v5724 = vpop.f32.mrb[0].mxu0
        %v5725 = vadd.f32 0.0, %v5724
        %v5726 = vpop.f32.mrb[0].mxu0
        %v5727 = vpop.f32.mrb[0].mxu0
        %v5728 = vadd.f32 0.0, %v5727
        %v5729 = vpop.f32.mrb[0].mxu0
        %5730 = vmatprep.mubr.bf16.mxu0 0
        %5731 = vmatmul.mubr.bf16.gmra.mrb[0].mxu0 %v5581
        %v5732 = vpop.f32.mrb[0].mxu0
        %v5733 = vadd.f32 0.0, %v5732
        %v5734 = vpop.f32.mrb[0].mxu0
        %v5735 = vpop.f32.mrb[0].mxu0
        %v5736 = vadd.f32 0.0, %v5735
        %v5737 = vpop.f32.mrb[0].mxu0
        %5738 = vmatprep.mubr.bf16.mxu0 0
        %5739 = vmatmul.mubr.bf16.gmra.mrb[0].mxu0 %v5584
        %v5740 = vpop.f32.mrb[0].mxu0
        %v5741 = vadd.f32 0.0, %v5740
        %v5742 = vpop.f32.mrb[0].mxu0
        %v5743 = vpop.f32.mrb[0].mxu0
        %v5744 = vadd.f32 0.0, %v5743
        %v5745 = vpop.f32.mrb[0].mxu0
        %5746 = vdwg.mxu0
        %v5747 = vadd.f32 %v4578, %v5621
        %v5748 = vadd.f32 %v4579, %v5624
        %v5749 = vadd.f32 %v4580, %v5629
        %v5750 = vadd.f32 %v4581, %v5632
        %v5751 = vadd.f32 %v4582, %v5637
        %v5752 = vadd.f32 %v4583, %v5640
        %v5753 = vadd.f32 %v4584, %v5645
        %v5754 = vadd.f32 %v4585, %v5648
        %v5755 = vadd.f32 %v4586, %v5653
        %v5756 = vadd.f32 %v4587, %v5656
        %v5757 = vadd.f32 %v4588, %v5661
        %v5758 = vadd.f32 %v4589, %v5664
        %v5759 = vadd.f32 %v4590, %v5669
        %v5760 = vadd.f32 %v4591, %v5672
        %v5761 = vadd.f32 %v4592, %v5677
        %v5762 = vadd.f32 %v4593, %v5680
        %v5763 = vadd.f32 %v4594, %v5685
        %v5764 = vadd.f32 %v4595, %v5688
        %v5765 = vadd.f32 %v4596, %v5693
        %v5766 = vadd.f32 %v4597, %v5696
        %v5767 = vadd.f32 %v4598, %v5701
        %v5768 = vadd.f32 %v4599, %v5704
        %v5769 = vadd.f32 %v4600, %v5709
        %v5770 = vadd.f32 %v4601, %v5712
        %v5771 = vadd.f32 %v4602, %v5717
        %v5772 = vadd.f32 %v4603, %v5720
        %v5773 = vadd.f32 %v4604, %v5725
        %v5774 = vadd.f32 %v4605, %v5728
        %v5775 = vadd.f32 %v4606, %v5733
        %v5776 = vadd.f32 %v4607, %v5736
        %v5777 = vadd.f32 %v4608, %v5741
        %v5778 = vadd.f32 %v4609, %v5744
        %v5779 = vadd.f32 %v496, %v5747
        %v5780 = vadd.f32 %v497, %v5748
        %v5781 = vadd.f32 %v498, %v5749
        %v5782 = vadd.f32 %v499, %v5750
        %v5783 = vadd.f32 %v500, %v5751
        %v5784 = vadd.f32 %v501, %v5752
        %v5785 = vadd.f32 %v502, %v5753
        %v5786 = vadd.f32 %v503, %v5754
        %v5787 = vadd.f32 %v504, %v5755
        %v5788 = vadd.f32 %v505, %v5756
        %v5789 = vadd.f32 %v506, %v5757
        %v5790 = vadd.f32 %v507, %v5758
        %v5791 = vadd.f32 %v508, %v5759
        %v5792 = vadd.f32 %v509, %v5760
        %v5793 = vadd.f32 %v510, %v5761
        %v5794 = vadd.f32 %v511, %v5762
        %v5795 = vadd.f32 %v512, %v5763
        %v5796 = vadd.f32 %v513, %v5764
        %v5797 = vadd.f32 %v514, %v5765
        %v5798 = vadd.f32 %v515, %v5766
        %v5799 = vadd.f32 %v516, %v5767
        %v5800 = vadd.f32 %v517, %v5768
        %v5801 = vadd.f32 %v518, %v5769
        %v5802 = vadd.f32 %v519, %v5770
        %v5803 = vadd.f32 %v520, %v5771
        %v5804 = vadd.f32 %v521, %v5772
        %v5805 = vadd.f32 %v522, %v5773
        %v5806 = vadd.f32 %v523, %v5774
        %v5807 = vadd.f32 %v524, %v5775
        %v5808 = vadd.f32 %v525, %v5776
        %v5809 = vadd.f32 %v526, %v5777
        %v5810 = vadd.f32 %v527, %v5778
        %v5811 = vlaneseq
        %v5812 = vshrl.u32 %v5811, 7
        %v5813 = vsub.s32 3, %v5812
        %v5814 = vrot.slane %v494, %v5813
        %v5815 = vadd.f32 %v5779, %v5814
        %v5816 = vadd.f32 %v5780, %v5814
        %v5817 = vadd.f32 %v5781, %v5814
        %v5818 = vadd.f32 %v5782, %v5814
        %v5819 = vadd.f32 %v5783, %v5814
        %v5820 = vadd.f32 %v5784, %v5814
        %v5821 = vadd.f32 %v5785, %v5814
        %v5822 = vadd.f32 %v5786, %v5814
        %v5823 = vadd.f32 %v5787, %v5814
        %v5824 = vadd.f32 %v5788, %v5814
        %v5825 = vadd.f32 %v5789, %v5814
        %v5826 = vadd.f32 %v5790, %v5814
        %v5827 = vadd.f32 %v5791, %v5814
        %v5828 = vadd.f32 %v5792, %v5814
        %v5829 = vadd.f32 %v5793, %v5814
        %v5830 = vadd.f32 %v5794, %v5814
        %v5831 = vadd.f32 %v5795, %v5814
        %v5832 = vadd.f32 %v5796, %v5814
        %v5833 = vadd.f32 %v5797, %v5814
        %v5834 = vadd.f32 %v5798, %v5814
        %v5835 = vadd.f32 %v5799, %v5814
        %v5836 = vadd.f32 %v5800, %v5814
        %v5837 = vadd.f32 %v5801, %v5814
        %v5838 = vadd.f32 %v5802, %v5814
        %v5839 = vadd.f32 %v5803, %v5814
        %v5840 = vadd.f32 %v5804, %v5814
        %v5841 = vadd.f32 %v5805, %v5814
        %v5842 = vadd.f32 %v5806, %v5814
        %v5843 = vadd.f32 %v5807, %v5814
        %v5844 = vadd.f32 %v5808, %v5814
        %v5845 = vadd.f32 %v5809, %v5814
        %v5846 = vadd.f32 %v5810, %v5814
        %v5847 = vpack.c.bf16 %v5816, %v5815
        %v5848 = vpack.c.bf16 %v5818, %v5817
        %v5849 = vpack.c.bf16 %v5820, %v5819
        %v5850 = vpack.c.bf16 %v5822, %v5821
        %v5851 = vpack.c.bf16 %v5824, %v5823
        %v5852 = vpack.c.bf16 %v5826, %v5825
        %v5853 = vpack.c.bf16 %v5828, %v5827
        %v5854 = vpack.c.bf16 %v5830, %v5829
        %v5855 = vpack.c.bf16 %v5832, %v5831
        %v5856 = vpack.c.bf16 %v5834, %v5833
        %v5857 = vpack.c.bf16 %v5836, %v5835
        %v5858 = vpack.c.bf16 %v5838, %v5837
        %v5859 = vpack.c.bf16 %v5840, %v5839
        %v5860 = vpack.c.bf16 %v5842, %v5841
        %v5861 = vpack.c.bf16 %v5844, %v5843
        %v5862 = vpack.c.bf16 %v5846, %v5845
        %v5863 = vld [vmem:[%s363] sm:$0xff]
        %v5864 = vld [vmem:[%s363 + $0x8] sm:$0xff]
        %v5865 = vld [vmem:[%s363 + $0x10] sm:$0xff]
        %v5866 = vld [vmem:[%s363 + $0x18] sm:$0xff]
        %v5867 = vld [vmem:[%s363 + $0x20] sm:$0xff]
        %v5868 = vld [vmem:[%s363 + $0x28] sm:$0xff]
        %v5869 = vld [vmem:[%s363 + $0x30] sm:$0xff]
        %v5870 = vld [vmem:[%s363 + $0x38] sm:$0xff]
        %v5871 = vld [vmem:[%s363 + $0x40] sm:$0xff]
        %v5872 = vld [vmem:[%s363 + $0x48] sm:$0xff]
        %v5873 = vld [vmem:[%s363 + $0x50] sm:$0xff]
        %v5874 = vld [vmem:[%s363 + $0x58] sm:$0xff]
        %v5875 = vld [vmem:[%s363 + $0x60] sm:$0xff]
        %v5876 = vld [vmem:[%s363 + $0x68] sm:$0xff]
        %v5877 = vld [vmem:[%s363 + $0x70] sm:$0xff]
        %v5878 = vld [vmem:[%s363 + $0x78] sm:$0xff]
        %v5879 = vlaneseq
        %v5880 = vshrl.u32 %v5879, 7
        %v5881 = vsub.s32 4, %v5880
        %v5882 = vrot.slane %v494, %v5881
        %v5883 = vlaneseq
        %v5884 = vshrl.u32 %v5883, 7
        %v5885 = vsub.s32 4, %v5884
        %v5886 = vrot.slane %v495, %v5885
        %v5903 = vunpack.c.l.b16 %v5863
        %v5904 = vunpack.c.h.b16 %v5863
        %v5905 = vunpack.c.l.b16 %v5864
        %v5906 = vunpack.c.h.b16 %v5864
        %v5907 = vunpack.c.l.b16 %v5865
        %v5908 = vunpack.c.h.b16 %v5865
        %v5909 = vunpack.c.l.b16 %v5866
        %v5910 = vunpack.c.h.b16 %v5866
        %v5911 = vunpack.c.l.b16 %v5867
        %v5912 = vunpack.c.h.b16 %v5867
        %v5913 = vunpack.c.l.b16 %v5868
        %v5914 = vunpack.c.h.b16 %v5868
        %v5915 = vunpack.c.l.b16 %v5869
        %v5916 = vunpack.c.h.b16 %v5869
        %v5917 = vunpack.c.l.b16 %v5870
        %v5918 = vunpack.c.h.b16 %v5870
        %v5919 = vunpack.c.l.b16 %v5871
        %v5920 = vunpack.c.h.b16 %v5871
        %v5921 = vunpack.c.l.b16 %v5872
        %v5922 = vunpack.c.h.b16 %v5872
        %v5923 = vunpack.c.l.b16 %v5873
        %v5924 = vunpack.c.h.b16 %v5873
        %v5925 = vunpack.c.l.b16 %v5874
        %v5926 = vunpack.c.h.b16 %v5874
        %v5927 = vunpack.c.l.b16 %v5875
        %v5928 = vunpack.c.h.b16 %v5875
        %v5929 = vunpack.c.l.b16 %v5876
        %v5930 = vunpack.c.h.b16 %v5876
        %v5931 = vunpack.c.l.b16 %v5877
        %v5932 = vunpack.c.h.b16 %v5877
        %v5933 = vunpack.c.l.b16 %v5878
        %v5934 = vunpack.c.h.b16 %v5878
        %v5935 = vpack.c.b16 %v5905, %v5903
        %v5936 = vpack.c.b16 %v5906, %v5904
        %v5937 = vpack.c.b16 %v5909, %v5907
        %v5938 = vpack.c.b16 %v5910, %v5908
        %v5939 = vpack.c.b16 %v5913, %v5911
        %v5940 = vpack.c.b16 %v5914, %v5912
        %v5941 = vpack.c.b16 %v5917, %v5915
        %v5942 = vpack.c.b16 %v5918, %v5916
        %v5943 = vpack.c.b16 %v5921, %v5919
        %v5944 = vpack.c.b16 %v5922, %v5920
        %v5945 = vpack.c.b16 %v5925, %v5923
        %v5946 = vpack.c.b16 %v5926, %v5924
        %v5947 = vpack.c.b16 %v5929, %v5927
        %v5948 = vpack.c.b16 %v5930, %v5928
        %v5949 = vpack.c.b16 %v5933, %v5931
        %v5950 = vpack.c.b16 %v5934, %v5932
        %5967 = vmatprep.subr.bf16.mxu0 %v5936
        %5968 = vmatpush1.bf16.msra.mxu0 %v5935
        %5969 = vmatprep.subr.bf16.mxu0 %v5938
        %5970 = vmatpush1.bf16.msra.mxu0 %v5937
        %5971 = vmatprep.subr.bf16.mxu0 %v5940
        %5972 = vmatpush1.bf16.msra.mxu0 %v5939
        %5973 = vmatprep.subr.bf16.mxu0 %v5942
        %5974 = vmatpush1.bf16.msra.mxu0 %v5941
        %5975 = vmatprep.subr.bf16.mxu0 %v5944
        %5976 = vmatpush1.bf16.msra.mxu0 %v5943
        %5977 = vmatprep.subr.bf16.mxu0 %v5946
        %5978 = vmatpush1.bf16.msra.mxu0 %v5945
        %5979 = vmatprep.subr.bf16.mxu0 %v5948
        %5980 = vmatpush1.bf16.msra.mxu0 %v5947
        %5981 = vmatprep.subr.bf16.mxu0 %v5950
        %5982 = vmatpush1.bf16.msra.mxu0 %v5949
        %5983 = vmatprep.subr.bf16.mxu0 0
        %5984 = vmatpush1.bf16.msra.mxu0 0
        %5985 = vmatprep.subr.bf16.mxu0 0
        %5986 = vmatpush1.bf16.msra.mxu0 0
        %5987 = vmatprep.subr.bf16.mxu0 0
        %5988 = vmatpush1.bf16.msra.mxu0 0
        %5989 = vmatprep.subr.bf16.mxu0 0
        %5990 = vmatpush1.bf16.msra.mxu0 0
        %5991 = vmatprep.subr.bf16.mxu0 0
        %5992 = vmatpush1.bf16.msra.mxu0 0
        %5993 = vmatprep.subr.bf16.mxu0 0
        %5994 = vmatpush1.bf16.msra.mxu0 0
        %5995 = vmatprep.subr.bf16.mxu0 0
        %5996 = vmatpush1.bf16.msra.mxu0 0
        %5997 = vmatprep.subr.bf16.mxu0 0
        %5998 = vmatpush1.bf16.msra.mxu0 0
        %5999 = vmatprep.mubr.bf16.mxu0 0
        %6000 = vmatmul.mubr.bf16.gmra.mrb[0].mxu0 %v5847
        %v6001 = vpop.f32.mrb[0].mxu0
        %v6002 = vadd.f32 %v5882, %v6001
        %v6003 = vpop.f32.mrb[0].mxu0
        %v6004 = vadd.f32 %v5886, %v6003
        %v6005 = vpop.f32.mrb[0].mxu0
        %v6006 = vadd.f32 %v5882, %v6005
        %v6007 = vpop.f32.mrb[0].mxu0
        %v6008 = vadd.f32 %v5886, %v6007
        %6009 = vmatprep.mubr.bf16.mxu0 0
        %6010 = vmatmul.mubr.bf16.gmra.mrb[0].mxu0 %v5848
        %v6011 = vpop.f32.mrb[0].mxu0
        %v6012 = vadd.f32 %v5882, %v6011
        %v6013 = vpop.f32.mrb[0].mxu0
        %v6014 = vadd.f32 %v5886, %v6013
        %v6015 = vpop.f32.mrb[0].mxu0
        %v6016 = vadd.f32 %v5882, %v6015
        %v6017 = vpop.f32.mrb[0].mxu0
        %v6018 = vadd.f32 %v5886, %v6017
        %6019 = vmatprep.mubr.bf16.mxu0 0
        %6020 = vmatmul.mubr.bf16.gmra.mrb[0].mxu0 %v5849
        %v6021 = vpop.f32.mrb[0].mxu0
        %v6022 = vadd.f32 %v5882, %v6021
        %v6023 = vpop.f32.mrb[0].mxu0
        %v6024 = vadd.f32 %v5886, %v6023
        %v6025 = vpop.f32.mrb[0].mxu0
        %v6026 = vadd.f32 %v5882, %v6025
        %v6027 = vpop.f32.mrb[0].mxu0
        %v6028 = vadd.f32 %v5886, %v6027
        %6029 = vmatprep.mubr.bf16.mxu0 0
        %6030 = vmatmul.mubr.bf16.gmra.mrb[0].mxu0 %v5850
        %v6031 = vpop.f32.mrb[0].mxu0
        %v6032 = vadd.f32 %v5882, %v6031
        %v6033 = vpop.f32.mrb[0].mxu0
        %v6034 = vadd.f32 %v5886, %v6033
        %v6035 = vpop.f32.mrb[0].mxu0
        %v6036 = vadd.f32 %v5882, %v6035
        %v6037 = vpop.f32.mrb[0].mxu0
        %v6038 = vadd.f32 %v5886, %v6037
        %6039 = vmatprep.mubr.bf16.mxu0 0
        %6040 = vmatmul.mubr.bf16.gmra.mrb[0].mxu0 %v5851
        %v6041 = vpop.f32.mrb[0].mxu0
        %v6042 = vadd.f32 %v5882, %v6041
        %v6043 = vpop.f32.mrb[0].mxu0
        %v6044 = vadd.f32 %v5886, %v6043
        %v6045 = vpop.f32.mrb[0].mxu0
        %v6046 = vadd.f32 %v5882, %v6045
        %v6047 = vpop.f32.mrb[0].mxu0
        %v6048 = vadd.f32 %v5886, %v6047
        %6049 = vmatprep.mubr.bf16.mxu0 0
        %6050 = vmatmul.mubr.bf16.gmra.mrb[0].mxu0 %v5852
        %v6051 = vpop.f32.mrb[0].mxu0
        %v6052 = vadd.f32 %v5882, %v6051
        %v6053 = vpop.f32.mrb[0].mxu0
        %v6054 = vadd.f32 %v5886, %v6053
        %v6055 = vpop.f32.mrb[0].mxu0
        %v6056 = vadd.f32 %v5882, %v6055
        %v6057 = vpop.f32.mrb[0].mxu0
        %v6058 = vadd.f32 %v5886, %v6057
        %6059 = vmatprep.mubr.bf16.mxu0 0
        %6060 = vmatmul.mubr.bf16.gmra.mrb[0].mxu0 %v5853
        %v6061 = vpop.f32.mrb[0].mxu0
        %v6062 = vadd.f32 %v5882, %v6061
        %v6063 = vpop.f32.mrb[0].mxu0
        %v6064 = vadd.f32 %v5886, %v6063
        %v6065 = vpop.f32.mrb[0].mxu0
        %v6066 = vadd.f32 %v5882, %v6065
        %v6067 = vpop.f32.mrb[0].mxu0
        %v6068 = vadd.f32 %v5886, %v6067
        %6069 = vmatprep.mubr.bf16.mxu0 0
        %6070 = vmatmul.mubr.bf16.gmra.mrb[0].mxu0 %v5854
        %v6071 = vpop.f32.mrb[0].mxu0
        %v6072 = vadd.f32 %v5882, %v6071
        %v6073 = vpop.f32.mrb[0].mxu0
        %v6074 = vadd.f32 %v5886, %v6073
        %v6075 = vpop.f32.mrb[0].mxu0
        %v6076 = vadd.f32 %v5882, %v6075
        %v6077 = vpop.f32.mrb[0].mxu0
        %v6078 = vadd.f32 %v5886, %v6077
        %6079 = vmatprep.mubr.bf16.mxu0 0
        %6080 = vmatmul.mubr.bf16.gmra.mrb[0].mxu0 %v5855
        %v6081 = vpop.f32.mrb[0].mxu0
        %v6082 = vadd.f32 %v5882, %v6081
        %v6083 = vpop.f32.mrb[0].mxu0
        %v6084 = vadd.f32 %v5886, %v6083
        %v6085 = vpop.f32.mrb[0].mxu0
        %v6086 = vadd.f32 %v5882, %v6085
        %v6087 = vpop.f32.mrb[0].mxu0
        %v6088 = vadd.f32 %v5886, %v6087
        %6089 = vmatprep.mubr.bf16.mxu0 0
        %6090 = vmatmul.mubr.bf16.gmra.mrb[0].mxu0 %v5856
        %v6091 = vpop.f32.mrb[0].mxu0
        %v6092 = vadd.f32 %v5882, %v6091
        %v6093 = vpop.f32.mrb[0].mxu0
        %v6094 = vadd.f32 %v5886, %v6093
        %v6095 = vpop.f32.mrb[0].mxu0
        %v6096 = vadd.f32 %v5882, %v6095
        %v6097 = vpop.f32.mrb[0].mxu0
        %v6098 = vadd.f32 %v5886, %v6097
        %6099 = vmatprep.mubr.bf16.mxu0 0
        %6100 = vmatmul.mubr.bf16.gmra.mrb[0].mxu0 %v5857
        %v6101 = vpop.f32.mrb[0].mxu0
        %v6102 = vadd.f32 %v5882, %v6101
        %v6103 = vpop.f32.mrb[0].mxu0
        %v6104 = vadd.f32 %v5886, %v6103
        %v6105 = vpop.f32.mrb[0].mxu0
        %v6106 = vadd.f32 %v5882, %v6105
        %v6107 = vpop.f32.mrb[0].mxu0
        %v6108 = vadd.f32 %v5886, %v6107
        %6109 = vmatprep.mubr.bf16.mxu0 0
        %6110 = vmatmul.mubr.bf16.gmra.mrb[0].mxu0 %v5858
        %v6111 = vpop.f32.mrb[0].mxu0
        %v6112 = vadd.f32 %v5882, %v6111
        %v6113 = vpop.f32.mrb[0].mxu0
        %v6114 = vadd.f32 %v5886, %v6113
        %v6115 = vpop.f32.mrb[0].mxu0
        %v6116 = vadd.f32 %v5882, %v6115
        %v6117 = vpop.f32.mrb[0].mxu0
        %v6118 = vadd.f32 %v5886, %v6117
        %6119 = vmatprep.mubr.bf16.mxu0 0
        %6120 = vmatmul.mubr.bf16.gmra.mrb[0].mxu0 %v5859
        %v6121 = vpop.f32.mrb[0].mxu0
        %v6122 = vadd.f32 %v5882, %v6121
        %v6123 = vpop.f32.mrb[0].mxu0
        %v6124 = vadd.f32 %v5886, %v6123
        %v6125 = vpop.f32.mrb[0].mxu0
        %v6126 = vadd.f32 %v5882, %v6125
        %v6127 = vpop.f32.mrb[0].mxu0
        %v6128 = vadd.f32 %v5886, %v6127
        %6129 = vmatprep.mubr.bf16.mxu0 0
        %6130 = vmatmul.mubr.bf16.gmra.mrb[0].mxu0 %v5860
        %v6131 = vpop.f32.mrb[0].mxu0
        %v6132 = vadd.f32 %v5882, %v6131
        %v6133 = vpop.f32.mrb[0].mxu0
        %v6134 = vadd.f32 %v5886, %v6133
        %v6135 = vpop.f32.mrb[0].mxu0
        %v6136 = vadd.f32 %v5882, %v6135
        %v6137 = vpop.f32.mrb[0].mxu0
        %v6138 = vadd.f32 %v5886, %v6137
        %6139 = vmatprep.mubr.bf16.mxu0 0
        %6140 = vmatmul.mubr.bf16.gmra.mrb[0].mxu0 %v5861
        %v6141 = vpop.f32.mrb[0].mxu0
        %v6142 = vadd.f32 %v5882, %v6141
        %v6143 = vpop.f32.mrb[0].mxu0
        %v6144 = vadd.f32 %v5886, %v6143
        %v6145 = vpop.f32.mrb[0].mxu0
        %v6146 = vadd.f32 %v5882, %v6145
        %v6147 = vpop.f32.mrb[0].mxu0
        %v6148 = vadd.f32 %v5886, %v6147
        %6149 = vmatprep.mubr.bf16.mxu0 0
        %6150 = vmatmul.mubr.bf16.gmra.mrb[0].mxu0 %v5862
        %v6151 = vpop.f32.mrb[0].mxu0
        %v6152 = vadd.f32 %v5882, %v6151
        %v6153 = vpop.f32.mrb[0].mxu0
        %v6154 = vadd.f32 %v5886, %v6153
        %v6155 = vpop.f32.mrb[0].mxu0
        %v6156 = vadd.f32 %v5882, %v6155
        %v6157 = vpop.f32.mrb[0].mxu0
        %v6158 = vadd.f32 %v5886, %v6157
        %6159 = vdwg.mxu0
        %v6160 = vmax.f32 %v6002, 0.0
        %v6161 = vmax.f32 %v6004, 0.0
        %v6162 = vmax.f32 %v6006, 0.0
        %v6163 = vmax.f32 %v6008, 0.0
        %v6164 = vmax.f32 %v6012, 0.0
        %v6165 = vmax.f32 %v6014, 0.0
        %v6166 = vmax.f32 %v6016, 0.0
        %v6167 = vmax.f32 %v6018, 0.0
        %v6168 = vmax.f32 %v6022, 0.0
        %v6169 = vmax.f32 %v6024, 0.0
        %v6170 = vmax.f32 %v6026, 0.0
        %v6171 = vmax.f32 %v6028, 0.0
        %v6172 = vmax.f32 %v6032, 0.0
        %v6173 = vmax.f32 %v6034, 0.0
        %v6174 = vmax.f32 %v6036, 0.0
        %v6175 = vmax.f32 %v6038, 0.0
        %v6176 = vmax.f32 %v6042, 0.0
        %v6177 = vmax.f32 %v6044, 0.0
        %v6178 = vmax.f32 %v6046, 0.0
        %v6179 = vmax.f32 %v6048, 0.0
        %v6180 = vmax.f32 %v6052, 0.0
        %v6181 = vmax.f32 %v6054, 0.0
        %v6182 = vmax.f32 %v6056, 0.0
        %v6183 = vmax.f32 %v6058, 0.0
        %v6184 = vmax.f32 %v6062, 0.0
        %v6185 = vmax.f32 %v6064, 0.0
        %v6186 = vmax.f32 %v6066, 0.0
        %v6187 = vmax.f32 %v6068, 0.0
        %v6188 = vmax.f32 %v6072, 0.0
        %v6189 = vmax.f32 %v6074, 0.0
        %v6190 = vmax.f32 %v6076, 0.0
        %v6191 = vmax.f32 %v6078, 0.0
        %v6192 = vmax.f32 %v6082, 0.0
        %v6193 = vmax.f32 %v6084, 0.0
        %v6194 = vmax.f32 %v6086, 0.0
        %v6195 = vmax.f32 %v6088, 0.0
        %v6196 = vmax.f32 %v6092, 0.0
        %v6197 = vmax.f32 %v6094, 0.0
        %v6198 = vmax.f32 %v6096, 0.0
        %v6199 = vmax.f32 %v6098, 0.0
        %v6200 = vmax.f32 %v6102, 0.0
        %v6201 = vmax.f32 %v6104, 0.0
        %v6202 = vmax.f32 %v6106, 0.0
        %v6203 = vmax.f32 %v6108, 0.0
        %v6204 = vmax.f32 %v6112, 0.0
        %v6205 = vmax.f32 %v6114, 0.0
        %v6206 = vmax.f32 %v6116, 0.0
        %v6207 = vmax.f32 %v6118, 0.0
        %v6208 = vmax.f32 %v6122, 0.0
        %v6209 = vmax.f32 %v6124, 0.0
        %v6210 = vmax.f32 %v6126, 0.0
        %v6211 = vmax.f32 %v6128, 0.0
        %v6212 = vmax.f32 %v6132, 0.0
        %v6213 = vmax.f32 %v6134, 0.0
        %v6214 = vmax.f32 %v6136, 0.0
        %v6215 = vmax.f32 %v6138, 0.0
        %v6216 = vmax.f32 %v6142, 0.0
        %v6217 = vmax.f32 %v6144, 0.0
        %v6218 = vmax.f32 %v6146, 0.0
        %v6219 = vmax.f32 %v6148, 0.0
        %v6220 = vmax.f32 %v6152, 0.0
        %v6221 = vmax.f32 %v6154, 0.0
        %v6222 = vmax.f32 %v6156, 0.0
        %v6223 = vmax.f32 %v6158, 0.0
        %v6224 = vpack.c.bf16 %v6162, %v6160
        %v6225 = vpack.c.bf16 %v6163, %v6161
        %v6226 = vpack.c.bf16 %v6166, %v6164
        %v6227 = vpack.c.bf16 %v6167, %v6165
        %v6228 = vpack.c.bf16 %v6170, %v6168
        %v6229 = vpack.c.bf16 %v6171, %v6169
        %v6230 = vpack.c.bf16 %v6174, %v6172
        %v6231 = vpack.c.bf16 %v6175, %v6173
        %v6232 = vpack.c.bf16 %v6178, %v6176
        %v6233 = vpack.c.bf16 %v6179, %v6177
        %v6234 = vpack.c.bf16 %v6182, %v6180
        %v6235 = vpack.c.bf16 %v6183, %v6181
        %v6236 = vpack.c.bf16 %v6186, %v6184
        %v6237 = vpack.c.bf16 %v6187, %v6185
        %v6238 = vpack.c.bf16 %v6190, %v6188
        %v6239 = vpack.c.bf16 %v6191, %v6189
        %v6240 = vpack.c.bf16 %v6194, %v6192
        %v6241 = vpack.c.bf16 %v6195, %v6193
        %v6242 = vpack.c.bf16 %v6198, %v6196
        %v6243 = vpack.c.bf16 %v6199, %v6197
        %v6244 = vpack.c.bf16 %v6202, %v6200
        %v6245 = vpack.c.bf16 %v6203, %v6201
        %v6246 = vpack.c.bf16 %v6206, %v6204
        %v6247 = vpack.c.bf16 %v6207, %v6205
        %v6248 = vpack.c.bf16 %v6210, %v6208
        %v6249 = vpack.c.bf16 %v6211, %v6209
        %v6250 = vpack.c.bf16 %v6214, %v6212
        %v6251 = vpack.c.bf16 %v6215, %v6213
        %v6252 = vpack.c.bf16 %v6218, %v6216
        %v6253 = vpack.c.bf16 %v6219, %v6217
        %v6254 = vpack.c.bf16 %v6222, %v6220
        %v6255 = vpack.c.bf16 %v6223, %v6221
        %v6256 = vld [vmem:[%s372] sm:$0xf]
        %v6257 = vld [vmem:[%s372 + $0x4] sm:$0xf]
        %v6258 = vld [vmem:[%s372 + $0x8] sm:$0xf]
        %v6259 = vld [vmem:[%s372 + $0xc] sm:$0xf]
        %v6260 = vld [vmem:[%s372 + $0x10] sm:$0xf]
        %v6261 = vld [vmem:[%s372 + $0x14] sm:$0xf]
        %v6262 = vld [vmem:[%s372 + $0x18] sm:$0xf]
        %v6263 = vld [vmem:[%s372 + $0x1c] sm:$0xf]
        %v6264 = vld [vmem:[%s372 + $0x20] sm:$0xf]
        %v6265 = vld [vmem:[%s372 + $0x24] sm:$0xf]
        %v6266 = vld [vmem:[%s372 + $0x28] sm:$0xf]
        %v6267 = vld [vmem:[%s372 + $0x2c] sm:$0xf]
        %v6268 = vld [vmem:[%s372 + $0x30] sm:$0xf]
        %v6269 = vld [vmem:[%s372 + $0x34] sm:$0xf]
        %v6270 = vld [vmem:[%s372 + $0x38] sm:$0xf]
        %v6271 = vld [vmem:[%s372 + $0x3c] sm:$0xf]
        %v6272 = vld [vmem:[%s372 + $0x40] sm:$0xf]
        %v6273 = vld [vmem:[%s372 + $0x44] sm:$0xf]
        %v6274 = vld [vmem:[%s372 + $0x48] sm:$0xf]
        %v6275 = vld [vmem:[%s372 + $0x4c] sm:$0xf]
        %v6276 = vld [vmem:[%s372 + $0x50] sm:$0xf]
        %v6277 = vld [vmem:[%s372 + $0x54] sm:$0xf]
        %v6278 = vld [vmem:[%s372 + $0x58] sm:$0xf]
        %v6279 = vld [vmem:[%s372 + $0x5c] sm:$0xf]
        %v6280 = vld [vmem:[%s372 + $0x60] sm:$0xf]
        %v6281 = vld [vmem:[%s372 + $0x64] sm:$0xf]
        %v6282 = vld [vmem:[%s372 + $0x68] sm:$0xf]
        %v6283 = vld [vmem:[%s372 + $0x6c] sm:$0xf]
        %v6284 = vld [vmem:[%s372 + $0x70] sm:$0xf]
        %v6285 = vld [vmem:[%s372 + $0x74] sm:$0xf]
        %v6286 = vld [vmem:[%s372 + $0x78] sm:$0xf]
        %v6287 = vld [vmem:[%s372 + $0x7c] sm:$0xf]
        %v6288 = vlaneseq
        %v6289 = vshrl.u32 %v6288, 7
        %v6290 = vsub.s32 5, %v6289
        %v6291 = vrot.slane %v494, %v6290
        %v6324 = vunpack.c.l.b16 %v6256
        %v6325 = vunpack.c.l.b16 %v6257
        %v6326 = vunpack.c.l.b16 %v6258
        %v6327 = vunpack.c.l.b16 %v6259
        %v6328 = vunpack.c.l.b16 %v6260
        %v6329 = vunpack.c.l.b16 %v6261
        %v6330 = vunpack.c.l.b16 %v6262
        %v6331 = vunpack.c.l.b16 %v6263
        %v6332 = vunpack.c.l.b16 %v6264
        %v6333 = vunpack.c.l.b16 %v6265
        %v6334 = vunpack.c.l.b16 %v6266
        %v6335 = vunpack.c.l.b16 %v6267
        %v6336 = vunpack.c.l.b16 %v6268
        %v6337 = vunpack.c.l.b16 %v6269
        %v6338 = vunpack.c.l.b16 %v6270
        %v6339 = vunpack.c.l.b16 %v6271
        %v6340 = vunpack.c.l.b16 %v6272
        %v6341 = vunpack.c.l.b16 %v6273
        %v6342 = vunpack.c.l.b16 %v6274
        %v6343 = vunpack.c.l.b16 %v6275
        %v6344 = vunpack.c.l.b16 %v6276
        %v6345 = vunpack.c.l.b16 %v6277
        %v6346 = vunpack.c.l.b16 %v6278
        %v6347 = vunpack.c.l.b16 %v6279
        %v6348 = vunpack.c.l.b16 %v6280
        %v6349 = vunpack.c.l.b16 %v6281
        %v6350 = vunpack.c.l.b16 %v6282
        %v6351 = vunpack.c.l.b16 %v6283
        %v6352 = vunpack.c.l.b16 %v6284
        %v6353 = vunpack.c.l.b16 %v6285
        %v6354 = vunpack.c.l.b16 %v6286
        %v6355 = vunpack.c.l.b16 %v6287
        %v6356 = vpack.c.b16 %v6325, %v6324
        %v6357 = vpack.c.b16 %v6327, %v6326
        %v6358 = vpack.c.b16 %v6329, %v6328
        %v6359 = vpack.c.b16 %v6331, %v6330
        %v6360 = vpack.c.b16 %v6333, %v6332
        %v6361 = vpack.c.b16 %v6335, %v6334
        %v6362 = vpack.c.b16 %v6337, %v6336
        %v6363 = vpack.c.b16 %v6339, %v6338
        %v6364 = vpack.c.b16 %v6341, %v6340
        %v6365 = vpack.c.b16 %v6343, %v6342
        %v6366 = vpack.c.b16 %v6345, %v6344
        %v6367 = vpack.c.b16 %v6347, %v6346
        %v6368 = vpack.c.b16 %v6349, %v6348
        %v6369 = vpack.c.b16 %v6351, %v6350
        %v6370 = vpack.c.b16 %v6353, %v6352
        %v6371 = vpack.c.b16 %v6355, %v6354
        %6388 = vmatprep.subr.bf16.mxu0 0
        %6389 = vmatpush1.bf16.msra.mxu0 %v6356
        %6390 = vmatprep.subr.bf16.mxu0 0
        %6391 = vmatpush1.bf16.msra.mxu0 %v6357
        %6392 = vmatprep.subr.bf16.mxu0 0
        %6393 = vmatpush1.bf16.msra.mxu0 %v6358
        %6394 = vmatprep.subr.bf16.mxu0 0
        %6395 = vmatpush1.bf16.msra.mxu0 %v6359
        %6396 = vmatprep.subr.bf16.mxu0 0
        %6397 = vmatpush1.bf16.msra.mxu0 %v6360
        %6398 = vmatprep.subr.bf16.mxu0 0
        %6399 = vmatpush1.bf16.msra.mxu0 %v6361
        %6400 = vmatprep.subr.bf16.mxu0 0
        %6401 = vmatpush1.bf16.msra.mxu0 %v6362
        %6402 = vmatprep.subr.bf16.mxu0 0
        %6403 = vmatpush1.bf16.msra.mxu0 %v6363
        %6404 = vmatprep.subr.bf16.mxu0 0
        %6405 = vmatpush1.bf16.msra.mxu0 %v6364
        %6406 = vmatprep.subr.bf16.mxu0 0
        %6407 = vmatpush1.bf16.msra.mxu0 %v6365
        %6408 = vmatprep.subr.bf16.mxu0 0
        %6409 = vmatpush1.bf16.msra.mxu0 %v6366
        %6410 = vmatprep.subr.bf16.mxu0 0
        %6411 = vmatpush1.bf16.msra.mxu0 %v6367
        %6412 = vmatprep.subr.bf16.mxu0 0
        %6413 = vmatpush1.bf16.msra.mxu0 %v6368
        %6414 = vmatprep.subr.bf16.mxu0 0
        %6415 = vmatpush1.bf16.msra.mxu0 %v6369
        %6416 = vmatprep.subr.bf16.mxu0 0
        %6417 = vmatpush1.bf16.msra.mxu0 %v6370
        %6418 = vmatprep.subr.bf16.mxu0 0
        %6419 = vmatpush1.bf16.msra.mxu0 %v6371
        %6420 = vmatprep.mubr.bf16.mxu0 %v6225
        %6421 = vmatmul.mubr.bf16.gmra.mrb[0].mxu0 %v6224
        %v6422 = vpop.f32.mrb[0].mxu0
        %v6423 = vadd.f32 %v6291, %v6422
        %v6424 = vpop.f32.mrb[0].mxu0
        %v6425 = vpop.f32.mrb[0].mxu0
        %v6426 = vadd.f32 %v6291, %v6425
        %v6427 = vpop.f32.mrb[0].mxu0
        %6428 = vmatprep.mubr.bf16.mxu0 %v6227
        %6429 = vmatmul.mubr.bf16.gmra.mrb[0].mxu0 %v6226
        %v6430 = vpop.f32.mrb[0].mxu0
        %v6431 = vadd.f32 %v6291, %v6430
        %v6432 = vpop.f32.mrb[0].mxu0
        %v6433 = vpop.f32.mrb[0].mxu0
        %v6434 = vadd.f32 %v6291, %v6433
        %v6435 = vpop.f32.mrb[0].mxu0
        %6436 = vmatprep.mubr.bf16.mxu0 %v6229
        %6437 = vmatmul.mubr.bf16.gmra.mrb[0].mxu0 %v6228
        %v6438 = vpop.f32.mrb[0].mxu0
        %v6439 = vadd.f32 %v6291, %v6438
        %v6440 = vpop.f32.mrb[0].mxu0
        %v6441 = vpop.f32.mrb[0].mxu0
        %v6442 = vadd.f32 %v6291, %v6441
        %v6443 = vpop.f32.mrb[0].mxu0
        %6444 = vmatprep.mubr.bf16.mxu0 %v6231
        %6445 = vmatmul.mubr.bf16.gmra.mrb[0].mxu0 %v6230
        %v6446 = vpop.f32.mrb[0].mxu0
        %v6447 = vadd.f32 %v6291, %v6446
        %v6448 = vpop.f32.mrb[0].mxu0
        %v6449 = vpop.f32.mrb[0].mxu0
        %v6450 = vadd.f32 %v6291, %v6449
        %v6451 = vpop.f32.mrb[0].mxu0
        %6452 = vmatprep.mubr.bf16.mxu0 %v6233
        %6453 = vmatmul.mubr.bf16.gmra.mrb[0].mxu0 %v6232
        %v6454 = vpop.f32.mrb[0].mxu0
        %v6455 = vadd.f32 %v6291, %v6454
        %v6456 = vpop.f32.mrb[0].mxu0
        %v6457 = vpop.f32.mrb[0].mxu0
        %v6458 = vadd.f32 %v6291, %v6457
        %v6459 = vpop.f32.mrb[0].mxu0
        %6460 = vmatprep.mubr.bf16.mxu0 %v6235
        %6461 = vmatmul.mubr.bf16.gmra.mrb[0].mxu0 %v6234
        %v6462 = vpop.f32.mrb[0].mxu0
        %v6463 = vadd.f32 %v6291, %v6462
        %v6464 = vpop.f32.mrb[0].mxu0
        %v6465 = vpop.f32.mrb[0].mxu0
        %v6466 = vadd.f32 %v6291, %v6465
        %v6467 = vpop.f32.mrb[0].mxu0
        %6468 = vmatprep.mubr.bf16.mxu0 %v6237
        %6469 = vmatmul.mubr.bf16.gmra.mrb[0].mxu0 %v6236
        %v6470 = vpop.f32.mrb[0].mxu0
        %v6471 = vadd.f32 %v6291, %v6470
        %v6472 = vpop.f32.mrb[0].mxu0
        %v6473 = vpop.f32.mrb[0].mxu0
        %v6474 = vadd.f32 %v6291, %v6473
        %v6475 = vpop.f32.mrb[0].mxu0
        %6476 = vmatprep.mubr.bf16.mxu0 %v6239
        %6477 = vmatmul.mubr.bf16.gmra.mrb[0].mxu0 %v6238
        %v6478 = vpop.f32.mrb[0].mxu0
        %v6479 = vadd.f32 %v6291, %v6478
        %v6480 = vpop.f32.mrb[0].mxu0
        %v6481 = vpop.f32.mrb[0].mxu0
        %v6482 = vadd.f32 %v6291, %v6481
        %v6483 = vpop.f32.mrb[0].mxu0
        %6484 = vmatprep.mubr.bf16.mxu0 %v6241
        %6485 = vmatmul.mubr.bf16.gmra.mrb[0].mxu0 %v6240
        %v6486 = vpop.f32.mrb[0].mxu0
        %v6487 = vadd.f32 %v6291, %v6486
        %v6488 = vpop.f32.mrb[0].mxu0
        %v6489 = vpop.f32.mrb[0].mxu0
        %v6490 = vadd.f32 %v6291, %v6489
        %v6491 = vpop.f32.mrb[0].mxu0
        %6492 = vmatprep.mubr.bf16.mxu0 %v6243
        %6493 = vmatmul.mubr.bf16.gmra.mrb[0].mxu0 %v6242
        %v6494 = vpop.f32.mrb[0].mxu0
        %v6495 = vadd.f32 %v6291, %v6494
        %v6496 = vpop.f32.mrb[0].mxu0
        %v6497 = vpop.f32.mrb[0].mxu0
        %v6498 = vadd.f32 %v6291, %v6497
        %v6499 = vpop.f32.mrb[0].mxu0
        %6500 = vmatprep.mubr.bf16.mxu0 %v6245
        %6501 = vmatmul.mubr.bf16.gmra.mrb[0].mxu0 %v6244
        %v6502 = vpop.f32.mrb[0].mxu0
        %v6503 = vadd.f32 %v6291, %v6502
        %v6504 = vpop.f32.mrb[0].mxu0
        %v6505 = vpop.f32.mrb[0].mxu0
        %v6506 = vadd.f32 %v6291, %v6505
        %v6507 = vpop.f32.mrb[0].mxu0
        %6508 = vmatprep.mubr.bf16.mxu0 %v6247
        %6509 = vmatmul.mubr.bf16.gmra.mrb[0].mxu0 %v6246
        %v6510 = vpop.f32.mrb[0].mxu0
        %v6511 = vadd.f32 %v6291, %v6510
        %v6512 = vpop.f32.mrb[0].mxu0
        %v6513 = vpop.f32.mrb[0].mxu0
        %v6514 = vadd.f32 %v6291, %v6513
        %v6515 = vpop.f32.mrb[0].mxu0
        %6516 = vmatprep.mubr.bf16.mxu0 %v6249
        %6517 = vmatmul.mubr.bf16.gmra.mrb[0].mxu0 %v6248
        %v6518 = vpop.f32.mrb[0].mxu0
        %v6519 = vadd.f32 %v6291, %v6518
        %v6520 = vpop.f32.mrb[0].mxu0
        %v6521 = vpop.f32.mrb[0].mxu0
        %v6522 = vadd.f32 %v6291, %v6521
        %v6523 = vpop.f32.mrb[0].mxu0
        %6524 = vmatprep.mubr.bf16.mxu0 %v6251
        %6525 = vmatmul.mubr.bf16.gmra.mrb[0].mxu0 %v6250
        %v6526 = vpop.f32.mrb[0].mxu0
        %v6527 = vadd.f32 %v6291, %v6526
        %v6528 = vpop.f32.mrb[0].mxu0
        %v6529 = vpop.f32.mrb[0].mxu0
        %v6530 = vadd.f32 %v6291, %v6529
        %v6531 = vpop.f32.mrb[0].mxu0
        %6532 = vmatprep.mubr.bf16.mxu0 %v6253
        %6533 = vmatmul.mubr.bf16.gmra.mrb[0].mxu0 %v6252
        %v6534 = vpop.f32.mrb[0].mxu0
        %v6535 = vadd.f32 %v6291, %v6534
        %v6536 = vpop.f32.mrb[0].mxu0
        %v6537 = vpop.f32.mrb[0].mxu0
        %v6538 = vadd.f32 %v6291, %v6537
        %v6539 = vpop.f32.mrb[0].mxu0
        %6540 = vmatprep.mubr.bf16.mxu0 %v6255
        %6541 = vmatmul.mubr.bf16.gmra.mrb[0].mxu0 %v6254
        %v6542 = vpop.f32.mrb[0].mxu0
        %v6543 = vadd.f32 %v6291, %v6542
        %v6544 = vpop.f32.mrb[0].mxu0
        %v6545 = vpop.f32.mrb[0].mxu0
        %v6546 = vadd.f32 %v6291, %v6545
        %v6547 = vpop.f32.mrb[0].mxu0
        %6548 = vdwg.mxu0
        %v6549 = vadd.f32 %v5815, %v6423
        %v6550 = vadd.f32 %v5816, %v6426
        %v6551 = vadd.f32 %v5817, %v6431
        %v6552 = vadd.f32 %v5818, %v6434
        %v6553 = vadd.f32 %v5819, %v6439
        %v6554 = vadd.f32 %v5820, %v6442
        %v6555 = vadd.f32 %v5821, %v6447
        %v6556 = vadd.f32 %v5822, %v6450
        %v6557 = vadd.f32 %v5823, %v6455
        %v6558 = vadd.f32 %v5824, %v6458
        %v6559 = vadd.f32 %v5825, %v6463
        %v6560 = vadd.f32 %v5826, %v6466
        %v6561 = vadd.f32 %v5827, %v6471
        %v6562 = vadd.f32 %v5828, %v6474
        %v6563 = vadd.f32 %v5829, %v6479
        %v6564 = vadd.f32 %v5830, %v6482
        %v6565 = vadd.f32 %v5831, %v6487
        %v6566 = vadd.f32 %v5832, %v6490
        %v6567 = vadd.f32 %v5833, %v6495
        %v6568 = vadd.f32 %v5834, %v6498
        %v6569 = vadd.f32 %v5835, %v6503
        %v6570 = vadd.f32 %v5836, %v6506
        %v6571 = vadd.f32 %v5837, %v6511
        %v6572 = vadd.f32 %v5838, %v6514
        %v6573 = vadd.f32 %v5839, %v6519
        %v6574 = vadd.f32 %v5840, %v6522
        %v6575 = vadd.f32 %v5841, %v6527
        %v6576 = vadd.f32 %v5842, %v6530
        %v6577 = vadd.f32 %v5843, %v6535
        %v6578 = vadd.f32 %v5844, %v6538
        %v6579 = vadd.f32 %v5845, %v6543
        %v6580 = vadd.f32 %v5846, %v6546
        %6581 = vst [vmem:[#allocation13] sm:$0xff] %v6549
        %6582 = vst [vmem:[#allocation13 + $0x8] sm:$0xff] %v6550
        %6583 = vst [vmem:[#allocation13 + $0x10] sm:$0xff] %v6551
        %6584 = vst [vmem:[#allocation13 + $0x18] sm:$0xff] %v6552
        %6585 = vst [vmem:[#allocation13 + $0x20] sm:$0xff] %v6553
        %6586 = vst [vmem:[#allocation13 + $0x28] sm:$0xff] %v6554
        %6587 = vst [vmem:[#allocation13 + $0x30] sm:$0xff] %v6555
        %6588 = vst [vmem:[#allocation13 + $0x38] sm:$0xff] %v6556
        %6589 = vst [vmem:[#allocation13 + $0x40] sm:$0xff] %v6557
        %6590 = vst [vmem:[#allocation13 + $0x48] sm:$0xff] %v6558
        %6591 = vst [vmem:[#allocation13 + $0x50] sm:$0xff] %v6559
        %6592 = vst [vmem:[#allocation13 + $0x58] sm:$0xff] %v6560
        %6593 = vst [vmem:[#allocation13 + $0x60] sm:$0xff] %v6561
        %6594 = vst [vmem:[#allocation13 + $0x68] sm:$0xff] %v6562
        %6595 = vst [vmem:[#allocation13 + $0x70] sm:$0xff] %v6563
        %6596 = vst [vmem:[#allocation13 + $0x78] sm:$0xff] %v6564
        %6597 = vst [vmem:[#allocation13 + $0x80] sm:$0xff] %v6565
        %6598 = vst [vmem:[#allocation13 + $0x88] sm:$0xff] %v6566
        %6599 = vst [vmem:[#allocation13 + $0x90] sm:$0xff] %v6567
        %6600 = vst [vmem:[#allocation13 + $0x98] sm:$0xff] %v6568
        %6601 = vst [vmem:[#allocation13 + $0xa0] sm:$0xff] %v6569
        %6602 = vst [vmem:[#allocation13 + $0xa8] sm:$0xff] %v6570
        %6603 = vst [vmem:[#allocation13 + $0xb0] sm:$0xff] %v6571
        %6604 = vst [vmem:[#allocation13 + $0xb8] sm:$0xff] %v6572
        %6605 = vst [vmem:[#allocation13 + $0xc0] sm:$0xff] %v6573
        %6606 = vst [vmem:[#allocation13 + $0xc8] sm:$0xff] %v6574
        %6607 = vst [vmem:[#allocation13 + $0xd0] sm:$0xff] %v6575
        %6608 = vst [vmem:[#allocation13 + $0xd8] sm:$0xff] %v6576
        %6609 = vst [vmem:[#allocation13 + $0xe0] sm:$0xff] %v6577
        %6610 = vst [vmem:[#allocation13 + $0xe8] sm:$0xff] %v6578
        %6611 = vst [vmem:[#allocation13 + $0xf0] sm:$0xff] %v6579
        %6612 = vst [vmem:[#allocation13 + $0xf8] sm:$0xff] %v6580
        // Predicated region
        $region73: #{tpu_custom_call.1} parent=43 // pred_check
          %p6613 = pneg %p192
        $region74: #{tpu_custom_call.1} parent=43 // pred_check_branch
          %6615 = sbr.rel (%p6613) target = $region76
        $region75: #{tpu_custom_call.1} parent=43 // pred_region
          %s6617 = ssub.s32 4096, 4096
          %6618 = vsyncadd [#allocation4], %s6617
          %s6619 = sshll.u32 [#allocation13], 4
          %s6620 = int_to_ptr.vmem [resolvable:$true] %s6619
          %6625 = dma.vmem_to_hbm [thread:$0]  %s6620, 4096, %s6, [#allocation4], 128, 128, 8
        $region76: #{tpu_custom_call.1} parent=43 // pred_fallthru
          _
        // Predicated region
        $region77: #{tpu_custom_call.1} parent=43 // pred_check
          %p6626 = pneg %p192
        $region78: #{tpu_custom_call.1} parent=43 // pred_check_branch
          %6628 = sbr.rel (%p6626) target = $region80
        $region79: #{tpu_custom_call.1} parent=43 // pred_region
          %6629 = dma.done [#allocation4], 4096
        $region80: #{tpu_custom_call.1} parent=43 // pred_fallthru
          _
      $region44: #{tpu_custom_call.1} parent=5 // pred_fallthru
        _
      %p6630 = scmp.le.s32.totalorder 2, %s23
      // Predicated region
      $region81: #{tpu_custom_call.1} parent=5 // pred_check
        %p6631 = pneg %p6630
      $region82: #{tpu_custom_call.1} parent=5 // pred_check_branch
        %6633 = sbr.rel (%p6631) target = $region84
      $region83: #{tpu_custom_call.1} parent=5 // pred_region
        %s6634 = ssub.s32 %s23, 2
      $region84: #{tpu_custom_call.1} parent=5 // pred_fallthru
        _
    $region6: #{tpu_custom_call.1} parent=1 // loop_footer
      %s27 = sadd.s32 1, %s23
    $region7: #{tpu_custom_call.1} parent=1 // loop_footer_branch
      %22 = sbr.rel target = $region3
    $region8: #{tpu_custom_call.1} parent=1 // loop_exit
      _
    %6635 = vsyncpa [#allocation3], 1
    %s6636 = scalar_lea.sflag [#allocation3], 1
    %6637 = vsyncpa %s6636, 1
    %6638 = vsyncpa [#allocation6], 1
    %s6639 = scalar_lea.sflag [#allocation6], 1
    %6640 = vsyncpa %s6639, 1
    %6641 = vsyncpa [#allocation9], 1
    %s6642 = scalar_lea.sflag [#allocation9], 1
    %6643 = vsyncpa %s6642, 1
    %6644 = vsyncpa [#allocation12], 1
    %s6645 = scalar_lea.sflag [#allocation12], 1
    %6646 = vsyncpa %s6645, 1
    %6647 = vsyncpa [#allocation4], 1
    %s6648 = scalar_lea.sflag [#allocation4], 1
    %6649 = vsyncpa %s6648, 1

</llo_original>
